<compile_context>
chip_gen: v7x
topology: tpu7x:2x2x1
jax: 0.10.0
libtpu: 0.0.40
codegen_flags: <defaults>
</compile_context>

<pallas_src>
import jax
import jax.numpy as jnp
from jax import lax
from jax.experimental import pallas as pl
from jax.experimental.pallas import tpu as pltpu

_SMEM = pltpu.MemorySpace.SMEM

# Stretched-slab lengths for a 30x30 input (lane index r = h*30 + w).
_L_Y1 = 838   # conv1 rows needed downstream (reads x lanes up to 837 + 62 = 899)
_L_MW = 837   # after max over the pool-w direction
_L_MH = 807   # pooled value of (h', w') sits at lane 60*h' + 2*w'
_L_Y2 = 683   # conv2 rows needed downstream (reads mh lanes up to 682 + 124 = 806)
_L_NW = 681
_L_NH = 621   # pooled2 value of (h'', w'') sits at lane 120*h'' + 4*w''

_G = 8        # images per conv_stack grid step


# ----------------------------- Pallas kernels -----------------------------

def _conv_stack_kernel(x_ref, w1_ref, b1_ref, w2_ref, b2_ref, sel_ref, alpha_ref,
                       f_ref):
    """G images per grid step: conv1 -> PReLU -> pool -> conv2 -> PReLU -> pool
    -> gather of the 36 valid pooled positions.  Channels on sublanes, stretched
    spatial rows on lanes (dense vregs)."""
    a = alpha_ref[0, 0]
    w1 = w1_ref[...]                                    # (8, 9)
    b1 = b1_ref[...]                                    # (8, 1)
    w2 = w2_ref[...]                                    # (16, 72)
    b2 = b2_ref[...]                                    # (16, 1)
    G = f_ref.shape[0]

    nh_all = []
    for g in range(G):
        x = x_ref[g:g + 1, :]                           # (1, 900), lane = h*30 + w

        # conv1 (1->8, k=3): 9 lane-shifted broadcast FMAs on the VPU.
        y1 = jnp.zeros((8, _L_Y1), jnp.float32)
        for kh in range(3):
            for kw in range(3):
                t = kh * 3 + kw
                off = kh * 30 + kw
                y1 = y1 + w1[:, t:t + 1] * x[:, off:off + _L_Y1]
        y1 = y1 + b1
        y1 = jnp.where(y1 > 0, y1, a * y1)              # PReLU (shared alpha)

        # 2x2 / stride-2 max-pool as two lane-shift max passes;
        # pooled (h',w') -> lane 60h' + 2w'.
        mw = jnp.maximum(y1[:, :_L_MW], y1[:, 1:1 + _L_MW])
        mh = jnp.maximum(mw[:, :_L_MH], mw[:, 30:30 + _L_MH])

        # conv2 (8->16, k=3): fuse the 9 taps into one K=72 MXU matmul.
        mh_cat = jnp.concatenate(
            [mh[:, kh * 60 + kw * 2: kh * 60 + kw * 2 + _L_Y2]
             for kh in range(3) for kw in range(3)], axis=0)        # (72, 683)
        y2 = jnp.dot(w2, mh_cat, preferred_element_type=jnp.float32) + b2
        y2 = jnp.where(y2 > 0, y2, a * y2)              # PReLU

        # second 2x2 / stride-2 max-pool; pooled2 (h'',w'') -> lane 120h'' + 4w''.
        nw = jnp.maximum(y2[:, :_L_NW], y2[:, 2:2 + _L_NW])
        nh = jnp.maximum(nw[:, :_L_NH], nw[:, 60:60 + _L_NH])
        nh_all.append(nh)                               # (16, 621)

    # One selection matmul for all G images: (G*16, 621) @ (621, 36) on the MXU.
    nh_stack = jnp.concatenate(nh_all, axis=0)          # (G*16, 621)
    f = jnp.dot(nh_stack, sel_ref[...], preferred_element_type=jnp.float32)
    for g in range(G):
        f_ref[g] = f[g * 16:(g + 1) * 16, :]            # (16, 36) per image


def _head_kernel(f_ref, w1_ref, b1_ref, w2_ref, b2_ref, o_ref):
    # fc1 -> fc2 -> tanh -> log_softmax on a (tb, 576) batch tile.
    # TODO(synk): dropout (p=0.25 / p=0.5) is the identity at inference; omitted.
    h = jnp.dot(f_ref[...], w1_ref[...], preferred_element_type=jnp.float32) + b1_ref[...]
    z = jnp.dot(h, w2_ref[...], preferred_element_type=jnp.float32) + b2_ref[...]
    t = jnp.tanh(z)
    m = jnp.max(t, axis=-1, keepdims=True)
    lse = m + jnp.log(jnp.sum(jnp.exp(t - m), axis=-1, keepdims=True))
    o_ref[...] = t - lse                                # log_softmax(dim=1)


# ----------------------------- kernel wrappers -----------------------------

def conv_stack(x_slab, prep):
    """x_slab: (Bp, 900) with Bp a multiple of _G -> (Bp, 16, 36) pooled features."""
    Bp = x_slab.shape[0]
    assert Bp % _G == 0
    return pl.pallas_call(
        _conv_stack_kernel,
        out_shape=jax.ShapeDtypeStruct((Bp, 16, 36), jnp.float32),
        grid=(Bp // _G,),
        in_specs=[
            pl.BlockSpec((_G, 900), lambda b: (b, 0)),
            pl.BlockSpec((8, 9), lambda b: (0, 0)),
            pl.BlockSpec((8, 1), lambda b: (0, 0)),
            pl.BlockSpec((16, 72), lambda b: (0, 0)),
            pl.BlockSpec((16, 1), lambda b: (0, 0)),
            pl.BlockSpec((_L_NH, 36), lambda b: (0, 0)),
            pl.BlockSpec((1, 1), lambda b: (0, 0), memory_space=_SMEM),
        ],
        out_specs=pl.BlockSpec((_G, 16, 36), lambda b: (b, 0, 0)),
        compiler_params=pltpu.CompilerParams(dimension_semantics=("parallel",)),
    )(x_slab, prep["w1c"], prep["b1"], prep["w2c"], prep["b2"], prep["sel"],
      prep["alpha"])


def _pick_head_tile(Bp):
    # Largest multiple-of-8 divisor of Bp, capped at 512, preferring >= 2 grid steps
    # (keeps the head pipelined, both v7x TensorCores busy, and VMEM bounded).
    for cand in (512, 256, 128, 64, 32, 16, 8):
        if Bp % cand == 0 and Bp // cand >= 2:
            return cand
    return Bp


def head(feats, prep):
    Bp = feats.shape[0]
    tb = _pick_head_tile(Bp)
    return pl.pallas_call(
        _head_kernel,
        out_shape=jax.ShapeDtypeStruct((Bp, 10), jnp.float32),
        grid=(Bp // tb,),
        in_specs=[
            pl.BlockSpec((tb, 576), lambda i: (i, 0)),
            pl.BlockSpec((576, 128), lambda i: (0, 0)),
            pl.BlockSpec((1, 128), lambda i: (0, 0)),
            pl.BlockSpec((128, 10), lambda i: (0, 0)),
            pl.BlockSpec((1, 10), lambda i: (0, 0)),
        ],
        out_specs=pl.BlockSpec((tb, 10), lambda i: (i, 0)),
        compiler_params=pltpu.CompilerParams(dimension_semantics=("parallel",)),
    )(feats, prep["w1fc"], prep["b1fc"], prep["w2fc"], prep["b2fc"])


# ----------------------------- one-time weight prep -----------------------------

def prepare_params(params):
    """One-time layout prep: conv weights as (cout, taps*cin), fc weights transposed,
    and the one-hot pooled-position (lane) selector."""
    p36 = jnp.arange(36)
    rows = 120 * (p36 // 6) + 4 * (p36 % 6)             # stretched lane of (h'', w'')
    sel = (jnp.arange(_L_NH)[:, None] == rows[None, :]).astype(jnp.float32)  # (621,36)
    return {
        "w1c": params["conv1_w"].reshape(8, 9),                       # (co, kh*3+kw)
        "b1": params["conv1_b"].reshape(8, 1),
        "w2c": params["conv2_w"].transpose(0, 2, 3, 1).reshape(16, 72),  # (co, kh*24+kw*8+ci)
        "b2": params["conv2_b"].reshape(16, 1),
        "sel": sel,
        "alpha": jnp.asarray(params["prelu_a"], jnp.float32).reshape(1, 1),
        # conv_stack features come out in NCHW flatten order (c*36 + h*6 + w), which
        # is exactly the fc1 column order -> plain transpose, no permutation.
        "w1fc": params["fc1_w"].T,
        "b1fc": params["fc1_b"].reshape(1, 128),
        "w2fc": params["fc2_w"].T,
        "b2fc": params["fc2_b"].reshape(1, 10),
    }


# ----------------------------- full forward -----------------------------

def network_forward(x, prep):
    """x: (B, 1, 30, 30) float32 NCHW -> (B, 10) log-probs."""
    B = x.shape[0]
    assert x.shape[1:] == (1, 30, 30), "Network requires 1x30x30 inputs (576 flat feats)"
    Bp = ((B + _G - 1) // _G) * _G
    x_slab = x.reshape(B, 900)               # free bitcast: lane index = h*30 + w
    if Bp != B:
        x_slab = jnp.pad(x_slab, ((0, Bp - B), (0, 0)))
    feats = conv_stack(x_slab, prep)         # (Bp, 16, 36): [c, h*6+w] pooled features
    feats = feats.reshape(Bp, 576)           # free bitcast: NCHW order c*36 + h*6 + w
    out = head(feats, prep)                  # (Bp, 10)
    return out[:B]


# ----------------------------- pure-JAX reference -----------------------------

def reference_forward(x, params):
    a = params["prelu_a"]
    prelu = lambda v: jnp.where(v > 0, v, a * v)
    dn = ("NCHW", "OIHW", "NCHW")
    pool = lambda v: lax.reduce_window(
        v, -jnp.inf, lax.max, (1, 1, 2, 2), (1, 1, 2, 2), "VALID")

    y = lax.conv_general_dilated(x, params["conv1_w"], (1, 1), "VALID",
                                 dimension_numbers=dn)
    y = prelu(y + params["conv1_b"][None, :, None, None])
    y = pool(y)
    y = lax.conv_general_dilated(y, params["conv2_w"], (1, 1), "VALID",
                                 dimension_numbers=dn)
    y = prelu(y + params["conv2_b"][None, :, None, None])
    y = pool(y)
    y = y.reshape(y.shape[0], -1)                          # (B, 576), NCHW flatten
    y = y @ params["fc1_w"].T + params["fc1_b"]
    y = y @ params["fc2_w"].T + params["fc2_b"]
    y = jnp.tanh(y)
    return jax.nn.log_softmax(y, axis=1)


# ----------------------------- main -----------------------------

if __name__ == "__main__":
    key = jax.random.PRNGKey(0)
    ks = jax.random.split(key, 9)
    params = {
        "conv1_w": jax.random.normal(ks[0], (8, 1, 3, 3), jnp.float32) * 0.2,
        "conv1_b": jax.random.normal(ks[1], (8,), jnp.float32) * 0.1,
        "conv2_w": jax.random.normal(ks[2], (16, 8, 3, 3), jnp.float32) * 0.1,
        "conv2_b": jax.random.normal(ks[3], (16,), jnp.float32) * 0.1,
        "fc1_w": jax.random.normal(ks[4], (128, 576), jnp.float32) * 0.05,
        "fc1_b": jax.random.normal(ks[5], (128,), jnp.float32) * 0.05,
        "fc2_w": jax.random.normal(ks[6], (10, 128), jnp.float32) * 0.05,
        "fc2_b": jax.random.normal(ks[7], (10,), jnp.float32) * 0.05,
        # nn.PReLU() default: ONE shared alpha applied after both convs (as in forward()).
        "prelu_a": jnp.float32(0.25),
    }
    # 30x30 input => 16*6*6 = 576 flat features, as required by fc1.
    x = jax.random.normal(ks[8], (2, 1, 30, 30), jnp.float32)

    prep = prepare_params(params)            # one-time weight/layout prep
    out = jax.jit(network_forward)(x, prep)
    out = jax.block_until_ready(out)
    assert out.shape == (2, 10)

    ref = reference_forward(x, params)
    max_diff = float(jnp.max(jnp.abs(out - ref)))
    assert max_diff < 2e-3, f"mismatch vs reference: max|diff|={max_diff}"

    print("KERNEL_OK")
</pallas_src>

<mosaic_0001>
module attributes {stable_mosaic.version = 11 : i64} {
  func.func @_head_kernel(%arg0: i32, %arg1: memref<8x576xf32, #tpu.memory_space<vmem>>, %arg2: memref<576x128xf32, #tpu.memory_space<vmem>>, %arg3: memref<1x128xf32, #tpu.memory_space<vmem>>, %arg4: memref<128x10xf32, #tpu.memory_space<vmem>>, %arg5: memref<1x10xf32, #tpu.memory_space<vmem>>, %arg6: memref<8x10xf32, #tpu.memory_space<vmem>>) attributes {dimension_semantics = [#tpu.dimension_semantics<parallel>], iteration_bounds = array<i64: 1>, scalar_prefetch = 0 : i64, scratch_operands = 0 : i64, tpu.core_type = #tpu.core_type<tc>, window_params = [{transform_indices = @transform_0, window_bounds = array<i64: 8, 576>}, {pipeline_mode = #tpu.pipeline_mode<synchronous>, transform_indices = @transform_1, window_bounds = array<i64: 576, 128>}, {pipeline_mode = #tpu.pipeline_mode<synchronous>, transform_indices = @transform_2, window_bounds = array<i64: 1, 128>}, {pipeline_mode = #tpu.pipeline_mode<synchronous>, transform_indices = @transform_3, window_bounds = array<i64: 128, 10>}, {pipeline_mode = #tpu.pipeline_mode<synchronous>, transform_indices = @transform_4, window_bounds = array<i64: 1, 10>}, {transform_indices = @transform_5, window_bounds = array<i64: 8, 10>}]} {
    %c0 = arith.constant 0 : index
    %c0_0 = arith.constant 0 : index
    %0 = vector.load %arg1[%c0, %c0_0] : memref<8x576xf32, #tpu.memory_space<vmem>>, vector<8x576xf32>
    %c0_1 = arith.constant 0 : index
    %c0_2 = arith.constant 0 : index
    %1 = vector.load %arg2[%c0_1, %c0_2] : memref<576x128xf32, #tpu.memory_space<vmem>>, vector<576x128xf32>
    %cst = arith.constant dense<0.000000e+00> : vector<8x128xf32>
    %2 = tpu.matmul %0, %1, %cst {dimension_numbers = #tpu.dot_dimension_numbers<[1], [0], [0], [1], [0, 0, 1, 1], [], []>} : vector<8x576xf32>, vector<576x128xf32>, vector<8x128xf32> -> vector<8x128xf32>
    %c0_3 = arith.constant 0 : index
    %c0_4 = arith.constant 0 : index
    %3 = vector.load %arg3[%c0_3, %c0_4] : memref<1x128xf32, #tpu.memory_space<vmem>>, vector<1x128xf32>
    %4 = vector.broadcast %3 : vector<1x128xf32> to vector<8x128xf32>
    %5 = arith.addf %2, %4 : vector<8x128xf32>
    %c0_5 = arith.constant 0 : index
    %c0_6 = arith.constant 0 : index
    %6 = vector.load %arg4[%c0_5, %c0_6] : memref<128x10xf32, #tpu.memory_space<vmem>>, vector<128x10xf32>
    %cst_7 = arith.constant dense<0.000000e+00> : vector<8x10xf32>
    %7 = tpu.matmul %5, %6, %cst_7 {dimension_numbers = #tpu.dot_dimension_numbers<[1], [0], [0], [1], [0, 0, 1, 1], [], []>} : vector<8x128xf32>, vector<128x10xf32>, vector<8x10xf32> -> vector<8x10xf32>
    %c0_8 = arith.constant 0 : index
    %c0_9 = arith.constant 0 : index
    %8 = vector.load %arg5[%c0_8, %c0_9] : memref<1x10xf32, #tpu.memory_space<vmem>>, vector<1x10xf32>
    %9 = vector.broadcast %8 : vector<1x10xf32> to vector<8x10xf32>
    %10 = arith.addf %7, %9 : vector<8x10xf32>
    %11 = math.tanh %10 : vector<8x10xf32>
    %cst_10 = arith.constant dense<0xFF800000> : vector<8xf32>
    %12 = vector.multi_reduction <maximumf>, %11, %cst_10 [1] : vector<8x10xf32> to vector<8xf32>
    %13 = vector.shape_cast %12 : vector<8xf32> to vector<8x1xf32>
    %14 = vector.broadcast %13 : vector<8x1xf32> to vector<8x10xf32>
    %15 = arith.subf %11, %14 : vector<8x10xf32>
    %16 = math.exp %15 : vector<8x10xf32>
    %cst_11 = arith.constant dense<0.000000e+00> : vector<8xf32>
    %17 = vector.multi_reduction <add>, %16, %cst_11 [1] : vector<8x10xf32> to vector<8xf32>
    %18 = vector.shape_cast %17 : vector<8xf32> to vector<8x1xf32>
    %19 = math.log %18 : vector<8x1xf32>
    %20 = arith.addf %13, %19 : vector<8x1xf32>
    %21 = vector.broadcast %20 : vector<8x1xf32> to vector<8x10xf32>
    %22 = arith.subf %11, %21 : vector<8x10xf32>
    %c0_12 = arith.constant 0 : index
    %c0_13 = arith.constant 0 : index
    %23 = vector.load %arg6[%c0_12, %c0_13] : memref<8x10xf32, #tpu.memory_space<vmem>>, vector<8x10xf32>
    tpu.vector_store %arg6[%c0_12, %c0_13], %22 {strides = array<i32>} : memref<8x10xf32, #tpu.memory_space<vmem>>, vector<8x10xf32>,
    return
  }
  func.func @transform_0(%arg0: i32) -> (i32, i32) {
    %c0_i32 = arith.constant 0 : i32
    %c0_i32_0 = arith.constant 0 : i32
    return %arg0, %c0_i32 : i32, i32
  }
  func.func @transform_1(%arg0: i32) -> (i32, i32) {
    %c0_i32 = arith.constant 0 : i32
    %c0_i32_0 = arith.constant 0 : i32
    %c0_i32_1 = arith.constant 0 : i32
    return %c0_i32, %c0_i32_0 : i32, i32
  }
  func.func @transform_2(%arg0: i32) -> (i32, i32) {
    %c0_i32 = arith.constant 0 : i32
    %c0_i32_0 = arith.constant 0 : i32
    %c0_i32_1 = arith.constant 0 : i32
    return %c0_i32, %c0_i32_0 : i32, i32
  }
  func.func @transform_3(%arg0: i32) -> (i32, i32) {
    %c0_i32 = arith.constant 0 : i32
    %c0_i32_0 = arith.constant 0 : i32
    %c0_i32_1 = arith.constant 0 : i32
    return %c0_i32, %c0_i32_0 : i32, i32
  }
  func.func @transform_4(%arg0: i32) -> (i32, i32) {
    %c0_i32 = arith.constant 0 : i32
    %c0_i32_0 = arith.constant 0 : i32
    %c0_i32_1 = arith.constant 0 : i32
    return %c0_i32, %c0_i32_0 : i32, i32
  }
  func.func @transform_5(%arg0: i32) -> (i32, i32) {
    %c0_i32 = arith.constant 0 : i32
    %c0_i32_0 = arith.constant 0 : i32
    return %arg0, %c0_i32 : i32, i32
  }
}

module attributes {stable_mosaic.version = 11 : i64} {
  func.func @_conv_stack_kernel(%arg0: i32, %arg1: memref<8x900xf32, #tpu.memory_space<vmem>>, %arg2: memref<8x9xf32, #tpu.memory_space<vmem>>, %arg3: memref<8x1xf32, #tpu.memory_space<vmem>>, %arg4: memref<16x72xf32, #tpu.memory_space<vmem>>, %arg5: memref<16x1xf32, #tpu.memory_space<vmem>>, %arg6: memref<621x36xf32, #tpu.memory_space<vmem>>, %arg7: memref<1x1xf32, #tpu.memory_space<smem>>, %arg8: memref<8x16x36xf32, #tpu.memory_space<vmem>>) attributes {dimension_semantics = [#tpu.dimension_semantics<parallel>], iteration_bounds = array<i64: 1>, scalar_prefetch = 0 : i64, scratch_operands = 0 : i64, tpu.core_type = #tpu.core_type<tc>, window_params = [{transform_indices = @transform_0, window_bounds = array<i64: 8, 900>}, {pipeline_mode = #tpu.pipeline_mode<synchronous>, transform_indices = @transform_1, window_bounds = array<i64: 8, 9>}, {pipeline_mode = #tpu.pipeline_mode<synchronous>, transform_indices = @transform_2, window_bounds = array<i64: 8, 1>}, {pipeline_mode = #tpu.pipeline_mode<synchronous>, transform_indices = @transform_3, window_bounds = array<i64: 16, 72>}, {pipeline_mode = #tpu.pipeline_mode<synchronous>, transform_indices = @transform_4, window_bounds = array<i64: 16, 1>}, {pipeline_mode = #tpu.pipeline_mode<synchronous>, transform_indices = @transform_5, window_bounds = array<i64: 621, 36>}, {transform_indices = @transform_6, window_bounds = array<i64: 1, 1>}, {transform_indices = @transform_7, window_bounds = array<i64: 8, 16, 36>}]} {
    %c0 = arith.constant 0 : index
    %c0_0 = arith.constant 0 : index
    %0 = memref.load %arg7[%c0, %c0_0] : memref<1x1xf32, #tpu.memory_space<smem>>
    %c0_1 = arith.constant 0 : index
    %c0_2 = arith.constant 0 : index
    %1 = vector.load %arg2[%c0_1, %c0_2] : memref<8x9xf32, #tpu.memory_space<vmem>>, vector<8x9xf32>
    %c0_3 = arith.constant 0 : index
    %c0_4 = arith.constant 0 : index
    %2 = vector.load %arg3[%c0_3, %c0_4] : memref<8x1xf32, #tpu.memory_space<vmem>>, vector<8x1xf32>
    %c0_5 = arith.constant 0 : index
    %c0_6 = arith.constant 0 : index
    %3 = vector.load %arg4[%c0_5, %c0_6] : memref<16x72xf32, #tpu.memory_space<vmem>>, vector<16x72xf32>
    %c0_7 = arith.constant 0 : index
    %c0_8 = arith.constant 0 : index
    %4 = vector.load %arg5[%c0_7, %c0_8] : memref<16x1xf32, #tpu.memory_space<vmem>>, vector<16x1xf32>
    %c0_9 = arith.constant 0 : index
    %c0_10 = arith.constant 0 : index
    %5 = vector.load %arg1[%c0_9, %c0_10] : memref<8x900xf32, #tpu.memory_space<vmem>>, vector<1x900xf32>
    %cst = arith.constant 0.000000e+00 : f32
    %6 = vector.broadcast %cst : f32 to vector<8x838xf32>
    %7 = vector.extract_strided_slice %1 {offsets = [0, 0], sizes = [8, 1], strides = [1, 1]} : vector<8x9xf32> to vector<8x1xf32>
    %8 = vector.extract_strided_slice %5 {offsets = [0, 0], sizes = [1, 838], strides = [1, 1]} : vector<1x900xf32> to vector<1x838xf32>
    %9 = vector.broadcast %7 : vector<8x1xf32> to vector<8x838xf32>
    %10 = vector.broadcast %8 : vector<1x838xf32> to vector<8x838xf32>
    %11 = arith.mulf %9, %10 : vector<8x838xf32>
    %12 = arith.addf %6, %11 : vector<8x838xf32>
    %13 = vector.extract_strided_slice %1 {offsets = [0, 1], sizes = [8, 1], strides = [1, 1]} : vector<8x9xf32> to vector<8x1xf32>
    %14 = vector.extract_strided_slice %5 {offsets = [0, 1], sizes = [1, 838], strides = [1, 1]} : vector<1x900xf32> to vector<1x838xf32>
    %15 = vector.broadcast %13 : vector<8x1xf32> to vector<8x838xf32>
    %16 = vector.broadcast %14 : vector<1x838xf32> to vector<8x838xf32>
    %17 = arith.mulf %15, %16 : vector<8x838xf32>
    %18 = arith.addf %12, %17 : vector<8x838xf32>
    %19 = vector.extract_strided_slice %1 {offsets = [0, 2], sizes = [8, 1], strides = [1, 1]} : vector<8x9xf32> to vector<8x1xf32>
    %20 = vector.extract_strided_slice %5 {offsets = [0, 2], sizes = [1, 838], strides = [1, 1]} : vector<1x900xf32> to vector<1x838xf32>
    %21 = vector.broadcast %19 : vector<8x1xf32> to vector<8x838xf32>
    %22 = vector.broadcast %20 : vector<1x838xf32> to vector<8x838xf32>
    %23 = arith.mulf %21, %22 : vector<8x838xf32>
    %24 = arith.addf %18, %23 : vector<8x838xf32>
    %25 = vector.extract_strided_slice %1 {offsets = [0, 3], sizes = [8, 1], strides = [1, 1]} : vector<8x9xf32> to vector<8x1xf32>
    %26 = vector.extract_strided_slice %5 {offsets = [0, 30], sizes = [1, 838], strides = [1, 1]} : vector<1x900xf32> to vector<1x838xf32>
    %27 = vector.broadcast %25 : vector<8x1xf32> to vector<8x838xf32>
    %28 = vector.broadcast %26 : vector<1x838xf32> to vector<8x838xf32>
    %29 = arith.mulf %27, %28 : vector<8x838xf32>
    %30 = arith.addf %24, %29 : vector<8x838xf32>
    %31 = vector.extract_strided_slice %1 {offsets = [0, 4], sizes = [8, 1], strides = [1, 1]} : vector<8x9xf32> to vector<8x1xf32>
    %32 = vector.extract_strided_slice %5 {offsets = [0, 31], sizes = [1, 838], strides = [1, 1]} : vector<1x900xf32> to vector<1x838xf32>
    %33 = vector.broadcast %31 : vector<8x1xf32> to vector<8x838xf32>
    %34 = vector.broadcast %32 : vector<1x838xf32> to vector<8x838xf32>
    %35 = arith.mulf %33, %34 : vector<8x838xf32>
    %36 = arith.addf %30, %35 : vector<8x838xf32>
    %37 = vector.extract_strided_slice %1 {offsets = [0, 5], sizes = [8, 1], strides = [1, 1]} : vector<8x9xf32> to vector<8x1xf32>
    %38 = vector.extract_strided_slice %5 {offsets = [0, 32], sizes = [1, 838], strides = [1, 1]} : vector<1x900xf32> to vector<1x838xf32>
    %39 = vector.broadcast %37 : vector<8x1xf32> to vector<8x838xf32>
    %40 = vector.broadcast %38 : vector<1x838xf32> to vector<8x838xf32>
    %41 = arith.mulf %39, %40 : vector<8x838xf32>
    %42 = arith.addf %36, %41 : vector<8x838xf32>
    %43 = vector.extract_strided_slice %1 {offsets = [0, 6], sizes = [8, 1], strides = [1, 1]} : vector<8x9xf32> to vector<8x1xf32>
    %44 = vector.extract_strided_slice %5 {offsets = [0, 60], sizes = [1, 838], strides = [1, 1]} : vector<1x900xf32> to vector<1x838xf32>
    %45 = vector.broadcast %43 : vector<8x1xf32> to vector<8x838xf32>
    %46 = vector.broadcast %44 : vector<1x838xf32> to vector<8x838xf32>
    %47 = arith.mulf %45, %46 : vector<8x838xf32>
    %48 = arith.addf %42, %47 : vector<8x838xf32>
    %49 = vector.extract_strided_slice %1 {offsets = [0, 7], sizes = [8, 1], strides = [1, 1]} : vector<8x9xf32> to vector<8x1xf32>
    %50 = vector.extract_strided_slice %5 {offsets = [0, 61], sizes = [1, 838], strides = [1, 1]} : vector<1x900xf32> to vector<1x838xf32>
    %51 = vector.broadcast %49 : vector<8x1xf32> to vector<8x838xf32>
    %52 = vector.broadcast %50 : vector<1x838xf32> to vector<8x838xf32>
    %53 = arith.mulf %51, %52 : vector<8x838xf32>
    %54 = arith.addf %48, %53 : vector<8x838xf32>
    %55 = vector.extract_strided_slice %1 {offsets = [0, 8], sizes = [8, 1], strides = [1, 1]} : vector<8x9xf32> to vector<8x1xf32>
    %56 = vector.extract_strided_slice %5 {offsets = [0, 62], sizes = [1, 838], strides = [1, 1]} : vector<1x900xf32> to vector<1x838xf32>
    %57 = vector.broadcast %55 : vector<8x1xf32> to vector<8x838xf32>
    %58 = vector.broadcast %56 : vector<1x838xf32> to vector<8x838xf32>
    %59 = arith.mulf %57, %58 : vector<8x838xf32>
    %60 = arith.addf %54, %59 : vector<8x838xf32>
    %61 = vector.broadcast %2 : vector<8x1xf32> to vector<8x838xf32>
    %62 = arith.addf %60, %61 : vector<8x838xf32>
    %cst_11 = arith.constant 0.000000e+00 : f32
    %63 = vector.broadcast %cst_11 : f32 to vector<8x838xf32>
    %64 = arith.cmpf ogt, %62, %63 : vector<8x838xf32>
    %65 = vector.broadcast %0 : f32 to vector<8x838xf32>
    %66 = arith.mulf %65, %62 : vector<8x838xf32>
    %67 = arith.select %64, %62, %66 : vector<8x838xi1>, vector<8x838xf32>
    %68 = vector.extract_strided_slice %67 {offsets = [0, 0], sizes = [8, 837], strides = [1, 1]} : vector<8x838xf32> to vector<8x837xf32>
    %69 = vector.extract_strided_slice %67 {offsets = [0, 1], sizes = [8, 837], strides = [1, 1]} : vector<8x838xf32> to vector<8x837xf32>
    %70 = arith.maximumf %68, %69 : vector<8x837xf32>
    %71 = vector.extract_strided_slice %70 {offsets = [0, 0], sizes = [8, 807], strides = [1, 1]} : vector<8x837xf32> to vector<8x807xf32>
    %72 = vector.extract_strided_slice %70 {offsets = [0, 30], sizes = [8, 807], strides = [1, 1]} : vector<8x837xf32> to vector<8x807xf32>
    %73 = arith.maximumf %71, %72 : vector<8x807xf32>
    %74 = vector.extract_strided_slice %73 {offsets = [0, 0], sizes = [8, 683], strides = [1, 1]} : vector<8x807xf32> to vector<8x683xf32>
    %75 = vector.extract_strided_slice %73 {offsets = [0, 2], sizes = [8, 683], strides = [1, 1]} : vector<8x807xf32> to vector<8x683xf32>
    %76 = vector.extract_strided_slice %73 {offsets = [0, 4], sizes = [8, 683], strides = [1, 1]} : vector<8x807xf32> to vector<8x683xf32>
    %77 = vector.extract_strided_slice %73 {offsets = [0, 60], sizes = [8, 683], strides = [1, 1]} : vector<8x807xf32> to vector<8x683xf32>
    %78 = vector.extract_strided_slice %73 {offsets = [0, 62], sizes = [8, 683], strides = [1, 1]} : vector<8x807xf32> to vector<8x683xf32>
    %79 = vector.extract_strided_slice %73 {offsets = [0, 64], sizes = [8, 683], strides = [1, 1]} : vector<8x807xf32> to vector<8x683xf32>
    %80 = vector.extract_strided_slice %73 {offsets = [0, 120], sizes = [8, 683], strides = [1, 1]} : vector<8x807xf32> to vector<8x683xf32>
    %81 = vector.extract_strided_slice %73 {offsets = [0, 122], sizes = [8, 683], strides = [1, 1]} : vector<8x807xf32> to vector<8x683xf32>
    %82 = vector.extract_strided_slice %73 {offsets = [0, 124], sizes = [8, 683], strides = [1, 1]} : vector<8x807xf32> to vector<8x683xf32>
    %83 = tpu.concatenate %74, %75, %76, %77, %78, %79, %80, %81, %82 in 0 : vector<8x683xf32>, vector<8x683xf32>, vector<8x683xf32>, vector<8x683xf32>, vector<8x683xf32>, vector<8x683xf32>, vector<8x683xf32>, vector<8x683xf32>, vector<8x683xf32> -> vector<72x683xf32>
    %cst_12 = arith.constant dense<0.000000e+00> : vector<16x683xf32>
    %84 = tpu.matmul %3, %83, %cst_12 {dimension_numbers = #tpu.dot_dimension_numbers<[1], [0], [0], [1], [0, 0, 1, 1], [], []>} : vector<16x72xf32>, vector<72x683xf32>, vector<16x683xf32> -> vector<16x683xf32>
    %85 = vector.broadcast %4 : vector<16x1xf32> to vector<16x683xf32>
    %86 = arith.addf %84, %85 : vector<16x683xf32>
    %cst_13 = arith.constant 0.000000e+00 : f32
    %87 = vector.broadcast %cst_13 : f32 to vector<16x683xf32>
    %88 = arith.cmpf ogt, %86, %87 : vector<16x683xf32>
    %89 = vector.broadcast %0 : f32 to vector<16x683xf32>
    %90 = arith.mulf %89, %86 : vector<16x683xf32>
    %91 = arith.select %88, %86, %90 : vector<16x683xi1>, vector<16x683xf32>
    %92 = vector.extract_strided_slice %91 {offsets = [0, 0], sizes = [16, 681], strides = [1, 1]} : vector<16x683xf32> to vector<16x681xf32>
    %93 = vector.extract_strided_slice %91 {offsets = [0, 2], sizes = [16, 681], strides = [1, 1]} : vector<16x683xf32> to vector<16x681xf32>
    %94 = arith.maximumf %92, %93 : vector<16x681xf32>
    %95 = vector.extract_strided_slice %94 {offsets = [0, 0], sizes = [16, 621], strides = [1, 1]} : vector<16x681xf32> to vector<16x621xf32>
    %96 = vector.extract_strided_slice %94 {offsets = [0, 60], sizes = [16, 621], strides = [1, 1]} : vector<16x681xf32> to vector<16x621xf32>
    %97 = arith.maximumf %95, %96 : vector<16x621xf32>
    %c1 = arith.constant 1 : index
    %c0_14 = arith.constant 0 : index
    %98 = vector.load %arg1[%c1, %c0_14] : memref<8x900xf32, #tpu.memory_space<vmem>>, vector<1x900xf32>
    %cst_15 = arith.constant 0.000000e+00 : f32
    %99 = vector.broadcast %cst_15 : f32 to vector<8x838xf32>
    %100 = vector.extract_strided_slice %1 {offsets = [0, 0], sizes = [8, 1], strides = [1, 1]} : vector<8x9xf32> to vector<8x1xf32>
    %101 = vector.extract_strided_slice %98 {offsets = [0, 0], sizes = [1, 838], strides = [1, 1]} : vector<1x900xf32> to vector<1x838xf32>
    %102 = vector.broadcast %100 : vector<8x1xf32> to vector<8x838xf32>
    %103 = vector.broadcast %101 : vector<1x838xf32> to vector<8x838xf32>
    %104 = arith.mulf %102, %103 : vector<8x838xf32>
    %105 = arith.addf %99, %104 : vector<8x838xf32>
    %106 = vector.extract_strided_slice %1 {offsets = [0, 1], sizes = [8, 1], strides = [1, 1]} : vector<8x9xf32> to vector<8x1xf32>
    %107 = vector.extract_strided_slice %98 {offsets = [0, 1], sizes = [1, 838], strides = [1, 1]} : vector<1x900xf32> to vector<1x838xf32>
    %108 = vector.broadcast %106 : vector<8x1xf32> to vector<8x838xf32>
    %109 = vector.broadcast %107 : vector<1x838xf32> to vector<8x838xf32>
    %110 = arith.mulf %108, %109 : vector<8x838xf32>
    %111 = arith.addf %105, %110 : vector<8x838xf32>
    %112 = vector.extract_strided_slice %1 {offsets = [0, 2], sizes = [8, 1], strides = [1, 1]} : vector<8x9xf32> to vector<8x1xf32>
    %113 = vector.extract_strided_slice %98 {offsets = [0, 2], sizes = [1, 838], strides = [1, 1]} : vector<1x900xf32> to vector<1x838xf32>
    %114 = vector.broadcast %112 : vector<8x1xf32> to vector<8x838xf32>
    %115 = vector.broadcast %113 : vector<1x838xf32> to vector<8x838xf32>
    %116 = arith.mulf %114, %115 : vector<8x838xf32>
    %117 = arith.addf %111, %116 : vector<8x838xf32>
    %118 = vector.extract_strided_slice %1 {offsets = [0, 3], sizes = [8, 1], strides = [1, 1]} : vector<8x9xf32> to vector<8x1xf32>
    %119 = vector.extract_strided_slice %98 {offsets = [0, 30], sizes = [1, 838], strides = [1, 1]} : vector<1x900xf32> to vector<1x838xf32>
    %120 = vector.broadcast %118 : vector<8x1xf32> to vector<8x838xf32>
    %121 = vector.broadcast %119 : vector<1x838xf32> to vector<8x838xf32>
    %122 = arith.mulf %120, %121 : vector<8x838xf32>
    %123 = arith.addf %117, %122 : vector<8x838xf32>
    %124 = vector.extract_strided_slice %1 {offsets = [0, 4], sizes = [8, 1], strides = [1, 1]} : vector<8x9xf32> to vector<8x1xf32>
    %125 = vector.extract_strided_slice %98 {offsets = [0, 31], sizes = [1, 838], strides = [1, 1]} : vector<1x900xf32> to vector<1x838xf32>
    %126 = vector.broadcast %124 : vector<8x1xf32> to vector<8x838xf32>
    %127 = vector.broadcast %125 : vector<1x838xf32> to vector<8x838xf32>
    %128 = arith.mulf %126, %127 : vector<8x838xf32>
    %129 = arith.addf %123, %128 : vector<8x838xf32>
    %130 = vector.extract_strided_slice %1 {offsets = [0, 5], sizes = [8, 1], strides = [1, 1]} : vector<8x9xf32> to vector<8x1xf32>
    %131 = vector.extract_strided_slice %98 {offsets = [0, 32], sizes = [1, 838], strides = [1, 1]} : vector<1x900xf32> to vector<1x838xf32>
    %132 = vector.broadcast %130 : vector<8x1xf32> to vector<8x838xf32>
    %133 = vector.broadcast %131 : vector<1x838xf32> to vector<8x838xf32>
    %134 = arith.mulf %132, %133 : vector<8x838xf32>
    %135 = arith.addf %129, %134 : vector<8x838xf32>
    %136 = vector.extract_strided_slice %1 {offsets = [0, 6], sizes = [8, 1], strides = [1, 1]} : vector<8x9xf32> to vector<8x1xf32>
    %137 = vector.extract_strided_slice %98 {offsets = [0, 60], sizes = [1, 838], strides = [1, 1]} : vector<1x900xf32> to vector<1x838xf32>
    %138 = vector.broadcast %136 : vector<8x1xf32> to vector<8x838xf32>
    %139 = vector.broadcast %137 : vector<1x838xf32> to vector<8x838xf32>
    %140 = arith.mulf %138, %139 : vector<8x838xf32>
    %141 = arith.addf %135, %140 : vector<8x838xf32>
    %142 = vector.extract_strided_slice %1 {offsets = [0, 7], sizes = [8, 1], strides = [1, 1]} : vector<8x9xf32> to vector<8x1xf32>
    %143 = vector.extract_strided_slice %98 {offsets = [0, 61], sizes = [1, 838], strides = [1, 1]} : vector<1x900xf32> to vector<1x838xf32>
    %144 = vector.broadcast %142 : vector<8x1xf32> to vector<8x838xf32>
    %145 = vector.broadcast %143 : vector<1x838xf32> to vector<8x838xf32>
    %146 = arith.mulf %144, %145 : vector<8x838xf32>
    %147 = arith.addf %141, %146 : vector<8x838xf32>
    %148 = vector.extract_strided_slice %1 {offsets = [0, 8], sizes = [8, 1], strides = [1, 1]} : vector<8x9xf32> to vector<8x1xf32>
    %149 = vector.extract_strided_slice %98 {offsets = [0, 62], sizes = [1, 838], strides = [1, 1]} : vector<1x900xf32> to vector<1x838xf32>
    %150 = vector.broadcast %148 : vector<8x1xf32> to vector<8x838xf32>
    %151 = vector.broadcast %149 : vector<1x838xf32> to vector<8x838xf32>
    %152 = arith.mulf %150, %151 : vector<8x838xf32>
    %153 = arith.addf %147, %152 : vector<8x838xf32>
    %154 = vector.broadcast %2 : vector<8x1xf32> to vector<8x838xf32>
    %155 = arith.addf %153, %154 : vector<8x838xf32>
    %cst_16 = arith.constant 0.000000e+00 : f32
    %156 = vector.broadcast %cst_16 : f32 to vector<8x838xf32>
    %157 = arith.cmpf ogt, %155, %156 : vector<8x838xf32>
    %158 = vector.broadcast %0 : f32 to vector<8x838xf32>
    %159 = arith.mulf %158, %155 : vector<8x838xf32>
    %160 = arith.select %157, %155, %159 : vector<8x838xi1>, vector<8x838xf32>
    %161 = vector.extract_strided_slice %160 {offsets = [0, 0], sizes = [8, 837], strides = [1, 1]} : vector<8x838xf32> to vector<8x837xf32>
    %162 = vector.extract_strided_slice %160 {offsets = [0, 1], sizes = [8, 837], strides = [1, 1]} : vector<8x838xf32> to vector<8x837xf32>
    %163 = arith.maximumf %161, %162 : vector<8x837xf32>
    %164 = vector.extract_strided_slice %163 {offsets = [0, 0], sizes = [8, 807], strides = [1, 1]} : vector<8x837xf32> to vector<8x807xf32>
    %165 = vector.extract_strided_slice %163 {offsets = [0, 30], sizes = [8, 807], strides = [1, 1]} : vector<8x837xf32> to vector<8x807xf32>
    %166 = arith.maximumf %164, %165 : vector<8x807xf32>
    %167 = vector.extract_strided_slice %166 {offsets = [0, 0], sizes = [8, 683], strides = [1, 1]} : vector<8x807xf32> to vector<8x683xf32>
    %168 = vector.extract_strided_slice %166 {offsets = [0, 2], sizes = [8, 683], strides = [1, 1]} : vector<8x807xf32> to vector<8x683xf32>
    %169 = vector.extract_strided_slice %166 {offsets = [0, 4], sizes = [8, 683], strides = [1, 1]} : vector<8x807xf32> to vector<8x683xf32>
    %170 = vector.extract_strided_slice %166 {offsets = [0, 60], sizes = [8, 683], strides = [1, 1]} : vector<8x807xf32> to vector<8x683xf32>
    %171 = vector.extract_strided_slice %166 {offsets = [0, 62], sizes = [8, 683], strides = [1, 1]} : vector<8x807xf32> to vector<8x683xf32>
    %172 = vector.extract_strided_slice %166 {offsets = [0, 64], sizes = [8, 683], strides = [1, 1]} : vector<8x807xf32> to vector<8x683xf32>
    %173 = vector.extract_strided_slice %166 {offsets = [0, 120], sizes = [8, 683], strides = [1, 1]} : vector<8x807xf32> to vector<8x683xf32>
    %174 = vector.extract_strided_slice %166 {offsets = [0, 122], sizes = [8, 683], strides = [1, 1]} : vector<8x807xf32> to vector<8x683xf32>
    %175 = vector.extract_strided_slice %166 {offsets = [0, 124], sizes = [8, 683], strides = [1, 1]} : vector<8x807xf32> to vector<8x683xf32>
    %176 = tpu.concatenate %167, %168, %169, %170, %171, %172, %173, %174, %175 in 0 : vector<8x683xf32>, vector<8x683xf32>, vector<8x683xf32>, vector<8x683xf32>, vector<8x683xf32>, vector<8x683xf32>, vector<8x683xf32>, vector<8x683xf32>, vector<8x683xf32> -> vector<72x683xf32>
    %cst_17 = arith.constant dense<0.000000e+00> : vector<16x683xf32>
    %177 = tpu.matmul %3, %176, %cst_17 {dimension_numbers = #tpu.dot_dimension_numbers<[1], [0], [0], [1], [0, 0, 1, 1], [], []>} : vector<16x72xf32>, vector<72x683xf32>, vector<16x683xf32> -> vector<16x683xf32>
    %178 = vector.broadcast %4 : vector<16x1xf32> to vector<16x683xf32>
    %179 = arith.addf %177, %178 : vector<16x683xf32>
    %cst_18 = arith.constant 0.000000e+00 : f32
    %180 = vector.broadcast %cst_18 : f32 to vector<16x683xf32>
    %181 = arith.cmpf ogt, %179, %180 : vector<16x683xf32>
    %182 = vector.broadcast %0 : f32 to vector<16x683xf32>
    %183 = arith.mulf %182, %179 : vector<16x683xf32>
    %184 = arith.select %181, %179, %183 : vector<16x683xi1>, vector<16x683xf32>
    %185 = vector.extract_strided_slice %184 {offsets = [0, 0], sizes = [16, 681], strides = [1, 1]} : vector<16x683xf32> to vector<16x681xf32>
    %186 = vector.extract_strided_slice %184 {offsets = [0, 2], sizes = [16, 681], strides = [1, 1]} : vector<16x683xf32> to vector<16x681xf32>
    %187 = arith.maximumf %185, %186 : vector<16x681xf32>
    %188 = vector.extract_strided_slice %187 {offsets = [0, 0], sizes = [16, 621], strides = [1, 1]} : vector<16x681xf32> to vector<16x621xf32>
    %189 = vector.extract_strided_slice %187 {offsets = [0, 60], sizes = [16, 621], strides = [1, 1]} : vector<16x681xf32> to vector<16x621xf32>
    %190 = arith.maximumf %188, %189 : vector<16x621xf32>
    %c2 = arith.constant 2 : index
    %c0_19 = arith.constant 0 : index
    %191 = vector.load %arg1[%c2, %c0_19] : memref<8x900xf32, #tpu.memory_space<vmem>>, vector<1x900xf32>
    %cst_20 = arith.constant 0.000000e+00 : f32
    %192 = vector.broadcast %cst_20 : f32 to vector<8x838xf32>
    %193 = vector.extract_strided_slice %1 {offsets = [0, 0], sizes = [8, 1], strides = [1, 1]} : vector<8x9xf32> to vector<8x1xf32>
    %194 = vector.extract_strided_slice %191 {offsets = [0, 0], sizes = [1, 838], strides = [1, 1]} : vector<1x900xf32> to vector<1x838xf32>
    %195 = vector.broadcast %193 : vector<8x1xf32> to vector<8x838xf32>
    %196 = vector.broadcast %194 : vector<1x838xf32> to vector<8x838xf32>
    %197 = arith.mulf %195, %196 : vector<8x838xf32>
    %198 = arith.addf %192, %197 : vector<8x838xf32>
    %199 = vector.extract_strided_slice %1 {offsets = [0, 1], sizes = [8, 1], strides = [1, 1]} : vector<8x9xf32> to vector<8x1xf32>
    %200 = vector.extract_strided_slice %191 {offsets = [0, 1], sizes = [1, 838], strides = [1, 1]} : vector<1x900xf32> to vector<1x838xf32>
    %201 = vector.broadcast %199 : vector<8x1xf32> to vector<8x838xf32>
    %202 = vector.broadcast %200 : vector<1x838xf32> to vector<8x838xf32>
    %203 = arith.mulf %201, %202 : vector<8x838xf32>
    %204 = arith.addf %198, %203 : vector<8x838xf32>
    %205 = vector.extract_strided_slice %1 {offsets = [0, 2], sizes = [8, 1], strides = [1, 1]} : vector<8x9xf32> to vector<8x1xf32>
    %206 = vector.extract_strided_slice %191 {offsets = [0, 2], sizes = [1, 838], strides = [1, 1]} : vector<1x900xf32> to vector<1x838xf32>
    %207 = vector.broadcast %205 : vector<8x1xf32> to vector<8x838xf32>
    %208 = vector.broadcast %206 : vector<1x838xf32> to vector<8x838xf32>
    %209 = arith.mulf %207, %208 : vector<8x838xf32>
    %210 = arith.addf %204, %209 : vector<8x838xf32>
    %211 = vector.extract_strided_slice %1 {offsets = [0, 3], sizes = [8, 1], strides = [1, 1]} : vector<8x9xf32> to vector<8x1xf32>
    %212 = vector.extract_strided_slice %191 {offsets = [0, 30], sizes = [1, 838], strides = [1, 1]} : vector<1x900xf32> to vector<1x838xf32>
    %213 = vector.broadcast %211 : vector<8x1xf32> to vector<8x838xf32>
    %214 = vector.broadcast %212 : vector<1x838xf32> to vector<8x838xf32>
    %215 = arith.mulf %213, %214 : vector<8x838xf32>
    %216 = arith.addf %210, %215 : vector<8x838xf32>
    %217 = vector.extract_strided_slice %1 {offsets = [0, 4], sizes = [8, 1], strides = [1, 1]} : vector<8x9xf32> to vector<8x1xf32>
    %218 = vector.extract_strided_slice %191 {offsets = [0, 31], sizes = [1, 838], strides = [1, 1]} : vector<1x900xf32> to vector<1x838xf32>
    %219 = vector.broadcast %217 : vector<8x1xf32> to vector<8x838xf32>
    %220 = vector.broadcast %218 : vector<1x838xf32> to vector<8x838xf32>
    %221 = arith.mulf %219, %220 : vector<8x838xf32>
    %222 = arith.addf %216, %221 : vector<8x838xf32>
    %223 = vector.extract_strided_slice %1 {offsets = [0, 5], sizes = [8, 1], strides = [1, 1]} : vector<8x9xf32> to vector<8x1xf32>
    %224 = vector.extract_strided_slice %191 {offsets = [0, 32], sizes = [1, 838], strides = [1, 1]} : vector<1x900xf32> to vector<1x838xf32>
    %225 = vector.broadcast %223 : vector<8x1xf32> to vector<8x838xf32>
    %226 = vector.broadcast %224 : vector<1x838xf32> to vector<8x838xf32>
    %227 = arith.mulf %225, %226 : vector<8x838xf32>
    %228 = arith.addf %222, %227 : vector<8x838xf32>
    %229 = vector.extract_strided_slice %1 {offsets = [0, 6], sizes = [8, 1], strides = [1, 1]} : vector<8x9xf32> to vector<8x1xf32>
    %230 = vector.extract_strided_slice %191 {offsets = [0, 60], sizes = [1, 838], strides = [1, 1]} : vector<1x900xf32> to vector<1x838xf32>
    %231 = vector.broadcast %229 : vector<8x1xf32> to vector<8x838xf32>
    %232 = vector.broadcast %230 : vector<1x838xf32> to vector<8x838xf32>
    %233 = arith.mulf %231, %232 : vector<8x838xf32>
    %234 = arith.addf %228, %233 : vector<8x838xf32>
    %235 = vector.extract_strided_slice %1 {offsets = [0, 7], sizes = [8, 1], strides = [1, 1]} : vector<8x9xf32> to vector<8x1xf32>
    %236 = vector.extract_strided_slice %191 {offsets = [0, 61], sizes = [1, 838], strides = [1, 1]} : vector<1x900xf32> to vector<1x838xf32>
    %237 = vector.broadcast %235 : vector<8x1xf32> to vector<8x838xf32>
    %238 = vector.broadcast %236 : vector<1x838xf32> to vector<8x838xf32>
    %239 = arith.mulf %237, %238 : vector<8x838xf32>
    %240 = arith.addf %234, %239 : vector<8x838xf32>
    %241 = vector.extract_strided_slice %1 {offsets = [0, 8], sizes = [8, 1], strides = [1, 1]} : vector<8x9xf32> to vector<8x1xf32>
    %242 = vector.extract_strided_slice %191 {offsets = [0, 62], sizes = [1, 838], strides = [1, 1]} : vector<1x900xf32> to vector<1x838xf32>
    %243 = vector.broadcast %241 : vector<8x1xf32> to vector<8x838xf32>
    %244 = vector.broadcast %242 : vector<1x838xf32> to vector<8x838xf32>
    %245 = arith.mulf %243, %244 : vector<8x838xf32>
    %246 = arith.addf %240, %245 : vector<8x838xf32>
    %247 = vector.broadcast %2 : vector<8x1xf32> to vector<8x838xf32>
    %248 = arith.addf %246, %247 : vector<8x838xf32>
    %cst_21 = arith.constant 0.000000e+00 : f32
    %249 = vector.broadcast %cst_21 : f32 to vector<8x838xf32>
    %250 = arith.cmpf ogt, %248, %249 : vector<8x838xf32>
    %251 = vector.broadcast %0 : f32 to vector<8x838xf32>
    %252 = arith.mulf %251, %248 : vector<8x838xf32>
    %253 = arith.select %250, %248, %252 : vector<8x838xi1>, vector<8x838xf32>
    %254 = vector.extract_strided_slice %253 {offsets = [0, 0], sizes = [8, 837], strides = [1, 1]} : vector<8x838xf32> to vector<8x837xf32>
    %255 = vector.extract_strided_slice %253 {offsets = [0, 1], sizes = [8, 837], strides = [1, 1]} : vector<8x838xf32> to vector<8x837xf32>
    %256 = arith.maximumf %254, %255 : vector<8x837xf32>
    %257 = vector.extract_strided_slice %256 {offsets = [0, 0], sizes = [8, 807], strides = [1, 1]} : vector<8x837xf32> to vector<8x807xf32>
    %258 = vector.extract_strided_slice %256 {offsets = [0, 30], sizes = [8, 807], strides = [1, 1]} : vector<8x837xf32> to vector<8x807xf32>
    %259 = arith.maximumf %257, %258 : vector<8x807xf32>
    %260 = vector.extract_strided_slice %259 {offsets = [0, 0], sizes = [8, 683], strides = [1, 1]} : vector<8x807xf32> to vector<8x683xf32>
    %261 = vector.extract_strided_slice %259 {offsets = [0, 2], sizes = [8, 683], strides = [1, 1]} : vector<8x807xf32> to vector<8x683xf32>
    %262 = vector.extract_strided_slice %259 {offsets = [0, 4], sizes = [8, 683], strides = [1, 1]} : vector<8x807xf32> to vector<8x683xf32>
    %263 = vector.extract_strided_slice %259 {offsets = [0, 60], sizes = [8, 683], strides = [1, 1]} : vector<8x807xf32> to vector<8x683xf32>
    %264 = vector.extract_strided_slice %259 {offsets = [0, 62], sizes = [8, 683], strides = [1, 1]} : vector<8x807xf32> to vector<8x683xf32>
    %265 = vector.extract_strided_slice %259 {offsets = [0, 64], sizes = [8, 683], strides = [1, 1]} : vector<8x807xf32> to vector<8x683xf32>
    %266 = vector.extract_strided_slice %259 {offsets = [0, 120], sizes = [8, 683], strides = [1, 1]} : vector<8x807xf32> to vector<8x683xf32>
    %267 = vector.extract_strided_slice %259 {offsets = [0, 122], sizes = [8, 683], strides = [1, 1]} : vector<8x807xf32> to vector<8x683xf32>
    %268 = vector.extract_strided_slice %259 {offsets = [0, 124], sizes = [8, 683], strides = [1, 1]} : vector<8x807xf32> to vector<8x683xf32>
    %269 = tpu.concatenate %260, %261, %262, %263, %264, %265, %266, %267, %268 in 0 : vector<8x683xf32>, vector<8x683xf32>, vector<8x683xf32>, vector<8x683xf32>, vector<8x683xf32>, vector<8x683xf32>, vector<8x683xf32>, vector<8x683xf32>, vector<8x683xf32> -> vector<72x683xf32>
    %cst_22 = arith.constant dense<0.000000e+00> : vector<16x683xf32>
    %270 = tpu.matmul %3, %269, %cst_22 {dimension_numbers = #tpu.dot_dimension_numbers<[1], [0], [0], [1], [0, 0, 1, 1], [], []>} : vector<16x72xf32>, vector<72x683xf32>, vector<16x683xf32> -> vector<16x683xf32>
    %271 = vector.broadcast %4 : vector<16x1xf32> to vector<16x683xf32>
    %272 = arith.addf %270, %271 : vector<16x683xf32>
    %cst_23 = arith.constant 0.000000e+00 : f32
    %273 = vector.broadcast %cst_23 : f32 to vector<16x683xf32>
    %274 = arith.cmpf ogt, %272, %273 : vector<16x683xf32>
    %275 = vector.broadcast %0 : f32 to vector<16x683xf32>
    %276 = arith.mulf %275, %272 : vector<16x683xf32>
    %277 = arith.select %274, %272, %276 : vector<16x683xi1>, vector<16x683xf32>
    %278 = vector.extract_strided_slice %277 {offsets = [0, 0], sizes = [16, 681], strides = [1, 1]} : vector<16x683xf32> to vector<16x681xf32>
    %279 = vector.extract_strided_slice %277 {offsets = [0, 2], sizes = [16, 681], strides = [1, 1]} : vector<16x683xf32> to vector<16x681xf32>
    %280 = arith.maximumf %278, %279 : vector<16x681xf32>
    %281 = vector.extract_strided_slice %280 {offsets = [0, 0], sizes = [16, 621], strides = [1, 1]} : vector<16x681xf32> to vector<16x621xf32>
    %282 = vector.extract_strided_slice %280 {offsets = [0, 60], sizes = [16, 621], strides = [1, 1]} : vector<16x681xf32> to vector<16x621xf32>
    %283 = arith.maximumf %281, %282 : vector<16x621xf32>
    %c3 = arith.constant 3 : index
    %c0_24 = arith.constant 0 : index
    %284 = vector.load %arg1[%c3, %c0_24] : memref<8x900xf32, #tpu.memory_space<vmem>>, vector<1x900xf32>
    %cst_25 = arith.constant 0.000000e+00 : f32
    %285 = vector.broadcast %cst_25 : f32 to vector<8x838xf32>
    %286 = vector.extract_strided_slice %1 {offsets = [0, 0], sizes = [8, 1], strides = [1, 1]} : vector<8x9xf32> to vector<8x1xf32>
    %287 = vector.extract_strided_slice %284 {offsets = [0, 0], sizes = [1, 838], strides = [1, 1]} : vector<1x900xf32> to vector<1x838xf32>
    %288 = vector.broadcast %286 : vector<8x1xf32> to vector<8x838xf32>
    %289 = vector.broadcast %287 : vector<1x838xf32> to vector<8x838xf32>
    %290 = arith.mulf %288, %289 : vector<8x838xf32>
    %291 = arith.addf %285, %290 : vector<8x838xf32>
    %292 = vector.extract_strided_slice %1 {offsets = [0, 1], sizes = [8, 1], strides = [1, 1]} : vector<8x9xf32> to vector<8x1xf32>
    %293 = vector.extract_strided_slice %284 {offsets = [0, 1], sizes = [1, 838], strides = [1, 1]} : vector<1x900xf32> to vector<1x838xf32>
    %294 = vector.broadcast %292 : vector<8x1xf32> to vector<8x838xf32>
    %295 = vector.broadcast %293 : vector<1x838xf32> to vector<8x838xf32>
    %296 = arith.mulf %294, %295 : vector<8x838xf32>
    %297 = arith.addf %291, %296 : vector<8x838xf32>
    %298 = vector.extract_strided_slice %1 {offsets = [0, 2], sizes = [8, 1], strides = [1, 1]} : vector<8x9xf32> to vector<8x1xf32>
    %299 = vector.extract_strided_slice %284 {offsets = [0, 2], sizes = [1, 838], strides = [1, 1]} : vector<1x900xf32> to vector<1x838xf32>
    %300 = vector.broadcast %298 : vector<8x1xf32> to vector<8x838xf32>
    %301 = vector.broadcast %299 : vector<1x838xf32> to vector<8x838xf32>
    %302 = arith.mulf %300, %301 : vector<8x838xf32>
    %303 = arith.addf %297, %302 : vector<8x838xf32>
    %304 = vector.extract_strided_slice %1 {offsets = [0, 3], sizes = [8, 1], strides = [1, 1]} : vector<8x9xf32> to vector<8x1xf32>
    %305 = vector.extract_strided_slice %284 {offsets = [0, 30], sizes = [1, 838], strides = [1, 1]} : vector<1x900xf32> to vector<1x838xf32>
    %306 = vector.broadcast %304 : vector<8x1xf32> to vector<8x838xf32>
    %307 = vector.broadcast %305 : vector<1x838xf32> to vector<8x838xf32>
    %308 = arith.mulf %306, %307 : vector<8x838xf32>
    %309 = arith.addf %303, %308 : vector<8x838xf32>
    %310 = vector.extract_strided_slice %1 {offsets = [0, 4], sizes = [8, 1], strides = [1, 1]} : vector<8x9xf32> to vector<8x1xf32>
    %311 = vector.extract_strided_slice %284 {offsets = [0, 31], sizes = [1, 838], strides = [1, 1]} : vector<1x900xf32> to vector<1x838xf32>
    %312 = vector.broadcast %310 : vector<8x1xf32> to vector<8x838xf32>
    %313 = vector.broadcast %311 : vector<1x838xf32> to vector<8x838xf32>
    %314 = arith.mulf %312, %313 : vector<8x838xf32>
    %315 = arith.addf %309, %314 : vector<8x838xf32>
    %316 = vector.extract_strided_slice %1 {offsets = [0, 5], sizes = [8, 1], strides = [1, 1]} : vector<8x9xf32> to vector<8x1xf32>
    %317 = vector.extract_strided_slice %284 {offsets = [0, 32], sizes = [1, 838], strides = [1, 1]} : vector<1x900xf32> to vector<1x838xf32>
    %318 = vector.broadcast %316 : vector<8x1xf32> to vector<8x838xf32>
    %319 = vector.broadcast %317 : vector<1x838xf32> to vector<8x838xf32>
    %320 = arith.mulf %318, %319 : vector<8x838xf32>
    %321 = arith.addf %315, %320 : vector<8x838xf32>
    %322 = vector.extract_strided_slice %1 {offsets = [0, 6], sizes = [8, 1], strides = [1, 1]} : vector<8x9xf32> to vector<8x1xf32>
    %323 = vector.extract_strided_slice %284 {offsets = [0, 60], sizes = [1, 838], strides = [1, 1]} : vector<1x900xf32> to vector<1x838xf32>
    %324 = vector.broadcast %322 : vector<8x1xf32> to vector<8x838xf32>
    %325 = vector.broadcast %323 : vector<1x838xf32> to vector<8x838xf32>
    %326 = arith.mulf %324, %325 : vector<8x838xf32>
    %327 = arith.addf %321, %326 : vector<8x838xf32>
    %328 = vector.extract_strided_slice %1 {offsets = [0, 7], sizes = [8, 1], strides = [1, 1]} : vector<8x9xf32> to vector<8x1xf32>
    %329 = vector.extract_strided_slice %284 {offsets = [0, 61], sizes = [1, 838], strides = [1, 1]} : vector<1x900xf32> to vector<1x838xf32>
    %330 = vector.broadcast %328 : vector<8x1xf32> to vector<8x838xf32>
    %331 = vector.broadcast %329 : vector<1x838xf32> to vector<8x838xf32>
    %332 = arith.mulf %330, %331 : vector<8x838xf32>
    %333 = arith.addf %327, %332 : vector<8x838xf32>
    %334 = vector.extract_strided_slice %1 {offsets = [0, 8], sizes = [8, 1], strides = [1, 1]} : vector<8x9xf32> to vector<8x1xf32>
    %335 = vector.extract_strided_slice %284 {offsets = [0, 62], sizes = [1, 838], strides = [1, 1]} : vector<1x900xf32> to vector<1x838xf32>
    %336 = vector.broadcast %334 : vector<8x1xf32> to vector<8x838xf32>
    %337 = vector.broadcast %335 : vector<1x838xf32> to vector<8x838xf32>
    %338 = arith.mulf %336, %337 : vector<8x838xf32>
    %339 = arith.addf %333, %338 : vector<8x838xf32>
    %340 = vector.broadcast %2 : vector<8x1xf32> to vector<8x838xf32>
    %341 = arith.addf %339, %340 : vector<8x838xf32>
    %cst_26 = arith.constant 0.000000e+00 : f32
    %342 = vector.broadcast %cst_26 : f32 to vector<8x838xf32>
    %343 = arith.cmpf ogt, %341, %342 : vector<8x838xf32>
    %344 = vector.broadcast %0 : f32 to vector<8x838xf32>
    %345 = arith.mulf %344, %341 : vector<8x838xf32>
    %346 = arith.select %343, %341, %345 : vector<8x838xi1>, vector<8x838xf32>
    %347 = vector.extract_strided_slice %346 {offsets = [0, 0], sizes = [8, 837], strides = [1, 1]} : vector<8x838xf32> to vector<8x837xf32>
    %348 = vector.extract_strided_slice %346 {offsets = [0, 1], sizes = [8, 837], strides = [1, 1]} : vector<8x838xf32> to vector<8x837xf32>
    %349 = arith.maximumf %347, %348 : vector<8x837xf32>
    %350 = vector.extract_strided_slice %349 {offsets = [0, 0], sizes = [8, 807], strides = [1, 1]} : vector<8x837xf32> to vector<8x807xf32>
    %351 = vector.extract_strided_slice %349 {offsets = [0, 30], sizes = [8, 807], strides = [1, 1]} : vector<8x837xf32> to vector<8x807xf32>
    %352 = arith.maximumf %350, %351 : vector<8x807xf32>
    %353 = vector.extract_strided_slice %352 {offsets = [0, 0], sizes = [8, 683], strides = [1, 1]} : vector<8x807xf32> to vector<8x683xf32>
    %354 = vector.extract_strided_slice %352 {offsets = [0, 2], sizes = [8, 683], strides = [1, 1]} : vector<8x807xf32> to vector<8x683xf32>
    %355 = vector.extract_strided_slice %352 {offsets = [0, 4], sizes = [8, 683], strides = [1, 1]} : vector<8x807xf32> to vector<8x683xf32>
    %356 = vector.extract_strided_slice %352 {offsets = [0, 60], sizes = [8, 683], strides = [1, 1]} : vector<8x807xf32> to vector<8x683xf32>
    %357 = vector.extract_strided_slice %352 {offsets = [0, 62], sizes = [8, 683], strides = [1, 1]} : vector<8x807xf32> to vector<8x683xf32>
    %358 = vector.extract_strided_slice %352 {offsets = [0, 64], sizes = [8, 683], strides = [1, 1]} : vector<8x807xf32> to vector<8x683xf32>
    %359 = vector.extract_strided_slice %352 {offsets = [0, 120], sizes = [8, 683], strides = [1, 1]} : vector<8x807xf32> to vector<8x683xf32>
    %360 = vector.extract_strided_slice %352 {offsets = [0, 122], sizes = [8, 683], strides = [1, 1]} : vector<8x807xf32> to vector<8x683xf32>
    %361 = vector.extract_strided_slice %352 {offsets = [0, 124], sizes = [8, 683], strides = [1, 1]} : vector<8x807xf32> to vector<8x683xf32>
    %362 = tpu.concatenate %353, %354, %355, %356, %357, %358, %359, %360, %361 in 0 : vector<8x683xf32>, vector<8x683xf32>, vector<8x683xf32>, vector<8x683xf32>, vector<8x683xf32>, vector<8x683xf32>, vector<8x683xf32>, vector<8x683xf32>, vector<8x683xf32> -> vector<72x683xf32>
    %cst_27 = arith.constant dense<0.000000e+00> : vector<16x683xf32>
    %363 = tpu.matmul %3, %362, %cst_27 {dimension_numbers = #tpu.dot_dimension_numbers<[1], [0], [0], [1], [0, 0, 1, 1], [], []>} : vector<16x72xf32>, vector<72x683xf32>, vector<16x683xf32> -> vector<16x683xf32>
    %364 = vector.broadcast %4 : vector<16x1xf32> to vector<16x683xf32>
    %365 = arith.addf %363, %364 : vector<16x683xf32>
    %cst_28 = arith.constant 0.000000e+00 : f32
    %366 = vector.broadcast %cst_28 : f32 to vector<16x683xf32>
    %367 = arith.cmpf ogt, %365, %366 : vector<16x683xf32>
    %368 = vector.broadcast %0 : f32 to vector<16x683xf32>
    %369 = arith.mulf %368, %365 : vector<16x683xf32>
    %370 = arith.select %367, %365, %369 : vector<16x683xi1>, vector<16x683xf32>
    %371 = vector.extract_strided_slice %370 {offsets = [0, 0], sizes = [16, 681], strides = [1, 1]} : vector<16x683xf32> to vector<16x681xf32>
    %372 = vector.extract_strided_slice %370 {offsets = [0, 2], sizes = [16, 681], strides = [1, 1]} : vector<16x683xf32> to vector<16x681xf32>
    %373 = arith.maximumf %371, %372 : vector<16x681xf32>
    %374 = vector.extract_strided_slice %373 {offsets = [0, 0], sizes = [16, 621], strides = [1, 1]} : vector<16x681xf32> to vector<16x621xf32>
    %375 = vector.extract_strided_slice %373 {offsets = [0, 60], sizes = [16, 621], strides = [1, 1]} : vector<16x681xf32> to vector<16x621xf32>
    %376 = arith.maximumf %374, %375 : vector<16x621xf32>
    %c4 = arith.constant 4 : index
    %c0_29 = arith.constant 0 : index
    %377 = vector.load %arg1[%c4, %c0_29] : memref<8x900xf32, #tpu.memory_space<vmem>>, vector<1x900xf32>
    %cst_30 = arith.constant 0.000000e+00 : f32
    %378 = vector.broadcast %cst_30 : f32 to vector<8x838xf32>
    %379 = vector.extract_strided_slice %1 {offsets = [0, 0], sizes = [8, 1], strides = [1, 1]} : vector<8x9xf32> to vector<8x1xf32>
    %380 = vector.extract_strided_slice %377 {offsets = [0, 0], sizes = [1, 838], strides = [1, 1]} : vector<1x900xf32> to vector<1x838xf32>
    %381 = vector.broadcast %379 : vector<8x1xf32> to vector<8x838xf32>
    %382 = vector.broadcast %380 : vector<1x838xf32> to vector<8x838xf32>
    %383 = arith.mulf %381, %382 : vector<8x838xf32>
    %384 = arith.addf %378, %383 : vector<8x838xf32>
    %385 = vector.extract_strided_slice %1 {offsets = [0, 1], sizes = [8, 1], strides = [1, 1]} : vector<8x9xf32> to vector<8x1xf32>
    %386 = vector.extract_strided_slice %377 {offsets = [0, 1], sizes = [1, 838], strides = [1, 1]} : vector<1x900xf32> to vector<1x838xf32>
    %387 = vector.broadcast %385 : vector<8x1xf32> to vector<8x838xf32>
    %388 = vector.broadcast %386 : vector<1x838xf32> to vector<8x838xf32>
    %389 = arith.mulf %387, %388 : vector<8x838xf32>
    %390 = arith.addf %384, %389 : vector<8x838xf32>
    %391 = vector.extract_strided_slice %1 {offsets = [0, 2], sizes = [8, 1], strides = [1, 1]} : vector<8x9xf32> to vector<8x1xf32>
    %392 = vector.extract_strided_slice %377 {offsets = [0, 2], sizes = [1, 838], strides = [1, 1]} : vector<1x900xf32> to vector<1x838xf32>
    %393 = vector.broadcast %391 : vector<8x1xf32> to vector<8x838xf32>
    %394 = vector.broadcast %392 : vector<1x838xf32> to vector<8x838xf32>
    %395 = arith.mulf %393, %394 : vector<8x838xf32>
    %396 = arith.addf %390, %395 : vector<8x838xf32>
    %397 = vector.extract_strided_slice %1 {offsets = [0, 3], sizes = [8, 1], strides = [1, 1]} : vector<8x9xf32> to vector<8x1xf32>
    %398 = vector.extract_strided_slice %377 {offsets = [0, 30], sizes = [1, 838], strides = [1, 1]} : vector<1x900xf32> to vector<1x838xf32>
    %399 = vector.broadcast %397 : vector<8x1xf32> to vector<8x838xf32>
    %400 = vector.broadcast %398 : vector<1x838xf32> to vector<8x838xf32>
    %401 = arith.mulf %399, %400 : vector<8x838xf32>
    %402 = arith.addf %396, %401 : vector<8x838xf32>
    %403 = vector.extract_strided_slice %1 {offsets = [0, 4], sizes = [8, 1], strides = [1, 1]} : vector<8x9xf32> to vector<8x1xf32>
    %404 = vector.extract_strided_slice %377 {offsets = [0, 31], sizes = [1, 838], strides = [1, 1]} : vector<1x900xf32> to vector<1x838xf32>
    %405 = vector.broadcast %403 : vector<8x1xf32> to vector<8x838xf32>
    %406 = vector.broadcast %404 : vector<1x838xf32> to vector<8x838xf32>
    %407 = arith.mulf %405, %406 : vector<8x838xf32>
    %408 = arith.addf %402, %407 : vector<8x838xf32>
    %409 = vector.extract_strided_slice %1 {offsets = [0, 5], sizes = [8, 1], strides = [1, 1]} : vector<8x9xf32> to vector<8x1xf32>
    %410 = vector.extract_strided_slice %377 {offsets = [0, 32], sizes = [1, 838], strides = [1, 1]} : vector<1x900xf32> to vector<1x838xf32>
    %411 = vector.broadcast %409 : vector<8x1xf32> to vector<8x838xf32>
    %412 = vector.broadcast %410 : vector<1x838xf32> to vector<8x838xf32>
    %413 = arith.mulf %411, %412 : vector<8x838xf32>
    %414 = arith.addf %408, %413 : vector<8x838xf32>
    %415 = vector.extract_strided_slice %1 {offsets = [0, 6], sizes = [8, 1], strides = [1, 1]} : vector<8x9xf32> to vector<8x1xf32>
    %416 = vector.extract_strided_slice %377 {offsets = [0, 60], sizes = [1, 838], strides = [1, 1]} : vector<1x900xf32> to vector<1x838xf32>
    %417 = vector.broadcast %415 : vector<8x1xf32> to vector<8x838xf32>
    %418 = vector.broadcast %416 : vector<1x838xf32> to vector<8x838xf32>
    %419 = arith.mulf %417, %418 : vector<8x838xf32>
    %420 = arith.addf %414, %419 : vector<8x838xf32>
    %421 = vector.extract_strided_slice %1 {offsets = [0, 7], sizes = [8, 1], strides = [1, 1]} : vector<8x9xf32> to vector<8x1xf32>
    %422 = vector.extract_strided_slice %377 {offsets = [0, 61], sizes = [1, 838], strides = [1, 1]} : vector<1x900xf32> to vector<1x838xf32>
    %423 = vector.broadcast %421 : vector<8x1xf32> to vector<8x838xf32>
    %424 = vector.broadcast %422 : vector<1x838xf32> to vector<8x838xf32>
    %425 = arith.mulf %423, %424 : vector<8x838xf32>
    %426 = arith.addf %420, %425 : vector<8x838xf32>
    %427 = vector.extract_strided_slice %1 {offsets = [0, 8], sizes = [8, 1], strides = [1, 1]} : vector<8x9xf32> to vector<8x1xf32>
    %428 = vector.extract_strided_slice %377 {offsets = [0, 62], sizes = [1, 838], strides = [1, 1]} : vector<1x900xf32> to vector<1x838xf32>
    %429 = vector.broadcast %427 : vector<8x1xf32> to vector<8x838xf32>
    %430 = vector.broadcast %428 : vector<1x838xf32> to vector<8x838xf32>
    %431 = arith.mulf %429, %430 : vector<8x838xf32>
    %432 = arith.addf %426, %431 : vector<8x838xf32>
    %433 = vector.broadcast %2 : vector<8x1xf32> to vector<8x838xf32>
    %434 = arith.addf %432, %433 : vector<8x838xf32>
    %cst_31 = arith.constant 0.000000e+00 : f32
    %435 = vector.broadcast %cst_31 : f32 to vector<8x838xf32>
    %436 = arith.cmpf ogt, %434, %435 : vector<8x838xf32>
    %437 = vector.broadcast %0 : f32 to vector<8x838xf32>
    %438 = arith.mulf %437, %434 : vector<8x838xf32>
    %439 = arith.select %436, %434, %438 : vector<8x838xi1>, vector<8x838xf32>
    %440 = vector.extract_strided_slice %439 {offsets = [0, 0], sizes = [8, 837], strides = [1, 1]} : vector<8x838xf32> to vector<8x837xf32>
    %441 = vector.extract_strided_slice %439 {offsets = [0, 1], sizes = [8, 837], strides = [1, 1]} : vector<8x838xf32> to vector<8x837xf32>
    %442 = arith.maximumf %440, %441 : vector<8x837xf32>
    %443 = vector.extract_strided_slice %442 {offsets = [0, 0], sizes = [8, 807], strides = [1, 1]} : vector<8x837xf32> to vector<8x807xf32>
    %444 = vector.extract_strided_slice %442 {offsets = [0, 30], sizes = [8, 807], strides = [1, 1]} : vector<8x837xf32> to vector<8x807xf32>
    %445 = arith.maximumf %443, %444 : vector<8x807xf32>
    %446 = vector.extract_strided_slice %445 {offsets = [0, 0], sizes = [8, 683], strides = [1, 1]} : vector<8x807xf32> to vector<8x683xf32>
    %447 = vector.extract_strided_slice %445 {offsets = [0, 2], sizes = [8, 683], strides = [1, 1]} : vector<8x807xf32> to vector<8x683xf32>
    %448 = vector.extract_strided_slice %445 {offsets = [0, 4], sizes = [8, 683], strides = [1, 1]} : vector<8x807xf32> to vector<8x683xf32>
    %449 = vector.extract_strided_slice %445 {offsets = [0, 60], sizes = [8, 683], strides = [1, 1]} : vector<8x807xf32> to vector<8x683xf32>
    %450 = vector.extract_strided_slice %445 {offsets = [0, 62], sizes = [8, 683], strides = [1, 1]} : vector<8x807xf32> to vector<8x683xf32>
    %451 = vector.extract_strided_slice %445 {offsets = [0, 64], sizes = [8, 683], strides = [1, 1]} : vector<8x807xf32> to vector<8x683xf32>
    %452 = vector.extract_strided_slice %445 {offsets = [0, 120], sizes = [8, 683], strides = [1, 1]} : vector<8x807xf32> to vector<8x683xf32>
    %453 = vector.extract_strided_slice %445 {offsets = [0, 122], sizes = [8, 683], strides = [1, 1]} : vector<8x807xf32> to vector<8x683xf32>
    %454 = vector.extract_strided_slice %445 {offsets = [0, 124], sizes = [8, 683], strides = [1, 1]} : vector<8x807xf32> to vector<8x683xf32>
    %455 = tpu.concatenate %446, %447, %448, %449, %450, %451, %452, %453, %454 in 0 : vector<8x683xf32>, vector<8x683xf32>, vector<8x683xf32>, vector<8x683xf32>, vector<8x683xf32>, vector<8x683xf32>, vector<8x683xf32>, vector<8x683xf32>, vector<8x683xf32> -> vector<72x683xf32>
    %cst_32 = arith.constant dense<0.000000e+00> : vector<16x683xf32>
    %456 = tpu.matmul %3, %455, %cst_32 {dimension_numbers = #tpu.dot_dimension_numbers<[1], [0], [0], [1], [0, 0, 1, 1], [], []>} : vector<16x72xf32>, vector<72x683xf32>, vector<16x683xf32> -> vector<16x683xf32>
    %457 = vector.broadcast %4 : vector<16x1xf32> to vector<16x683xf32>
    %458 = arith.addf %456, %457 : vector<16x683xf32>
    %cst_33 = arith.constant 0.000000e+00 : f32
    %459 = vector.broadcast %cst_33 : f32 to vector<16x683xf32>
    %460 = arith.cmpf ogt, %458, %459 : vector<16x683xf32>
    %461 = vector.broadcast %0 : f32 to vector<16x683xf32>
    %462 = arith.mulf %461, %458 : vector<16x683xf32>
    %463 = arith.select %460, %458, %462 : vector<16x683xi1>, vector<16x683xf32>
    %464 = vector.extract_strided_slice %463 {offsets = [0, 0], sizes = [16, 681], strides = [1, 1]} : vector<16x683xf32> to vector<16x681xf32>
    %465 = vector.extract_strided_slice %463 {offsets = [0, 2], sizes = [16, 681], strides = [1, 1]} : vector<16x683xf32> to vector<16x681xf32>
    %466 = arith.maximumf %464, %465 : vector<16x681xf32>
    %467 = vector.extract_strided_slice %466 {offsets = [0, 0], sizes = [16, 621], strides = [1, 1]} : vector<16x681xf32> to vector<16x621xf32>
    %468 = vector.extract_strided_slice %466 {offsets = [0, 60], sizes = [16, 621], strides = [1, 1]} : vector<16x681xf32> to vector<16x621xf32>
    %469 = arith.maximumf %467, %468 : vector<16x621xf32>
    %c5 = arith.constant 5 : index
    %c0_34 = arith.constant 0 : index
    %470 = vector.load %arg1[%c5, %c0_34] : memref<8x900xf32, #tpu.memory_space<vmem>>, vector<1x900xf32>
    %cst_35 = arith.constant 0.000000e+00 : f32
    %471 = vector.broadcast %cst_35 : f32 to vector<8x838xf32>
    %472 = vector.extract_strided_slice %1 {offsets = [0, 0], sizes = [8, 1], strides = [1, 1]} : vector<8x9xf32> to vector<8x1xf32>
    %473 = vector.extract_strided_slice %470 {offsets = [0, 0], sizes = [1, 838], strides = [1, 1]} : vector<1x900xf32> to vector<1x838xf32>
    %474 = vector.broadcast %472 : vector<8x1xf32> to vector<8x838xf32>
    %475 = vector.broadcast %473 : vector<1x838xf32> to vector<8x838xf32>
    %476 = arith.mulf %474, %475 : vector<8x838xf32>
    %477 = arith.addf %471, %476 : vector<8x838xf32>
    %478 = vector.extract_strided_slice %1 {offsets = [0, 1], sizes = [8, 1], strides = [1, 1]} : vector<8x9xf32> to vector<8x1xf32>
    %479 = vector.extract_strided_slice %470 {offsets = [0, 1], sizes = [1, 838], strides = [1, 1]} : vector<1x900xf32> to vector<1x838xf32>
    %480 = vector.broadcast %478 : vector<8x1xf32> to vector<8x838xf32>
    %481 = vector.broadcast %479 : vector<1x838xf32> to vector<8x838xf32>
    %482 = arith.mulf %480, %481 : vector<8x838xf32>
    %483 = arith.addf %477, %482 : vector<8x838xf32>
    %484 = vector.extract_strided_slice %1 {offsets = [0, 2], sizes = [8, 1], strides = [1, 1]} : vector<8x9xf32> to vector<8x1xf32>
    %485 = vector.extract_strided_slice %470 {offsets = [0, 2], sizes = [1, 838], strides = [1, 1]} : vector<1x900xf32> to vector<1x838xf32>
    %486 = vector.broadcast %484 : vector<8x1xf32> to vector<8x838xf32>
    %487 = vector.broadcast %485 : vector<1x838xf32> to vector<8x838xf32>
    %488 = arith.mulf %486, %487 : vector<8x838xf32>
    %489 = arith.addf %483, %488 : vector<8x838xf32>
    %490 = vector.extract_strided_slice %1 {offsets = [0, 3], sizes = [8, 1], strides = [1, 1]} : vector<8x9xf32> to vector<8x1xf32>
    %491 = vector.extract_strided_slice %470 {offsets = [0, 30], sizes = [1, 838], strides = [1, 1]} : vector<1x900xf32> to vector<1x838xf32>
    %492 = vector.broadcast %490 : vector<8x1xf32> to vector<8x838xf32>
    %493 = vector.broadcast %491 : vector<1x838xf32> to vector<8x838xf32>
    %494 = arith.mulf %492, %493 : vector<8x838xf32>
    %495 = arith.addf %489, %494 : vector<8x838xf32>
    %496 = vector.extract_strided_slice %1 {offsets = [0, 4], sizes = [8, 1], strides = [1, 1]} : vector<8x9xf32> to vector<8x1xf32>
    %497 = vector.extract_strided_slice %470 {offsets = [0, 31], sizes = [1, 838], strides = [1, 1]} : vector<1x900xf32> to vector<1x838xf32>
    %498 = vector.broadcast %496 : vector<8x1xf32> to vector<8x838xf32>
    %499 = vector.broadcast %497 : vector<1x838xf32> to vector<8x838xf32>
    %500 = arith.mulf %498, %499 : vector<8x838xf32>
    %501 = arith.addf %495, %500 : vector<8x838xf32>
    %502 = vector.extract_strided_slice %1 {offsets = [0, 5], sizes = [8, 1], strides = [1, 1]} : vector<8x9xf32> to vector<8x1xf32>
    %503 = vector.extract_strided_slice %470 {offsets = [0, 32], sizes = [1, 838], strides = [1, 1]} : vector<1x900xf32> to vector<1x838xf32>
    %504 = vector.broadcast %502 : vector<8x1xf32> to vector<8x838xf32>
    %505 = vector.broadcast %503 : vector<1x838xf32> to vector<8x838xf32>
    %506 = arith.mulf %504, %505 : vector<8x838xf32>
    %507 = arith.addf %501, %506 : vector<8x838xf32>
    %508 = vector.extract_strided_slice %1 {offsets = [0, 6], sizes = [8, 1], strides = [1, 1]} : vector<8x9xf32> to vector<8x1xf32>
    %509 = vector.extract_strided_slice %470 {offsets = [0, 60], sizes = [1, 838], strides = [1, 1]} : vector<1x900xf32> to vector<1x838xf32>
    %510 = vector.broadcast %508 : vector<8x1xf32> to vector<8x838xf32>
    %511 = vector.broadcast %509 : vector<1x838xf32> to vector<8x838xf32>
    %512 = arith.mulf %510, %511 : vector<8x838xf32>
    %513 = arith.addf %507, %512 : vector<8x838xf32>
    %514 = vector.extract_strided_slice %1 {offsets = [0, 7], sizes = [8, 1], strides = [1, 1]} : vector<8x9xf32> to vector<8x1xf32>
    %515 = vector.extract_strided_slice %470 {offsets = [0, 61], sizes = [1, 838], strides = [1, 1]} : vector<1x900xf32> to vector<1x838xf32>
    %516 = vector.broadcast %514 : vector<8x1xf32> to vector<8x838xf32>
    %517 = vector.broadcast %515 : vector<1x838xf32> to vector<8x838xf32>
    %518 = arith.mulf %516, %517 : vector<8x838xf32>
    %519 = arith.addf %513, %518 : vector<8x838xf32>
    %520 = vector.extract_strided_slice %1 {offsets = [0, 8], sizes = [8, 1], strides = [1, 1]} : vector<8x9xf32> to vector<8x1xf32>
    %521 = vector.extract_strided_slice %470 {offsets = [0, 62], sizes = [1, 838], strides = [1, 1]} : vector<1x900xf32> to vector<1x838xf32>
    %522 = vector.broadcast %520 : vector<8x1xf32> to vector<8x838xf32>
    %523 = vector.broadcast %521 : vector<1x838xf32> to vector<8x838xf32>
    %524 = arith.mulf %522, %523 : vector<8x838xf32>
    %525 = arith.addf %519, %524 : vector<8x838xf32>
    %526 = vector.broadcast %2 : vector<8x1xf32> to vector<8x838xf32>
    %527 = arith.addf %525, %526 : vector<8x838xf32>
    %cst_36 = arith.constant 0.000000e+00 : f32
    %528 = vector.broadcast %cst_36 : f32 to vector<8x838xf32>
    %529 = arith.cmpf ogt, %527, %528 : vector<8x838xf32>
    %530 = vector.broadcast %0 : f32 to vector<8x838xf32>
    %531 = arith.mulf %530, %527 : vector<8x838xf32>
    %532 = arith.select %529, %527, %531 : vector<8x838xi1>, vector<8x838xf32>
    %533 = vector.extract_strided_slice %532 {offsets = [0, 0], sizes = [8, 837], strides = [1, 1]} : vector<8x838xf32> to vector<8x837xf32>
    %534 = vector.extract_strided_slice %532 {offsets = [0, 1], sizes = [8, 837], strides = [1, 1]} : vector<8x838xf32> to vector<8x837xf32>
    %535 = arith.maximumf %533, %534 : vector<8x837xf32>
    %536 = vector.extract_strided_slice %535 {offsets = [0, 0], sizes = [8, 807], strides = [1, 1]} : vector<8x837xf32> to vector<8x807xf32>
    %537 = vector.extract_strided_slice %535 {offsets = [0, 30], sizes = [8, 807], strides = [1, 1]} : vector<8x837xf32> to vector<8x807xf32>
    %538 = arith.maximumf %536, %537 : vector<8x807xf32>
    %539 = vector.extract_strided_slice %538 {offsets = [0, 0], sizes = [8, 683], strides = [1, 1]} : vector<8x807xf32> to vector<8x683xf32>
    %540 = vector.extract_strided_slice %538 {offsets = [0, 2], sizes = [8, 683], strides = [1, 1]} : vector<8x807xf32> to vector<8x683xf32>
    %541 = vector.extract_strided_slice %538 {offsets = [0, 4], sizes = [8, 683], strides = [1, 1]} : vector<8x807xf32> to vector<8x683xf32>
    %542 = vector.extract_strided_slice %538 {offsets = [0, 60], sizes = [8, 683], strides = [1, 1]} : vector<8x807xf32> to vector<8x683xf32>
    %543 = vector.extract_strided_slice %538 {offsets = [0, 62], sizes = [8, 683], strides = [1, 1]} : vector<8x807xf32> to vector<8x683xf32>
    %544 = vector.extract_strided_slice %538 {offsets = [0, 64], sizes = [8, 683], strides = [1, 1]} : vector<8x807xf32> to vector<8x683xf32>
    %545 = vector.extract_strided_slice %538 {offsets = [0, 120], sizes = [8, 683], strides = [1, 1]} : vector<8x807xf32> to vector<8x683xf32>
    %546 = vector.extract_strided_slice %538 {offsets = [0, 122], sizes = [8, 683], strides = [1, 1]} : vector<8x807xf32> to vector<8x683xf32>
    %547 = vector.extract_strided_slice %538 {offsets = [0, 124], sizes = [8, 683], strides = [1, 1]} : vector<8x807xf32> to vector<8x683xf32>
    %548 = tpu.concatenate %539, %540, %541, %542, %543, %544, %545, %546, %547 in 0 : vector<8x683xf32>, vector<8x683xf32>, vector<8x683xf32>, vector<8x683xf32>, vector<8x683xf32>, vector<8x683xf32>, vector<8x683xf32>, vector<8x683xf32>, vector<8x683xf32> -> vector<72x683xf32>
    %cst_37 = arith.constant dense<0.000000e+00> : vector<16x683xf32>
    %549 = tpu.matmul %3, %548, %cst_37 {dimension_numbers = #tpu.dot_dimension_numbers<[1], [0], [0], [1], [0, 0, 1, 1], [], []>} : vector<16x72xf32>, vector<72x683xf32>, vector<16x683xf32> -> vector<16x683xf32>
    %550 = vector.broadcast %4 : vector<16x1xf32> to vector<16x683xf32>
    %551 = arith.addf %549, %550 : vector<16x683xf32>
    %cst_38 = arith.constant 0.000000e+00 : f32
    %552 = vector.broadcast %cst_38 : f32 to vector<16x683xf32>
    %553 = arith.cmpf ogt, %551, %552 : vector<16x683xf32>
    %554 = vector.broadcast %0 : f32 to vector<16x683xf32>
    %555 = arith.mulf %554, %551 : vector<16x683xf32>
    %556 = arith.select %553, %551, %555 : vector<16x683xi1>, vector<16x683xf32>
    %557 = vector.extract_strided_slice %556 {offsets = [0, 0], sizes = [16, 681], strides = [1, 1]} : vector<16x683xf32> to vector<16x681xf32>
    %558 = vector.extract_strided_slice %556 {offsets = [0, 2], sizes = [16, 681], strides = [1, 1]} : vector<16x683xf32> to vector<16x681xf32>
    %559 = arith.maximumf %557, %558 : vector<16x681xf32>
    %560 = vector.extract_strided_slice %559 {offsets = [0, 0], sizes = [16, 621], strides = [1, 1]} : vector<16x681xf32> to vector<16x621xf32>
    %561 = vector.extract_strided_slice %559 {offsets = [0, 60], sizes = [16, 621], strides = [1, 1]} : vector<16x681xf32> to vector<16x621xf32>
    %562 = arith.maximumf %560, %561 : vector<16x621xf32>
    %c6 = arith.constant 6 : index
    %c0_39 = arith.constant 0 : index
    %563 = vector.load %arg1[%c6, %c0_39] : memref<8x900xf32, #tpu.memory_space<vmem>>, vector<1x900xf32>
    %cst_40 = arith.constant 0.000000e+00 : f32
    %564 = vector.broadcast %cst_40 : f32 to vector<8x838xf32>
    %565 = vector.extract_strided_slice %1 {offsets = [0, 0], sizes = [8, 1], strides = [1, 1]} : vector<8x9xf32> to vector<8x1xf32>
    %566 = vector.extract_strided_slice %563 {offsets = [0, 0], sizes = [1, 838], strides = [1, 1]} : vector<1x900xf32> to vector<1x838xf32>
    %567 = vector.broadcast %565 : vector<8x1xf32> to vector<8x838xf32>
    %568 = vector.broadcast %566 : vector<1x838xf32> to vector<8x838xf32>
    %569 = arith.mulf %567, %568 : vector<8x838xf32>
    %570 = arith.addf %564, %569 : vector<8x838xf32>
    %571 = vector.extract_strided_slice %1 {offsets = [0, 1], sizes = [8, 1], strides = [1, 1]} : vector<8x9xf32> to vector<8x1xf32>
    %572 = vector.extract_strided_slice %563 {offsets = [0, 1], sizes = [1, 838], strides = [1, 1]} : vector<1x900xf32> to vector<1x838xf32>
    %573 = vector.broadcast %571 : vector<8x1xf32> to vector<8x838xf32>
    %574 = vector.broadcast %572 : vector<1x838xf32> to vector<8x838xf32>
    %575 = arith.mulf %573, %574 : vector<8x838xf32>
    %576 = arith.addf %570, %575 : vector<8x838xf32>
    %577 = vector.extract_strided_slice %1 {offsets = [0, 2], sizes = [8, 1], strides = [1, 1]} : vector<8x9xf32> to vector<8x1xf32>
    %578 = vector.extract_strided_slice %563 {offsets = [0, 2], sizes = [1, 838], strides = [1, 1]} : vector<1x900xf32> to vector<1x838xf32>
    %579 = vector.broadcast %577 : vector<8x1xf32> to vector<8x838xf32>
    %580 = vector.broadcast %578 : vector<1x838xf32> to vector<8x838xf32>
    %581 = arith.mulf %579, %580 : vector<8x838xf32>
    %582 = arith.addf %576, %581 : vector<8x838xf32>
    %583 = vector.extract_strided_slice %1 {offsets = [0, 3], sizes = [8, 1], strides = [1, 1]} : vector<8x9xf32> to vector<8x1xf32>
    %584 = vector.extract_strided_slice %563 {offsets = [0, 30], sizes = [1, 838], strides = [1, 1]} : vector<1x900xf32> to vector<1x838xf32>
    %585 = vector.broadcast %583 : vector<8x1xf32> to vector<8x838xf32>
    %586 = vector.broadcast %584 : vector<1x838xf32> to vector<8x838xf32>
    %587 = arith.mulf %585, %586 : vector<8x838xf32>
    %588 = arith.addf %582, %587 : vector<8x838xf32>
    %589 = vector.extract_strided_slice %1 {offsets = [0, 4], sizes = [8, 1], strides = [1, 1]} : vector<8x9xf32> to vector<8x1xf32>
    %590 = vector.extract_strided_slice %563 {offsets = [0, 31], sizes = [1, 838], strides = [1, 1]} : vector<1x900xf32> to vector<1x838xf32>
    %591 = vector.broadcast %589 : vector<8x1xf32> to vector<8x838xf32>
    %592 = vector.broadcast %590 : vector<1x838xf32> to vector<8x838xf32>
    %593 = arith.mulf %591, %592 : vector<8x838xf32>
    %594 = arith.addf %588, %593 : vector<8x838xf32>
    %595 = vector.extract_strided_slice %1 {offsets = [0, 5], sizes = [8, 1], strides = [1, 1]} : vector<8x9xf32> to vector<8x1xf32>
    %596 = vector.extract_strided_slice %563 {offsets = [0, 32], sizes = [1, 838], strides = [1, 1]} : vector<1x900xf32> to vector<1x838xf32>
    %597 = vector.broadcast %595 : vector<8x1xf32> to vector<8x838xf32>
    %598 = vector.broadcast %596 : vector<1x838xf32> to vector<8x838xf32>
    %599 = arith.mulf %597, %598 : vector<8x838xf32>
    %600 = arith.addf %594, %599 : vector<8x838xf32>
    %601 = vector.extract_strided_slice %1 {offsets = [0, 6], sizes = [8, 1], strides = [1, 1]} : vector<8x9xf32> to vector<8x1xf32>
    %602 = vector.extract_strided_slice %563 {offsets = [0, 60], sizes = [1, 838], strides = [1, 1]} : vector<1x900xf32> to vector<1x838xf32>
    %603 = vector.broadcast %601 : vector<8x1xf32> to vector<8x838xf32>
    %604 = vector.broadcast %602 : vector<1x838xf32> to vector<8x838xf32>
    %605 = arith.mulf %603, %604 : vector<8x838xf32>
    %606 = arith.addf %600, %605 : vector<8x838xf32>
    %607 = vector.extract_strided_slice %1 {offsets = [0, 7], sizes = [8, 1], strides = [1, 1]} : vector<8x9xf32> to vector<8x1xf32>
    %608 = vector.extract_strided_slice %563 {offsets = [0, 61], sizes = [1, 838], strides = [1, 1]} : vector<1x900xf32> to vector<1x838xf32>
    %609 = vector.broadcast %607 : vector<8x1xf32> to vector<8x838xf32>
    %610 = vector.broadcast %608 : vector<1x838xf32> to vector<8x838xf32>
    %611 = arith.mulf %609, %610 : vector<8x838xf32>
    %612 = arith.addf %606, %611 : vector<8x838xf32>
    %613 = vector.extract_strided_slice %1 {offsets = [0, 8], sizes = [8, 1], strides = [1, 1]} : vector<8x9xf32> to vector<8x1xf32>
    %614 = vector.extract_strided_slice %563 {offsets = [0, 62], sizes = [1, 838], strides = [1, 1]} : vector<1x900xf32> to vector<1x838xf32>
    %615 = vector.broadcast %613 : vector<8x1xf32> to vector<8x838xf32>
    %616 = vector.broadcast %614 : vector<1x838xf32> to vector<8x838xf32>
    %617 = arith.mulf %615, %616 : vector<8x838xf32>
    %618 = arith.addf %612, %617 : vector<8x838xf32>
    %619 = vector.broadcast %2 : vector<8x1xf32> to vector<8x838xf32>
    %620 = arith.addf %618, %619 : vector<8x838xf32>
    %cst_41 = arith.constant 0.000000e+00 : f32
    %621 = vector.broadcast %cst_41 : f32 to vector<8x838xf32>
    %622 = arith.cmpf ogt, %620, %621 : vector<8x838xf32>
    %623 = vector.broadcast %0 : f32 to vector<8x838xf32>
    %624 = arith.mulf %623, %620 : vector<8x838xf32>
    %625 = arith.select %622, %620, %624 : vector<8x838xi1>, vector<8x838xf32>
    %626 = vector.extract_strided_slice %625 {offsets = [0, 0], sizes = [8, 837], strides = [1, 1]} : vector<8x838xf32> to vector<8x837xf32>
    %627 = vector.extract_strided_slice %625 {offsets = [0, 1], sizes = [8, 837], strides = [1, 1]} : vector<8x838xf32> to vector<8x837xf32>
    %628 = arith.maximumf %626, %627 : vector<8x837xf32>
    %629 = vector.extract_strided_slice %628 {offsets = [0, 0], sizes = [8, 807], strides = [1, 1]} : vector<8x837xf32> to vector<8x807xf32>
    %630 = vector.extract_strided_slice %628 {offsets = [0, 30], sizes = [8, 807], strides = [1, 1]} : vector<8x837xf32> to vector<8x807xf32>
    %631 = arith.maximumf %629, %630 : vector<8x807xf32>
    %632 = vector.extract_strided_slice %631 {offsets = [0, 0], sizes = [8, 683], strides = [1, 1]} : vector<8x807xf32> to vector<8x683xf32>
    %633 = vector.extract_strided_slice %631 {offsets = [0, 2], sizes = [8, 683], strides = [1, 1]} : vector<8x807xf32> to vector<8x683xf32>
    %634 = vector.extract_strided_slice %631 {offsets = [0, 4], sizes = [8, 683], strides = [1, 1]} : vector<8x807xf32> to vector<8x683xf32>
    %635 = vector.extract_strided_slice %631 {offsets = [0, 60], sizes = [8, 683], strides = [1, 1]} : vector<8x807xf32> to vector<8x683xf32>
    %636 = vector.extract_strided_slice %631 {offsets = [0, 62], sizes = [8, 683], strides = [1, 1]} : vector<8x807xf32> to vector<8x683xf32>
    %637 = vector.extract_strided_slice %631 {offsets = [0, 64], sizes = [8, 683], strides = [1, 1]} : vector<8x807xf32> to vector<8x683xf32>
    %638 = vector.extract_strided_slice %631 {offsets = [0, 120], sizes = [8, 683], strides = [1, 1]} : vector<8x807xf32> to vector<8x683xf32>
    %639 = vector.extract_strided_slice %631 {offsets = [0, 122], sizes = [8, 683], strides = [1, 1]} : vector<8x807xf32> to vector<8x683xf32>
    %640 = vector.extract_strided_slice %631 {offsets = [0, 124], sizes = [8, 683], strides = [1, 1]} : vector<8x807xf32> to vector<8x683xf32>
    %641 = tpu.concatenate %632, %633, %634, %635, %636, %637, %638, %639, %640 in 0 : vector<8x683xf32>, vector<8x683xf32>, vector<8x683xf32>, vector<8x683xf32>, vector<8x683xf32>, vector<8x683xf32>, vector<8x683xf32>, vector<8x683xf32>, vector<8x683xf32> -> vector<72x683xf32>
    %cst_42 = arith.constant dense<0.000000e+00> : vector<16x683xf32>
    %642 = tpu.matmul %3, %641, %cst_42 {dimension_numbers = #tpu.dot_dimension_numbers<[1], [0], [0], [1], [0, 0, 1, 1], [], []>} : vector<16x72xf32>, vector<72x683xf32>, vector<16x683xf32> -> vector<16x683xf32>
    %643 = vector.broadcast %4 : vector<16x1xf32> to vector<16x683xf32>
    %644 = arith.addf %642, %643 : vector<16x683xf32>
    %cst_43 = arith.constant 0.000000e+00 : f32
    %645 = vector.broadcast %cst_43 : f32 to vector<16x683xf32>
    %646 = arith.cmpf ogt, %644, %645 : vector<16x683xf32>
    %647 = vector.broadcast %0 : f32 to vector<16x683xf32>
    %648 = arith.mulf %647, %644 : vector<16x683xf32>
    %649 = arith.select %646, %644, %648 : vector<16x683xi1>, vector<16x683xf32>
    %650 = vector.extract_strided_slice %649 {offsets = [0, 0], sizes = [16, 681], strides = [1, 1]} : vector<16x683xf32> to vector<16x681xf32>
    %651 = vector.extract_strided_slice %649 {offsets = [0, 2], sizes = [16, 681], strides = [1, 1]} : vector<16x683xf32> to vector<16x681xf32>
    %652 = arith.maximumf %650, %651 : vector<16x681xf32>
    %653 = vector.extract_strided_slice %652 {offsets = [0, 0], sizes = [16, 621], strides = [1, 1]} : vector<16x681xf32> to vector<16x621xf32>
    %654 = vector.extract_strided_slice %652 {offsets = [0, 60], sizes = [16, 621], strides = [1, 1]} : vector<16x681xf32> to vector<16x621xf32>
    %655 = arith.maximumf %653, %654 : vector<16x621xf32>
    %c7 = arith.constant 7 : index
    %c0_44 = arith.constant 0 : index
    %656 = vector.load %arg1[%c7, %c0_44] : memref<8x900xf32, #tpu.memory_space<vmem>>, vector<1x900xf32>
    %cst_45 = arith.constant 0.000000e+00 : f32
    %657 = vector.broadcast %cst_45 : f32 to vector<8x838xf32>
    %658 = vector.extract_strided_slice %1 {offsets = [0, 0], sizes = [8, 1], strides = [1, 1]} : vector<8x9xf32> to vector<8x1xf32>
    %659 = vector.extract_strided_slice %656 {offsets = [0, 0], sizes = [1, 838], strides = [1, 1]} : vector<1x900xf32> to vector<1x838xf32>
    %660 = vector.broadcast %658 : vector<8x1xf32> to vector<8x838xf32>
    %661 = vector.broadcast %659 : vector<1x838xf32> to vector<8x838xf32>
    %662 = arith.mulf %660, %661 : vector<8x838xf32>
    %663 = arith.addf %657, %662 : vector<8x838xf32>
    %664 = vector.extract_strided_slice %1 {offsets = [0, 1], sizes = [8, 1], strides = [1, 1]} : vector<8x9xf32> to vector<8x1xf32>
    %665 = vector.extract_strided_slice %656 {offsets = [0, 1], sizes = [1, 838], strides = [1, 1]} : vector<1x900xf32> to vector<1x838xf32>
    %666 = vector.broadcast %664 : vector<8x1xf32> to vector<8x838xf32>
    %667 = vector.broadcast %665 : vector<1x838xf32> to vector<8x838xf32>
    %668 = arith.mulf %666, %667 : vector<8x838xf32>
    %669 = arith.addf %663, %668 : vector<8x838xf32>
    %670 = vector.extract_strided_slice %1 {offsets = [0, 2], sizes = [8, 1], strides = [1, 1]} : vector<8x9xf32> to vector<8x1xf32>
    %671 = vector.extract_strided_slice %656 {offsets = [0, 2], sizes = [1, 838], strides = [1, 1]} : vector<1x900xf32> to vector<1x838xf32>
    %672 = vector.broadcast %670 : vector<8x1xf32> to vector<8x838xf32>
    %673 = vector.broadcast %671 : vector<1x838xf32> to vector<8x838xf32>
    %674 = arith.mulf %672, %673 : vector<8x838xf32>
    %675 = arith.addf %669, %674 : vector<8x838xf32>
    %676 = vector.extract_strided_slice %1 {offsets = [0, 3], sizes = [8, 1], strides = [1, 1]} : vector<8x9xf32> to vector<8x1xf32>
    %677 = vector.extract_strided_slice %656 {offsets = [0, 30], sizes = [1, 838], strides = [1, 1]} : vector<1x900xf32> to vector<1x838xf32>
    %678 = vector.broadcast %676 : vector<8x1xf32> to vector<8x838xf32>
    %679 = vector.broadcast %677 : vector<1x838xf32> to vector<8x838xf32>
    %680 = arith.mulf %678, %679 : vector<8x838xf32>
    %681 = arith.addf %675, %680 : vector<8x838xf32>
    %682 = vector.extract_strided_slice %1 {offsets = [0, 4], sizes = [8, 1], strides = [1, 1]} : vector<8x9xf32> to vector<8x1xf32>
    %683 = vector.extract_strided_slice %656 {offsets = [0, 31], sizes = [1, 838], strides = [1, 1]} : vector<1x900xf32> to vector<1x838xf32>
    %684 = vector.broadcast %682 : vector<8x1xf32> to vector<8x838xf32>
    %685 = vector.broadcast %683 : vector<1x838xf32> to vector<8x838xf32>
    %686 = arith.mulf %684, %685 : vector<8x838xf32>
    %687 = arith.addf %681, %686 : vector<8x838xf32>
    %688 = vector.extract_strided_slice %1 {offsets = [0, 5], sizes = [8, 1], strides = [1, 1]} : vector<8x9xf32> to vector<8x1xf32>
    %689 = vector.extract_strided_slice %656 {offsets = [0, 32], sizes = [1, 838], strides = [1, 1]} : vector<1x900xf32> to vector<1x838xf32>
    %690 = vector.broadcast %688 : vector<8x1xf32> to vector<8x838xf32>
    %691 = vector.broadcast %689 : vector<1x838xf32> to vector<8x838xf32>
    %692 = arith.mulf %690, %691 : vector<8x838xf32>
    %693 = arith.addf %687, %692 : vector<8x838xf32>
    %694 = vector.extract_strided_slice %1 {offsets = [0, 6], sizes = [8, 1], strides = [1, 1]} : vector<8x9xf32> to vector<8x1xf32>
    %695 = vector.extract_strided_slice %656 {offsets = [0, 60], sizes = [1, 838], strides = [1, 1]} : vector<1x900xf32> to vector<1x838xf32>
    %696 = vector.broadcast %694 : vector<8x1xf32> to vector<8x838xf32>
    %697 = vector.broadcast %695 : vector<1x838xf32> to vector<8x838xf32>
    %698 = arith.mulf %696, %697 : vector<8x838xf32>
    %699 = arith.addf %693, %698 : vector<8x838xf32>
    %700 = vector.extract_strided_slice %1 {offsets = [0, 7], sizes = [8, 1], strides = [1, 1]} : vector<8x9xf32> to vector<8x1xf32>
    %701 = vector.extract_strided_slice %656 {offsets = [0, 61], sizes = [1, 838], strides = [1, 1]} : vector<1x900xf32> to vector<1x838xf32>
    %702 = vector.broadcast %700 : vector<8x1xf32> to vector<8x838xf32>
    %703 = vector.broadcast %701 : vector<1x838xf32> to vector<8x838xf32>
    %704 = arith.mulf %702, %703 : vector<8x838xf32>
    %705 = arith.addf %699, %704 : vector<8x838xf32>
    %706 = vector.extract_strided_slice %1 {offsets = [0, 8], sizes = [8, 1], strides = [1, 1]} : vector<8x9xf32> to vector<8x1xf32>
    %707 = vector.extract_strided_slice %656 {offsets = [0, 62], sizes = [1, 838], strides = [1, 1]} : vector<1x900xf32> to vector<1x838xf32>
    %708 = vector.broadcast %706 : vector<8x1xf32> to vector<8x838xf32>
    %709 = vector.broadcast %707 : vector<1x838xf32> to vector<8x838xf32>
    %710 = arith.mulf %708, %709 : vector<8x838xf32>
    %711 = arith.addf %705, %710 : vector<8x838xf32>
    %712 = vector.broadcast %2 : vector<8x1xf32> to vector<8x838xf32>
    %713 = arith.addf %711, %712 : vector<8x838xf32>
    %cst_46 = arith.constant 0.000000e+00 : f32
    %714 = vector.broadcast %cst_46 : f32 to vector<8x838xf32>
    %715 = arith.cmpf ogt, %713, %714 : vector<8x838xf32>
    %716 = vector.broadcast %0 : f32 to vector<8x838xf32>
    %717 = arith.mulf %716, %713 : vector<8x838xf32>
    %718 = arith.select %715, %713, %717 : vector<8x838xi1>, vector<8x838xf32>
    %719 = vector.extract_strided_slice %718 {offsets = [0, 0], sizes = [8, 837], strides = [1, 1]} : vector<8x838xf32> to vector<8x837xf32>
    %720 = vector.extract_strided_slice %718 {offsets = [0, 1], sizes = [8, 837], strides = [1, 1]} : vector<8x838xf32> to vector<8x837xf32>
    %721 = arith.maximumf %719, %720 : vector<8x837xf32>
    %722 = vector.extract_strided_slice %721 {offsets = [0, 0], sizes = [8, 807], strides = [1, 1]} : vector<8x837xf32> to vector<8x807xf32>
    %723 = vector.extract_strided_slice %721 {offsets = [0, 30], sizes = [8, 807], strides = [1, 1]} : vector<8x837xf32> to vector<8x807xf32>
    %724 = arith.maximumf %722, %723 : vector<8x807xf32>
    %725 = vector.extract_strided_slice %724 {offsets = [0, 0], sizes = [8, 683], strides = [1, 1]} : vector<8x807xf32> to vector<8x683xf32>
    %726 = vector.extract_strided_slice %724 {offsets = [0, 2], sizes = [8, 683], strides = [1, 1]} : vector<8x807xf32> to vector<8x683xf32>
    %727 = vector.extract_strided_slice %724 {offsets = [0, 4], sizes = [8, 683], strides = [1, 1]} : vector<8x807xf32> to vector<8x683xf32>
    %728 = vector.extract_strided_slice %724 {offsets = [0, 60], sizes = [8, 683], strides = [1, 1]} : vector<8x807xf32> to vector<8x683xf32>
    %729 = vector.extract_strided_slice %724 {offsets = [0, 62], sizes = [8, 683], strides = [1, 1]} : vector<8x807xf32> to vector<8x683xf32>
    %730 = vector.extract_strided_slice %724 {offsets = [0, 64], sizes = [8, 683], strides = [1, 1]} : vector<8x807xf32> to vector<8x683xf32>
    %731 = vector.extract_strided_slice %724 {offsets = [0, 120], sizes = [8, 683], strides = [1, 1]} : vector<8x807xf32> to vector<8x683xf32>
    %732 = vector.extract_strided_slice %724 {offsets = [0, 122], sizes = [8, 683], strides = [1, 1]} : vector<8x807xf32> to vector<8x683xf32>
    %733 = vector.extract_strided_slice %724 {offsets = [0, 124], sizes = [8, 683], strides = [1, 1]} : vector<8x807xf32> to vector<8x683xf32>
    %734 = tpu.concatenate %725, %726, %727, %728, %729, %730, %731, %732, %733 in 0 : vector<8x683xf32>, vector<8x683xf32>, vector<8x683xf32>, vector<8x683xf32>, vector<8x683xf32>, vector<8x683xf32>, vector<8x683xf32>, vector<8x683xf32>, vector<8x683xf32> -> vector<72x683xf32>
    %cst_47 = arith.constant dense<0.000000e+00> : vector<16x683xf32>
    %735 = tpu.matmul %3, %734, %cst_47 {dimension_numbers = #tpu.dot_dimension_numbers<[1], [0], [0], [1], [0, 0, 1, 1], [], []>} : vector<16x72xf32>, vector<72x683xf32>, vector<16x683xf32> -> vector<16x683xf32>
    %736 = vector.broadcast %4 : vector<16x1xf32> to vector<16x683xf32>
    %737 = arith.addf %735, %736 : vector<16x683xf32>
    %cst_48 = arith.constant 0.000000e+00 : f32
    %738 = vector.broadcast %cst_48 : f32 to vector<16x683xf32>
    %739 = arith.cmpf ogt, %737, %738 : vector<16x683xf32>
    %740 = vector.broadcast %0 : f32 to vector<16x683xf32>
    %741 = arith.mulf %740, %737 : vector<16x683xf32>
    %742 = arith.select %739, %737, %741 : vector<16x683xi1>, vector<16x683xf32>
    %743 = vector.extract_strided_slice %742 {offsets = [0, 0], sizes = [16, 681], strides = [1, 1]} : vector<16x683xf32> to vector<16x681xf32>
    %744 = vector.extract_strided_slice %742 {offsets = [0, 2], sizes = [16, 681], strides = [1, 1]} : vector<16x683xf32> to vector<16x681xf32>
    %745 = arith.maximumf %743, %744 : vector<16x681xf32>
    %746 = vector.extract_strided_slice %745 {offsets = [0, 0], sizes = [16, 621], strides = [1, 1]} : vector<16x681xf32> to vector<16x621xf32>
    %747 = vector.extract_strided_slice %745 {offsets = [0, 60], sizes = [16, 621], strides = [1, 1]} : vector<16x681xf32> to vector<16x621xf32>
    %748 = arith.maximumf %746, %747 : vector<16x621xf32>
    %749 = tpu.concatenate %97, %190, %283, %376, %469, %562, %655, %748 in 0 : vector<16x621xf32>, vector<16x621xf32>, vector<16x621xf32>, vector<16x621xf32>, vector<16x621xf32>, vector<16x621xf32>, vector<16x621xf32>, vector<16x621xf32> -> vector<128x621xf32>
    %c0_49 = arith.constant 0 : index
    %c0_50 = arith.constant 0 : index
    %750 = vector.load %arg6[%c0_49, %c0_50] : memref<621x36xf32, #tpu.memory_space<vmem>>, vector<621x36xf32>
    %cst_51 = arith.constant dense<0.000000e+00> : vector<128x36xf32>
    %751 = tpu.matmul %749, %750, %cst_51 {dimension_numbers = #tpu.dot_dimension_numbers<[1], [0], [0], [1], [0, 0, 1, 1], [], []>} : vector<128x621xf32>, vector<621x36xf32>, vector<128x36xf32> -> vector<128x36xf32>
    %752 = vector.extract_strided_slice %751 {offsets = [0, 0], sizes = [16, 36], strides = [1, 1]} : vector<128x36xf32> to vector<16x36xf32>
    %c0_52 = arith.constant 0 : index
    %c0_53 = arith.constant 0 : index
    %c0_54 = arith.constant 0 : index
    %753 = vector.load %arg8[%c0_52, %c0_53, %c0_54] : memref<8x16x36xf32, #tpu.memory_space<vmem>>, vector<1x16x36xf32>
    %754 = vector.shape_cast %753 : vector<1x16x36xf32> to vector<16x36xf32>
    %755 = vector.shape_cast %752 : vector<16x36xf32> to vector<1x16x36xf32>
    tpu.vector_store %arg8[%c0_52, %c0_53, %c0_54], %755 {strides = array<i32>} : memref<8x16x36xf32, #tpu.memory_space<vmem>>, vector<1x16x36xf32>,
    %756 = vector.extract_strided_slice %751 {offsets = [16, 0], sizes = [16, 36], strides = [1, 1]} : vector<128x36xf32> to vector<16x36xf32>
    %c1_55 = arith.constant 1 : index
    %c0_56 = arith.constant 0 : index
    %c0_57 = arith.constant 0 : index
    %757 = vector.load %arg8[%c1_55, %c0_56, %c0_57] : memref<8x16x36xf32, #tpu.memory_space<vmem>>, vector<1x16x36xf32>
    %758 = vector.shape_cast %757 : vector<1x16x36xf32> to vector<16x36xf32>
    %759 = vector.shape_cast %756 : vector<16x36xf32> to vector<1x16x36xf32>
    tpu.vector_store %arg8[%c1_55, %c0_56, %c0_57], %759 {strides = array<i32>} : memref<8x16x36xf32, #tpu.memory_space<vmem>>, vector<1x16x36xf32>,
    %760 = vector.extract_strided_slice %751 {offsets = [32, 0], sizes = [16, 36], strides = [1, 1]} : vector<128x36xf32> to vector<16x36xf32>
    %c2_58 = arith.constant 2 : index
    %c0_59 = arith.constant 0 : index
    %c0_60 = arith.constant 0 : index
    %761 = vector.load %arg8[%c2_58, %c0_59, %c0_60] : memref<8x16x36xf32, #tpu.memory_space<vmem>>, vector<1x16x36xf32>
    %762 = vector.shape_cast %761 : vector<1x16x36xf32> to vector<16x36xf32>
    %763 = vector.shape_cast %760 : vector<16x36xf32> to vector<1x16x36xf32>
    tpu.vector_store %arg8[%c2_58, %c0_59, %c0_60], %763 {strides = array<i32>} : memref<8x16x36xf32, #tpu.memory_space<vmem>>, vector<1x16x36xf32>,
    %764 = vector.extract_strided_slice %751 {offsets = [48, 0], sizes = [16, 36], strides = [1, 1]} : vector<128x36xf32> to vector<16x36xf32>
    %c3_61 = arith.constant 3 : index
    %c0_62 = arith.constant 0 : index
    %c0_63 = arith.constant 0 : index
    %765 = vector.load %arg8[%c3_61, %c0_62, %c0_63] : memref<8x16x36xf32, #tpu.memory_space<vmem>>, vector<1x16x36xf32>
    %766 = vector.shape_cast %765 : vector<1x16x36xf32> to vector<16x36xf32>
    %767 = vector.shape_cast %764 : vector<16x36xf32> to vector<1x16x36xf32>
    tpu.vector_store %arg8[%c3_61, %c0_62, %c0_63], %767 {strides = array<i32>} : memref<8x16x36xf32, #tpu.memory_space<vmem>>, vector<1x16x36xf32>,
    %768 = vector.extract_strided_slice %751 {offsets = [64, 0], sizes = [16, 36], strides = [1, 1]} : vector<128x36xf32> to vector<16x36xf32>
    %c4_64 = arith.constant 4 : index
    %c0_65 = arith.constant 0 : index
    %c0_66 = arith.constant 0 : index
    %769 = vector.load %arg8[%c4_64, %c0_65, %c0_66] : memref<8x16x36xf32, #tpu.memory_space<vmem>>, vector<1x16x36xf32>
    %770 = vector.shape_cast %769 : vector<1x16x36xf32> to vector<16x36xf32>
    %771 = vector.shape_cast %768 : vector<16x36xf32> to vector<1x16x36xf32>
    tpu.vector_store %arg8[%c4_64, %c0_65, %c0_66], %771 {strides = array<i32>} : memref<8x16x36xf32, #tpu.memory_space<vmem>>, vector<1x16x36xf32>,
    %772 = vector.extract_strided_slice %751 {offsets = [80, 0], sizes = [16, 36], strides = [1, 1]} : vector<128x36xf32> to vector<16x36xf32>
    %c5_67 = arith.constant 5 : index
    %c0_68 = arith.constant 0 : index
    %c0_69 = arith.constant 0 : index
    %773 = vector.load %arg8[%c5_67, %c0_68, %c0_69] : memref<8x16x36xf32, #tpu.memory_space<vmem>>, vector<1x16x36xf32>
    %774 = vector.shape_cast %773 : vector<1x16x36xf32> to vector<16x36xf32>
    %775 = vector.shape_cast %772 : vector<16x36xf32> to vector<1x16x36xf32>
    tpu.vector_store %arg8[%c5_67, %c0_68, %c0_69], %775 {strides = array<i32>} : memref<8x16x36xf32, #tpu.memory_space<vmem>>, vector<1x16x36xf32>,
    %776 = vector.extract_strided_slice %751 {offsets = [96, 0], sizes = [16, 36], strides = [1, 1]} : vector<128x36xf32> to vector<16x36xf32>
    %c6_70 = arith.constant 6 : index
    %c0_71 = arith.constant 0 : index
    %c0_72 = arith.constant 0 : index
    %777 = vector.load %arg8[%c6_70, %c0_71, %c0_72] : memref<8x16x36xf32, #tpu.memory_space<vmem>>, vector<1x16x36xf32>
    %778 = vector.shape_cast %777 : vector<1x16x36xf32> to vector<16x36xf32>
    %779 = vector.shape_cast %776 : vector<16x36xf32> to vector<1x16x36xf32>
    tpu.vector_store %arg8[%c6_70, %c0_71, %c0_72], %779 {strides = array<i32>} : memref<8x16x36xf32, #tpu.memory_space<vmem>>, vector<1x16x36xf32>,
    %780 = vector.extract_strided_slice %751 {offsets = [112, 0], sizes = [16, 36], strides = [1, 1]} : vector<128x36xf32> to vector<16x36xf32>
    %c7_73 = arith.constant 7 : index
    %c0_74 = arith.constant 0 : index
    %c0_75 = arith.constant 0 : index
    %781 = vector.load %arg8[%c7_73, %c0_74, %c0_75] : memref<8x16x36xf32, #tpu.memory_space<vmem>>, vector<1x16x36xf32>
    %782 = vector.shape_cast %781 : vector<1x16x36xf32> to vector<16x36xf32>
    %783 = vector.shape_cast %780 : vector<16x36xf32> to vector<1x16x36xf32>
    tpu.vector_store %arg8[%c7_73, %c0_74, %c0_75], %783 {strides = array<i32>} : memref<8x16x36xf32, #tpu.memory_space<vmem>>, vector<1x16x36xf32>,
    return
  }
  func.func @transform_0(%arg0: i32) -> (i32, i32) {
    %c0_i32 = arith.constant 0 : i32
    %c0_i32_0 = arith.constant 0 : i32
    return %arg0, %c0_i32 : i32, i32
  }
  func.func @transform_1(%arg0: i32) -> (i32, i32) {
    %c0_i32 = arith.constant 0 : i32
    %c0_i32_0 = arith.constant 0 : i32
    %c0_i32_1 = arith.constant 0 : i32
    return %c0_i32, %c0_i32_0 : i32, i32
  }
  func.func @transform_2(%arg0: i32) -> (i32, i32) {
    %c0_i32 = arith.constant 0 : i32
    %c0_i32_0 = arith.constant 0 : i32
    %c0_i32_1 = arith.constant 0 : i32
    return %c0_i32, %c0_i32_0 : i32, i32
  }
  func.func @transform_3(%arg0: i32) -> (i32, i32) {
    %c0_i32 = arith.constant 0 : i32
    %c0_i32_0 = arith.constant 0 : i32
    %c0_i32_1 = arith.constant 0 : i32
    return %c0_i32, %c0_i32_0 : i32, i32
  }
  func.func @transform_4(%arg0: i32) -> (i32, i32) {
    %c0_i32 = arith.constant 0 : i32
    %c0_i32_0 = arith.constant 0 : i32
    %c0_i32_1 = arith.constant 0 : i32
    return %c0_i32, %c0_i32_0 : i32, i32
  }
  func.func @transform_5(%arg0: i32) -> (i32, i32) {
    %c0_i32 = arith.constant 0 : i32
    %c0_i32_0 = arith.constant 0 : i32
    %c0_i32_1 = arith.constant 0 : i32
    return %c0_i32, %c0_i32_0 : i32, i32
  }
  func.func @transform_6(%arg0: i32) -> (i32, i32) {
    %c0_i32 = arith.constant 0 : i32
    %c0_i32_0 = arith.constant 0 : i32
    %c0_i32_1 = arith.constant 0 : i32
    return %c0_i32, %c0_i32_0 : i32, i32
  }
  func.func @transform_7(%arg0: i32) -> (i32, i32, i32) {
    %c0_i32 = arith.constant 0 : i32
    %c0_i32_0 = arith.constant 0 : i32
    %c0_i32_1 = arith.constant 0 : i32
    return %arg0, %c0_i32, %c0_i32_0 : i32, i32, i32
  }
}

</mosaic_0001>

<llo_original>
// kernel: network_forward.3
$region0: #{network_forward.3}
  #allocation0 [shape = 'u32[]', space=smem, size = 0x4, offset = 0x4, fixed_abs, tag = 'smem constant byte address 0x4 - core index']
  #allocation1 [shape = 'u32[144,128]{1,0:T(1,128)}', space=vmem, size = 0x12000, scoped, tag = 'internal scratch']
  %s0 = inlined_call_operand.vmem [shape: f32[8,576], index: 0, kind: input, shape index: {}]
  %s1 = inlined_call_operand.vmem [shape: f32[576,128], index: 1, kind: input, shape index: {}]
  %s2 = inlined_call_operand.vmem [shape: f32[1,128], index: 2, kind: input, shape index: {}]
  %s3 = inlined_call_operand.vmem [shape: f32[128,10], index: 3, kind: input, shape index: {}]
  %s4 = inlined_call_operand.vmem [shape: f32[1,10], index: 4, kind: input, shape index: {}]
  %s5 = inlined_call_operand.vmem [shape: f32[8,10], index: 5, kind: output, shape index: {}]
  %s6 = sld [smem:[#allocation0]]
  $region30: #{network_forward.3} parent=0
    _
  %s8 = ssub.s32 1, %s6
  %s9 = scalar_select 0, %s8, %s6
  // Predicated region
  $region2: #{network_forward.3} parent=0 // pred_check
    _
  $region3: #{network_forward.3} parent=0 // pred_check_branch
    %11 = sbr.rel (0) target = $region5
  $region4: #{network_forward.3} parent=0 // pred_region
    _
  $region5: #{network_forward.3} parent=0 // pred_fallthru
    _
  // Predicated region
  $region6: #{network_forward.3} parent=0 // pred_check
    _
  $region7: #{network_forward.3} parent=0 // pred_check_branch
    %13 = sbr.rel (0) target = $region9
  $region8: #{network_forward.3} parent=0 // pred_region
    _
  $region9: #{network_forward.3} parent=0 // pred_fallthru
    _
  // Predicated region
  $region10: #{network_forward.3} parent=0 // pred_check
    _
  $region11: #{network_forward.3} parent=0 // pred_check_branch
    %15 = sbr.rel (0) target = $region13
  $region12: #{network_forward.3} parent=0 // pred_region
    _
  $region13: #{network_forward.3} parent=0 // pred_fallthru
    _
  // Predicated region
  $region14: #{network_forward.3} parent=0 // pred_check
    _
  $region15: #{network_forward.3} parent=0 // pred_check_branch
    %17 = sbr.rel (0) target = $region17
  $region16: #{network_forward.3} parent=0 // pred_region
    _
  $region17: #{network_forward.3} parent=0 // pred_fallthru
    _
  // Predicated region
  $region18: #{network_forward.3} parent=0 // pred_check
    _
  $region19: #{network_forward.3} parent=0 // pred_check_branch
    %19 = sbr.rel (0) target = $region21
  $region20: #{network_forward.3} parent=0 // pred_region
    _
  $region21: #{network_forward.3} parent=0 // pred_fallthru
    _
  %v20 = vld [vmem:[%s0] sm:$0xff]
  %v21 = vld [vmem:[%s0 + $0x8] sm:$0xff]
  %v22 = vld [vmem:[%s0 + $0x10] sm:$0xff]
  %v23 = vld [vmem:[%s0 + $0x18] sm:$0xff]
  %v24 = vld [vmem:[%s0 + $0x20] sm:$0xff]
  %v25 = vld [vmem:[%s1] sm:$0xff]
  %v26 = vld [vmem:[%s1 + $0x8] sm:$0xff]
  %v27 = vld [vmem:[%s1 + $0x10] sm:$0xff]
  %v28 = vld [vmem:[%s1 + $0x18] sm:$0xff]
  %v29 = vld [vmem:[%s1 + $0x20] sm:$0xff]
  %v30 = vld [vmem:[%s1 + $0x28] sm:$0xff]
  %v31 = vld [vmem:[%s1 + $0x30] sm:$0xff]
  %v32 = vld [vmem:[%s1 + $0x38] sm:$0xff]
  %v33 = vld [vmem:[%s1 + $0x40] sm:$0xff]
  %v34 = vld [vmem:[%s1 + $0x48] sm:$0xff]
  %v35 = vld [vmem:[%s1 + $0x50] sm:$0xff]
  %v36 = vld [vmem:[%s1 + $0x58] sm:$0xff]
  %v37 = vld [vmem:[%s1 + $0x60] sm:$0xff]
  %v38 = vld [vmem:[%s1 + $0x68] sm:$0xff]
  %v39 = vld [vmem:[%s1 + $0x70] sm:$0xff]
  %v40 = vld [vmem:[%s1 + $0x78] sm:$0xff]
  %v41 = vld [vmem:[%s1 + $0x80] sm:$0xff]
  %v42 = vld [vmem:[%s1 + $0x88] sm:$0xff]
  %v43 = vld [vmem:[%s1 + $0x90] sm:$0xff]
  %v44 = vld [vmem:[%s1 + $0x98] sm:$0xff]
  %v45 = vld [vmem:[%s1 + $0xa0] sm:$0xff]
  %v46 = vld [vmem:[%s1 + $0xa8] sm:$0xff]
  %v47 = vld [vmem:[%s1 + $0xb0] sm:$0xff]
  %v48 = vld [vmem:[%s1 + $0xb8] sm:$0xff]
  %v49 = vld [vmem:[%s1 + $0xc0] sm:$0xff]
  %v50 = vld [vmem:[%s1 + $0xc8] sm:$0xff]
  %v51 = vld [vmem:[%s1 + $0xd0] sm:$0xff]
  %v52 = vld [vmem:[%s1 + $0xd8] sm:$0xff]
  %v53 = vld [vmem:[%s1 + $0xe0] sm:$0xff]
  %v54 = vld [vmem:[%s1 + $0xe8] sm:$0xff]
  %v55 = vld [vmem:[%s1 + $0xf0] sm:$0xff]
  %v56 = vld [vmem:[%s1 + $0xf8] sm:$0xff]
  %v57 = vld [vmem:[%s1 + $0x100] sm:$0xff]
  %v58 = vld [vmem:[%s1 + $0x108] sm:$0xff]
  %v59 = vld [vmem:[%s1 + $0x110] sm:$0xff]
  %v60 = vld [vmem:[%s1 + $0x118] sm:$0xff]
  %v61 = vld [vmem:[%s1 + $0x120] sm:$0xff]
  %v62 = vld [vmem:[%s1 + $0x128] sm:$0xff]
  %v63 = vld [vmem:[%s1 + $0x130] sm:$0xff]
  %v64 = vld [vmem:[%s1 + $0x138] sm:$0xff]
  %v65 = vld [vmem:[%s1 + $0x140] sm:$0xff]
  %v66 = vld [vmem:[%s1 + $0x148] sm:$0xff]
  %v67 = vld [vmem:[%s1 + $0x150] sm:$0xff]
  %v68 = vld [vmem:[%s1 + $0x158] sm:$0xff]
  %v69 = vld [vmem:[%s1 + $0x160] sm:$0xff]
  %v70 = vld [vmem:[%s1 + $0x168] sm:$0xff]
  %v71 = vld [vmem:[%s1 + $0x170] sm:$0xff]
  %v72 = vld [vmem:[%s1 + $0x178] sm:$0xff]
  %v73 = vld [vmem:[%s1 + $0x180] sm:$0xff]
  %v74 = vld [vmem:[%s1 + $0x188] sm:$0xff]
  %v75 = vld [vmem:[%s1 + $0x190] sm:$0xff]
  %v76 = vld [vmem:[%s1 + $0x198] sm:$0xff]
  %v77 = vld [vmem:[%s1 + $0x1a0] sm:$0xff]
  %v78 = vld [vmem:[%s1 + $0x1a8] sm:$0xff]
  %v79 = vld [vmem:[%s1 + $0x1b0] sm:$0xff]
  %v80 = vld [vmem:[%s1 + $0x1b8] sm:$0xff]
  %v81 = vld [vmem:[%s1 + $0x1c0] sm:$0xff]
  %v82 = vld [vmem:[%s1 + $0x1c8] sm:$0xff]
  %v83 = vld [vmem:[%s1 + $0x1d0] sm:$0xff]
  %v84 = vld [vmem:[%s1 + $0x1d8] sm:$0xff]
  %v85 = vld [vmem:[%s1 + $0x1e0] sm:$0xff]
  %v86 = vld [vmem:[%s1 + $0x1e8] sm:$0xff]
  %v87 = vld [vmem:[%s1 + $0x1f0] sm:$0xff]
  %v88 = vld [vmem:[%s1 + $0x1f8] sm:$0xff]
  %v89 = vld [vmem:[%s1 + $0x200] sm:$0xff]
  %v90 = vld [vmem:[%s1 + $0x208] sm:$0xff]
  %v91 = vld [vmem:[%s1 + $0x210] sm:$0xff]
  %v92 = vld [vmem:[%s1 + $0x218] sm:$0xff]
  %v93 = vld [vmem:[%s1 + $0x220] sm:$0xff]
  %v94 = vld [vmem:[%s1 + $0x228] sm:$0xff]
  %v95 = vld [vmem:[%s1 + $0x230] sm:$0xff]
  %v96 = vld [vmem:[%s1 + $0x238] sm:$0xff]
  %v97 = vld [vmem:[%s2] sm:$0x1]
  %v99 = vlaneseq
  %v100 = vshrl.u32 %v99, 7
  %v101 = vsub.s32 0, %v100
  %v102 = vrot.slane %v97, %v101
  %vm104 = vcmask 523264
  %v106 = vsel %vm104, %v24, 0
  %108 = vmatprep.subr.mxu0 0.0
  %109 = vmatpush1.msra.mxu0 %v25
  %110 = vmatprep.subr.mxu0 0.0
  %111 = vmatpush1.msra.mxu0 %v26
  %112 = vmatprep.subr.mxu0 0.0
  %113 = vmatpush1.msra.mxu0 %v27
  %114 = vmatprep.subr.mxu0 0.0
  %115 = vmatpush1.msra.mxu0 %v28
  %116 = vmatprep.subr.mxu0 0.0
  %117 = vmatpush1.msra.mxu0 %v29
  %118 = vmatprep.subr.mxu0 0.0
  %119 = vmatpush1.msra.mxu0 %v30
  %120 = vmatprep.subr.mxu0 0.0
  %121 = vmatpush1.msra.mxu0 %v31
  %122 = vmatprep.subr.mxu0 0.0
  %123 = vmatpush1.msra.mxu0 %v32
  %124 = vmatprep.subr.mxu0 0.0
  %125 = vmatpush1.msra.mxu0 %v33
  %126 = vmatprep.subr.mxu0 0.0
  %127 = vmatpush1.msra.mxu0 %v34
  %128 = vmatprep.subr.mxu0 0.0
  %129 = vmatpush1.msra.mxu0 %v35
  %130 = vmatprep.subr.mxu0 0.0
  %131 = vmatpush1.msra.mxu0 %v36
  %132 = vmatprep.subr.mxu0 0.0
  %133 = vmatpush1.msra.mxu0 %v37
  %134 = vmatprep.subr.mxu0 0.0
  %135 = vmatpush1.msra.mxu0 %v38
  %136 = vmatprep.subr.mxu0 0.0
  %137 = vmatpush1.msra.mxu0 %v39
  %138 = vmatprep.subr.mxu0 0.0
  %139 = vmatpush1.msra.mxu0 %v40
  %140 = vmatprep.subr.mxu0 0.0
  %141 = vmatpush1.msra.mxu0 %v41
  %142 = vmatprep.subr.mxu0 0.0
  %143 = vmatpush1.msra.mxu0 %v42
  %144 = vmatprep.subr.mxu0 0.0
  %145 = vmatpush1.msra.mxu0 %v43
  %146 = vmatprep.subr.mxu0 0.0
  %147 = vmatpush1.msra.mxu0 %v44
  %148 = vmatprep.subr.mxu0 0.0
  %149 = vmatpush1.msra.mxu0 %v45
  %150 = vmatprep.subr.mxu0 0.0
  %151 = vmatpush1.msra.mxu0 %v46
  %152 = vmatprep.subr.mxu0 0.0
  %153 = vmatpush1.msra.mxu0 %v47
  %154 = vmatprep.subr.mxu0 0.0
  %155 = vmatpush1.msra.mxu0 %v48
  %156 = vmatprep.subr.mxu0 0.0
  %157 = vmatpush1.msra.mxu0 %v49
  %158 = vmatprep.subr.mxu0 0.0
  %159 = vmatpush1.msra.mxu0 %v50
  %160 = vmatprep.subr.mxu0 0.0
  %161 = vmatpush1.msra.mxu0 %v51
  %162 = vmatprep.subr.mxu0 0.0
  %163 = vmatpush1.msra.mxu0 %v52
  %164 = vmatprep.subr.mxu0 0.0
  %165 = vmatpush1.msra.mxu0 %v53
  %166 = vmatprep.subr.mxu0 0.0
  %167 = vmatpush1.msra.mxu0 %v54
  %168 = vmatprep.subr.mxu0 0.0
  %169 = vmatpush1.msra.mxu0 %v55
  %170 = vmatprep.subr.mxu0 0.0
  %171 = vmatpush1.msra.mxu0 %v56
  %172 = vmatprep.mubr.f32.mxu0 %v21
  %173 = vmatmul.mubr.f32.gmra.mrb[0].mxu0 %v20
  %v174 = vpop.f32.mrb[0].mxu0
  %v175 = vadd.f32 %v102, %v174
  %v176 = vpop.f32.mrb[0].mxu0
  %177 = vdwg.mxu0
  %178 = vmatprep.subr.mxu0 0.0
  %179 = vmatpush1.msra.mxu0 %v57
  %180 = vmatprep.subr.mxu0 0.0
  %181 = vmatpush1.msra.mxu0 %v58
  %182 = vmatprep.subr.mxu0 0.0
  %183 = vmatpush1.msra.mxu0 %v59
  %184 = vmatprep.subr.mxu0 0.0
  %185 = vmatpush1.msra.mxu0 %v60
  %186 = vmatprep.subr.mxu0 0.0
  %187 = vmatpush1.msra.mxu0 %v61
  %188 = vmatprep.subr.mxu0 0.0
  %189 = vmatpush1.msra.mxu0 %v62
  %190 = vmatprep.subr.mxu0 0.0
  %191 = vmatpush1.msra.mxu0 %v63
  %192 = vmatprep.subr.mxu0 0.0
  %193 = vmatpush1.msra.mxu0 %v64
  %194 = vmatprep.subr.mxu0 0.0
  %195 = vmatpush1.msra.mxu0 %v65
  %196 = vmatprep.subr.mxu0 0.0
  %197 = vmatpush1.msra.mxu0 %v66
  %198 = vmatprep.subr.mxu0 0.0
  %199 = vmatpush1.msra.mxu0 %v67
  %200 = vmatprep.subr.mxu0 0.0
  %201 = vmatpush1.msra.mxu0 %v68
  %202 = vmatprep.subr.mxu0 0.0
  %203 = vmatpush1.msra.mxu0 %v69
  %204 = vmatprep.subr.mxu0 0.0
  %205 = vmatpush1.msra.mxu0 %v70
  %206 = vmatprep.subr.mxu0 0.0
  %207 = vmatpush1.msra.mxu0 %v71
  %208 = vmatprep.subr.mxu0 0.0
  %209 = vmatpush1.msra.mxu0 %v72
  %210 = vmatprep.subr.mxu0 0.0
  %211 = vmatpush1.msra.mxu0 %v73
  %212 = vmatprep.subr.mxu0 0.0
  %213 = vmatpush1.msra.mxu0 %v74
  %214 = vmatprep.subr.mxu0 0.0
  %215 = vmatpush1.msra.mxu0 %v75
  %216 = vmatprep.subr.mxu0 0.0
  %217 = vmatpush1.msra.mxu0 %v76
  %218 = vmatprep.subr.mxu0 0.0
  %219 = vmatpush1.msra.mxu0 %v77
  %220 = vmatprep.subr.mxu0 0.0
  %221 = vmatpush1.msra.mxu0 %v78
  %222 = vmatprep.subr.mxu0 0.0
  %223 = vmatpush1.msra.mxu0 %v79
  %224 = vmatprep.subr.mxu0 0.0
  %225 = vmatpush1.msra.mxu0 %v80
  %226 = vmatprep.subr.mxu0 0.0
  %227 = vmatpush1.msra.mxu0 %v81
  %228 = vmatprep.subr.mxu0 0.0
  %229 = vmatpush1.msra.mxu0 %v82
  %230 = vmatprep.subr.mxu0 0.0
  %231 = vmatpush1.msra.mxu0 %v83
  %232 = vmatprep.subr.mxu0 0.0
  %233 = vmatpush1.msra.mxu0 %v84
  %234 = vmatprep.subr.mxu0 0.0
  %235 = vmatpush1.msra.mxu0 %v85
  %236 = vmatprep.subr.mxu0 0.0
  %237 = vmatpush1.msra.mxu0 %v86
  %238 = vmatprep.subr.mxu0 0.0
  %239 = vmatpush1.msra.mxu0 %v87
  %240 = vmatprep.subr.mxu0 0.0
  %241 = vmatpush1.msra.mxu0 %v88
  %242 = vmatprep.mubr.f32.mxu0 %v23
  %243 = vmatmul.mubr.f32.gmra.mrb[0].mxu0 %v22
  %v244 = vpop.f32.mrb[0].mxu0
  %v245 = vadd.f32 %v175, %v244
  %v246 = vpop.f32.mrb[0].mxu0
  %247 = vdwg.mxu0
  %248 = vmatprep.subr.mxu0 0.0
  %249 = vmatpush1.msra.mxu0 %v89
  %250 = vmatprep.subr.mxu0 0.0
  %251 = vmatpush1.msra.mxu0 %v90
  %252 = vmatprep.subr.mxu0 0.0
  %253 = vmatpush1.msra.mxu0 %v91
  %254 = vmatprep.subr.mxu0 0.0
  %255 = vmatpush1.msra.mxu0 %v92
  %256 = vmatprep.subr.mxu0 0.0
  %257 = vmatpush1.msra.mxu0 %v93
  %258 = vmatprep.subr.mxu0 0.0
  %259 = vmatpush1.msra.mxu0 %v94
  %260 = vmatprep.subr.mxu0 0.0
  %261 = vmatpush1.msra.mxu0 %v95
  %262 = vmatprep.subr.mxu0 0.0
  %263 = vmatpush1.msra.mxu0 %v96
  %264 = vmatprep.subr.mxu0 0.0
  %265 = vmatpush1.msra.mxu0 0.0
  %266 = vmatprep.subr.mxu0 0.0
  %267 = vmatpush1.msra.mxu0 0.0
  %268 = vmatprep.subr.mxu0 0.0
  %269 = vmatpush1.msra.mxu0 0.0
  %270 = vmatprep.subr.mxu0 0.0
  %271 = vmatpush1.msra.mxu0 0.0
  %272 = vmatprep.subr.mxu0 0.0
  %273 = vmatpush1.msra.mxu0 0.0
  %274 = vmatprep.subr.mxu0 0.0
  %275 = vmatpush1.msra.mxu0 0.0
  %276 = vmatprep.subr.mxu0 0.0
  %277 = vmatpush1.msra.mxu0 0.0
  %278 = vmatprep.subr.mxu0 0.0
  %279 = vmatpush1.msra.mxu0 0.0
  %280 = vmatprep.subr.mxu0 0.0
  %281 = vmatpush1.msra.mxu0 0.0
  %282 = vmatprep.subr.mxu0 0.0
  %283 = vmatpush1.msra.mxu0 0.0
  %284 = vmatprep.subr.mxu0 0.0
  %285 = vmatpush1.msra.mxu0 0.0
  %286 = vmatprep.subr.mxu0 0.0
  %287 = vmatpush1.msra.mxu0 0.0
  %288 = vmatprep.subr.mxu0 0.0
  %289 = vmatpush1.msra.mxu0 0.0
  %290 = vmatprep.subr.mxu0 0.0
  %291 = vmatpush1.msra.mxu0 0.0
  %292 = vmatprep.subr.mxu0 0.0
  %293 = vmatpush1.msra.mxu0 0.0
  %294 = vmatprep.subr.mxu0 0.0
  %295 = vmatpush1.msra.mxu0 0.0
  %296 = vmatprep.subr.mxu0 0.0
  %297 = vmatpush1.msra.mxu0 0.0
  %298 = vmatprep.subr.mxu0 0.0
  %299 = vmatpush1.msra.mxu0 0.0
  %300 = vmatprep.subr.mxu0 0.0
  %301 = vmatpush1.msra.mxu0 0.0
  %302 = vmatprep.subr.mxu0 0.0
  %303 = vmatpush1.msra.mxu0 0.0
  %304 = vmatprep.subr.mxu0 0.0
  %305 = vmatpush1.msra.mxu0 0.0
  %306 = vmatprep.subr.mxu0 0.0
  %307 = vmatpush1.msra.mxu0 0.0
  %308 = vmatprep.subr.mxu0 0.0
  %309 = vmatpush1.msra.mxu0 0.0
  %310 = vmatprep.subr.mxu0 0.0
  %311 = vmatpush1.msra.mxu0 0.0
  %312 = vmatprep.mubr.f32.mxu0 0.0
  %313 = vmatmul.mubr.f32.gmra.mrb[0].mxu0 %v106
  %v314 = vpop.f32.mrb[0].mxu0
  %v315 = vadd.f32 %v245, %v314
  %v316 = vpop.f32.mrb[0].mxu0
  %317 = vdwg.mxu0
  %v318 = vld [vmem:[%s3] sm:$0xff]
  %v319 = vld [vmem:[%s3 + $0x8] sm:$0xff]
  %v320 = vld [vmem:[%s3 + $0x10] sm:$0xff]
  %v321 = vld [vmem:[%s3 + $0x18] sm:$0xff]
  %v322 = vld [vmem:[%s3 + $0x20] sm:$0xff]
  %v323 = vld [vmem:[%s3 + $0x28] sm:$0xff]
  %v324 = vld [vmem:[%s3 + $0x30] sm:$0xff]
  %v325 = vld [vmem:[%s3 + $0x38] sm:$0xff]
  %v326 = vld [vmem:[%s3 + $0x40] sm:$0xff]
  %v327 = vld [vmem:[%s3 + $0x48] sm:$0xff]
  %v328 = vld [vmem:[%s3 + $0x50] sm:$0xff]
  %v329 = vld [vmem:[%s3 + $0x58] sm:$0xff]
  %v330 = vld [vmem:[%s3 + $0x60] sm:$0xff]
  %v331 = vld [vmem:[%s3 + $0x68] sm:$0xff]
  %v332 = vld [vmem:[%s3 + $0x70] sm:$0xff]
  %v333 = vld [vmem:[%s3 + $0x78] sm:$0xff]
  %v334 = vld [vmem:[%s4] sm:$0x1]
  %v336 = vlaneseq
  %v337 = vshrl.u32 %v336, 7
  %v338 = vsub.s32 0, %v337
  %v339 = vrot.slane %v334, %v338
  %341 = vmatprep.subr.mxu0 0.0
  %342 = vmatpush1.msra.mxu0 %v318
  %343 = vmatprep.subr.mxu0 0.0
  %344 = vmatpush1.msra.mxu0 %v319
  %345 = vmatprep.subr.mxu0 0.0
  %346 = vmatpush1.msra.mxu0 %v320
  %347 = vmatprep.subr.mxu0 0.0
  %348 = vmatpush1.msra.mxu0 %v321
  %349 = vmatprep.subr.mxu0 0.0
  %350 = vmatpush1.msra.mxu0 %v322
  %351 = vmatprep.subr.mxu0 0.0
  %352 = vmatpush1.msra.mxu0 %v323
  %353 = vmatprep.subr.mxu0 0.0
  %354 = vmatpush1.msra.mxu0 %v324
  %355 = vmatprep.subr.mxu0 0.0
  %356 = vmatpush1.msra.mxu0 %v325
  %357 = vmatprep.subr.mxu0 0.0
  %358 = vmatpush1.msra.mxu0 %v326
  %359 = vmatprep.subr.mxu0 0.0
  %360 = vmatpush1.msra.mxu0 %v327
  %361 = vmatprep.subr.mxu0 0.0
  %362 = vmatpush1.msra.mxu0 %v328
  %363 = vmatprep.subr.mxu0 0.0
  %364 = vmatpush1.msra.mxu0 %v329
  %365 = vmatprep.subr.mxu0 0.0
  %366 = vmatpush1.msra.mxu0 %v330
  %367 = vmatprep.subr.mxu0 0.0
  %368 = vmatpush1.msra.mxu0 %v331
  %369 = vmatprep.subr.mxu0 0.0
  %370 = vmatpush1.msra.mxu0 %v332
  %371 = vmatprep.subr.mxu0 0.0
  %372 = vmatpush1.msra.mxu0 %v333
  %373 = vmatprep.subr.mxu0 0.0
  %374 = vmatpush1.msra.mxu0 0.0
  %375 = vmatprep.subr.mxu0 0.0
  %376 = vmatpush1.msra.mxu0 0.0
  %377 = vmatprep.subr.mxu0 0.0
  %378 = vmatpush1.msra.mxu0 0.0
  %379 = vmatprep.subr.mxu0 0.0
  %380 = vmatpush1.msra.mxu0 0.0
  %381 = vmatprep.subr.mxu0 0.0
  %382 = vmatpush1.msra.mxu0 0.0
  %383 = vmatprep.subr.mxu0 0.0
  %384 = vmatpush1.msra.mxu0 0.0
  %385 = vmatprep.subr.mxu0 0.0
  %386 = vmatpush1.msra.mxu0 0.0
  %387 = vmatprep.subr.mxu0 0.0
  %388 = vmatpush1.msra.mxu0 0.0
  %389 = vmatprep.subr.mxu0 0.0
  %390 = vmatpush1.msra.mxu0 0.0
  %391 = vmatprep.subr.mxu0 0.0
  %392 = vmatpush1.msra.mxu0 0.0
  %393 = vmatprep.subr.mxu0 0.0
  %394 = vmatpush1.msra.mxu0 0.0
  %395 = vmatprep.subr.mxu0 0.0
  %396 = vmatpush1.msra.mxu0 0.0
  %397 = vmatprep.subr.mxu0 0.0
  %398 = vmatpush1.msra.mxu0 0.0
  %399 = vmatprep.subr.mxu0 0.0
  %400 = vmatpush1.msra.mxu0 0.0
  %401 = vmatprep.subr.mxu0 0.0
  %402 = vmatpush1.msra.mxu0 0.0
  %403 = vmatprep.subr.mxu0 0.0
  %404 = vmatpush1.msra.mxu0 0.0
  %405 = vmatprep.mubr.f32.mxu0 0.0
  %406 = vmatmul.mubr.f32.gmra.mrb[0].mxu0 %v315
  %v407 = vpop.f32.mrb[0].mxu0
  %v408 = vadd.f32 %v339, %v407
  %v409 = vpop.f32.mrb[0].mxu0
  %410 = vdwg.mxu0
  %v411 = vtanh.pop %v408
  %vm412 = vcmask 80896
  %v413 = vsel %vm412, %v411, -inf
  %414 = vmax.xlane.f32.xlu0 %v413
  %v415 = vpop.xlane.xlu0 %414
  %v416 = vsub.f32 %v411, %v415
  %v417 = vmul.f32 %v416, 1.442695
  %v418 = vpow.pop %v417
  %v419 = vsel %vm412, %v418, 0.0
  %420 = vadd.xlane.f32.xlu0 %v419
  %v421 = vpop.xlane.xlu0 %420
  %v422 = vlog2.pop %v421
  %v423 = vmul.f32 %v422, 0.6931472
  %v424 = vadd.f32 %v415, %v423
  %v425 = vsub.f32 %v411, %v424
  %426 = vst.msk [vmem:[%s5] sm:$0xff] %vm412, %v425
  // Predicated region
  $region22: #{network_forward.3} parent=0 // pred_check
    _
  $region23: #{network_forward.3} parent=0 // pred_check_branch
    %428 = sbr.rel (0) target = $region25
  $region24: #{network_forward.3} parent=0 // pred_region
    _
  $region25: #{network_forward.3} parent=0 // pred_fallthru
    _
  // Predicated region
  $region26: #{network_forward.3} parent=0 // pred_check
    _
  $region27: #{network_forward.3} parent=0 // pred_check_branch
    %430 = sbr.rel (0) target = $region29
  $region28: #{network_forward.3} parent=0 // pred_region
    _
  $region29: #{network_forward.3} parent=0 // pred_fallthru
    _

// kernel: network_forward.2
$region0: #{network_forward.2}
  #allocation0 [shape = 'u32[]', space=smem, size = 0x4, offset = 0x4, fixed_abs, tag = 'smem constant byte address 0x4 - core index']
  #allocation1 [shape = 'u32[144,128]{1,0:T(1,128)}', space=vmem, size = 0x12000, scoped, tag = 'internal scratch']
  #allocation2 [shape = 'f32[1,1]{1,0:T(1,128)S(6)}', space=smem, size = 0x200, scoped, tag = 'scoped memory for network_forward.2']
  %s0 = inlined_call_operand.vmem [shape: f32[8,900], index: 0, kind: input, shape index: {}]
  %s1 = inlined_call_operand.vmem [shape: f32[8,9], index: 1, kind: input, shape index: {}]
  %s2 = inlined_call_operand.vmem [shape: f32[8,1], index: 2, kind: input, shape index: {}]
  %s3 = inlined_call_operand.vmem [shape: f32[16,72], index: 3, kind: input, shape index: {}]
  %s4 = inlined_call_operand.vmem [shape: f32[16,1], index: 4, kind: input, shape index: {}]
  %s5 = inlined_call_operand.vmem [shape: f32[621,36], index: 5, kind: input, shape index: {}]
  %s6 = inlined_call_operand.<no memory space> [shape: f32[1,1], index: 6, kind: input, shape index: {}]
  %s7 = inlined_call_operand.vmem [shape: f32[8,16,36], index: 7, kind: output, shape index: {}]
  %s8 = sld [smem:[#allocation0]]
  $region38: #{network_forward.2} parent=0
    _
  %s10 = ssub.s32 1, %s8
  %s11 = scalar_select 0, %s10, %s8
  %12 = sst [smem:[#allocation2]] %s6
  // Predicated region
  $region2: #{network_forward.2} parent=0 // pred_check
    _
  $region3: #{network_forward.2} parent=0 // pred_check_branch
    %14 = sbr.rel (0) target = $region5
  $region4: #{network_forward.2} parent=0 // pred_region
    _
  $region5: #{network_forward.2} parent=0 // pred_fallthru
    _
  // Predicated region
  $region6: #{network_forward.2} parent=0 // pred_check
    _
  $region7: #{network_forward.2} parent=0 // pred_check_branch
    %16 = sbr.rel (0) target = $region9
  $region8: #{network_forward.2} parent=0 // pred_region
    _
  $region9: #{network_forward.2} parent=0 // pred_fallthru
    _
  // Predicated region
  $region10: #{network_forward.2} parent=0 // pred_check
    _
  $region11: #{network_forward.2} parent=0 // pred_check_branch
    %18 = sbr.rel (0) target = $region13
  $region12: #{network_forward.2} parent=0 // pred_region
    _
  $region13: #{network_forward.2} parent=0 // pred_fallthru
    _
  // Predicated region
  $region14: #{network_forward.2} parent=0 // pred_check
    _
  $region15: #{network_forward.2} parent=0 // pred_check_branch
    %20 = sbr.rel (0) target = $region17
  $region16: #{network_forward.2} parent=0 // pred_region
    _
  $region17: #{network_forward.2} parent=0 // pred_fallthru
    _
  // Predicated region
  $region18: #{network_forward.2} parent=0 // pred_check
    _
  $region19: #{network_forward.2} parent=0 // pred_check_branch
    %22 = sbr.rel (0) target = $region21
  $region20: #{network_forward.2} parent=0 // pred_region
    _
  $region21: #{network_forward.2} parent=0 // pred_fallthru
    _
  // Predicated region
  $region22: #{network_forward.2} parent=0 // pred_check
    _
  $region23: #{network_forward.2} parent=0 // pred_check_branch
    %24 = sbr.rel (0) target = $region25
  $region24: #{network_forward.2} parent=0 // pred_region
    _
  $region25: #{network_forward.2} parent=0 // pred_fallthru
    _
  // Predicated region
  $region26: #{network_forward.2} parent=0 // pred_check
    _
  $region27: #{network_forward.2} parent=0 // pred_check_branch
    %26 = sbr.rel (0) target = $region29
  $region28: #{network_forward.2} parent=0 // pred_region
    _
  $region29: #{network_forward.2} parent=0 // pred_fallthru
    _
  %s27 = sld [smem:[#allocation2]]
  %v28 = vld [vmem:[%s1] sm:$0xff]
  %v29 = vld [vmem:[%s2] sm:$0xff]
  %v30 = vld [vmem:[%s3] sm:$0xff]
  %v31 = vld [vmem:[%s3 + $0x8] sm:$0xff]
  %v32 = vld [vmem:[%s4] sm:$0xff]
  %v33 = vld [vmem:[%s4 + $0x8] sm:$0xff]
  %v34 = vld [vmem:[%s0] ss:$8 sm:$0xf]
  %v35 = vld [vmem:[%s0] ss:$8 sm:$0xf0]
  %v36 = vor.u32 %v34, %v35
  %38 = vset.pattern.permute.xlu0 0
  %39 = vperm.xlu0 %38, %v28
  %v40 = vpop.permute.xlu0 %39
  %v43 = vlaneseq
  %v44 = vshrl.u32 %v43, 7
  %v45 = vsub.s32 0, %v44
  %v46 = vrot.slane %v36, %v45
  %v47 = vlaneseq
  %v48 = vshrl.u32 %v47, 7
  %v49 = vsub.s32 1, %v48
  %v50 = vrot.slane %v36, %v49
  %v51 = vlaneseq
  %v52 = vshrl.u32 %v51, 7
  %v53 = vsub.s32 2, %v52
  %v54 = vrot.slane %v36, %v53
  %v55 = vlaneseq
  %v56 = vshrl.u32 %v55, 7
  %v57 = vsub.s32 3, %v56
  %v58 = vrot.slane %v36, %v57
  %v59 = vlaneseq
  %v60 = vshrl.u32 %v59, 7
  %v61 = vsub.s32 4, %v60
  %v62 = vrot.slane %v36, %v61
  %v63 = vlaneseq
  %v64 = vshrl.u32 %v63, 7
  %v65 = vsub.s32 5, %v64
  %v66 = vrot.slane %v36, %v65
  %v67 = vlaneseq
  %v68 = vshrl.u32 %v67, 7
  %v69 = vsub.s32 6, %v68
  %v70 = vrot.slane %v36, %v69
  %v78 = vmul.f32 %v40, %v46
  %v79 = vmul.f32 %v40, %v50
  %v80 = vmul.f32 %v40, %v54
  %v81 = vmul.f32 %v40, %v58
  %v82 = vmul.f32 %v40, %v62
  %v83 = vmul.f32 %v40, %v66
  %v84 = vmul.f32 %v40, %v70
  %v85 = vadd.f32 %v78, 0.0
  %v86 = vadd.f32 %v79, 0.0
  %v87 = vadd.f32 %v80, 0.0
  %v88 = vadd.f32 %v81, 0.0
  %v89 = vadd.f32 %v82, 0.0
  %v90 = vadd.f32 %v83, 0.0
  %v91 = vadd.f32 %v84, 0.0
  %92 = vset.pattern.permute.xlu0 1
  %93 = vperm.xlu0 %92, %v28
  %v94 = vpop.permute.xlu0 %93
  %v96 = vmul.f32 %v94, %v46
  %v97 = vmul.f32 %v94, %v50
  %v98 = vmul.f32 %v94, %v54
  %v99 = vmul.f32 %v94, %v58
  %v100 = vmul.f32 %v94, %v62
  %v101 = vmul.f32 %v94, %v66
  %v102 = vmul.f32 %v94, %v70
  %110 = vrot.lane.b32.xlu0 %v96, 127
  %v111 = vpop.permute.xlu0 %110
  %112 = vrot.lane.b32.xlu0 %v97, 127
  %v113 = vpop.permute.xlu0 %112
  %114 = vrot.lane.b32.xlu0 %v98, 127
  %v115 = vpop.permute.xlu0 %114
  %116 = vrot.lane.b32.xlu0 %v99, 127
  %v117 = vpop.permute.xlu0 %116
  %118 = vrot.lane.b32.xlu0 %v100, 127
  %v119 = vpop.permute.xlu0 %118
  %120 = vrot.lane.b32.xlu0 %v101, 127
  %v121 = vpop.permute.xlu0 %120
  %122 = vrot.lane.b32.xlu0 %v102, 127
  %v123 = vpop.permute.xlu0 %122
  %vm124 = vcmask 1039360
  %v125 = vsel %vm124, %v111, %v113
  %v126 = vsel %vm124, %v113, %v115
  %v127 = vsel %vm124, %v115, %v117
  %v128 = vsel %vm124, %v117, %v119
  %v129 = vsel %vm124, %v119, %v121
  %v130 = vsel %vm124, %v121, %v123
  %v138 = vadd.f32 %v85, %v125
  %v139 = vadd.f32 %v86, %v126
  %v140 = vadd.f32 %v87, %v127
  %v141 = vadd.f32 %v88, %v128
  %v142 = vadd.f32 %v89, %v129
  %v143 = vadd.f32 %v90, %v130
  %v144 = vadd.f32 %v91, %v123
  %145 = vset.pattern.permute.xlu0 2
  %146 = vperm.xlu0 %145, %v28
  %v147 = vpop.permute.xlu0 %146
  %v149 = vmul.f32 %v147, %v46
  %v150 = vmul.f32 %v147, %v50
  %v151 = vmul.f32 %v147, %v54
  %v152 = vmul.f32 %v147, %v58
  %v153 = vmul.f32 %v147, %v62
  %v154 = vmul.f32 %v147, %v66
  %v155 = vmul.f32 %v147, %v70
  %163 = vrot.lane.b32.xlu0 %v149, 126
  %v164 = vpop.permute.xlu0 %163
  %165 = vrot.lane.b32.xlu0 %v150, 126
  %v166 = vpop.permute.xlu0 %165
  %167 = vrot.lane.b32.xlu0 %v151, 126
  %v168 = vpop.permute.xlu0 %167
  %169 = vrot.lane.b32.xlu0 %v152, 126
  %v170 = vpop.permute.xlu0 %169
  %171 = vrot.lane.b32.xlu0 %v153, 126
  %v172 = vpop.permute.xlu0 %171
  %173 = vrot.lane.b32.xlu0 %v154, 126
  %v174 = vpop.permute.xlu0 %173
  %175 = vrot.lane.b32.xlu0 %v155, 126
  %v176 = vpop.permute.xlu0 %175
  %vm177 = vcmask 1031168
  %v178 = vsel %vm177, %v164, %v166
  %v179 = vsel %vm177, %v166, %v168
  %v180 = vsel %vm177, %v168, %v170
  %v181 = vsel %vm177, %v170, %v172
  %v182 = vsel %vm177, %v172, %v174
  %v183 = vsel %vm177, %v174, %v176
  %v191 = vadd.f32 %v138, %v178
  %v192 = vadd.f32 %v139, %v179
  %v193 = vadd.f32 %v140, %v180
  %v194 = vadd.f32 %v141, %v181
  %v195 = vadd.f32 %v142, %v182
  %v196 = vadd.f32 %v143, %v183
  %v197 = vadd.f32 %v144, %v176
  %198 = vset.pattern.permute.xlu0 3
  %199 = vperm.xlu0 %198, %v28
  %v200 = vpop.permute.xlu0 %199
  %v202 = vmul.f32 %v200, %v46
  %v203 = vmul.f32 %v200, %v50
  %v204 = vmul.f32 %v200, %v54
  %v205 = vmul.f32 %v200, %v58
  %v206 = vmul.f32 %v200, %v62
  %v207 = vmul.f32 %v200, %v66
  %v208 = vmul.f32 %v200, %v70
  %216 = vrot.lane.b32.xlu0 %v202, 98
  %v217 = vpop.permute.xlu0 %216
  %218 = vrot.lane.b32.xlu0 %v203, 98
  %v219 = vpop.permute.xlu0 %218
  %220 = vrot.lane.b32.xlu0 %v204, 98
  %v221 = vpop.permute.xlu0 %220
  %222 = vrot.lane.b32.xlu0 %v205, 98
  %v223 = vpop.permute.xlu0 %222
  %224 = vrot.lane.b32.xlu0 %v206, 98
  %v225 = vpop.permute.xlu0 %224
  %226 = vrot.lane.b32.xlu0 %v207, 98
  %v227 = vpop.permute.xlu0 %226
  %228 = vrot.lane.b32.xlu0 %v208, 98
  %v229 = vpop.permute.xlu0 %228
  %vm230 = vcmask 801792
  %v231 = vsel %vm230, %v217, %v219
  %v232 = vsel %vm230, %v219, %v221
  %v233 = vsel %vm230, %v221, %v223
  %v234 = vsel %vm230, %v223, %v225
  %v235 = vsel %vm230, %v225, %v227
  %v236 = vsel %vm230, %v227, %v229
  %v244 = vadd.f32 %v191, %v231
  %v245 = vadd.f32 %v192, %v232
  %v246 = vadd.f32 %v193, %v233
  %v247 = vadd.f32 %v194, %v234
  %v248 = vadd.f32 %v195, %v235
  %v249 = vadd.f32 %v196, %v236
  %v250 = vadd.f32 %v197, %v229
  %251 = vset.pattern.permute.xlu0 4
  %252 = vperm.xlu0 %251, %v28
  %v253 = vpop.permute.xlu0 %252
  %v255 = vmul.f32 %v253, %v46
  %v256 = vmul.f32 %v253, %v50
  %v257 = vmul.f32 %v253, %v54
  %v258 = vmul.f32 %v253, %v58
  %v259 = vmul.f32 %v253, %v62
  %v260 = vmul.f32 %v253, %v66
  %v261 = vmul.f32 %v253, %v70
  %269 = vrot.lane.b32.xlu0 %v255, 97
  %v270 = vpop.permute.xlu0 %269
  %271 = vrot.lane.b32.xlu0 %v256, 97
  %v272 = vpop.permute.xlu0 %271
  %273 = vrot.lane.b32.xlu0 %v257, 97
  %v274 = vpop.permute.xlu0 %273
  %275 = vrot.lane.b32.xlu0 %v258, 97
  %v276 = vpop.permute.xlu0 %275
  %277 = vrot.lane.b32.xlu0 %v259, 97
  %v278 = vpop.permute.xlu0 %277
  %279 = vrot.lane.b32.xlu0 %v260, 97
  %v280 = vpop.permute.xlu0 %279
  %281 = vrot.lane.b32.xlu0 %v261, 97
  %v282 = vpop.permute.xlu0 %281
  %vm283 = vcmask 793600
  %v284 = vsel %vm283, %v270, %v272
  %v285 = vsel %vm283, %v272, %v274
  %v286 = vsel %vm283, %v274, %v276
  %v287 = vsel %vm283, %v276, %v278
  %v288 = vsel %vm283, %v278, %v280
  %v289 = vsel %vm283, %v280, %v282
  %v297 = vadd.f32 %v244, %v284
  %v298 = vadd.f32 %v245, %v285
  %v299 = vadd.f32 %v246, %v286
  %v300 = vadd.f32 %v247, %v287
  %v301 = vadd.f32 %v248, %v288
  %v302 = vadd.f32 %v249, %v289
  %v303 = vadd.f32 %v250, %v282
  %304 = vset.pattern.permute.xlu0 5
  %305 = vperm.xlu0 %304, %v28
  %v306 = vpop.permute.xlu0 %305
  %v308 = vmul.f32 %v306, %v46
  %v309 = vmul.f32 %v306, %v50
  %v310 = vmul.f32 %v306, %v54
  %v311 = vmul.f32 %v306, %v58
  %v312 = vmul.f32 %v306, %v62
  %v313 = vmul.f32 %v306, %v66
  %v314 = vmul.f32 %v306, %v70
  %322 = vrot.lane.b32.xlu0 %v308, 96
  %v323 = vpop.permute.xlu0 %322
  %324 = vrot.lane.b32.xlu0 %v309, 96
  %v325 = vpop.permute.xlu0 %324
  %326 = vrot.lane.b32.xlu0 %v310, 96
  %v327 = vpop.permute.xlu0 %326
  %328 = vrot.lane.b32.xlu0 %v311, 96
  %v329 = vpop.permute.xlu0 %328
  %330 = vrot.lane.b32.xlu0 %v312, 96
  %v331 = vpop.permute.xlu0 %330
  %332 = vrot.lane.b32.xlu0 %v313, 96
  %v333 = vpop.permute.xlu0 %332
  %334 = vrot.lane.b32.xlu0 %v314, 96
  %v335 = vpop.permute.xlu0 %334
  %vm336 = vcmask 785408
  %v337 = vsel %vm336, %v323, %v325
  %v338 = vsel %vm336, %v325, %v327
  %v339 = vsel %vm336, %v327, %v329
  %v340 = vsel %vm336, %v329, %v331
  %v341 = vsel %vm336, %v331, %v333
  %v342 = vsel %vm336, %v333, %v335
  %v350 = vadd.f32 %v297, %v337
  %v351 = vadd.f32 %v298, %v338
  %v352 = vadd.f32 %v299, %v339
  %v353 = vadd.f32 %v300, %v340
  %v354 = vadd.f32 %v301, %v341
  %v355 = vadd.f32 %v302, %v342
  %v356 = vadd.f32 %v303, %v335
  %357 = vset.pattern.permute.xlu0 6
  %358 = vperm.xlu0 %357, %v28
  %v359 = vpop.permute.xlu0 %358
  %v361 = vlaneseq
  %v362 = vshrl.u32 %v361, 7
  %v363 = vsub.s32 7, %v362
  %v364 = vrot.slane %v36, %v363
  %v366 = vmul.f32 %v359, %v46
  %v367 = vmul.f32 %v359, %v50
  %v368 = vmul.f32 %v359, %v54
  %v369 = vmul.f32 %v359, %v58
  %v370 = vmul.f32 %v359, %v62
  %v371 = vmul.f32 %v359, %v66
  %v372 = vmul.f32 %v359, %v70
  %v373 = vmul.f32 %v359, %v364
  %382 = vrot.lane.b32.xlu0 %v366, 68
  %v383 = vpop.permute.xlu0 %382
  %384 = vrot.lane.b32.xlu0 %v367, 68
  %v385 = vpop.permute.xlu0 %384
  %386 = vrot.lane.b32.xlu0 %v368, 68
  %v387 = vpop.permute.xlu0 %386
  %388 = vrot.lane.b32.xlu0 %v369, 68
  %v389 = vpop.permute.xlu0 %388
  %390 = vrot.lane.b32.xlu0 %v370, 68
  %v391 = vpop.permute.xlu0 %390
  %392 = vrot.lane.b32.xlu0 %v371, 68
  %v393 = vpop.permute.xlu0 %392
  %394 = vrot.lane.b32.xlu0 %v372, 68
  %v395 = vpop.permute.xlu0 %394
  %396 = vrot.lane.b32.xlu0 %v373, 68
  %v397 = vpop.permute.xlu0 %396
  %vm398 = vcmask 556032
  %v399 = vsel %vm398, %v383, %v385
  %v400 = vsel %vm398, %v385, %v387
  %v401 = vsel %vm398, %v387, %v389
  %v402 = vsel %vm398, %v389, %v391
  %v403 = vsel %vm398, %v391, %v393
  %v404 = vsel %vm398, %v393, %v395
  %v405 = vsel %vm398, %v395, %v397
  %v413 = vadd.f32 %v350, %v399
  %v414 = vadd.f32 %v351, %v400
  %v415 = vadd.f32 %v352, %v401
  %v416 = vadd.f32 %v353, %v402
  %v417 = vadd.f32 %v354, %v403
  %v418 = vadd.f32 %v355, %v404
  %v419 = vadd.f32 %v356, %v405
  %420 = vset.pattern.permute.xlu0 7
  %421 = vperm.xlu0 %420, %v28
  %v422 = vpop.permute.xlu0 %421
  %v424 = vmul.f32 %v422, %v46
  %v425 = vmul.f32 %v422, %v50
  %v426 = vmul.f32 %v422, %v54
  %v427 = vmul.f32 %v422, %v58
  %v428 = vmul.f32 %v422, %v62
  %v429 = vmul.f32 %v422, %v66
  %v430 = vmul.f32 %v422, %v70
  %v431 = vmul.f32 %v422, %v364
  %440 = vrot.lane.b32.xlu0 %v424, 67
  %v441 = vpop.permute.xlu0 %440
  %442 = vrot.lane.b32.xlu0 %v425, 67
  %v443 = vpop.permute.xlu0 %442
  %444 = vrot.lane.b32.xlu0 %v426, 67
  %v445 = vpop.permute.xlu0 %444
  %446 = vrot.lane.b32.xlu0 %v427, 67
  %v447 = vpop.permute.xlu0 %446
  %448 = vrot.lane.b32.xlu0 %v428, 67
  %v449 = vpop.permute.xlu0 %448
  %450 = vrot.lane.b32.xlu0 %v429, 67
  %v451 = vpop.permute.xlu0 %450
  %452 = vrot.lane.b32.xlu0 %v430, 67
  %v453 = vpop.permute.xlu0 %452
  %454 = vrot.lane.b32.xlu0 %v431, 67
  %v455 = vpop.permute.xlu0 %454
  %vm456 = vcmask 547840
  %v457 = vsel %vm456, %v441, %v443
  %v458 = vsel %vm456, %v443, %v445
  %v459 = vsel %vm456, %v445, %v447
  %v460 = vsel %vm456, %v447, %v449
  %v461 = vsel %vm456, %v449, %v451
  %v462 = vsel %vm456, %v451, %v453
  %v463 = vsel %vm456, %v453, %v455
  %v471 = vadd.f32 %v413, %v457
  %v472 = vadd.f32 %v414, %v458
  %v473 = vadd.f32 %v415, %v459
  %v474 = vadd.f32 %v416, %v460
  %v475 = vadd.f32 %v417, %v461
  %v476 = vadd.f32 %v418, %v462
  %v477 = vadd.f32 %v419, %v463
  %478 = vset.pattern.permute.xlu0 8
  %479 = vperm.xlu0 %478, %v28
  %v480 = vpop.permute.xlu0 %479
  %v482 = vmul.f32 %v480, %v46
  %v483 = vmul.f32 %v480, %v50
  %v484 = vmul.f32 %v480, %v54
  %v485 = vmul.f32 %v480, %v58
  %v486 = vmul.f32 %v480, %v62
  %v487 = vmul.f32 %v480, %v66
  %v488 = vmul.f32 %v480, %v70
  %v489 = vmul.f32 %v480, %v364
  %498 = vrot.lane.b32.xlu0 %v482, 66
  %v499 = vpop.permute.xlu0 %498
  %500 = vrot.lane.b32.xlu0 %v483, 66
  %v501 = vpop.permute.xlu0 %500
  %502 = vrot.lane.b32.xlu0 %v484, 66
  %v503 = vpop.permute.xlu0 %502
  %504 = vrot.lane.b32.xlu0 %v485, 66
  %v505 = vpop.permute.xlu0 %504
  %506 = vrot.lane.b32.xlu0 %v486, 66
  %v507 = vpop.permute.xlu0 %506
  %508 = vrot.lane.b32.xlu0 %v487, 66
  %v509 = vpop.permute.xlu0 %508
  %510 = vrot.lane.b32.xlu0 %v488, 66
  %v511 = vpop.permute.xlu0 %510
  %512 = vrot.lane.b32.xlu0 %v489, 66
  %v513 = vpop.permute.xlu0 %512
  %vm514 = vcmask 539648
  %v515 = vsel %vm514, %v499, %v501
  %v516 = vsel %vm514, %v501, %v503
  %v517 = vsel %vm514, %v503, %v505
  %v518 = vsel %vm514, %v505, %v507
  %v519 = vsel %vm514, %v507, %v509
  %v520 = vsel %vm514, %v509, %v511
  %v521 = vsel %vm514, %v511, %v513
  %v529 = vadd.f32 %v471, %v515
  %v530 = vadd.f32 %v472, %v516
  %v531 = vadd.f32 %v473, %v517
  %v532 = vadd.f32 %v474, %v518
  %v533 = vadd.f32 %v475, %v519
  %v534 = vadd.f32 %v476, %v520
  %v535 = vadd.f32 %v477, %v521
  %537 = vset.pattern.permute.xlu0 0
  %538 = vperm.xlu0 %537, %v29
  %v539 = vpop.permute.xlu0 %538
  %v541 = vadd.f32 %v529, %v539
  %v542 = vadd.f32 %v530, %v539
  %v543 = vadd.f32 %v531, %v539
  %v544 = vadd.f32 %v532, %v539
  %v545 = vadd.f32 %v533, %v539
  %v546 = vadd.f32 %v534, %v539
  %v547 = vadd.f32 %v535, %v539
  %vm548 = vcmp.gt.f32.partialorder %v541, 0.0
  %vm549 = vcmp.gt.f32.partialorder %v542, 0.0
  %vm550 = vcmp.gt.f32.partialorder %v543, 0.0
  %vm551 = vcmp.gt.f32.partialorder %v544, 0.0
  %vm552 = vcmp.gt.f32.partialorder %v545, 0.0
  %vm553 = vcmp.gt.f32.partialorder %v546, 0.0
  %vm554 = vcmp.gt.f32.partialorder %v547, 0.0
  %v555 = vstv %s27
  %v556 = vmul.f32 %v555, %v541
  %v557 = vmul.f32 %v555, %v542
  %v558 = vmul.f32 %v555, %v543
  %v559 = vmul.f32 %v555, %v544
  %v560 = vmul.f32 %v555, %v545
  %v561 = vmul.f32 %v555, %v546
  %v562 = vmul.f32 %v555, %v547
  %v563 = vsel %vm548, %v541, %v556
  %v564 = vsel %vm549, %v542, %v557
  %v565 = vsel %vm550, %v543, %v558
  %v566 = vsel %vm551, %v544, %v559
  %v567 = vsel %vm552, %v545, %v560
  %v568 = vsel %vm553, %v546, %v561
  %v569 = vsel %vm554, %v547, %v562
  %577 = vrot.lane.b32.xlu0 %v563, 127
  %v578 = vpop.permute.xlu0 %577
  %579 = vrot.lane.b32.xlu0 %v564, 127
  %v580 = vpop.permute.xlu0 %579
  %581 = vrot.lane.b32.xlu0 %v565, 127
  %v582 = vpop.permute.xlu0 %581
  %583 = vrot.lane.b32.xlu0 %v566, 127
  %v584 = vpop.permute.xlu0 %583
  %585 = vrot.lane.b32.xlu0 %v567, 127
  %v586 = vpop.permute.xlu0 %585
  %587 = vrot.lane.b32.xlu0 %v568, 127
  %v588 = vpop.permute.xlu0 %587
  %589 = vrot.lane.b32.xlu0 %v569, 127
  %v590 = vpop.permute.xlu0 %589
  %v591 = vsel %vm124, %v578, %v580
  %v592 = vsel %vm124, %v580, %v582
  %v593 = vsel %vm124, %v582, %v584
  %v594 = vsel %vm124, %v584, %v586
  %v595 = vsel %vm124, %v586, %v588
  %v596 = vsel %vm124, %v588, %v590
  %v604 = vmax.f32 %v563, %v591
  %v605 = vmax.f32 %v564, %v592
  %v606 = vmax.f32 %v565, %v593
  %v607 = vmax.f32 %v566, %v594
  %v608 = vmax.f32 %v567, %v595
  %v609 = vmax.f32 %v568, %v596
  %v610 = vmax.f32 %v569, %v590
  %618 = vrot.lane.b32.xlu0 %v604, 98
  %v619 = vpop.permute.xlu0 %618
  %620 = vrot.lane.b32.xlu0 %v605, 98
  %v621 = vpop.permute.xlu0 %620
  %622 = vrot.lane.b32.xlu0 %v606, 98
  %v623 = vpop.permute.xlu0 %622
  %624 = vrot.lane.b32.xlu0 %v607, 98
  %v625 = vpop.permute.xlu0 %624
  %626 = vrot.lane.b32.xlu0 %v608, 98
  %v627 = vpop.permute.xlu0 %626
  %628 = vrot.lane.b32.xlu0 %v609, 98
  %v629 = vpop.permute.xlu0 %628
  %630 = vrot.lane.b32.xlu0 %v610, 98
  %v631 = vpop.permute.xlu0 %630
  %v632 = vsel %vm230, %v619, %v621
  %v633 = vsel %vm230, %v621, %v623
  %v634 = vsel %vm230, %v623, %v625
  %v635 = vsel %vm230, %v625, %v627
  %v636 = vsel %vm230, %v627, %v629
  %v637 = vsel %vm230, %v629, %v631
  %v645 = vmax.f32 %v604, %v632
  %v646 = vmax.f32 %v605, %v633
  %v647 = vmax.f32 %v606, %v634
  %v648 = vmax.f32 %v607, %v635
  %v649 = vmax.f32 %v608, %v636
  %v650 = vmax.f32 %v609, %v637
  %v651 = vmax.f32 %v610, %v631
  %658 = vrot.lane.b32.xlu0 %v645, 126
  %v659 = vpop.permute.xlu0 %658
  %660 = vrot.lane.b32.xlu0 %v646, 126
  %v661 = vpop.permute.xlu0 %660
  %662 = vrot.lane.b32.xlu0 %v647, 126
  %v663 = vpop.permute.xlu0 %662
  %664 = vrot.lane.b32.xlu0 %v648, 126
  %v665 = vpop.permute.xlu0 %664
  %666 = vrot.lane.b32.xlu0 %v649, 126
  %v667 = vpop.permute.xlu0 %666
  %668 = vrot.lane.b32.xlu0 %v650, 126
  %v669 = vpop.permute.xlu0 %668
  %v670 = vsel %vm177, %v659, %v661
  %v671 = vsel %vm177, %v661, %v663
  %v672 = vsel %vm177, %v663, %v665
  %v673 = vsel %vm177, %v665, %v667
  %v674 = vsel %vm177, %v667, %v669
  %681 = vrot.lane.b32.xlu0 %v645, 124
  %v682 = vpop.permute.xlu0 %681
  %683 = vrot.lane.b32.xlu0 %v646, 124
  %v684 = vpop.permute.xlu0 %683
  %685 = vrot.lane.b32.xlu0 %v647, 124
  %v686 = vpop.permute.xlu0 %685
  %687 = vrot.lane.b32.xlu0 %v648, 124
  %v688 = vpop.permute.xlu0 %687
  %689 = vrot.lane.b32.xlu0 %v649, 124
  %v690 = vpop.permute.xlu0 %689
  %691 = vrot.lane.b32.xlu0 %v650, 124
  %v692 = vpop.permute.xlu0 %691
  %vm693 = vcmask 1014784
  %v694 = vsel %vm693, %v682, %v684
  %v695 = vsel %vm693, %v684, %v686
  %v696 = vsel %vm693, %v686, %v688
  %v697 = vsel %vm693, %v688, %v690
  %v698 = vsel %vm693, %v690, %v692
  %705 = vrot.lane.b32.xlu0 %v645, 68
  %v706 = vpop.permute.xlu0 %705
  %707 = vrot.lane.b32.xlu0 %v646, 68
  %v708 = vpop.permute.xlu0 %707
  %709 = vrot.lane.b32.xlu0 %v647, 68
  %v710 = vpop.permute.xlu0 %709
  %711 = vrot.lane.b32.xlu0 %v648, 68
  %v712 = vpop.permute.xlu0 %711
  %713 = vrot.lane.b32.xlu0 %v649, 68
  %v714 = vpop.permute.xlu0 %713
  %715 = vrot.lane.b32.xlu0 %v650, 68
  %v716 = vpop.permute.xlu0 %715
  %v717 = vsel %vm398, %v706, %v708
  %v718 = vsel %vm398, %v708, %v710
  %v719 = vsel %vm398, %v710, %v712
  %v720 = vsel %vm398, %v712, %v714
  %v721 = vsel %vm398, %v714, %v716
  %728 = vrot.lane.b32.xlu0 %v645, 66
  %v729 = vpop.permute.xlu0 %728
  %730 = vrot.lane.b32.xlu0 %v646, 66
  %v731 = vpop.permute.xlu0 %730
  %732 = vrot.lane.b32.xlu0 %v647, 66
  %v733 = vpop.permute.xlu0 %732
  %734 = vrot.lane.b32.xlu0 %v648, 66
  %v735 = vpop.permute.xlu0 %734
  %736 = vrot.lane.b32.xlu0 %v649, 66
  %v737 = vpop.permute.xlu0 %736
  %738 = vrot.lane.b32.xlu0 %v650, 66
  %v739 = vpop.permute.xlu0 %738
  %v740 = vsel %vm514, %v729, %v731
  %v741 = vsel %vm514, %v731, %v733
  %v742 = vsel %vm514, %v733, %v735
  %v743 = vsel %vm514, %v735, %v737
  %v744 = vsel %vm514, %v737, %v739
  %751 = vrot.lane.b32.xlu0 %v645, 64
  %v752 = vpop.permute.xlu0 %751
  %753 = vrot.lane.b32.xlu0 %v646, 64
  %v754 = vpop.permute.xlu0 %753
  %755 = vrot.lane.b32.xlu0 %v647, 64
  %v756 = vpop.permute.xlu0 %755
  %757 = vrot.lane.b32.xlu0 %v648, 64
  %v758 = vpop.permute.xlu0 %757
  %759 = vrot.lane.b32.xlu0 %v649, 64
  %v760 = vpop.permute.xlu0 %759
  %761 = vrot.lane.b32.xlu0 %v650, 64
  %v762 = vpop.permute.xlu0 %761
  %vm763 = vcmask 523264
  %v764 = vsel %vm763, %v752, %v754
  %v765 = vsel %vm763, %v754, %v756
  %v766 = vsel %vm763, %v756, %v758
  %v767 = vsel %vm763, %v758, %v760
  %v768 = vsel %vm763, %v760, %v762
  %776 = vrot.lane.b32.xlu0 %v645, 8
  %v777 = vpop.permute.xlu0 %776
  %778 = vrot.lane.b32.xlu0 %v646, 8
  %v779 = vpop.permute.xlu0 %778
  %780 = vrot.lane.b32.xlu0 %v647, 8
  %v781 = vpop.permute.xlu0 %780
  %782 = vrot.lane.b32.xlu0 %v648, 8
  %v783 = vpop.permute.xlu0 %782
  %784 = vrot.lane.b32.xlu0 %v649, 8
  %v785 = vpop.permute.xlu0 %784
  %786 = vrot.lane.b32.xlu0 %v650, 8
  %v787 = vpop.permute.xlu0 %786
  %788 = vrot.lane.b32.xlu0 %v651, 8
  %v789 = vpop.permute.xlu0 %788
  %vm790 = vcmask 64512
  %v791 = vsel %vm790, %v777, %v779
  %v792 = vsel %vm790, %v779, %v781
  %v793 = vsel %vm790, %v781, %v783
  %v794 = vsel %vm790, %v783, %v785
  %v795 = vsel %vm790, %v785, %v787
  %v796 = vsel %vm790, %v787, %v789
  %803 = vrot.lane.b32.xlu0 %v645, 6
  %v804 = vpop.permute.xlu0 %803
  %805 = vrot.lane.b32.xlu0 %v646, 6
  %v806 = vpop.permute.xlu0 %805
  %807 = vrot.lane.b32.xlu0 %v647, 6
  %v808 = vpop.permute.xlu0 %807
  %809 = vrot.lane.b32.xlu0 %v648, 6
  %v810 = vpop.permute.xlu0 %809
  %811 = vrot.lane.b32.xlu0 %v649, 6
  %v812 = vpop.permute.xlu0 %811
  %813 = vrot.lane.b32.xlu0 %v650, 6
  %v814 = vpop.permute.xlu0 %813
  %815 = vrot.lane.b32.xlu0 %v651, 6
  %v816 = vpop.permute.xlu0 %815
  %vm817 = vcmask 48128
  %v818 = vsel %vm817, %v804, %v806
  %v819 = vsel %vm817, %v806, %v808
  %v820 = vsel %vm817, %v808, %v810
  %v821 = vsel %vm817, %v810, %v812
  %v822 = vsel %vm817, %v812, %v814
  %v823 = vsel %vm817, %v814, %v816
  %830 = vrot.lane.b32.xlu0 %v645, 4
  %v831 = vpop.permute.xlu0 %830
  %832 = vrot.lane.b32.xlu0 %v646, 4
  %v833 = vpop.permute.xlu0 %832
  %834 = vrot.lane.b32.xlu0 %v647, 4
  %v835 = vpop.permute.xlu0 %834
  %836 = vrot.lane.b32.xlu0 %v648, 4
  %v837 = vpop.permute.xlu0 %836
  %838 = vrot.lane.b32.xlu0 %v649, 4
  %v839 = vpop.permute.xlu0 %838
  %840 = vrot.lane.b32.xlu0 %v650, 4
  %v841 = vpop.permute.xlu0 %840
  %842 = vrot.lane.b32.xlu0 %v651, 4
  %v843 = vpop.permute.xlu0 %842
  %vm844 = vcmask 31744
  %v845 = vsel %vm844, %v831, %v833
  %v846 = vsel %vm844, %v833, %v835
  %v847 = vsel %vm844, %v835, %v837
  %v848 = vsel %vm844, %v837, %v839
  %v849 = vsel %vm844, %v839, %v841
  %v850 = vsel %vm844, %v841, %v843
  %858 = vset.pattern.permute.xlu0 0
  %859 = vperm.xlu0 %858, %v32
  %v860 = vpop.permute.xlu0 %859
  %863 = vset.pattern.permute.xlu0 0
  %864 = vperm.xlu0 %863, %v33
  %v865 = vpop.permute.xlu0 %864
  %vm867 = vcmask 588800
  %v869 = vsel %vm867, %v30, 0
  %v872 = vsel %vm867, %v31, 0
  %874 = vmatprep.subr.mxu0 %v646
  %875 = vmatpush1.msra.mxu0 %v645
  %876 = vmatprep.subr.mxu0 %v671
  %877 = vmatpush1.msra.mxu0 %v670
  %878 = vmatprep.subr.mxu0 %v695
  %879 = vmatpush1.msra.mxu0 %v694
  %880 = vmatprep.subr.mxu0 %v718
  %881 = vmatpush1.msra.mxu0 %v717
  %882 = vmatprep.subr.mxu0 %v741
  %883 = vmatpush1.msra.mxu0 %v740
  %884 = vmatprep.subr.mxu0 %v765
  %885 = vmatpush1.msra.mxu0 %v764
  %886 = vmatprep.subr.mxu0 %v792
  %887 = vmatpush1.msra.mxu0 %v791
  %888 = vmatprep.subr.mxu0 %v819
  %889 = vmatpush1.msra.mxu0 %v818
  %890 = vmatprep.subr.mxu0 %v846
  %891 = vmatpush1.msra.mxu0 %v845
  %892 = vmatprep.subr.mxu0 0.0
  %893 = vmatpush1.msra.mxu0 0.0
  %894 = vmatprep.subr.mxu0 0.0
  %895 = vmatpush1.msra.mxu0 0.0
  %896 = vmatprep.subr.mxu0 0.0
  %897 = vmatpush1.msra.mxu0 0.0
  %898 = vmatprep.subr.mxu0 0.0
  %899 = vmatpush1.msra.mxu0 0.0
  %900 = vmatprep.subr.mxu0 0.0
  %901 = vmatpush1.msra.mxu0 0.0
  %902 = vmatprep.subr.mxu0 0.0
  %903 = vmatpush1.msra.mxu0 0.0
  %904 = vmatprep.subr.mxu0 0.0
  %905 = vmatpush1.msra.mxu0 0.0
  %906 = vmatprep.subr.mxu0 0.0
  %907 = vmatpush1.msra.mxu0 0.0
  %908 = vmatprep.subr.mxu0 0.0
  %909 = vmatpush1.msra.mxu0 0.0
  %910 = vmatprep.subr.mxu0 0.0
  %911 = vmatpush1.msra.mxu0 0.0
  %912 = vmatprep.subr.mxu0 0.0
  %913 = vmatpush1.msra.mxu0 0.0
  %914 = vmatprep.subr.mxu0 0.0
  %915 = vmatpush1.msra.mxu0 0.0
  %916 = vmatprep.subr.mxu0 0.0
  %917 = vmatpush1.msra.mxu0 0.0
  %918 = vmatprep.subr.mxu0 0.0
  %919 = vmatpush1.msra.mxu0 0.0
  %920 = vmatprep.subr.mxu0 0.0
  %921 = vmatpush1.msra.mxu0 0.0
  %922 = vmatprep.subr.mxu0 0.0
  %923 = vmatpush1.msra.mxu0 0.0
  %924 = vmatprep.subr.mxu0 0.0
  %925 = vmatpush1.msra.mxu0 0.0
  %926 = vmatprep.subr.mxu0 0.0
  %927 = vmatpush1.msra.mxu0 0.0
  %928 = vmatprep.subr.mxu0 0.0
  %929 = vmatpush1.msra.mxu0 0.0
  %930 = vmatprep.subr.mxu0 0.0
  %931 = vmatpush1.msra.mxu0 0.0
  %932 = vmatprep.subr.mxu0 0.0
  %933 = vmatpush1.msra.mxu0 0.0
  %934 = vmatprep.subr.mxu0 0.0
  %935 = vmatpush1.msra.mxu0 0.0
  %936 = vmatprep.subr.mxu0 0.0
  %937 = vmatpush1.msra.mxu0 0.0
  %938 = vmatprep.mubr.f32.mxu0 0.0
  %939 = vmatmul.mubr.f32.gmra.mrb[0].mxu0 %v869
  %v940 = vpop.f32.mrb[0].mxu0
  %v941 = vadd.f32 %v860, %v940
  %v942 = vpop.f32.mrb[0].mxu0
  %v943 = vadd.f32 %v860, %v942
  %944 = vmatprep.mubr.f32.mxu0 0.0
  %945 = vmatmul.mubr.f32.gmra.mrb[0].mxu0 %v872
  %v946 = vpop.f32.mrb[0].mxu0
  %v947 = vadd.f32 %v865, %v946
  %v948 = vpop.f32.mrb[0].mxu0
  %v949 = vadd.f32 %v865, %v948
  %950 = vdwg.mxu0
  %951 = vmatprep.subr.mxu0 %v648
  %952 = vmatpush1.msra.mxu0 %v647
  %953 = vmatprep.subr.mxu0 %v673
  %954 = vmatpush1.msra.mxu0 %v672
  %955 = vmatprep.subr.mxu0 %v697
  %956 = vmatpush1.msra.mxu0 %v696
  %957 = vmatprep.subr.mxu0 %v720
  %958 = vmatpush1.msra.mxu0 %v719
  %959 = vmatprep.subr.mxu0 %v743
  %960 = vmatpush1.msra.mxu0 %v742
  %961 = vmatprep.subr.mxu0 %v767
  %962 = vmatpush1.msra.mxu0 %v766
  %963 = vmatprep.subr.mxu0 %v794
  %964 = vmatpush1.msra.mxu0 %v793
  %965 = vmatprep.subr.mxu0 %v821
  %966 = vmatpush1.msra.mxu0 %v820
  %967 = vmatprep.subr.mxu0 %v848
  %968 = vmatpush1.msra.mxu0 %v847
  %969 = vmatprep.subr.mxu0 0.0
  %970 = vmatpush1.msra.mxu0 0.0
  %971 = vmatprep.subr.mxu0 0.0
  %972 = vmatpush1.msra.mxu0 0.0
  %973 = vmatprep.subr.mxu0 0.0
  %974 = vmatpush1.msra.mxu0 0.0
  %975 = vmatprep.subr.mxu0 0.0
  %976 = vmatpush1.msra.mxu0 0.0
  %977 = vmatprep.subr.mxu0 0.0
  %978 = vmatpush1.msra.mxu0 0.0
  %979 = vmatprep.subr.mxu0 0.0
  %980 = vmatpush1.msra.mxu0 0.0
  %981 = vmatprep.subr.mxu0 0.0
  %982 = vmatpush1.msra.mxu0 0.0
  %983 = vmatprep.subr.mxu0 0.0
  %984 = vmatpush1.msra.mxu0 0.0
  %985 = vmatprep.subr.mxu0 0.0
  %986 = vmatpush1.msra.mxu0 0.0
  %987 = vmatprep.subr.mxu0 0.0
  %988 = vmatpush1.msra.mxu0 0.0
  %989 = vmatprep.subr.mxu0 0.0
  %990 = vmatpush1.msra.mxu0 0.0
  %991 = vmatprep.subr.mxu0 0.0
  %992 = vmatpush1.msra.mxu0 0.0
  %993 = vmatprep.subr.mxu0 0.0
  %994 = vmatpush1.msra.mxu0 0.0
  %995 = vmatprep.subr.mxu0 0.0
  %996 = vmatpush1.msra.mxu0 0.0
  %997 = vmatprep.subr.mxu0 0.0
  %998 = vmatpush1.msra.mxu0 0.0
  %999 = vmatprep.subr.mxu0 0.0
  %1000 = vmatpush1.msra.mxu0 0.0
  %1001 = vmatprep.subr.mxu0 0.0
  %1002 = vmatpush1.msra.mxu0 0.0
  %1003 = vmatprep.subr.mxu0 0.0
  %1004 = vmatpush1.msra.mxu0 0.0
  %1005 = vmatprep.subr.mxu0 0.0
  %1006 = vmatpush1.msra.mxu0 0.0
  %1007 = vmatprep.subr.mxu0 0.0
  %1008 = vmatpush1.msra.mxu0 0.0
  %1009 = vmatprep.subr.mxu0 0.0
  %1010 = vmatpush1.msra.mxu0 0.0
  %1011 = vmatprep.subr.mxu0 0.0
  %1012 = vmatpush1.msra.mxu0 0.0
  %1013 = vmatprep.subr.mxu0 0.0
  %1014 = vmatpush1.msra.mxu0 0.0
  %1015 = vmatprep.mubr.f32.mxu0 0.0
  %1016 = vmatmul.mubr.f32.gmra.mrb[0].mxu0 %v869
  %v1017 = vpop.f32.mrb[0].mxu0
  %v1018 = vadd.f32 %v860, %v1017
  %v1019 = vpop.f32.mrb[0].mxu0
  %v1020 = vadd.f32 %v860, %v1019
  %1021 = vmatprep.mubr.f32.mxu0 0.0
  %1022 = vmatmul.mubr.f32.gmra.mrb[0].mxu0 %v872
  %v1023 = vpop.f32.mrb[0].mxu0
  %v1024 = vadd.f32 %v865, %v1023
  %v1025 = vpop.f32.mrb[0].mxu0
  %v1026 = vadd.f32 %v865, %v1025
  %1027 = vdwg.mxu0
  %1028 = vmatprep.subr.mxu0 %v650
  %1029 = vmatpush1.msra.mxu0 %v649
  %1030 = vmatprep.subr.mxu0 %v669
  %1031 = vmatpush1.msra.mxu0 %v674
  %1032 = vmatprep.subr.mxu0 %v692
  %1033 = vmatpush1.msra.mxu0 %v698
  %1034 = vmatprep.subr.mxu0 %v716
  %1035 = vmatpush1.msra.mxu0 %v721
  %1036 = vmatprep.subr.mxu0 %v739
  %1037 = vmatpush1.msra.mxu0 %v744
  %1038 = vmatprep.subr.mxu0 %v762
  %1039 = vmatpush1.msra.mxu0 %v768
  %1040 = vmatprep.subr.mxu0 %v796
  %1041 = vmatpush1.msra.mxu0 %v795
  %1042 = vmatprep.subr.mxu0 %v823
  %1043 = vmatpush1.msra.mxu0 %v822
  %1044 = vmatprep.subr.mxu0 %v850
  %1045 = vmatpush1.msra.mxu0 %v849
  %1046 = vmatprep.subr.mxu0 0.0
  %1047 = vmatpush1.msra.mxu0 0.0
  %1048 = vmatprep.subr.mxu0 0.0
  %1049 = vmatpush1.msra.mxu0 0.0
  %1050 = vmatprep.subr.mxu0 0.0
  %1051 = vmatpush1.msra.mxu0 0.0
  %1052 = vmatprep.subr.mxu0 0.0
  %1053 = vmatpush1.msra.mxu0 0.0
  %1054 = vmatprep.subr.mxu0 0.0
  %1055 = vmatpush1.msra.mxu0 0.0
  %1056 = vmatprep.subr.mxu0 0.0
  %1057 = vmatpush1.msra.mxu0 0.0
  %1058 = vmatprep.subr.mxu0 0.0
  %1059 = vmatpush1.msra.mxu0 0.0
  %1060 = vmatprep.subr.mxu0 0.0
  %1061 = vmatpush1.msra.mxu0 0.0
  %1062 = vmatprep.subr.mxu0 0.0
  %1063 = vmatpush1.msra.mxu0 0.0
  %1064 = vmatprep.subr.mxu0 0.0
  %1065 = vmatpush1.msra.mxu0 0.0
  %1066 = vmatprep.subr.mxu0 0.0
  %1067 = vmatpush1.msra.mxu0 0.0
  %1068 = vmatprep.subr.mxu0 0.0
  %1069 = vmatpush1.msra.mxu0 0.0
  %1070 = vmatprep.subr.mxu0 0.0
  %1071 = vmatpush1.msra.mxu0 0.0
  %1072 = vmatprep.subr.mxu0 0.0
  %1073 = vmatpush1.msra.mxu0 0.0
  %1074 = vmatprep.subr.mxu0 0.0
  %1075 = vmatpush1.msra.mxu0 0.0
  %1076 = vmatprep.subr.mxu0 0.0
  %1077 = vmatpush1.msra.mxu0 0.0
  %1078 = vmatprep.subr.mxu0 0.0
  %1079 = vmatpush1.msra.mxu0 0.0
  %1080 = vmatprep.subr.mxu0 0.0
  %1081 = vmatpush1.msra.mxu0 0.0
  %1082 = vmatprep.subr.mxu0 0.0
  %1083 = vmatpush1.msra.mxu0 0.0
  %1084 = vmatprep.subr.mxu0 0.0
  %1085 = vmatpush1.msra.mxu0 0.0
  %1086 = vmatprep.subr.mxu0 0.0
  %1087 = vmatpush1.msra.mxu0 0.0
  %1088 = vmatprep.subr.mxu0 0.0
  %1089 = vmatpush1.msra.mxu0 0.0
  %1090 = vmatprep.subr.mxu0 0.0
  %1091 = vmatpush1.msra.mxu0 0.0
  %1092 = vmatprep.mubr.f32.mxu0 0.0
  %1093 = vmatmul.mubr.f32.gmra.mrb[0].mxu0 %v869
  %v1094 = vpop.f32.mrb[0].mxu0
  %v1095 = vadd.f32 %v860, %v1094
  %v1096 = vpop.f32.mrb[0].mxu0
  %v1097 = vadd.f32 %v860, %v1096
  %1098 = vmatprep.mubr.f32.mxu0 0.0
  %1099 = vmatmul.mubr.f32.gmra.mrb[0].mxu0 %v872
  %v1100 = vpop.f32.mrb[0].mxu0
  %v1101 = vadd.f32 %v865, %v1100
  %v1102 = vpop.f32.mrb[0].mxu0
  %v1103 = vadd.f32 %v865, %v1102
  %1104 = vdwg.mxu0
  %vm1105 = vcmp.gt.f32.partialorder %v941, 0.0
  %vm1106 = vcmp.gt.f32.partialorder %v943, 0.0
  %vm1107 = vcmp.gt.f32.partialorder %v1018, 0.0
  %vm1108 = vcmp.gt.f32.partialorder %v1020, 0.0
  %vm1109 = vcmp.gt.f32.partialorder %v1095, 0.0
  %vm1110 = vcmp.gt.f32.partialorder %v1097, 0.0
  %vm1111 = vcmp.gt.f32.partialorder %v947, 0.0
  %vm1112 = vcmp.gt.f32.partialorder %v949, 0.0
  %vm1113 = vcmp.gt.f32.partialorder %v1024, 0.0
  %vm1114 = vcmp.gt.f32.partialorder %v1026, 0.0
  %vm1115 = vcmp.gt.f32.partialorder %v1101, 0.0
  %vm1116 = vcmp.gt.f32.partialorder %v1103, 0.0
  %v1117 = vmul.f32 %v555, %v941
  %v1118 = vmul.f32 %v555, %v943
  %v1119 = vmul.f32 %v555, %v1018
  %v1120 = vmul.f32 %v555, %v1020
  %v1121 = vmul.f32 %v555, %v1095
  %v1122 = vmul.f32 %v555, %v1097
  %v1123 = vmul.f32 %v555, %v947
  %v1124 = vmul.f32 %v555, %v949
  %v1125 = vmul.f32 %v555, %v1024
  %v1126 = vmul.f32 %v555, %v1026
  %v1127 = vmul.f32 %v555, %v1101
  %v1128 = vmul.f32 %v555, %v1103
  %v1129 = vsel %vm1105, %v941, %v1117
  %v1130 = vsel %vm1106, %v943, %v1118
  %v1131 = vsel %vm1107, %v1018, %v1119
  %v1132 = vsel %vm1108, %v1020, %v1120
  %v1133 = vsel %vm1109, %v1095, %v1121
  %v1134 = vsel %vm1110, %v1097, %v1122
  %v1135 = vsel %vm1111, %v947, %v1123
  %v1136 = vsel %vm1112, %v949, %v1124
  %v1137 = vsel %vm1113, %v1024, %v1125
  %v1138 = vsel %vm1114, %v1026, %v1126
  %v1139 = vsel %vm1115, %v1101, %v1127
  %v1140 = vsel %vm1116, %v1103, %v1128
  %1153 = vrot.lane.b32.xlu0 %v1129, 126
  %v1154 = vpop.permute.xlu0 %1153
  %1155 = vrot.lane.b32.xlu0 %v1130, 126
  %v1156 = vpop.permute.xlu0 %1155
  %1157 = vrot.lane.b32.xlu0 %v1131, 126
  %v1158 = vpop.permute.xlu0 %1157
  %1159 = vrot.lane.b32.xlu0 %v1132, 126
  %v1160 = vpop.permute.xlu0 %1159
  %1161 = vrot.lane.b32.xlu0 %v1133, 126
  %v1162 = vpop.permute.xlu0 %1161
  %1163 = vrot.lane.b32.xlu0 %v1134, 126
  %v1164 = vpop.permute.xlu0 %1163
  %1165 = vrot.lane.b32.xlu0 %v1135, 126
  %v1166 = vpop.permute.xlu0 %1165
  %1167 = vrot.lane.b32.xlu0 %v1136, 126
  %v1168 = vpop.permute.xlu0 %1167
  %1169 = vrot.lane.b32.xlu0 %v1137, 126
  %v1170 = vpop.permute.xlu0 %1169
  %1171 = vrot.lane.b32.xlu0 %v1138, 126
  %v1172 = vpop.permute.xlu0 %1171
  %1173 = vrot.lane.b32.xlu0 %v1139, 126
  %v1174 = vpop.permute.xlu0 %1173
  %1175 = vrot.lane.b32.xlu0 %v1140, 126
  %v1176 = vpop.permute.xlu0 %1175
  %v1177 = vsel %vm177, %v1154, %v1156
  %v1178 = vsel %vm177, %v1156, %v1158
  %v1179 = vsel %vm177, %v1158, %v1160
  %v1180 = vsel %vm177, %v1160, %v1162
  %v1181 = vsel %vm177, %v1162, %v1164
  %v1182 = vsel %vm177, %v1166, %v1168
  %v1183 = vsel %vm177, %v1168, %v1170
  %v1184 = vsel %vm177, %v1170, %v1172
  %v1185 = vsel %vm177, %v1172, %v1174
  %v1186 = vsel %vm177, %v1174, %v1176
  %v1199 = vmax.f32 %v1129, %v1177
  %v1200 = vmax.f32 %v1130, %v1178
  %v1201 = vmax.f32 %v1131, %v1179
  %v1202 = vmax.f32 %v1132, %v1180
  %v1203 = vmax.f32 %v1133, %v1181
  %v1204 = vmax.f32 %v1134, %v1164
  %v1205 = vmax.f32 %v1135, %v1182
  %v1206 = vmax.f32 %v1136, %v1183
  %v1207 = vmax.f32 %v1137, %v1184
  %v1208 = vmax.f32 %v1138, %v1185
  %v1209 = vmax.f32 %v1139, %v1186
  %v1210 = vmax.f32 %v1140, %v1176
  %1223 = vrot.lane.b32.xlu0 %v1199, 68
  %v1224 = vpop.permute.xlu0 %1223
  %1225 = vrot.lane.b32.xlu0 %v1200, 68
  %v1226 = vpop.permute.xlu0 %1225
  %1227 = vrot.lane.b32.xlu0 %v1201, 68
  %v1228 = vpop.permute.xlu0 %1227
  %1229 = vrot.lane.b32.xlu0 %v1202, 68
  %v1230 = vpop.permute.xlu0 %1229
  %1231 = vrot.lane.b32.xlu0 %v1203, 68
  %v1232 = vpop.permute.xlu0 %1231
  %1233 = vrot.lane.b32.xlu0 %v1204, 68
  %v1234 = vpop.permute.xlu0 %1233
  %1235 = vrot.lane.b32.xlu0 %v1205, 68
  %v1236 = vpop.permute.xlu0 %1235
  %1237 = vrot.lane.b32.xlu0 %v1206, 68
  %v1238 = vpop.permute.xlu0 %1237
  %1239 = vrot.lane.b32.xlu0 %v1207, 68
  %v1240 = vpop.permute.xlu0 %1239
  %1241 = vrot.lane.b32.xlu0 %v1208, 68
  %v1242 = vpop.permute.xlu0 %1241
  %1243 = vrot.lane.b32.xlu0 %v1209, 68
  %v1244 = vpop.permute.xlu0 %1243
  %1245 = vrot.lane.b32.xlu0 %v1210, 68
  %v1246 = vpop.permute.xlu0 %1245
  %v1247 = vsel %vm398, %v1224, %v1226
  %v1248 = vsel %vm398, %v1226, %v1228
  %v1249 = vsel %vm398, %v1228, %v1230
  %v1250 = vsel %vm398, %v1230, %v1232
  %v1251 = vsel %vm398, %v1232, %v1234
  %v1252 = vsel %vm398, %v1236, %v1238
  %v1253 = vsel %vm398, %v1238, %v1240
  %v1254 = vsel %vm398, %v1240, %v1242
  %v1255 = vsel %vm398, %v1242, %v1244
  %v1256 = vsel %vm398, %v1244, %v1246
  %v1267 = vmax.f32 %v1199, %v1247
  %v1268 = vmax.f32 %v1200, %v1248
  %v1269 = vmax.f32 %v1201, %v1249
  %v1270 = vmax.f32 %v1202, %v1250
  %v1271 = vmax.f32 %v1203, %v1251
  %v1272 = vmax.f32 %v1205, %v1252
  %v1273 = vmax.f32 %v1206, %v1253
  %v1274 = vmax.f32 %v1207, %v1254
  %v1275 = vmax.f32 %v1208, %v1255
  %v1276 = vmax.f32 %v1209, %v1256
  %s1277 = scalar_lea.vmem %s0, 1
  %v1278 = vld [vmem:[%s1277] ss:$8 sm:$0xf]
  %v1279 = vld [vmem:[%s1277] ss:$8 sm:$0xf0]
  %v1280 = vor.u32 %v1278, %v1279
  %v1282 = vlaneseq
  %v1283 = vshrl.u32 %v1282, 7
  %v1284 = vsub.s32 0, %v1283
  %v1285 = vrot.slane %v1280, %v1284
  %v1286 = vlaneseq
  %v1287 = vshrl.u32 %v1286, 7
  %v1288 = vsub.s32 1, %v1287
  %v1289 = vrot.slane %v1280, %v1288
  %v1290 = vlaneseq
  %v1291 = vshrl.u32 %v1290, 7
  %v1292 = vsub.s32 2, %v1291
  %v1293 = vrot.slane %v1280, %v1292
  %v1294 = vlaneseq
  %v1295 = vshrl.u32 %v1294, 7
  %v1296 = vsub.s32 3, %v1295
  %v1297 = vrot.slane %v1280, %v1296
  %v1298 = vlaneseq
  %v1299 = vshrl.u32 %v1298, 7
  %v1300 = vsub.s32 4, %v1299
  %v1301 = vrot.slane %v1280, %v1300
  %v1302 = vlaneseq
  %v1303 = vshrl.u32 %v1302, 7
  %v1304 = vsub.s32 5, %v1303
  %v1305 = vrot.slane %v1280, %v1304
  %v1306 = vlaneseq
  %v1307 = vshrl.u32 %v1306, 7
  %v1308 = vsub.s32 6, %v1307
  %v1309 = vrot.slane %v1280, %v1308
  %v1317 = vmul.f32 %v40, %v1285
  %v1318 = vmul.f32 %v40, %v1289
  %v1319 = vmul.f32 %v40, %v1293
  %v1320 = vmul.f32 %v40, %v1297
  %v1321 = vmul.f32 %v40, %v1301
  %v1322 = vmul.f32 %v40, %v1305
  %v1323 = vmul.f32 %v40, %v1309
  %v1324 = vadd.f32 %v1317, 0.0
  %v1325 = vadd.f32 %v1318, 0.0
  %v1326 = vadd.f32 %v1319, 0.0
  %v1327 = vadd.f32 %v1320, 0.0
  %v1328 = vadd.f32 %v1321, 0.0
  %v1329 = vadd.f32 %v1322, 0.0
  %v1330 = vadd.f32 %v1323, 0.0
  %v1331 = vmul.f32 %v94, %v1285
  %v1332 = vmul.f32 %v94, %v1289
  %v1333 = vmul.f32 %v94, %v1293
  %v1334 = vmul.f32 %v94, %v1297
  %v1335 = vmul.f32 %v94, %v1301
  %v1336 = vmul.f32 %v94, %v1305
  %v1337 = vmul.f32 %v94, %v1309
  %1345 = vrot.lane.b32.xlu0 %v1331, 127
  %v1346 = vpop.permute.xlu0 %1345
  %1347 = vrot.lane.b32.xlu0 %v1332, 127
  %v1348 = vpop.permute.xlu0 %1347
  %1349 = vrot.lane.b32.xlu0 %v1333, 127
  %v1350 = vpop.permute.xlu0 %1349
  %1351 = vrot.lane.b32.xlu0 %v1334, 127
  %v1352 = vpop.permute.xlu0 %1351
  %1353 = vrot.lane.b32.xlu0 %v1335, 127
  %v1354 = vpop.permute.xlu0 %1353
  %1355 = vrot.lane.b32.xlu0 %v1336, 127
  %v1356 = vpop.permute.xlu0 %1355
  %1357 = vrot.lane.b32.xlu0 %v1337, 127
  %v1358 = vpop.permute.xlu0 %1357
  %v1359 = vsel %vm124, %v1346, %v1348
  %v1360 = vsel %vm124, %v1348, %v1350
  %v1361 = vsel %vm124, %v1350, %v1352
  %v1362 = vsel %vm124, %v1352, %v1354
  %v1363 = vsel %vm124, %v1354, %v1356
  %v1364 = vsel %vm124, %v1356, %v1358
  %v1372 = vadd.f32 %v1324, %v1359
  %v1373 = vadd.f32 %v1325, %v1360
  %v1374 = vadd.f32 %v1326, %v1361
  %v1375 = vadd.f32 %v1327, %v1362
  %v1376 = vadd.f32 %v1328, %v1363
  %v1377 = vadd.f32 %v1329, %v1364
  %v1378 = vadd.f32 %v1330, %v1358
  %v1379 = vmul.f32 %v147, %v1285
  %v1380 = vmul.f32 %v147, %v1289
  %v1381 = vmul.f32 %v147, %v1293
  %v1382 = vmul.f32 %v147, %v1297
  %v1383 = vmul.f32 %v147, %v1301
  %v1384 = vmul.f32 %v147, %v1305
  %v1385 = vmul.f32 %v147, %v1309
  %1393 = vrot.lane.b32.xlu0 %v1379, 126
  %v1394 = vpop.permute.xlu0 %1393
  %1395 = vrot.lane.b32.xlu0 %v1380, 126
  %v1396 = vpop.permute.xlu0 %1395
  %1397 = vrot.lane.b32.xlu0 %v1381, 126
  %v1398 = vpop.permute.xlu0 %1397
  %1399 = vrot.lane.b32.xlu0 %v1382, 126
  %v1400 = vpop.permute.xlu0 %1399
  %1401 = vrot.lane.b32.xlu0 %v1383, 126
  %v1402 = vpop.permute.xlu0 %1401
  %1403 = vrot.lane.b32.xlu0 %v1384, 126
  %v1404 = vpop.permute.xlu0 %1403
  %1405 = vrot.lane.b32.xlu0 %v1385, 126
  %v1406 = vpop.permute.xlu0 %1405
  %v1407 = vsel %vm177, %v1394, %v1396
  %v1408 = vsel %vm177, %v1396, %v1398
  %v1409 = vsel %vm177, %v1398, %v1400
  %v1410 = vsel %vm177, %v1400, %v1402
  %v1411 = vsel %vm177, %v1402, %v1404
  %v1412 = vsel %vm177, %v1404, %v1406
  %v1420 = vadd.f32 %v1372, %v1407
  %v1421 = vadd.f32 %v1373, %v1408
  %v1422 = vadd.f32 %v1374, %v1409
  %v1423 = vadd.f32 %v1375, %v1410
  %v1424 = vadd.f32 %v1376, %v1411
  %v1425 = vadd.f32 %v1377, %v1412
  %v1426 = vadd.f32 %v1378, %v1406
  %v1427 = vmul.f32 %v200, %v1285
  %v1428 = vmul.f32 %v200, %v1289
  %v1429 = vmul.f32 %v200, %v1293
  %v1430 = vmul.f32 %v200, %v1297
  %v1431 = vmul.f32 %v200, %v1301
  %v1432 = vmul.f32 %v200, %v1305
  %v1433 = vmul.f32 %v200, %v1309
  %1441 = vrot.lane.b32.xlu0 %v1427, 98
  %v1442 = vpop.permute.xlu0 %1441
  %1443 = vrot.lane.b32.xlu0 %v1428, 98
  %v1444 = vpop.permute.xlu0 %1443
  %1445 = vrot.lane.b32.xlu0 %v1429, 98
  %v1446 = vpop.permute.xlu0 %1445
  %1447 = vrot.lane.b32.xlu0 %v1430, 98
  %v1448 = vpop.permute.xlu0 %1447
  %1449 = vrot.lane.b32.xlu0 %v1431, 98
  %v1450 = vpop.permute.xlu0 %1449
  %1451 = vrot.lane.b32.xlu0 %v1432, 98
  %v1452 = vpop.permute.xlu0 %1451
  %1453 = vrot.lane.b32.xlu0 %v1433, 98
  %v1454 = vpop.permute.xlu0 %1453
  %v1455 = vsel %vm230, %v1442, %v1444
  %v1456 = vsel %vm230, %v1444, %v1446
  %v1457 = vsel %vm230, %v1446, %v1448
  %v1458 = vsel %vm230, %v1448, %v1450
  %v1459 = vsel %vm230, %v1450, %v1452
  %v1460 = vsel %vm230, %v1452, %v1454
  %v1468 = vadd.f32 %v1420, %v1455
  %v1469 = vadd.f32 %v1421, %v1456
  %v1470 = vadd.f32 %v1422, %v1457
  %v1471 = vadd.f32 %v1423, %v1458
  %v1472 = vadd.f32 %v1424, %v1459
  %v1473 = vadd.f32 %v1425, %v1460
  %v1474 = vadd.f32 %v1426, %v1454
  %v1475 = vmul.f32 %v253, %v1285
  %v1476 = vmul.f32 %v253, %v1289
  %v1477 = vmul.f32 %v253, %v1293
  %v1478 = vmul.f32 %v253, %v1297
  %v1479 = vmul.f32 %v253, %v1301
  %v1480 = vmul.f32 %v253, %v1305
  %v1481 = vmul.f32 %v253, %v1309
  %1489 = vrot.lane.b32.xlu0 %v1475, 97
  %v1490 = vpop.permute.xlu0 %1489
  %1491 = vrot.lane.b32.xlu0 %v1476, 97
  %v1492 = vpop.permute.xlu0 %1491
  %1493 = vrot.lane.b32.xlu0 %v1477, 97
  %v1494 = vpop.permute.xlu0 %1493
  %1495 = vrot.lane.b32.xlu0 %v1478, 97
  %v1496 = vpop.permute.xlu0 %1495
  %1497 = vrot.lane.b32.xlu0 %v1479, 97
  %v1498 = vpop.permute.xlu0 %1497
  %1499 = vrot.lane.b32.xlu0 %v1480, 97
  %v1500 = vpop.permute.xlu0 %1499
  %1501 = vrot.lane.b32.xlu0 %v1481, 97
  %v1502 = vpop.permute.xlu0 %1501
  %v1503 = vsel %vm283, %v1490, %v1492
  %v1504 = vsel %vm283, %v1492, %v1494
  %v1505 = vsel %vm283, %v1494, %v1496
  %v1506 = vsel %vm283, %v1496, %v1498
  %v1507 = vsel %vm283, %v1498, %v1500
  %v1508 = vsel %vm283, %v1500, %v1502
  %v1516 = vadd.f32 %v1468, %v1503
  %v1517 = vadd.f32 %v1469, %v1504
  %v1518 = vadd.f32 %v1470, %v1505
  %v1519 = vadd.f32 %v1471, %v1506
  %v1520 = vadd.f32 %v1472, %v1507
  %v1521 = vadd.f32 %v1473, %v1508
  %v1522 = vadd.f32 %v1474, %v1502
  %v1523 = vmul.f32 %v306, %v1285
  %v1524 = vmul.f32 %v306, %v1289
  %v1525 = vmul.f32 %v306, %v1293
  %v1526 = vmul.f32 %v306, %v1297
  %v1527 = vmul.f32 %v306, %v1301
  %v1528 = vmul.f32 %v306, %v1305
  %v1529 = vmul.f32 %v306, %v1309
  %1537 = vrot.lane.b32.xlu0 %v1523, 96
  %v1538 = vpop.permute.xlu0 %1537
  %1539 = vrot.lane.b32.xlu0 %v1524, 96
  %v1540 = vpop.permute.xlu0 %1539
  %1541 = vrot.lane.b32.xlu0 %v1525, 96
  %v1542 = vpop.permute.xlu0 %1541
  %1543 = vrot.lane.b32.xlu0 %v1526, 96
  %v1544 = vpop.permute.xlu0 %1543
  %1545 = vrot.lane.b32.xlu0 %v1527, 96
  %v1546 = vpop.permute.xlu0 %1545
  %1547 = vrot.lane.b32.xlu0 %v1528, 96
  %v1548 = vpop.permute.xlu0 %1547
  %1549 = vrot.lane.b32.xlu0 %v1529, 96
  %v1550 = vpop.permute.xlu0 %1549
  %v1551 = vsel %vm336, %v1538, %v1540
  %v1552 = vsel %vm336, %v1540, %v1542
  %v1553 = vsel %vm336, %v1542, %v1544
  %v1554 = vsel %vm336, %v1544, %v1546
  %v1555 = vsel %vm336, %v1546, %v1548
  %v1556 = vsel %vm336, %v1548, %v1550
  %v1564 = vadd.f32 %v1516, %v1551
  %v1565 = vadd.f32 %v1517, %v1552
  %v1566 = vadd.f32 %v1518, %v1553
  %v1567 = vadd.f32 %v1519, %v1554
  %v1568 = vadd.f32 %v1520, %v1555
  %v1569 = vadd.f32 %v1521, %v1556
  %v1570 = vadd.f32 %v1522, %v1550
  %v1571 = vlaneseq
  %v1572 = vshrl.u32 %v1571, 7
  %v1573 = vsub.s32 7, %v1572
  %v1574 = vrot.slane %v1280, %v1573
  %v1576 = vmul.f32 %v359, %v1285
  %v1577 = vmul.f32 %v359, %v1289
  %v1578 = vmul.f32 %v359, %v1293
  %v1579 = vmul.f32 %v359, %v1297
  %v1580 = vmul.f32 %v359, %v1301
  %v1581 = vmul.f32 %v359, %v1305
  %v1582 = vmul.f32 %v359, %v1309
  %v1583 = vmul.f32 %v359, %v1574
  %1592 = vrot.lane.b32.xlu0 %v1576, 68
  %v1593 = vpop.permute.xlu0 %1592
  %1594 = vrot.lane.b32.xlu0 %v1577, 68
  %v1595 = vpop.permute.xlu0 %1594
  %1596 = vrot.lane.b32.xlu0 %v1578, 68
  %v1597 = vpop.permute.xlu0 %1596
  %1598 = vrot.lane.b32.xlu0 %v1579, 68
  %v1599 = vpop.permute.xlu0 %1598
  %1600 = vrot.lane.b32.xlu0 %v1580, 68
  %v1601 = vpop.permute.xlu0 %1600
  %1602 = vrot.lane.b32.xlu0 %v1581, 68
  %v1603 = vpop.permute.xlu0 %1602
  %1604 = vrot.lane.b32.xlu0 %v1582, 68
  %v1605 = vpop.permute.xlu0 %1604
  %1606 = vrot.lane.b32.xlu0 %v1583, 68
  %v1607 = vpop.permute.xlu0 %1606
  %v1608 = vsel %vm398, %v1593, %v1595
  %v1609 = vsel %vm398, %v1595, %v1597
  %v1610 = vsel %vm398, %v1597, %v1599
  %v1611 = vsel %vm398, %v1599, %v1601
  %v1612 = vsel %vm398, %v1601, %v1603
  %v1613 = vsel %vm398, %v1603, %v1605
  %v1614 = vsel %vm398, %v1605, %v1607
  %v1622 = vadd.f32 %v1564, %v1608
  %v1623 = vadd.f32 %v1565, %v1609
  %v1624 = vadd.f32 %v1566, %v1610
  %v1625 = vadd.f32 %v1567, %v1611
  %v1626 = vadd.f32 %v1568, %v1612
  %v1627 = vadd.f32 %v1569, %v1613
  %v1628 = vadd.f32 %v1570, %v1614
  %v1629 = vmul.f32 %v422, %v1285
  %v1630 = vmul.f32 %v422, %v1289
  %v1631 = vmul.f32 %v422, %v1293
  %v1632 = vmul.f32 %v422, %v1297
  %v1633 = vmul.f32 %v422, %v1301
  %v1634 = vmul.f32 %v422, %v1305
  %v1635 = vmul.f32 %v422, %v1309
  %v1636 = vmul.f32 %v422, %v1574
  %1645 = vrot.lane.b32.xlu0 %v1629, 67
  %v1646 = vpop.permute.xlu0 %1645
  %1647 = vrot.lane.b32.xlu0 %v1630, 67
  %v1648 = vpop.permute.xlu0 %1647
  %1649 = vrot.lane.b32.xlu0 %v1631, 67
  %v1650 = vpop.permute.xlu0 %1649
  %1651 = vrot.lane.b32.xlu0 %v1632, 67
  %v1652 = vpop.permute.xlu0 %1651
  %1653 = vrot.lane.b32.xlu0 %v1633, 67
  %v1654 = vpop.permute.xlu0 %1653
  %1655 = vrot.lane.b32.xlu0 %v1634, 67
  %v1656 = vpop.permute.xlu0 %1655
  %1657 = vrot.lane.b32.xlu0 %v1635, 67
  %v1658 = vpop.permute.xlu0 %1657
  %1659 = vrot.lane.b32.xlu0 %v1636, 67
  %v1660 = vpop.permute.xlu0 %1659
  %v1661 = vsel %vm456, %v1646, %v1648
  %v1662 = vsel %vm456, %v1648, %v1650
  %v1663 = vsel %vm456, %v1650, %v1652
  %v1664 = vsel %vm456, %v1652, %v1654
  %v1665 = vsel %vm456, %v1654, %v1656
  %v1666 = vsel %vm456, %v1656, %v1658
  %v1667 = vsel %vm456, %v1658, %v1660
  %v1675 = vadd.f32 %v1622, %v1661
  %v1676 = vadd.f32 %v1623, %v1662
  %v1677 = vadd.f32 %v1624, %v1663
  %v1678 = vadd.f32 %v1625, %v1664
  %v1679 = vadd.f32 %v1626, %v1665
  %v1680 = vadd.f32 %v1627, %v1666
  %v1681 = vadd.f32 %v1628, %v1667
  %v1682 = vmul.f32 %v480, %v1285
  %v1683 = vmul.f32 %v480, %v1289
  %v1684 = vmul.f32 %v480, %v1293
  %v1685 = vmul.f32 %v480, %v1297
  %v1686 = vmul.f32 %v480, %v1301
  %v1687 = vmul.f32 %v480, %v1305
  %v1688 = vmul.f32 %v480, %v1309
  %v1689 = vmul.f32 %v480, %v1574
  %1698 = vrot.lane.b32.xlu0 %v1682, 66
  %v1699 = vpop.permute.xlu0 %1698
  %1700 = vrot.lane.b32.xlu0 %v1683, 66
  %v1701 = vpop.permute.xlu0 %1700
  %1702 = vrot.lane.b32.xlu0 %v1684, 66
  %v1703 = vpop.permute.xlu0 %1702
  %1704 = vrot.lane.b32.xlu0 %v1685, 66
  %v1705 = vpop.permute.xlu0 %1704
  %1706 = vrot.lane.b32.xlu0 %v1686, 66
  %v1707 = vpop.permute.xlu0 %1706
  %1708 = vrot.lane.b32.xlu0 %v1687, 66
  %v1709 = vpop.permute.xlu0 %1708
  %1710 = vrot.lane.b32.xlu0 %v1688, 66
  %v1711 = vpop.permute.xlu0 %1710
  %1712 = vrot.lane.b32.xlu0 %v1689, 66
  %v1713 = vpop.permute.xlu0 %1712
  %v1714 = vsel %vm514, %v1699, %v1701
  %v1715 = vsel %vm514, %v1701, %v1703
  %v1716 = vsel %vm514, %v1703, %v1705
  %v1717 = vsel %vm514, %v1705, %v1707
  %v1718 = vsel %vm514, %v1707, %v1709
  %v1719 = vsel %vm514, %v1709, %v1711
  %v1720 = vsel %vm514, %v1711, %v1713
  %v1728 = vadd.f32 %v1675, %v1714
  %v1729 = vadd.f32 %v1676, %v1715
  %v1730 = vadd.f32 %v1677, %v1716
  %v1731 = vadd.f32 %v1678, %v1717
  %v1732 = vadd.f32 %v1679, %v1718
  %v1733 = vadd.f32 %v1680, %v1719
  %v1734 = vadd.f32 %v1681, %v1720
  %v1735 = vadd.f32 %v1728, %v539
  %v1736 = vadd.f32 %v1729, %v539
  %v1737 = vadd.f32 %v1730, %v539
  %v1738 = vadd.f32 %v1731, %v539
  %v1739 = vadd.f32 %v1732, %v539
  %v1740 = vadd.f32 %v1733, %v539
  %v1741 = vadd.f32 %v1734, %v539
  %vm1742 = vcmp.gt.f32.partialorder %v1735, 0.0
  %vm1743 = vcmp.gt.f32.partialorder %v1736, 0.0
  %vm1744 = vcmp.gt.f32.partialorder %v1737, 0.0
  %vm1745 = vcmp.gt.f32.partialorder %v1738, 0.0
  %vm1746 = vcmp.gt.f32.partialorder %v1739, 0.0
  %vm1747 = vcmp.gt.f32.partialorder %v1740, 0.0
  %vm1748 = vcmp.gt.f32.partialorder %v1741, 0.0
  %v1749 = vmul.f32 %v555, %v1735
  %v1750 = vmul.f32 %v555, %v1736
  %v1751 = vmul.f32 %v555, %v1737
  %v1752 = vmul.f32 %v555, %v1738
  %v1753 = vmul.f32 %v555, %v1739
  %v1754 = vmul.f32 %v555, %v1740
  %v1755 = vmul.f32 %v555, %v1741
  %v1756 = vsel %vm1742, %v1735, %v1749
  %v1757 = vsel %vm1743, %v1736, %v1750
  %v1758 = vsel %vm1744, %v1737, %v1751
  %v1759 = vsel %vm1745, %v1738, %v1752
  %v1760 = vsel %vm1746, %v1739, %v1753
  %v1761 = vsel %vm1747, %v1740, %v1754
  %v1762 = vsel %vm1748, %v1741, %v1755
  %1770 = vrot.lane.b32.xlu0 %v1756, 127
  %v1771 = vpop.permute.xlu0 %1770
  %1772 = vrot.lane.b32.xlu0 %v1757, 127
  %v1773 = vpop.permute.xlu0 %1772
  %1774 = vrot.lane.b32.xlu0 %v1758, 127
  %v1775 = vpop.permute.xlu0 %1774
  %1776 = vrot.lane.b32.xlu0 %v1759, 127
  %v1777 = vpop.permute.xlu0 %1776
  %1778 = vrot.lane.b32.xlu0 %v1760, 127
  %v1779 = vpop.permute.xlu0 %1778
  %1780 = vrot.lane.b32.xlu0 %v1761, 127
  %v1781 = vpop.permute.xlu0 %1780
  %1782 = vrot.lane.b32.xlu0 %v1762, 127
  %v1783 = vpop.permute.xlu0 %1782
  %v1784 = vsel %vm124, %v1771, %v1773
  %v1785 = vsel %vm124, %v1773, %v1775
  %v1786 = vsel %vm124, %v1775, %v1777
  %v1787 = vsel %vm124, %v1777, %v1779
  %v1788 = vsel %vm124, %v1779, %v1781
  %v1789 = vsel %vm124, %v1781, %v1783
  %v1797 = vmax.f32 %v1756, %v1784
  %v1798 = vmax.f32 %v1757, %v1785
  %v1799 = vmax.f32 %v1758, %v1786
  %v1800 = vmax.f32 %v1759, %v1787
  %v1801 = vmax.f32 %v1760, %v1788
  %v1802 = vmax.f32 %v1761, %v1789
  %v1803 = vmax.f32 %v1762, %v1783
  %1811 = vrot.lane.b32.xlu0 %v1797, 98
  %v1812 = vpop.permute.xlu0 %1811
  %1813 = vrot.lane.b32.xlu0 %v1798, 98
  %v1814 = vpop.permute.xlu0 %1813
  %1815 = vrot.lane.b32.xlu0 %v1799, 98
  %v1816 = vpop.permute.xlu0 %1815
  %1817 = vrot.lane.b32.xlu0 %v1800, 98
  %v1818 = vpop.permute.xlu0 %1817
  %1819 = vrot.lane.b32.xlu0 %v1801, 98
  %v1820 = vpop.permute.xlu0 %1819
  %1821 = vrot.lane.b32.xlu0 %v1802, 98
  %v1822 = vpop.permute.xlu0 %1821
  %1823 = vrot.lane.b32.xlu0 %v1803, 98
  %v1824 = vpop.permute.xlu0 %1823
  %v1825 = vsel %vm230, %v1812, %v1814
  %v1826 = vsel %vm230, %v1814, %v1816
  %v1827 = vsel %vm230, %v1816, %v1818
  %v1828 = vsel %vm230, %v1818, %v1820
  %v1829 = vsel %vm230, %v1820, %v1822
  %v1830 = vsel %vm230, %v1822, %v1824
  %v1838 = vmax.f32 %v1797, %v1825
  %v1839 = vmax.f32 %v1798, %v1826
  %v1840 = vmax.f32 %v1799, %v1827
  %v1841 = vmax.f32 %v1800, %v1828
  %v1842 = vmax.f32 %v1801, %v1829
  %v1843 = vmax.f32 %v1802, %v1830
  %v1844 = vmax.f32 %v1803, %v1824
  %1851 = vrot.lane.b32.xlu0 %v1838, 126
  %v1852 = vpop.permute.xlu0 %1851
  %1853 = vrot.lane.b32.xlu0 %v1839, 126
  %v1854 = vpop.permute.xlu0 %1853
  %1855 = vrot.lane.b32.xlu0 %v1840, 126
  %v1856 = vpop.permute.xlu0 %1855
  %1857 = vrot.lane.b32.xlu0 %v1841, 126
  %v1858 = vpop.permute.xlu0 %1857
  %1859 = vrot.lane.b32.xlu0 %v1842, 126
  %v1860 = vpop.permute.xlu0 %1859
  %1861 = vrot.lane.b32.xlu0 %v1843, 126
  %v1862 = vpop.permute.xlu0 %1861
  %v1863 = vsel %vm177, %v1852, %v1854
  %v1864 = vsel %vm177, %v1854, %v1856
  %v1865 = vsel %vm177, %v1856, %v1858
  %v1866 = vsel %vm177, %v1858, %v1860
  %v1867 = vsel %vm177, %v1860, %v1862
  %1874 = vrot.lane.b32.xlu0 %v1838, 124
  %v1875 = vpop.permute.xlu0 %1874
  %1876 = vrot.lane.b32.xlu0 %v1839, 124
  %v1877 = vpop.permute.xlu0 %1876
  %1878 = vrot.lane.b32.xlu0 %v1840, 124
  %v1879 = vpop.permute.xlu0 %1878
  %1880 = vrot.lane.b32.xlu0 %v1841, 124
  %v1881 = vpop.permute.xlu0 %1880
  %1882 = vrot.lane.b32.xlu0 %v1842, 124
  %v1883 = vpop.permute.xlu0 %1882
  %1884 = vrot.lane.b32.xlu0 %v1843, 124
  %v1885 = vpop.permute.xlu0 %1884
  %v1886 = vsel %vm693, %v1875, %v1877
  %v1887 = vsel %vm693, %v1877, %v1879
  %v1888 = vsel %vm693, %v1879, %v1881
  %v1889 = vsel %vm693, %v1881, %v1883
  %v1890 = vsel %vm693, %v1883, %v1885
  %1897 = vrot.lane.b32.xlu0 %v1838, 68
  %v1898 = vpop.permute.xlu0 %1897
  %1899 = vrot.lane.b32.xlu0 %v1839, 68
  %v1900 = vpop.permute.xlu0 %1899
  %1901 = vrot.lane.b32.xlu0 %v1840, 68
  %v1902 = vpop.permute.xlu0 %1901
  %1903 = vrot.lane.b32.xlu0 %v1841, 68
  %v1904 = vpop.permute.xlu0 %1903
  %1905 = vrot.lane.b32.xlu0 %v1842, 68
  %v1906 = vpop.permute.xlu0 %1905
  %1907 = vrot.lane.b32.xlu0 %v1843, 68
  %v1908 = vpop.permute.xlu0 %1907
  %v1909 = vsel %vm398, %v1898, %v1900
  %v1910 = vsel %vm398, %v1900, %v1902
  %v1911 = vsel %vm398, %v1902, %v1904
  %v1912 = vsel %vm398, %v1904, %v1906
  %v1913 = vsel %vm398, %v1906, %v1908
  %1920 = vrot.lane.b32.xlu0 %v1838, 66
  %v1921 = vpop.permute.xlu0 %1920
  %1922 = vrot.lane.b32.xlu0 %v1839, 66
  %v1923 = vpop.permute.xlu0 %1922
  %1924 = vrot.lane.b32.xlu0 %v1840, 66
  %v1925 = vpop.permute.xlu0 %1924
  %1926 = vrot.lane.b32.xlu0 %v1841, 66
  %v1927 = vpop.permute.xlu0 %1926
  %1928 = vrot.lane.b32.xlu0 %v1842, 66
  %v1929 = vpop.permute.xlu0 %1928
  %1930 = vrot.lane.b32.xlu0 %v1843, 66
  %v1931 = vpop.permute.xlu0 %1930
  %v1932 = vsel %vm514, %v1921, %v1923
  %v1933 = vsel %vm514, %v1923, %v1925
  %v1934 = vsel %vm514, %v1925, %v1927
  %v1935 = vsel %vm514, %v1927, %v1929
  %v1936 = vsel %vm514, %v1929, %v1931
  %1943 = vrot.lane.b32.xlu0 %v1838, 64
  %v1944 = vpop.permute.xlu0 %1943
  %1945 = vrot.lane.b32.xlu0 %v1839, 64
  %v1946 = vpop.permute.xlu0 %1945
  %1947 = vrot.lane.b32.xlu0 %v1840, 64
  %v1948 = vpop.permute.xlu0 %1947
  %1949 = vrot.lane.b32.xlu0 %v1841, 64
  %v1950 = vpop.permute.xlu0 %1949
  %1951 = vrot.lane.b32.xlu0 %v1842, 64
  %v1952 = vpop.permute.xlu0 %1951
  %1953 = vrot.lane.b32.xlu0 %v1843, 64
  %v1954 = vpop.permute.xlu0 %1953
  %v1955 = vsel %vm763, %v1944, %v1946
  %v1956 = vsel %vm763, %v1946, %v1948
  %v1957 = vsel %vm763, %v1948, %v1950
  %v1958 = vsel %vm763, %v1950, %v1952
  %v1959 = vsel %vm763, %v1952, %v1954
  %1967 = vrot.lane.b32.xlu0 %v1838, 8
  %v1968 = vpop.permute.xlu0 %1967
  %1969 = vrot.lane.b32.xlu0 %v1839, 8
  %v1970 = vpop.permute.xlu0 %1969
  %1971 = vrot.lane.b32.xlu0 %v1840, 8
  %v1972 = vpop.permute.xlu0 %1971
  %1973 = vrot.lane.b32.xlu0 %v1841, 8
  %v1974 = vpop.permute.xlu0 %1973
  %1975 = vrot.lane.b32.xlu0 %v1842, 8
  %v1976 = vpop.permute.xlu0 %1975
  %1977 = vrot.lane.b32.xlu0 %v1843, 8
  %v1978 = vpop.permute.xlu0 %1977
  %1979 = vrot.lane.b32.xlu0 %v1844, 8
  %v1980 = vpop.permute.xlu0 %1979
  %v1981 = vsel %vm790, %v1968, %v1970
  %v1982 = vsel %vm790, %v1970, %v1972
  %v1983 = vsel %vm790, %v1972, %v1974
  %v1984 = vsel %vm790, %v1974, %v1976
  %v1985 = vsel %vm790, %v1976, %v1978
  %v1986 = vsel %vm790, %v1978, %v1980
  %1993 = vrot.lane.b32.xlu0 %v1838, 6
  %v1994 = vpop.permute.xlu0 %1993
  %1995 = vrot.lane.b32.xlu0 %v1839, 6
  %v1996 = vpop.permute.xlu0 %1995
  %1997 = vrot.lane.b32.xlu0 %v1840, 6
  %v1998 = vpop.permute.xlu0 %1997
  %1999 = vrot.lane.b32.xlu0 %v1841, 6
  %v2000 = vpop.permute.xlu0 %1999
  %2001 = vrot.lane.b32.xlu0 %v1842, 6
  %v2002 = vpop.permute.xlu0 %2001
  %2003 = vrot.lane.b32.xlu0 %v1843, 6
  %v2004 = vpop.permute.xlu0 %2003
  %2005 = vrot.lane.b32.xlu0 %v1844, 6
  %v2006 = vpop.permute.xlu0 %2005
  %v2007 = vsel %vm817, %v1994, %v1996
  %v2008 = vsel %vm817, %v1996, %v1998
  %v2009 = vsel %vm817, %v1998, %v2000
  %v2010 = vsel %vm817, %v2000, %v2002
  %v2011 = vsel %vm817, %v2002, %v2004
  %v2012 = vsel %vm817, %v2004, %v2006
  %2019 = vrot.lane.b32.xlu0 %v1838, 4
  %v2020 = vpop.permute.xlu0 %2019
  %2021 = vrot.lane.b32.xlu0 %v1839, 4
  %v2022 = vpop.permute.xlu0 %2021
  %2023 = vrot.lane.b32.xlu0 %v1840, 4
  %v2024 = vpop.permute.xlu0 %2023
  %2025 = vrot.lane.b32.xlu0 %v1841, 4
  %v2026 = vpop.permute.xlu0 %2025
  %2027 = vrot.lane.b32.xlu0 %v1842, 4
  %v2028 = vpop.permute.xlu0 %2027
  %2029 = vrot.lane.b32.xlu0 %v1843, 4
  %v2030 = vpop.permute.xlu0 %2029
  %2031 = vrot.lane.b32.xlu0 %v1844, 4
  %v2032 = vpop.permute.xlu0 %2031
  %v2033 = vsel %vm844, %v2020, %v2022
  %v2034 = vsel %vm844, %v2022, %v2024
  %v2035 = vsel %vm844, %v2024, %v2026
  %v2036 = vsel %vm844, %v2026, %v2028
  %v2037 = vsel %vm844, %v2028, %v2030
  %v2038 = vsel %vm844, %v2030, %v2032
  %2045 = vmatprep.subr.mxu0 %v1839
  %2046 = vmatpush1.msra.mxu0 %v1838
  %2047 = vmatprep.subr.mxu0 %v1864
  %2048 = vmatpush1.msra.mxu0 %v1863
  %2049 = vmatprep.subr.mxu0 %v1887
  %2050 = vmatpush1.msra.mxu0 %v1886
  %2051 = vmatprep.subr.mxu0 %v1910
  %2052 = vmatpush1.msra.mxu0 %v1909
  %2053 = vmatprep.subr.mxu0 %v1933
  %2054 = vmatpush1.msra.mxu0 %v1932
  %2055 = vmatprep.subr.mxu0 %v1956
  %2056 = vmatpush1.msra.mxu0 %v1955
  %2057 = vmatprep.subr.mxu0 %v1982
  %2058 = vmatpush1.msra.mxu0 %v1981
  %2059 = vmatprep.subr.mxu0 %v2008
  %2060 = vmatpush1.msra.mxu0 %v2007
  %2061 = vmatprep.subr.mxu0 %v2034
  %2062 = vmatpush1.msra.mxu0 %v2033
  %2063 = vmatprep.subr.mxu0 0.0
  %2064 = vmatpush1.msra.mxu0 0.0
  %2065 = vmatprep.subr.mxu0 0.0
  %2066 = vmatpush1.msra.mxu0 0.0
  %2067 = vmatprep.subr.mxu0 0.0
  %2068 = vmatpush1.msra.mxu0 0.0
  %2069 = vmatprep.subr.mxu0 0.0
  %2070 = vmatpush1.msra.mxu0 0.0
  %2071 = vmatprep.subr.mxu0 0.0
  %2072 = vmatpush1.msra.mxu0 0.0
  %2073 = vmatprep.subr.mxu0 0.0
  %2074 = vmatpush1.msra.mxu0 0.0
  %2075 = vmatprep.subr.mxu0 0.0
  %2076 = vmatpush1.msra.mxu0 0.0
  %2077 = vmatprep.subr.mxu0 0.0
  %2078 = vmatpush1.msra.mxu0 0.0
  %2079 = vmatprep.subr.mxu0 0.0
  %2080 = vmatpush1.msra.mxu0 0.0
  %2081 = vmatprep.subr.mxu0 0.0
  %2082 = vmatpush1.msra.mxu0 0.0
  %2083 = vmatprep.subr.mxu0 0.0
  %2084 = vmatpush1.msra.mxu0 0.0
  %2085 = vmatprep.subr.mxu0 0.0
  %2086 = vmatpush1.msra.mxu0 0.0
  %2087 = vmatprep.subr.mxu0 0.0
  %2088 = vmatpush1.msra.mxu0 0.0
  %2089 = vmatprep.subr.mxu0 0.0
  %2090 = vmatpush1.msra.mxu0 0.0
  %2091 = vmatprep.subr.mxu0 0.0
  %2092 = vmatpush1.msra.mxu0 0.0
  %2093 = vmatprep.subr.mxu0 0.0
  %2094 = vmatpush1.msra.mxu0 0.0
  %2095 = vmatprep.subr.mxu0 0.0
  %2096 = vmatpush1.msra.mxu0 0.0
  %2097 = vmatprep.subr.mxu0 0.0
  %2098 = vmatpush1.msra.mxu0 0.0
  %2099 = vmatprep.subr.mxu0 0.0
  %2100 = vmatpush1.msra.mxu0 0.0
  %2101 = vmatprep.subr.mxu0 0.0
  %2102 = vmatpush1.msra.mxu0 0.0
  %2103 = vmatprep.subr.mxu0 0.0
  %2104 = vmatpush1.msra.mxu0 0.0
  %2105 = vmatprep.subr.mxu0 0.0
  %2106 = vmatpush1.msra.mxu0 0.0
  %2107 = vmatprep.subr.mxu0 0.0
  %2108 = vmatpush1.msra.mxu0 0.0
  %2109 = vmatprep.mubr.f32.mxu0 0.0
  %2110 = vmatmul.mubr.f32.gmra.mrb[0].mxu0 %v869
  %v2111 = vpop.f32.mrb[0].mxu0
  %v2112 = vadd.f32 %v860, %v2111
  %v2113 = vpop.f32.mrb[0].mxu0
  %v2114 = vadd.f32 %v860, %v2113
  %2115 = vmatprep.mubr.f32.mxu0 0.0
  %2116 = vmatmul.mubr.f32.gmra.mrb[0].mxu0 %v872
  %v2117 = vpop.f32.mrb[0].mxu0
  %v2118 = vadd.f32 %v865, %v2117
  %v2119 = vpop.f32.mrb[0].mxu0
  %v2120 = vadd.f32 %v865, %v2119
  %2121 = vdwg.mxu0
  %2122 = vmatprep.subr.mxu0 %v1841
  %2123 = vmatpush1.msra.mxu0 %v1840
  %2124 = vmatprep.subr.mxu0 %v1866
  %2125 = vmatpush1.msra.mxu0 %v1865
  %2126 = vmatprep.subr.mxu0 %v1889
  %2127 = vmatpush1.msra.mxu0 %v1888
  %2128 = vmatprep.subr.mxu0 %v1912
  %2129 = vmatpush1.msra.mxu0 %v1911
  %2130 = vmatprep.subr.mxu0 %v1935
  %2131 = vmatpush1.msra.mxu0 %v1934
  %2132 = vmatprep.subr.mxu0 %v1958
  %2133 = vmatpush1.msra.mxu0 %v1957
  %2134 = vmatprep.subr.mxu0 %v1984
  %2135 = vmatpush1.msra.mxu0 %v1983
  %2136 = vmatprep.subr.mxu0 %v2010
  %2137 = vmatpush1.msra.mxu0 %v2009
  %2138 = vmatprep.subr.mxu0 %v2036
  %2139 = vmatpush1.msra.mxu0 %v2035
  %2140 = vmatprep.subr.mxu0 0.0
  %2141 = vmatpush1.msra.mxu0 0.0
  %2142 = vmatprep.subr.mxu0 0.0
  %2143 = vmatpush1.msra.mxu0 0.0
  %2144 = vmatprep.subr.mxu0 0.0
  %2145 = vmatpush1.msra.mxu0 0.0
  %2146 = vmatprep.subr.mxu0 0.0
  %2147 = vmatpush1.msra.mxu0 0.0
  %2148 = vmatprep.subr.mxu0 0.0
  %2149 = vmatpush1.msra.mxu0 0.0
  %2150 = vmatprep.subr.mxu0 0.0
  %2151 = vmatpush1.msra.mxu0 0.0
  %2152 = vmatprep.subr.mxu0 0.0
  %2153 = vmatpush1.msra.mxu0 0.0
  %2154 = vmatprep.subr.mxu0 0.0
  %2155 = vmatpush1.msra.mxu0 0.0
  %2156 = vmatprep.subr.mxu0 0.0
  %2157 = vmatpush1.msra.mxu0 0.0
  %2158 = vmatprep.subr.mxu0 0.0
  %2159 = vmatpush1.msra.mxu0 0.0
  %2160 = vmatprep.subr.mxu0 0.0
  %2161 = vmatpush1.msra.mxu0 0.0
  %2162 = vmatprep.subr.mxu0 0.0
  %2163 = vmatpush1.msra.mxu0 0.0
  %2164 = vmatprep.subr.mxu0 0.0
  %2165 = vmatpush1.msra.mxu0 0.0
  %2166 = vmatprep.subr.mxu0 0.0
  %2167 = vmatpush1.msra.mxu0 0.0
  %2168 = vmatprep.subr.mxu0 0.0
  %2169 = vmatpush1.msra.mxu0 0.0
  %2170 = vmatprep.subr.mxu0 0.0
  %2171 = vmatpush1.msra.mxu0 0.0
  %2172 = vmatprep.subr.mxu0 0.0
  %2173 = vmatpush1.msra.mxu0 0.0
  %2174 = vmatprep.subr.mxu0 0.0
  %2175 = vmatpush1.msra.mxu0 0.0
  %2176 = vmatprep.subr.mxu0 0.0
  %2177 = vmatpush1.msra.mxu0 0.0
  %2178 = vmatprep.subr.mxu0 0.0
  %2179 = vmatpush1.msra.mxu0 0.0
  %2180 = vmatprep.subr.mxu0 0.0
  %2181 = vmatpush1.msra.mxu0 0.0
  %2182 = vmatprep.subr.mxu0 0.0
  %2183 = vmatpush1.msra.mxu0 0.0
  %2184 = vmatprep.subr.mxu0 0.0
  %2185 = vmatpush1.msra.mxu0 0.0
  %2186 = vmatprep.mubr.f32.mxu0 0.0
  %2187 = vmatmul.mubr.f32.gmra.mrb[0].mxu0 %v869
  %v2188 = vpop.f32.mrb[0].mxu0
  %v2189 = vadd.f32 %v860, %v2188
  %v2190 = vpop.f32.mrb[0].mxu0
  %v2191 = vadd.f32 %v860, %v2190
  %2192 = vmatprep.mubr.f32.mxu0 0.0
  %2193 = vmatmul.mubr.f32.gmra.mrb[0].mxu0 %v872
  %v2194 = vpop.f32.mrb[0].mxu0
  %v2195 = vadd.f32 %v865, %v2194
  %v2196 = vpop.f32.mrb[0].mxu0
  %v2197 = vadd.f32 %v865, %v2196
  %2198 = vdwg.mxu0
  %2199 = vmatprep.subr.mxu0 %v1843
  %2200 = vmatpush1.msra.mxu0 %v1842
  %2201 = vmatprep.subr.mxu0 %v1862
  %2202 = vmatpush1.msra.mxu0 %v1867
  %2203 = vmatprep.subr.mxu0 %v1885
  %2204 = vmatpush1.msra.mxu0 %v1890
  %2205 = vmatprep.subr.mxu0 %v1908
  %2206 = vmatpush1.msra.mxu0 %v1913
  %2207 = vmatprep.subr.mxu0 %v1931
  %2208 = vmatpush1.msra.mxu0 %v1936
  %2209 = vmatprep.subr.mxu0 %v1954
  %2210 = vmatpush1.msra.mxu0 %v1959
  %2211 = vmatprep.subr.mxu0 %v1986
  %2212 = vmatpush1.msra.mxu0 %v1985
  %2213 = vmatprep.subr.mxu0 %v2012
  %2214 = vmatpush1.msra.mxu0 %v2011
  %2215 = vmatprep.subr.mxu0 %v2038
  %2216 = vmatpush1.msra.mxu0 %v2037
  %2217 = vmatprep.subr.mxu0 0.0
  %2218 = vmatpush1.msra.mxu0 0.0
  %2219 = vmatprep.subr.mxu0 0.0
  %2220 = vmatpush1.msra.mxu0 0.0
  %2221 = vmatprep.subr.mxu0 0.0
  %2222 = vmatpush1.msra.mxu0 0.0
  %2223 = vmatprep.subr.mxu0 0.0
  %2224 = vmatpush1.msra.mxu0 0.0
  %2225 = vmatprep.subr.mxu0 0.0
  %2226 = vmatpush1.msra.mxu0 0.0
  %2227 = vmatprep.subr.mxu0 0.0
  %2228 = vmatpush1.msra.mxu0 0.0
  %2229 = vmatprep.subr.mxu0 0.0
  %2230 = vmatpush1.msra.mxu0 0.0
  %2231 = vmatprep.subr.mxu0 0.0
  %2232 = vmatpush1.msra.mxu0 0.0
  %2233 = vmatprep.subr.mxu0 0.0
  %2234 = vmatpush1.msra.mxu0 0.0
  %2235 = vmatprep.subr.mxu0 0.0
  %2236 = vmatpush1.msra.mxu0 0.0
  %2237 = vmatprep.subr.mxu0 0.0
  %2238 = vmatpush1.msra.mxu0 0.0
  %2239 = vmatprep.subr.mxu0 0.0
  %2240 = vmatpush1.msra.mxu0 0.0
  %2241 = vmatprep.subr.mxu0 0.0
  %2242 = vmatpush1.msra.mxu0 0.0
  %2243 = vmatprep.subr.mxu0 0.0
  %2244 = vmatpush1.msra.mxu0 0.0
  %2245 = vmatprep.subr.mxu0 0.0
  %2246 = vmatpush1.msra.mxu0 0.0
  %2247 = vmatprep.subr.mxu0 0.0
  %2248 = vmatpush1.msra.mxu0 0.0
  %2249 = vmatprep.subr.mxu0 0.0
  %2250 = vmatpush1.msra.mxu0 0.0
  %2251 = vmatprep.subr.mxu0 0.0
  %2252 = vmatpush1.msra.mxu0 0.0
  %2253 = vmatprep.subr.mxu0 0.0
  %2254 = vmatpush1.msra.mxu0 0.0
  %2255 = vmatprep.subr.mxu0 0.0
  %2256 = vmatpush1.msra.mxu0 0.0
  %2257 = vmatprep.subr.mxu0 0.0
  %2258 = vmatpush1.msra.mxu0 0.0
  %2259 = vmatprep.subr.mxu0 0.0
  %2260 = vmatpush1.msra.mxu0 0.0
  %2261 = vmatprep.subr.mxu0 0.0
  %2262 = vmatpush1.msra.mxu0 0.0
  %2263 = vmatprep.mubr.f32.mxu0 0.0
  %2264 = vmatmul.mubr.f32.gmra.mrb[0].mxu0 %v869
  %v2265 = vpop.f32.mrb[0].mxu0
  %v2266 = vadd.f32 %v860, %v2265
  %v2267 = vpop.f32.mrb[0].mxu0
  %v2268 = vadd.f32 %v860, %v2267
  %2269 = vmatprep.mubr.f32.mxu0 0.0
  %2270 = vmatmul.mubr.f32.gmra.mrb[0].mxu0 %v872
  %v2271 = vpop.f32.mrb[0].mxu0
  %v2272 = vadd.f32 %v865, %v2271
  %v2273 = vpop.f32.mrb[0].mxu0
  %v2274 = vadd.f32 %v865, %v2273
  %2275 = vdwg.mxu0
  %vm2276 = vcmp.gt.f32.partialorder %v2112, 0.0
  %vm2277 = vcmp.gt.f32.partialorder %v2114, 0.0
  %vm2278 = vcmp.gt.f32.partialorder %v2189, 0.0
  %vm2279 = vcmp.gt.f32.partialorder %v2191, 0.0
  %vm2280 = vcmp.gt.f32.partialorder %v2266, 0.0
  %vm2281 = vcmp.gt.f32.partialorder %v2268, 0.0
  %vm2282 = vcmp.gt.f32.partialorder %v2118, 0.0
  %vm2283 = vcmp.gt.f32.partialorder %v2120, 0.0
  %vm2284 = vcmp.gt.f32.partialorder %v2195, 0.0
  %vm2285 = vcmp.gt.f32.partialorder %v2197, 0.0
  %vm2286 = vcmp.gt.f32.partialorder %v2272, 0.0
  %vm2287 = vcmp.gt.f32.partialorder %v2274, 0.0
  %v2288 = vmul.f32 %v555, %v2112
  %v2289 = vmul.f32 %v555, %v2114
  %v2290 = vmul.f32 %v555, %v2189
  %v2291 = vmul.f32 %v555, %v2191
  %v2292 = vmul.f32 %v555, %v2266
  %v2293 = vmul.f32 %v555, %v2268
  %v2294 = vmul.f32 %v555, %v2118
  %v2295 = vmul.f32 %v555, %v2120
  %v2296 = vmul.f32 %v555, %v2195
  %v2297 = vmul.f32 %v555, %v2197
  %v2298 = vmul.f32 %v555, %v2272
  %v2299 = vmul.f32 %v555, %v2274
  %v2300 = vsel %vm2276, %v2112, %v2288
  %v2301 = vsel %vm2277, %v2114, %v2289
  %v2302 = vsel %vm2278, %v2189, %v2290
  %v2303 = vsel %vm2279, %v2191, %v2291
  %v2304 = vsel %vm2280, %v2266, %v2292
  %v2305 = vsel %vm2281, %v2268, %v2293
  %v2306 = vsel %vm2282, %v2118, %v2294
  %v2307 = vsel %vm2283, %v2120, %v2295
  %v2308 = vsel %vm2284, %v2195, %v2296
  %v2309 = vsel %vm2285, %v2197, %v2297
  %v2310 = vsel %vm2286, %v2272, %v2298
  %v2311 = vsel %vm2287, %v2274, %v2299
  %2324 = vrot.lane.b32.xlu0 %v2300, 126
  %v2325 = vpop.permute.xlu0 %2324
  %2326 = vrot.lane.b32.xlu0 %v2301, 126
  %v2327 = vpop.permute.xlu0 %2326
  %2328 = vrot.lane.b32.xlu0 %v2302, 126
  %v2329 = vpop.permute.xlu0 %2328
  %2330 = vrot.lane.b32.xlu0 %v2303, 126
  %v2331 = vpop.permute.xlu0 %2330
  %2332 = vrot.lane.b32.xlu0 %v2304, 126
  %v2333 = vpop.permute.xlu0 %2332
  %2334 = vrot.lane.b32.xlu0 %v2305, 126
  %v2335 = vpop.permute.xlu0 %2334
  %2336 = vrot.lane.b32.xlu0 %v2306, 126
  %v2337 = vpop.permute.xlu0 %2336
  %2338 = vrot.lane.b32.xlu0 %v2307, 126
  %v2339 = vpop.permute.xlu0 %2338
  %2340 = vrot.lane.b32.xlu0 %v2308, 126
  %v2341 = vpop.permute.xlu0 %2340
  %2342 = vrot.lane.b32.xlu0 %v2309, 126
  %v2343 = vpop.permute.xlu0 %2342
  %2344 = vrot.lane.b32.xlu0 %v2310, 126
  %v2345 = vpop.permute.xlu0 %2344
  %2346 = vrot.lane.b32.xlu0 %v2311, 126
  %v2347 = vpop.permute.xlu0 %2346
  %v2348 = vsel %vm177, %v2325, %v2327
  %v2349 = vsel %vm177, %v2327, %v2329
  %v2350 = vsel %vm177, %v2329, %v2331
  %v2351 = vsel %vm177, %v2331, %v2333
  %v2352 = vsel %vm177, %v2333, %v2335
  %v2353 = vsel %vm177, %v2337, %v2339
  %v2354 = vsel %vm177, %v2339, %v2341
  %v2355 = vsel %vm177, %v2341, %v2343
  %v2356 = vsel %vm177, %v2343, %v2345
  %v2357 = vsel %vm177, %v2345, %v2347
  %v2370 = vmax.f32 %v2300, %v2348
  %v2371 = vmax.f32 %v2301, %v2349
  %v2372 = vmax.f32 %v2302, %v2350
  %v2373 = vmax.f32 %v2303, %v2351
  %v2374 = vmax.f32 %v2304, %v2352
  %v2375 = vmax.f32 %v2305, %v2335
  %v2376 = vmax.f32 %v2306, %v2353
  %v2377 = vmax.f32 %v2307, %v2354
  %v2378 = vmax.f32 %v2308, %v2355
  %v2379 = vmax.f32 %v2309, %v2356
  %v2380 = vmax.f32 %v2310, %v2357
  %v2381 = vmax.f32 %v2311, %v2347
  %2394 = vrot.lane.b32.xlu0 %v2370, 68
  %v2395 = vpop.permute.xlu0 %2394
  %2396 = vrot.lane.b32.xlu0 %v2371, 68
  %v2397 = vpop.permute.xlu0 %2396
  %2398 = vrot.lane.b32.xlu0 %v2372, 68
  %v2399 = vpop.permute.xlu0 %2398
  %2400 = vrot.lane.b32.xlu0 %v2373, 68
  %v2401 = vpop.permute.xlu0 %2400
  %2402 = vrot.lane.b32.xlu0 %v2374, 68
  %v2403 = vpop.permute.xlu0 %2402
  %2404 = vrot.lane.b32.xlu0 %v2375, 68
  %v2405 = vpop.permute.xlu0 %2404
  %2406 = vrot.lane.b32.xlu0 %v2376, 68
  %v2407 = vpop.permute.xlu0 %2406
  %2408 = vrot.lane.b32.xlu0 %v2377, 68
  %v2409 = vpop.permute.xlu0 %2408
  %2410 = vrot.lane.b32.xlu0 %v2378, 68
  %v2411 = vpop.permute.xlu0 %2410
  %2412 = vrot.lane.b32.xlu0 %v2379, 68
  %v2413 = vpop.permute.xlu0 %2412
  %2414 = vrot.lane.b32.xlu0 %v2380, 68
  %v2415 = vpop.permute.xlu0 %2414
  %2416 = vrot.lane.b32.xlu0 %v2381, 68
  %v2417 = vpop.permute.xlu0 %2416
  %v2418 = vsel %vm398, %v2395, %v2397
  %v2419 = vsel %vm398, %v2397, %v2399
  %v2420 = vsel %vm398, %v2399, %v2401
  %v2421 = vsel %vm398, %v2401, %v2403
  %v2422 = vsel %vm398, %v2403, %v2405
  %v2423 = vsel %vm398, %v2407, %v2409
  %v2424 = vsel %vm398, %v2409, %v2411
  %v2425 = vsel %vm398, %v2411, %v2413
  %v2426 = vsel %vm398, %v2413, %v2415
  %v2427 = vsel %vm398, %v2415, %v2417
  %v2438 = vmax.f32 %v2370, %v2418
  %v2439 = vmax.f32 %v2371, %v2419
  %v2440 = vmax.f32 %v2372, %v2420
  %v2441 = vmax.f32 %v2373, %v2421
  %v2442 = vmax.f32 %v2374, %v2422
  %v2443 = vmax.f32 %v2376, %v2423
  %v2444 = vmax.f32 %v2377, %v2424
  %v2445 = vmax.f32 %v2378, %v2425
  %v2446 = vmax.f32 %v2379, %v2426
  %v2447 = vmax.f32 %v2380, %v2427
  %s2448 = scalar_lea.vmem %s0, 2
  %v2449 = vld [vmem:[%s2448] ss:$8 sm:$0xf]
  %v2450 = vld [vmem:[%s2448] ss:$8 sm:$0xf0]
  %v2451 = vor.u32 %v2449, %v2450
  %v2453 = vlaneseq
  %v2454 = vshrl.u32 %v2453, 7
  %v2455 = vsub.s32 0, %v2454
  %v2456 = vrot.slane %v2451, %v2455
  %v2457 = vlaneseq
  %v2458 = vshrl.u32 %v2457, 7
  %v2459 = vsub.s32 1, %v2458
  %v2460 = vrot.slane %v2451, %v2459
  %v2461 = vlaneseq
  %v2462 = vshrl.u32 %v2461, 7
  %v2463 = vsub.s32 2, %v2462
  %v2464 = vrot.slane %v2451, %v2463
  %v2465 = vlaneseq
  %v2466 = vshrl.u32 %v2465, 7
  %v2467 = vsub.s32 3, %v2466
  %v2468 = vrot.slane %v2451, %v2467
  %v2469 = vlaneseq
  %v2470 = vshrl.u32 %v2469, 7
  %v2471 = vsub.s32 4, %v2470
  %v2472 = vrot.slane %v2451, %v2471
  %v2473 = vlaneseq
  %v2474 = vshrl.u32 %v2473, 7
  %v2475 = vsub.s32 5, %v2474
  %v2476 = vrot.slane %v2451, %v2475
  %v2477 = vlaneseq
  %v2478 = vshrl.u32 %v2477, 7
  %v2479 = vsub.s32 6, %v2478
  %v2480 = vrot.slane %v2451, %v2479
  %v2488 = vmul.f32 %v40, %v2456
  %v2489 = vmul.f32 %v40, %v2460
  %v2490 = vmul.f32 %v40, %v2464
  %v2491 = vmul.f32 %v40, %v2468
  %v2492 = vmul.f32 %v40, %v2472
  %v2493 = vmul.f32 %v40, %v2476
  %v2494 = vmul.f32 %v40, %v2480
  %v2495 = vadd.f32 %v2488, 0.0
  %v2496 = vadd.f32 %v2489, 0.0
  %v2497 = vadd.f32 %v2490, 0.0
  %v2498 = vadd.f32 %v2491, 0.0
  %v2499 = vadd.f32 %v2492, 0.0
  %v2500 = vadd.f32 %v2493, 0.0
  %v2501 = vadd.f32 %v2494, 0.0
  %v2502 = vmul.f32 %v94, %v2456
  %v2503 = vmul.f32 %v94, %v2460
  %v2504 = vmul.f32 %v94, %v2464
  %v2505 = vmul.f32 %v94, %v2468
  %v2506 = vmul.f32 %v94, %v2472
  %v2507 = vmul.f32 %v94, %v2476
  %v2508 = vmul.f32 %v94, %v2480
  %2516 = vrot.lane.b32.xlu0 %v2502, 127
  %v2517 = vpop.permute.xlu0 %2516
  %2518 = vrot.lane.b32.xlu0 %v2503, 127
  %v2519 = vpop.permute.xlu0 %2518
  %2520 = vrot.lane.b32.xlu0 %v2504, 127
  %v2521 = vpop.permute.xlu0 %2520
  %2522 = vrot.lane.b32.xlu0 %v2505, 127
  %v2523 = vpop.permute.xlu0 %2522
  %2524 = vrot.lane.b32.xlu0 %v2506, 127
  %v2525 = vpop.permute.xlu0 %2524
  %2526 = vrot.lane.b32.xlu0 %v2507, 127
  %v2527 = vpop.permute.xlu0 %2526
  %2528 = vrot.lane.b32.xlu0 %v2508, 127
  %v2529 = vpop.permute.xlu0 %2528
  %v2530 = vsel %vm124, %v2517, %v2519
  %v2531 = vsel %vm124, %v2519, %v2521
  %v2532 = vsel %vm124, %v2521, %v2523
  %v2533 = vsel %vm124, %v2523, %v2525
  %v2534 = vsel %vm124, %v2525, %v2527
  %v2535 = vsel %vm124, %v2527, %v2529
  %v2543 = vadd.f32 %v2495, %v2530
  %v2544 = vadd.f32 %v2496, %v2531
  %v2545 = vadd.f32 %v2497, %v2532
  %v2546 = vadd.f32 %v2498, %v2533
  %v2547 = vadd.f32 %v2499, %v2534
  %v2548 = vadd.f32 %v2500, %v2535
  %v2549 = vadd.f32 %v2501, %v2529
  %v2550 = vmul.f32 %v147, %v2456
  %v2551 = vmul.f32 %v147, %v2460
  %v2552 = vmul.f32 %v147, %v2464
  %v2553 = vmul.f32 %v147, %v2468
  %v2554 = vmul.f32 %v147, %v2472
  %v2555 = vmul.f32 %v147, %v2476
  %v2556 = vmul.f32 %v147, %v2480
  %2564 = vrot.lane.b32.xlu0 %v2550, 126
  %v2565 = vpop.permute.xlu0 %2564
  %2566 = vrot.lane.b32.xlu0 %v2551, 126
  %v2567 = vpop.permute.xlu0 %2566
  %2568 = vrot.lane.b32.xlu0 %v2552, 126
  %v2569 = vpop.permute.xlu0 %2568
  %2570 = vrot.lane.b32.xlu0 %v2553, 126
  %v2571 = vpop.permute.xlu0 %2570
  %2572 = vrot.lane.b32.xlu0 %v2554, 126
  %v2573 = vpop.permute.xlu0 %2572
  %2574 = vrot.lane.b32.xlu0 %v2555, 126
  %v2575 = vpop.permute.xlu0 %2574
  %2576 = vrot.lane.b32.xlu0 %v2556, 126
  %v2577 = vpop.permute.xlu0 %2576
  %v2578 = vsel %vm177, %v2565, %v2567
  %v2579 = vsel %vm177, %v2567, %v2569
  %v2580 = vsel %vm177, %v2569, %v2571
  %v2581 = vsel %vm177, %v2571, %v2573
  %v2582 = vsel %vm177, %v2573, %v2575
  %v2583 = vsel %vm177, %v2575, %v2577
  %v2591 = vadd.f32 %v2543, %v2578
  %v2592 = vadd.f32 %v2544, %v2579
  %v2593 = vadd.f32 %v2545, %v2580
  %v2594 = vadd.f32 %v2546, %v2581
  %v2595 = vadd.f32 %v2547, %v2582
  %v2596 = vadd.f32 %v2548, %v2583
  %v2597 = vadd.f32 %v2549, %v2577
  %v2598 = vmul.f32 %v200, %v2456
  %v2599 = vmul.f32 %v200, %v2460
  %v2600 = vmul.f32 %v200, %v2464
  %v2601 = vmul.f32 %v200, %v2468
  %v2602 = vmul.f32 %v200, %v2472
  %v2603 = vmul.f32 %v200, %v2476
  %v2604 = vmul.f32 %v200, %v2480
  %2612 = vrot.lane.b32.xlu0 %v2598, 98
  %v2613 = vpop.permute.xlu0 %2612
  %2614 = vrot.lane.b32.xlu0 %v2599, 98
  %v2615 = vpop.permute.xlu0 %2614
  %2616 = vrot.lane.b32.xlu0 %v2600, 98
  %v2617 = vpop.permute.xlu0 %2616
  %2618 = vrot.lane.b32.xlu0 %v2601, 98
  %v2619 = vpop.permute.xlu0 %2618
  %2620 = vrot.lane.b32.xlu0 %v2602, 98
  %v2621 = vpop.permute.xlu0 %2620
  %2622 = vrot.lane.b32.xlu0 %v2603, 98
  %v2623 = vpop.permute.xlu0 %2622
  %2624 = vrot.lane.b32.xlu0 %v2604, 98
  %v2625 = vpop.permute.xlu0 %2624
  %v2626 = vsel %vm230, %v2613, %v2615
  %v2627 = vsel %vm230, %v2615, %v2617
  %v2628 = vsel %vm230, %v2617, %v2619
  %v2629 = vsel %vm230, %v2619, %v2621
  %v2630 = vsel %vm230, %v2621, %v2623
  %v2631 = vsel %vm230, %v2623, %v2625
  %v2639 = vadd.f32 %v2591, %v2626
  %v2640 = vadd.f32 %v2592, %v2627
  %v2641 = vadd.f32 %v2593, %v2628
  %v2642 = vadd.f32 %v2594, %v2629
  %v2643 = vadd.f32 %v2595, %v2630
  %v2644 = vadd.f32 %v2596, %v2631
  %v2645 = vadd.f32 %v2597, %v2625
  %v2646 = vmul.f32 %v253, %v2456
  %v2647 = vmul.f32 %v253, %v2460
  %v2648 = vmul.f32 %v253, %v2464
  %v2649 = vmul.f32 %v253, %v2468
  %v2650 = vmul.f32 %v253, %v2472
  %v2651 = vmul.f32 %v253, %v2476
  %v2652 = vmul.f32 %v253, %v2480
  %2660 = vrot.lane.b32.xlu0 %v2646, 97
  %v2661 = vpop.permute.xlu0 %2660
  %2662 = vrot.lane.b32.xlu0 %v2647, 97
  %v2663 = vpop.permute.xlu0 %2662
  %2664 = vrot.lane.b32.xlu0 %v2648, 97
  %v2665 = vpop.permute.xlu0 %2664
  %2666 = vrot.lane.b32.xlu0 %v2649, 97
  %v2667 = vpop.permute.xlu0 %2666
  %2668 = vrot.lane.b32.xlu0 %v2650, 97
  %v2669 = vpop.permute.xlu0 %2668
  %2670 = vrot.lane.b32.xlu0 %v2651, 97
  %v2671 = vpop.permute.xlu0 %2670
  %2672 = vrot.lane.b32.xlu0 %v2652, 97
  %v2673 = vpop.permute.xlu0 %2672
  %v2674 = vsel %vm283, %v2661, %v2663
  %v2675 = vsel %vm283, %v2663, %v2665
  %v2676 = vsel %vm283, %v2665, %v2667
  %v2677 = vsel %vm283, %v2667, %v2669
  %v2678 = vsel %vm283, %v2669, %v2671
  %v2679 = vsel %vm283, %v2671, %v2673
  %v2687 = vadd.f32 %v2639, %v2674
  %v2688 = vadd.f32 %v2640, %v2675
  %v2689 = vadd.f32 %v2641, %v2676
  %v2690 = vadd.f32 %v2642, %v2677
  %v2691 = vadd.f32 %v2643, %v2678
  %v2692 = vadd.f32 %v2644, %v2679
  %v2693 = vadd.f32 %v2645, %v2673
  %v2694 = vmul.f32 %v306, %v2456
  %v2695 = vmul.f32 %v306, %v2460
  %v2696 = vmul.f32 %v306, %v2464
  %v2697 = vmul.f32 %v306, %v2468
  %v2698 = vmul.f32 %v306, %v2472
  %v2699 = vmul.f32 %v306, %v2476
  %v2700 = vmul.f32 %v306, %v2480
  %2708 = vrot.lane.b32.xlu0 %v2694, 96
  %v2709 = vpop.permute.xlu0 %2708
  %2710 = vrot.lane.b32.xlu0 %v2695, 96
  %v2711 = vpop.permute.xlu0 %2710
  %2712 = vrot.lane.b32.xlu0 %v2696, 96
  %v2713 = vpop.permute.xlu0 %2712
  %2714 = vrot.lane.b32.xlu0 %v2697, 96
  %v2715 = vpop.permute.xlu0 %2714
  %2716 = vrot.lane.b32.xlu0 %v2698, 96
  %v2717 = vpop.permute.xlu0 %2716
  %2718 = vrot.lane.b32.xlu0 %v2699, 96
  %v2719 = vpop.permute.xlu0 %2718
  %2720 = vrot.lane.b32.xlu0 %v2700, 96
  %v2721 = vpop.permute.xlu0 %2720
  %v2722 = vsel %vm336, %v2709, %v2711
  %v2723 = vsel %vm336, %v2711, %v2713
  %v2724 = vsel %vm336, %v2713, %v2715
  %v2725 = vsel %vm336, %v2715, %v2717
  %v2726 = vsel %vm336, %v2717, %v2719
  %v2727 = vsel %vm336, %v2719, %v2721
  %v2735 = vadd.f32 %v2687, %v2722
  %v2736 = vadd.f32 %v2688, %v2723
  %v2737 = vadd.f32 %v2689, %v2724
  %v2738 = vadd.f32 %v2690, %v2725
  %v2739 = vadd.f32 %v2691, %v2726
  %v2740 = vadd.f32 %v2692, %v2727
  %v2741 = vadd.f32 %v2693, %v2721
  %v2742 = vlaneseq
  %v2743 = vshrl.u32 %v2742, 7
  %v2744 = vsub.s32 7, %v2743
  %v2745 = vrot.slane %v2451, %v2744
  %v2747 = vmul.f32 %v359, %v2456
  %v2748 = vmul.f32 %v359, %v2460
  %v2749 = vmul.f32 %v359, %v2464
  %v2750 = vmul.f32 %v359, %v2468
  %v2751 = vmul.f32 %v359, %v2472
  %v2752 = vmul.f32 %v359, %v2476
  %v2753 = vmul.f32 %v359, %v2480
  %v2754 = vmul.f32 %v359, %v2745
  %2763 = vrot.lane.b32.xlu0 %v2747, 68
  %v2764 = vpop.permute.xlu0 %2763
  %2765 = vrot.lane.b32.xlu0 %v2748, 68
  %v2766 = vpop.permute.xlu0 %2765
  %2767 = vrot.lane.b32.xlu0 %v2749, 68
  %v2768 = vpop.permute.xlu0 %2767
  %2769 = vrot.lane.b32.xlu0 %v2750, 68
  %v2770 = vpop.permute.xlu0 %2769
  %2771 = vrot.lane.b32.xlu0 %v2751, 68
  %v2772 = vpop.permute.xlu0 %2771
  %2773 = vrot.lane.b32.xlu0 %v2752, 68
  %v2774 = vpop.permute.xlu0 %2773
  %2775 = vrot.lane.b32.xlu0 %v2753, 68
  %v2776 = vpop.permute.xlu0 %2775
  %2777 = vrot.lane.b32.xlu0 %v2754, 68
  %v2778 = vpop.permute.xlu0 %2777
  %v2779 = vsel %vm398, %v2764, %v2766
  %v2780 = vsel %vm398, %v2766, %v2768
  %v2781 = vsel %vm398, %v2768, %v2770
  %v2782 = vsel %vm398, %v2770, %v2772
  %v2783 = vsel %vm398, %v2772, %v2774
  %v2784 = vsel %vm398, %v2774, %v2776
  %v2785 = vsel %vm398, %v2776, %v2778
  %v2793 = vadd.f32 %v2735, %v2779
  %v2794 = vadd.f32 %v2736, %v2780
  %v2795 = vadd.f32 %v2737, %v2781
  %v2796 = vadd.f32 %v2738, %v2782
  %v2797 = vadd.f32 %v2739, %v2783
  %v2798 = vadd.f32 %v2740, %v2784
  %v2799 = vadd.f32 %v2741, %v2785
  %v2800 = vmul.f32 %v422, %v2456
  %v2801 = vmul.f32 %v422, %v2460
  %v2802 = vmul.f32 %v422, %v2464
  %v2803 = vmul.f32 %v422, %v2468
  %v2804 = vmul.f32 %v422, %v2472
  %v2805 = vmul.f32 %v422, %v2476
  %v2806 = vmul.f32 %v422, %v2480
  %v2807 = vmul.f32 %v422, %v2745
  %2816 = vrot.lane.b32.xlu0 %v2800, 67
  %v2817 = vpop.permute.xlu0 %2816
  %2818 = vrot.lane.b32.xlu0 %v2801, 67
  %v2819 = vpop.permute.xlu0 %2818
  %2820 = vrot.lane.b32.xlu0 %v2802, 67
  %v2821 = vpop.permute.xlu0 %2820
  %2822 = vrot.lane.b32.xlu0 %v2803, 67
  %v2823 = vpop.permute.xlu0 %2822
  %2824 = vrot.lane.b32.xlu0 %v2804, 67
  %v2825 = vpop.permute.xlu0 %2824
  %2826 = vrot.lane.b32.xlu0 %v2805, 67
  %v2827 = vpop.permute.xlu0 %2826
  %2828 = vrot.lane.b32.xlu0 %v2806, 67
  %v2829 = vpop.permute.xlu0 %2828
  %2830 = vrot.lane.b32.xlu0 %v2807, 67
  %v2831 = vpop.permute.xlu0 %2830
  %v2832 = vsel %vm456, %v2817, %v2819
  %v2833 = vsel %vm456, %v2819, %v2821
  %v2834 = vsel %vm456, %v2821, %v2823
  %v2835 = vsel %vm456, %v2823, %v2825
  %v2836 = vsel %vm456, %v2825, %v2827
  %v2837 = vsel %vm456, %v2827, %v2829
  %v2838 = vsel %vm456, %v2829, %v2831
  %v2846 = vadd.f32 %v2793, %v2832
  %v2847 = vadd.f32 %v2794, %v2833
  %v2848 = vadd.f32 %v2795, %v2834
  %v2849 = vadd.f32 %v2796, %v2835
  %v2850 = vadd.f32 %v2797, %v2836
  %v2851 = vadd.f32 %v2798, %v2837
  %v2852 = vadd.f32 %v2799, %v2838
  %v2853 = vmul.f32 %v480, %v2456
  %v2854 = vmul.f32 %v480, %v2460
  %v2855 = vmul.f32 %v480, %v2464
  %v2856 = vmul.f32 %v480, %v2468
  %v2857 = vmul.f32 %v480, %v2472
  %v2858 = vmul.f32 %v480, %v2476
  %v2859 = vmul.f32 %v480, %v2480
  %v2860 = vmul.f32 %v480, %v2745
  %2869 = vrot.lane.b32.xlu0 %v2853, 66
  %v2870 = vpop.permute.xlu0 %2869
  %2871 = vrot.lane.b32.xlu0 %v2854, 66
  %v2872 = vpop.permute.xlu0 %2871
  %2873 = vrot.lane.b32.xlu0 %v2855, 66
  %v2874 = vpop.permute.xlu0 %2873
  %2875 = vrot.lane.b32.xlu0 %v2856, 66
  %v2876 = vpop.permute.xlu0 %2875
  %2877 = vrot.lane.b32.xlu0 %v2857, 66
  %v2878 = vpop.permute.xlu0 %2877
  %2879 = vrot.lane.b32.xlu0 %v2858, 66
  %v2880 = vpop.permute.xlu0 %2879
  %2881 = vrot.lane.b32.xlu0 %v2859, 66
  %v2882 = vpop.permute.xlu0 %2881
  %2883 = vrot.lane.b32.xlu0 %v2860, 66
  %v2884 = vpop.permute.xlu0 %2883
  %v2885 = vsel %vm514, %v2870, %v2872
  %v2886 = vsel %vm514, %v2872, %v2874
  %v2887 = vsel %vm514, %v2874, %v2876
  %v2888 = vsel %vm514, %v2876, %v2878
  %v2889 = vsel %vm514, %v2878, %v2880
  %v2890 = vsel %vm514, %v2880, %v2882
  %v2891 = vsel %vm514, %v2882, %v2884
  %v2899 = vadd.f32 %v2846, %v2885
  %v2900 = vadd.f32 %v2847, %v2886
  %v2901 = vadd.f32 %v2848, %v2887
  %v2902 = vadd.f32 %v2849, %v2888
  %v2903 = vadd.f32 %v2850, %v2889
  %v2904 = vadd.f32 %v2851, %v2890
  %v2905 = vadd.f32 %v2852, %v2891
  %v2906 = vadd.f32 %v2899, %v539
  %v2907 = vadd.f32 %v2900, %v539
  %v2908 = vadd.f32 %v2901, %v539
  %v2909 = vadd.f32 %v2902, %v539
  %v2910 = vadd.f32 %v2903, %v539
  %v2911 = vadd.f32 %v2904, %v539
  %v2912 = vadd.f32 %v2905, %v539
  %vm2913 = vcmp.gt.f32.partialorder %v2906, 0.0
  %vm2914 = vcmp.gt.f32.partialorder %v2907, 0.0
  %vm2915 = vcmp.gt.f32.partialorder %v2908, 0.0
  %vm2916 = vcmp.gt.f32.partialorder %v2909, 0.0
  %vm2917 = vcmp.gt.f32.partialorder %v2910, 0.0
  %vm2918 = vcmp.gt.f32.partialorder %v2911, 0.0
  %vm2919 = vcmp.gt.f32.partialorder %v2912, 0.0
  %v2920 = vmul.f32 %v555, %v2906
  %v2921 = vmul.f32 %v555, %v2907
  %v2922 = vmul.f32 %v555, %v2908
  %v2923 = vmul.f32 %v555, %v2909
  %v2924 = vmul.f32 %v555, %v2910
  %v2925 = vmul.f32 %v555, %v2911
  %v2926 = vmul.f32 %v555, %v2912
  %v2927 = vsel %vm2913, %v2906, %v2920
  %v2928 = vsel %vm2914, %v2907, %v2921
  %v2929 = vsel %vm2915, %v2908, %v2922
  %v2930 = vsel %vm2916, %v2909, %v2923
  %v2931 = vsel %vm2917, %v2910, %v2924
  %v2932 = vsel %vm2918, %v2911, %v2925
  %v2933 = vsel %vm2919, %v2912, %v2926
  %2941 = vrot.lane.b32.xlu0 %v2927, 127
  %v2942 = vpop.permute.xlu0 %2941
  %2943 = vrot.lane.b32.xlu0 %v2928, 127
  %v2944 = vpop.permute.xlu0 %2943
  %2945 = vrot.lane.b32.xlu0 %v2929, 127
  %v2946 = vpop.permute.xlu0 %2945
  %2947 = vrot.lane.b32.xlu0 %v2930, 127
  %v2948 = vpop.permute.xlu0 %2947
  %2949 = vrot.lane.b32.xlu0 %v2931, 127
  %v2950 = vpop.permute.xlu0 %2949
  %2951 = vrot.lane.b32.xlu0 %v2932, 127
  %v2952 = vpop.permute.xlu0 %2951
  %2953 = vrot.lane.b32.xlu0 %v2933, 127
  %v2954 = vpop.permute.xlu0 %2953
  %v2955 = vsel %vm124, %v2942, %v2944
  %v2956 = vsel %vm124, %v2944, %v2946
  %v2957 = vsel %vm124, %v2946, %v2948
  %v2958 = vsel %vm124, %v2948, %v2950
  %v2959 = vsel %vm124, %v2950, %v2952
  %v2960 = vsel %vm124, %v2952, %v2954
  %v2968 = vmax.f32 %v2927, %v2955
  %v2969 = vmax.f32 %v2928, %v2956
  %v2970 = vmax.f32 %v2929, %v2957
  %v2971 = vmax.f32 %v2930, %v2958
  %v2972 = vmax.f32 %v2931, %v2959
  %v2973 = vmax.f32 %v2932, %v2960
  %v2974 = vmax.f32 %v2933, %v2954
  %2982 = vrot.lane.b32.xlu0 %v2968, 98
  %v2983 = vpop.permute.xlu0 %2982
  %2984 = vrot.lane.b32.xlu0 %v2969, 98
  %v2985 = vpop.permute.xlu0 %2984
  %2986 = vrot.lane.b32.xlu0 %v2970, 98
  %v2987 = vpop.permute.xlu0 %2986
  %2988 = vrot.lane.b32.xlu0 %v2971, 98
  %v2989 = vpop.permute.xlu0 %2988
  %2990 = vrot.lane.b32.xlu0 %v2972, 98
  %v2991 = vpop.permute.xlu0 %2990
  %2992 = vrot.lane.b32.xlu0 %v2973, 98
  %v2993 = vpop.permute.xlu0 %2992
  %2994 = vrot.lane.b32.xlu0 %v2974, 98
  %v2995 = vpop.permute.xlu0 %2994
  %v2996 = vsel %vm230, %v2983, %v2985
  %v2997 = vsel %vm230, %v2985, %v2987
  %v2998 = vsel %vm230, %v2987, %v2989
  %v2999 = vsel %vm230, %v2989, %v2991
  %v3000 = vsel %vm230, %v2991, %v2993
  %v3001 = vsel %vm230, %v2993, %v2995
  %v3009 = vmax.f32 %v2968, %v2996
  %v3010 = vmax.f32 %v2969, %v2997
  %v3011 = vmax.f32 %v2970, %v2998
  %v3012 = vmax.f32 %v2971, %v2999
  %v3013 = vmax.f32 %v2972, %v3000
  %v3014 = vmax.f32 %v2973, %v3001
  %v3015 = vmax.f32 %v2974, %v2995
  %3022 = vrot.lane.b32.xlu0 %v3009, 126
  %v3023 = vpop.permute.xlu0 %3022
  %3024 = vrot.lane.b32.xlu0 %v3010, 126
  %v3025 = vpop.permute.xlu0 %3024
  %3026 = vrot.lane.b32.xlu0 %v3011, 126
  %v3027 = vpop.permute.xlu0 %3026
  %3028 = vrot.lane.b32.xlu0 %v3012, 126
  %v3029 = vpop.permute.xlu0 %3028
  %3030 = vrot.lane.b32.xlu0 %v3013, 126
  %v3031 = vpop.permute.xlu0 %3030
  %3032 = vrot.lane.b32.xlu0 %v3014, 126
  %v3033 = vpop.permute.xlu0 %3032
  %v3034 = vsel %vm177, %v3023, %v3025
  %v3035 = vsel %vm177, %v3025, %v3027
  %v3036 = vsel %vm177, %v3027, %v3029
  %v3037 = vsel %vm177, %v3029, %v3031
  %v3038 = vsel %vm177, %v3031, %v3033
  %3045 = vrot.lane.b32.xlu0 %v3009, 124
  %v3046 = vpop.permute.xlu0 %3045
  %3047 = vrot.lane.b32.xlu0 %v3010, 124
  %v3048 = vpop.permute.xlu0 %3047
  %3049 = vrot.lane.b32.xlu0 %v3011, 124
  %v3050 = vpop.permute.xlu0 %3049
  %3051 = vrot.lane.b32.xlu0 %v3012, 124
  %v3052 = vpop.permute.xlu0 %3051
  %3053 = vrot.lane.b32.xlu0 %v3013, 124
  %v3054 = vpop.permute.xlu0 %3053
  %3055 = vrot.lane.b32.xlu0 %v3014, 124
  %v3056 = vpop.permute.xlu0 %3055
  %v3057 = vsel %vm693, %v3046, %v3048
  %v3058 = vsel %vm693, %v3048, %v3050
  %v3059 = vsel %vm693, %v3050, %v3052
  %v3060 = vsel %vm693, %v3052, %v3054
  %v3061 = vsel %vm693, %v3054, %v3056
  %3068 = vrot.lane.b32.xlu0 %v3009, 68
  %v3069 = vpop.permute.xlu0 %3068
  %3070 = vrot.lane.b32.xlu0 %v3010, 68
  %v3071 = vpop.permute.xlu0 %3070
  %3072 = vrot.lane.b32.xlu0 %v3011, 68
  %v3073 = vpop.permute.xlu0 %3072
  %3074 = vrot.lane.b32.xlu0 %v3012, 68
  %v3075 = vpop.permute.xlu0 %3074
  %3076 = vrot.lane.b32.xlu0 %v3013, 68
  %v3077 = vpop.permute.xlu0 %3076
  %3078 = vrot.lane.b32.xlu0 %v3014, 68
  %v3079 = vpop.permute.xlu0 %3078
  %v3080 = vsel %vm398, %v3069, %v3071
  %v3081 = vsel %vm398, %v3071, %v3073
  %v3082 = vsel %vm398, %v3073, %v3075
  %v3083 = vsel %vm398, %v3075, %v3077
  %v3084 = vsel %vm398, %v3077, %v3079
  %3091 = vrot.lane.b32.xlu0 %v3009, 66
  %v3092 = vpop.permute.xlu0 %3091
  %3093 = vrot.lane.b32.xlu0 %v3010, 66
  %v3094 = vpop.permute.xlu0 %3093
  %3095 = vrot.lane.b32.xlu0 %v3011, 66
  %v3096 = vpop.permute.xlu0 %3095
  %3097 = vrot.lane.b32.xlu0 %v3012, 66
  %v3098 = vpop.permute.xlu0 %3097
  %3099 = vrot.lane.b32.xlu0 %v3013, 66
  %v3100 = vpop.permute.xlu0 %3099
  %3101 = vrot.lane.b32.xlu0 %v3014, 66
  %v3102 = vpop.permute.xlu0 %3101
  %v3103 = vsel %vm514, %v3092, %v3094
  %v3104 = vsel %vm514, %v3094, %v3096
  %v3105 = vsel %vm514, %v3096, %v3098
  %v3106 = vsel %vm514, %v3098, %v3100
  %v3107 = vsel %vm514, %v3100, %v3102
  %3114 = vrot.lane.b32.xlu0 %v3009, 64
  %v3115 = vpop.permute.xlu0 %3114
  %3116 = vrot.lane.b32.xlu0 %v3010, 64
  %v3117 = vpop.permute.xlu0 %3116
  %3118 = vrot.lane.b32.xlu0 %v3011, 64
  %v3119 = vpop.permute.xlu0 %3118
  %3120 = vrot.lane.b32.xlu0 %v3012, 64
  %v3121 = vpop.permute.xlu0 %3120
  %3122 = vrot.lane.b32.xlu0 %v3013, 64
  %v3123 = vpop.permute.xlu0 %3122
  %3124 = vrot.lane.b32.xlu0 %v3014, 64
  %v3125 = vpop.permute.xlu0 %3124
  %v3126 = vsel %vm763, %v3115, %v3117
  %v3127 = vsel %vm763, %v3117, %v3119
  %v3128 = vsel %vm763, %v3119, %v3121
  %v3129 = vsel %vm763, %v3121, %v3123
  %v3130 = vsel %vm763, %v3123, %v3125
  %3138 = vrot.lane.b32.xlu0 %v3009, 8
  %v3139 = vpop.permute.xlu0 %3138
  %3140 = vrot.lane.b32.xlu0 %v3010, 8
  %v3141 = vpop.permute.xlu0 %3140
  %3142 = vrot.lane.b32.xlu0 %v3011, 8
  %v3143 = vpop.permute.xlu0 %3142
  %3144 = vrot.lane.b32.xlu0 %v3012, 8
  %v3145 = vpop.permute.xlu0 %3144
  %3146 = vrot.lane.b32.xlu0 %v3013, 8
  %v3147 = vpop.permute.xlu0 %3146
  %3148 = vrot.lane.b32.xlu0 %v3014, 8
  %v3149 = vpop.permute.xlu0 %3148
  %3150 = vrot.lane.b32.xlu0 %v3015, 8
  %v3151 = vpop.permute.xlu0 %3150
  %v3152 = vsel %vm790, %v3139, %v3141
  %v3153 = vsel %vm790, %v3141, %v3143
  %v3154 = vsel %vm790, %v3143, %v3145
  %v3155 = vsel %vm790, %v3145, %v3147
  %v3156 = vsel %vm790, %v3147, %v3149
  %v3157 = vsel %vm790, %v3149, %v3151
  %3164 = vrot.lane.b32.xlu0 %v3009, 6
  %v3165 = vpop.permute.xlu0 %3164
  %3166 = vrot.lane.b32.xlu0 %v3010, 6
  %v3167 = vpop.permute.xlu0 %3166
  %3168 = vrot.lane.b32.xlu0 %v3011, 6
  %v3169 = vpop.permute.xlu0 %3168
  %3170 = vrot.lane.b32.xlu0 %v3012, 6
  %v3171 = vpop.permute.xlu0 %3170
  %3172 = vrot.lane.b32.xlu0 %v3013, 6
  %v3173 = vpop.permute.xlu0 %3172
  %3174 = vrot.lane.b32.xlu0 %v3014, 6
  %v3175 = vpop.permute.xlu0 %3174
  %3176 = vrot.lane.b32.xlu0 %v3015, 6
  %v3177 = vpop.permute.xlu0 %3176
  %v3178 = vsel %vm817, %v3165, %v3167
  %v3179 = vsel %vm817, %v3167, %v3169
  %v3180 = vsel %vm817, %v3169, %v3171
  %v3181 = vsel %vm817, %v3171, %v3173
  %v3182 = vsel %vm817, %v3173, %v3175
  %v3183 = vsel %vm817, %v3175, %v3177
  %3190 = vrot.lane.b32.xlu0 %v3009, 4
  %v3191 = vpop.permute.xlu0 %3190
  %3192 = vrot.lane.b32.xlu0 %v3010, 4
  %v3193 = vpop.permute.xlu0 %3192
  %3194 = vrot.lane.b32.xlu0 %v3011, 4
  %v3195 = vpop.permute.xlu0 %3194
  %3196 = vrot.lane.b32.xlu0 %v3012, 4
  %v3197 = vpop.permute.xlu0 %3196
  %3198 = vrot.lane.b32.xlu0 %v3013, 4
  %v3199 = vpop.permute.xlu0 %3198
  %3200 = vrot.lane.b32.xlu0 %v3014, 4
  %v3201 = vpop.permute.xlu0 %3200
  %3202 = vrot.lane.b32.xlu0 %v3015, 4
  %v3203 = vpop.permute.xlu0 %3202
  %v3204 = vsel %vm844, %v3191, %v3193
  %v3205 = vsel %vm844, %v3193, %v3195
  %v3206 = vsel %vm844, %v3195, %v3197
  %v3207 = vsel %vm844, %v3197, %v3199
  %v3208 = vsel %vm844, %v3199, %v3201
  %v3209 = vsel %vm844, %v3201, %v3203
  %3216 = vmatprep.subr.mxu0 %v3010
  %3217 = vmatpush1.msra.mxu0 %v3009
  %3218 = vmatprep.subr.mxu0 %v3035
  %3219 = vmatpush1.msra.mxu0 %v3034
  %3220 = vmatprep.subr.mxu0 %v3058
  %3221 = vmatpush1.msra.mxu0 %v3057
  %3222 = vmatprep.subr.mxu0 %v3081
  %3223 = vmatpush1.msra.mxu0 %v3080
  %3224 = vmatprep.subr.mxu0 %v3104
  %3225 = vmatpush1.msra.mxu0 %v3103
  %3226 = vmatprep.subr.mxu0 %v3127
  %3227 = vmatpush1.msra.mxu0 %v3126
  %3228 = vmatprep.subr.mxu0 %v3153
  %3229 = vmatpush1.msra.mxu0 %v3152
  %3230 = vmatprep.subr.mxu0 %v3179
  %3231 = vmatpush1.msra.mxu0 %v3178
  %3232 = vmatprep.subr.mxu0 %v3205
  %3233 = vmatpush1.msra.mxu0 %v3204
  %3234 = vmatprep.subr.mxu0 0.0
  %3235 = vmatpush1.msra.mxu0 0.0
  %3236 = vmatprep.subr.mxu0 0.0
  %3237 = vmatpush1.msra.mxu0 0.0
  %3238 = vmatprep.subr.mxu0 0.0
  %3239 = vmatpush1.msra.mxu0 0.0
  %3240 = vmatprep.subr.mxu0 0.0
  %3241 = vmatpush1.msra.mxu0 0.0
  %3242 = vmatprep.subr.mxu0 0.0
  %3243 = vmatpush1.msra.mxu0 0.0
  %3244 = vmatprep.subr.mxu0 0.0
  %3245 = vmatpush1.msra.mxu0 0.0
  %3246 = vmatprep.subr.mxu0 0.0
  %3247 = vmatpush1.msra.mxu0 0.0
  %3248 = vmatprep.subr.mxu0 0.0
  %3249 = vmatpush1.msra.mxu0 0.0
  %3250 = vmatprep.subr.mxu0 0.0
  %3251 = vmatpush1.msra.mxu0 0.0
  %3252 = vmatprep.subr.mxu0 0.0
  %3253 = vmatpush1.msra.mxu0 0.0
  %3254 = vmatprep.subr.mxu0 0.0
  %3255 = vmatpush1.msra.mxu0 0.0
  %3256 = vmatprep.subr.mxu0 0.0
  %3257 = vmatpush1.msra.mxu0 0.0
  %3258 = vmatprep.subr.mxu0 0.0
  %3259 = vmatpush1.msra.mxu0 0.0
  %3260 = vmatprep.subr.mxu0 0.0
  %3261 = vmatpush1.msra.mxu0 0.0
  %3262 = vmatprep.subr.mxu0 0.0
  %3263 = vmatpush1.msra.mxu0 0.0
  %3264 = vmatprep.subr.mxu0 0.0
  %3265 = vmatpush1.msra.mxu0 0.0
  %3266 = vmatprep.subr.mxu0 0.0
  %3267 = vmatpush1.msra.mxu0 0.0
  %3268 = vmatprep.subr.mxu0 0.0
  %3269 = vmatpush1.msra.mxu0 0.0
  %3270 = vmatprep.subr.mxu0 0.0
  %3271 = vmatpush1.msra.mxu0 0.0
  %3272 = vmatprep.subr.mxu0 0.0
  %3273 = vmatpush1.msra.mxu0 0.0
  %3274 = vmatprep.subr.mxu0 0.0
  %3275 = vmatpush1.msra.mxu0 0.0
  %3276 = vmatprep.subr.mxu0 0.0
  %3277 = vmatpush1.msra.mxu0 0.0
  %3278 = vmatprep.subr.mxu0 0.0
  %3279 = vmatpush1.msra.mxu0 0.0
  %3280 = vmatprep.mubr.f32.mxu0 0.0
  %3281 = vmatmul.mubr.f32.gmra.mrb[0].mxu0 %v869
  %v3282 = vpop.f32.mrb[0].mxu0
  %v3283 = vadd.f32 %v860, %v3282
  %v3284 = vpop.f32.mrb[0].mxu0
  %v3285 = vadd.f32 %v860, %v3284
  %3286 = vmatprep.mubr.f32.mxu0 0.0
  %3287 = vmatmul.mubr.f32.gmra.mrb[0].mxu0 %v872
  %v3288 = vpop.f32.mrb[0].mxu0
  %v3289 = vadd.f32 %v865, %v3288
  %v3290 = vpop.f32.mrb[0].mxu0
  %v3291 = vadd.f32 %v865, %v3290
  %3292 = vdwg.mxu0
  %3293 = vmatprep.subr.mxu0 %v3012
  %3294 = vmatpush1.msra.mxu0 %v3011
  %3295 = vmatprep.subr.mxu0 %v3037
  %3296 = vmatpush1.msra.mxu0 %v3036
  %3297 = vmatprep.subr.mxu0 %v3060
  %3298 = vmatpush1.msra.mxu0 %v3059
  %3299 = vmatprep.subr.mxu0 %v3083
  %3300 = vmatpush1.msra.mxu0 %v3082
  %3301 = vmatprep.subr.mxu0 %v3106
  %3302 = vmatpush1.msra.mxu0 %v3105
  %3303 = vmatprep.subr.mxu0 %v3129
  %3304 = vmatpush1.msra.mxu0 %v3128
  %3305 = vmatprep.subr.mxu0 %v3155
  %3306 = vmatpush1.msra.mxu0 %v3154
  %3307 = vmatprep.subr.mxu0 %v3181
  %3308 = vmatpush1.msra.mxu0 %v3180
  %3309 = vmatprep.subr.mxu0 %v3207
  %3310 = vmatpush1.msra.mxu0 %v3206
  %3311 = vmatprep.subr.mxu0 0.0
  %3312 = vmatpush1.msra.mxu0 0.0
  %3313 = vmatprep.subr.mxu0 0.0
  %3314 = vmatpush1.msra.mxu0 0.0
  %3315 = vmatprep.subr.mxu0 0.0
  %3316 = vmatpush1.msra.mxu0 0.0
  %3317 = vmatprep.subr.mxu0 0.0
  %3318 = vmatpush1.msra.mxu0 0.0
  %3319 = vmatprep.subr.mxu0 0.0
  %3320 = vmatpush1.msra.mxu0 0.0
  %3321 = vmatprep.subr.mxu0 0.0
  %3322 = vmatpush1.msra.mxu0 0.0
  %3323 = vmatprep.subr.mxu0 0.0
  %3324 = vmatpush1.msra.mxu0 0.0
  %3325 = vmatprep.subr.mxu0 0.0
  %3326 = vmatpush1.msra.mxu0 0.0
  %3327 = vmatprep.subr.mxu0 0.0
  %3328 = vmatpush1.msra.mxu0 0.0
  %3329 = vmatprep.subr.mxu0 0.0
  %3330 = vmatpush1.msra.mxu0 0.0
  %3331 = vmatprep.subr.mxu0 0.0
  %3332 = vmatpush1.msra.mxu0 0.0
  %3333 = vmatprep.subr.mxu0 0.0
  %3334 = vmatpush1.msra.mxu0 0.0
  %3335 = vmatprep.subr.mxu0 0.0
  %3336 = vmatpush1.msra.mxu0 0.0
  %3337 = vmatprep.subr.mxu0 0.0
  %3338 = vmatpush1.msra.mxu0 0.0
  %3339 = vmatprep.subr.mxu0 0.0
  %3340 = vmatpush1.msra.mxu0 0.0
  %3341 = vmatprep.subr.mxu0 0.0
  %3342 = vmatpush1.msra.mxu0 0.0
  %3343 = vmatprep.subr.mxu0 0.0
  %3344 = vmatpush1.msra.mxu0 0.0
  %3345 = vmatprep.subr.mxu0 0.0
  %3346 = vmatpush1.msra.mxu0 0.0
  %3347 = vmatprep.subr.mxu0 0.0
  %3348 = vmatpush1.msra.mxu0 0.0
  %3349 = vmatprep.subr.mxu0 0.0
  %3350 = vmatpush1.msra.mxu0 0.0
  %3351 = vmatprep.subr.mxu0 0.0
  %3352 = vmatpush1.msra.mxu0 0.0
  %3353 = vmatprep.subr.mxu0 0.0
  %3354 = vmatpush1.msra.mxu0 0.0
  %3355 = vmatprep.subr.mxu0 0.0
  %3356 = vmatpush1.msra.mxu0 0.0
  %3357 = vmatprep.mubr.f32.mxu0 0.0
  %3358 = vmatmul.mubr.f32.gmra.mrb[0].mxu0 %v869
  %v3359 = vpop.f32.mrb[0].mxu0
  %v3360 = vadd.f32 %v860, %v3359
  %v3361 = vpop.f32.mrb[0].mxu0
  %v3362 = vadd.f32 %v860, %v3361
  %3363 = vmatprep.mubr.f32.mxu0 0.0
  %3364 = vmatmul.mubr.f32.gmra.mrb[0].mxu0 %v872
  %v3365 = vpop.f32.mrb[0].mxu0
  %v3366 = vadd.f32 %v865, %v3365
  %v3367 = vpop.f32.mrb[0].mxu0
  %v3368 = vadd.f32 %v865, %v3367
  %3369 = vdwg.mxu0
  %3370 = vmatprep.subr.mxu0 %v3014
  %3371 = vmatpush1.msra.mxu0 %v3013
  %3372 = vmatprep.subr.mxu0 %v3033
  %3373 = vmatpush1.msra.mxu0 %v3038
  %3374 = vmatprep.subr.mxu0 %v3056
  %3375 = vmatpush1.msra.mxu0 %v3061
  %3376 = vmatprep.subr.mxu0 %v3079
  %3377 = vmatpush1.msra.mxu0 %v3084
  %3378 = vmatprep.subr.mxu0 %v3102
  %3379 = vmatpush1.msra.mxu0 %v3107
  %3380 = vmatprep.subr.mxu0 %v3125
  %3381 = vmatpush1.msra.mxu0 %v3130
  %3382 = vmatprep.subr.mxu0 %v3157
  %3383 = vmatpush1.msra.mxu0 %v3156
  %3384 = vmatprep.subr.mxu0 %v3183
  %3385 = vmatpush1.msra.mxu0 %v3182
  %3386 = vmatprep.subr.mxu0 %v3209
  %3387 = vmatpush1.msra.mxu0 %v3208
  %3388 = vmatprep.subr.mxu0 0.0
  %3389 = vmatpush1.msra.mxu0 0.0
  %3390 = vmatprep.subr.mxu0 0.0
  %3391 = vmatpush1.msra.mxu0 0.0
  %3392 = vmatprep.subr.mxu0 0.0
  %3393 = vmatpush1.msra.mxu0 0.0
  %3394 = vmatprep.subr.mxu0 0.0
  %3395 = vmatpush1.msra.mxu0 0.0
  %3396 = vmatprep.subr.mxu0 0.0
  %3397 = vmatpush1.msra.mxu0 0.0
  %3398 = vmatprep.subr.mxu0 0.0
  %3399 = vmatpush1.msra.mxu0 0.0
  %3400 = vmatprep.subr.mxu0 0.0
  %3401 = vmatpush1.msra.mxu0 0.0
  %3402 = vmatprep.subr.mxu0 0.0
  %3403 = vmatpush1.msra.mxu0 0.0
  %3404 = vmatprep.subr.mxu0 0.0
  %3405 = vmatpush1.msra.mxu0 0.0
  %3406 = vmatprep.subr.mxu0 0.0
  %3407 = vmatpush1.msra.mxu0 0.0
  %3408 = vmatprep.subr.mxu0 0.0
  %3409 = vmatpush1.msra.mxu0 0.0
  %3410 = vmatprep.subr.mxu0 0.0
  %3411 = vmatpush1.msra.mxu0 0.0
  %3412 = vmatprep.subr.mxu0 0.0
  %3413 = vmatpush1.msra.mxu0 0.0
  %3414 = vmatprep.subr.mxu0 0.0
  %3415 = vmatpush1.msra.mxu0 0.0
  %3416 = vmatprep.subr.mxu0 0.0
  %3417 = vmatpush1.msra.mxu0 0.0
  %3418 = vmatprep.subr.mxu0 0.0
  %3419 = vmatpush1.msra.mxu0 0.0
  %3420 = vmatprep.subr.mxu0 0.0
  %3421 = vmatpush1.msra.mxu0 0.0
  %3422 = vmatprep.subr.mxu0 0.0
  %3423 = vmatpush1.msra.mxu0 0.0
  %3424 = vmatprep.subr.mxu0 0.0
  %3425 = vmatpush1.msra.mxu0 0.0
  %3426 = vmatprep.subr.mxu0 0.0
  %3427 = vmatpush1.msra.mxu0 0.0
  %3428 = vmatprep.subr.mxu0 0.0
  %3429 = vmatpush1.msra.mxu0 0.0
  %3430 = vmatprep.subr.mxu0 0.0
  %3431 = vmatpush1.msra.mxu0 0.0
  %3432 = vmatprep.subr.mxu0 0.0
  %3433 = vmatpush1.msra.mxu0 0.0
  %3434 = vmatprep.mubr.f32.mxu0 0.0
  %3435 = vmatmul.mubr.f32.gmra.mrb[0].mxu0 %v869
  %v3436 = vpop.f32.mrb[0].mxu0
  %v3437 = vadd.f32 %v860, %v3436
  %v3438 = vpop.f32.mrb[0].mxu0
  %v3439 = vadd.f32 %v860, %v3438
  %3440 = vmatprep.mubr.f32.mxu0 0.0
  %3441 = vmatmul.mubr.f32.gmra.mrb[0].mxu0 %v872
  %v3442 = vpop.f32.mrb[0].mxu0
  %v3443 = vadd.f32 %v865, %v3442
  %v3444 = vpop.f32.mrb[0].mxu0
  %v3445 = vadd.f32 %v865, %v3444
  %3446 = vdwg.mxu0
  %vm3447 = vcmp.gt.f32.partialorder %v3283, 0.0
  %vm3448 = vcmp.gt.f32.partialorder %v3285, 0.0
  %vm3449 = vcmp.gt.f32.partialorder %v3360, 0.0
  %vm3450 = vcmp.gt.f32.partialorder %v3362, 0.0
  %vm3451 = vcmp.gt.f32.partialorder %v3437, 0.0
  %vm3452 = vcmp.gt.f32.partialorder %v3439, 0.0
  %vm3453 = vcmp.gt.f32.partialorder %v3289, 0.0
  %vm3454 = vcmp.gt.f32.partialorder %v3291, 0.0
  %vm3455 = vcmp.gt.f32.partialorder %v3366, 0.0
  %vm3456 = vcmp.gt.f32.partialorder %v3368, 0.0
  %vm3457 = vcmp.gt.f32.partialorder %v3443, 0.0
  %vm3458 = vcmp.gt.f32.partialorder %v3445, 0.0
  %v3459 = vmul.f32 %v555, %v3283
  %v3460 = vmul.f32 %v555, %v3285
  %v3461 = vmul.f32 %v555, %v3360
  %v3462 = vmul.f32 %v555, %v3362
  %v3463 = vmul.f32 %v555, %v3437
  %v3464 = vmul.f32 %v555, %v3439
  %v3465 = vmul.f32 %v555, %v3289
  %v3466 = vmul.f32 %v555, %v3291
  %v3467 = vmul.f32 %v555, %v3366
  %v3468 = vmul.f32 %v555, %v3368
  %v3469 = vmul.f32 %v555, %v3443
  %v3470 = vmul.f32 %v555, %v3445
  %v3471 = vsel %vm3447, %v3283, %v3459
  %v3472 = vsel %vm3448, %v3285, %v3460
  %v3473 = vsel %vm3449, %v3360, %v3461
  %v3474 = vsel %vm3450, %v3362, %v3462
  %v3475 = vsel %vm3451, %v3437, %v3463
  %v3476 = vsel %vm3452, %v3439, %v3464
  %v3477 = vsel %vm3453, %v3289, %v3465
  %v3478 = vsel %vm3454, %v3291, %v3466
  %v3479 = vsel %vm3455, %v3366, %v3467
  %v3480 = vsel %vm3456, %v3368, %v3468
  %v3481 = vsel %vm3457, %v3443, %v3469
  %v3482 = vsel %vm3458, %v3445, %v3470
  %3495 = vrot.lane.b32.xlu0 %v3471, 126
  %v3496 = vpop.permute.xlu0 %3495
  %3497 = vrot.lane.b32.xlu0 %v3472, 126
  %v3498 = vpop.permute.xlu0 %3497
  %3499 = vrot.lane.b32.xlu0 %v3473, 126
  %v3500 = vpop.permute.xlu0 %3499
  %3501 = vrot.lane.b32.xlu0 %v3474, 126
  %v3502 = vpop.permute.xlu0 %3501
  %3503 = vrot.lane.b32.xlu0 %v3475, 126
  %v3504 = vpop.permute.xlu0 %3503
  %3505 = vrot.lane.b32.xlu0 %v3476, 126
  %v3506 = vpop.permute.xlu0 %3505
  %3507 = vrot.lane.b32.xlu0 %v3477, 126
  %v3508 = vpop.permute.xlu0 %3507
  %3509 = vrot.lane.b32.xlu0 %v3478, 126
  %v3510 = vpop.permute.xlu0 %3509
  %3511 = vrot.lane.b32.xlu0 %v3479, 126
  %v3512 = vpop.permute.xlu0 %3511
  %3513 = vrot.lane.b32.xlu0 %v3480, 126
  %v3514 = vpop.permute.xlu0 %3513
  %3515 = vrot.lane.b32.xlu0 %v3481, 126
  %v3516 = vpop.permute.xlu0 %3515
  %3517 = vrot.lane.b32.xlu0 %v3482, 126
  %v3518 = vpop.permute.xlu0 %3517
  %v3519 = vsel %vm177, %v3496, %v3498
  %v3520 = vsel %vm177, %v3498, %v3500
  %v3521 = vsel %vm177, %v3500, %v3502
  %v3522 = vsel %vm177, %v3502, %v3504
  %v3523 = vsel %vm177, %v3504, %v3506
  %v3524 = vsel %vm177, %v3508, %v3510
  %v3525 = vsel %vm177, %v3510, %v3512
  %v3526 = vsel %vm177, %v3512, %v3514
  %v3527 = vsel %vm177, %v3514, %v3516
  %v3528 = vsel %vm177, %v3516, %v3518
  %v3541 = vmax.f32 %v3471, %v3519
  %v3542 = vmax.f32 %v3472, %v3520
  %v3543 = vmax.f32 %v3473, %v3521
  %v3544 = vmax.f32 %v3474, %v3522
  %v3545 = vmax.f32 %v3475, %v3523
  %v3546 = vmax.f32 %v3476, %v3506
  %v3547 = vmax.f32 %v3477, %v3524
  %v3548 = vmax.f32 %v3478, %v3525
  %v3549 = vmax.f32 %v3479, %v3526
  %v3550 = vmax.f32 %v3480, %v3527
  %v3551 = vmax.f32 %v3481, %v3528
  %v3552 = vmax.f32 %v3482, %v3518
  %3565 = vrot.lane.b32.xlu0 %v3541, 68
  %v3566 = vpop.permute.xlu0 %3565
  %3567 = vrot.lane.b32.xlu0 %v3542, 68
  %v3568 = vpop.permute.xlu0 %3567
  %3569 = vrot.lane.b32.xlu0 %v3543, 68
  %v3570 = vpop.permute.xlu0 %3569
  %3571 = vrot.lane.b32.xlu0 %v3544, 68
  %v3572 = vpop.permute.xlu0 %3571
  %3573 = vrot.lane.b32.xlu0 %v3545, 68
  %v3574 = vpop.permute.xlu0 %3573
  %3575 = vrot.lane.b32.xlu0 %v3546, 68
  %v3576 = vpop.permute.xlu0 %3575
  %3577 = vrot.lane.b32.xlu0 %v3547, 68
  %v3578 = vpop.permute.xlu0 %3577
  %3579 = vrot.lane.b32.xlu0 %v3548, 68
  %v3580 = vpop.permute.xlu0 %3579
  %3581 = vrot.lane.b32.xlu0 %v3549, 68
  %v3582 = vpop.permute.xlu0 %3581
  %3583 = vrot.lane.b32.xlu0 %v3550, 68
  %v3584 = vpop.permute.xlu0 %3583
  %3585 = vrot.lane.b32.xlu0 %v3551, 68
  %v3586 = vpop.permute.xlu0 %3585
  %3587 = vrot.lane.b32.xlu0 %v3552, 68
  %v3588 = vpop.permute.xlu0 %3587
  %v3589 = vsel %vm398, %v3566, %v3568
  %v3590 = vsel %vm398, %v3568, %v3570
  %v3591 = vsel %vm398, %v3570, %v3572
  %v3592 = vsel %vm398, %v3572, %v3574
  %v3593 = vsel %vm398, %v3574, %v3576
  %v3594 = vsel %vm398, %v3578, %v3580
  %v3595 = vsel %vm398, %v3580, %v3582
  %v3596 = vsel %vm398, %v3582, %v3584
  %v3597 = vsel %vm398, %v3584, %v3586
  %v3598 = vsel %vm398, %v3586, %v3588
  %v3609 = vmax.f32 %v3541, %v3589
  %v3610 = vmax.f32 %v3542, %v3590
  %v3611 = vmax.f32 %v3543, %v3591
  %v3612 = vmax.f32 %v3544, %v3592
  %v3613 = vmax.f32 %v3545, %v3593
  %v3614 = vmax.f32 %v3547, %v3594
  %v3615 = vmax.f32 %v3548, %v3595
  %v3616 = vmax.f32 %v3549, %v3596
  %v3617 = vmax.f32 %v3550, %v3597
  %v3618 = vmax.f32 %v3551, %v3598
  %s3619 = scalar_lea.vmem %s0, 3
  %v3620 = vld [vmem:[%s3619] ss:$8 sm:$0xf]
  %v3621 = vld [vmem:[%s3619] ss:$8 sm:$0xf0]
  %v3622 = vor.u32 %v3620, %v3621
  %v3624 = vlaneseq
  %v3625 = vshrl.u32 %v3624, 7
  %v3626 = vsub.s32 0, %v3625
  %v3627 = vrot.slane %v3622, %v3626
  %v3628 = vlaneseq
  %v3629 = vshrl.u32 %v3628, 7
  %v3630 = vsub.s32 1, %v3629
  %v3631 = vrot.slane %v3622, %v3630
  %v3632 = vlaneseq
  %v3633 = vshrl.u32 %v3632, 7
  %v3634 = vsub.s32 2, %v3633
  %v3635 = vrot.slane %v3622, %v3634
  %v3636 = vlaneseq
  %v3637 = vshrl.u32 %v3636, 7
  %v3638 = vsub.s32 3, %v3637
  %v3639 = vrot.slane %v3622, %v3638
  %v3640 = vlaneseq
  %v3641 = vshrl.u32 %v3640, 7
  %v3642 = vsub.s32 4, %v3641
  %v3643 = vrot.slane %v3622, %v3642
  %v3644 = vlaneseq
  %v3645 = vshrl.u32 %v3644, 7
  %v3646 = vsub.s32 5, %v3645
  %v3647 = vrot.slane %v3622, %v3646
  %v3648 = vlaneseq
  %v3649 = vshrl.u32 %v3648, 7
  %v3650 = vsub.s32 6, %v3649
  %v3651 = vrot.slane %v3622, %v3650
  %v3659 = vmul.f32 %v40, %v3627
  %v3660 = vmul.f32 %v40, %v3631
  %v3661 = vmul.f32 %v40, %v3635
  %v3662 = vmul.f32 %v40, %v3639
  %v3663 = vmul.f32 %v40, %v3643
  %v3664 = vmul.f32 %v40, %v3647
  %v3665 = vmul.f32 %v40, %v3651
  %v3666 = vadd.f32 %v3659, 0.0
  %v3667 = vadd.f32 %v3660, 0.0
  %v3668 = vadd.f32 %v3661, 0.0
  %v3669 = vadd.f32 %v3662, 0.0
  %v3670 = vadd.f32 %v3663, 0.0
  %v3671 = vadd.f32 %v3664, 0.0
  %v3672 = vadd.f32 %v3665, 0.0
  %v3673 = vmul.f32 %v94, %v3627
  %v3674 = vmul.f32 %v94, %v3631
  %v3675 = vmul.f32 %v94, %v3635
  %v3676 = vmul.f32 %v94, %v3639
  %v3677 = vmul.f32 %v94, %v3643
  %v3678 = vmul.f32 %v94, %v3647
  %v3679 = vmul.f32 %v94, %v3651
  %3687 = vrot.lane.b32.xlu0 %v3673, 127
  %v3688 = vpop.permute.xlu0 %3687
  %3689 = vrot.lane.b32.xlu0 %v3674, 127
  %v3690 = vpop.permute.xlu0 %3689
  %3691 = vrot.lane.b32.xlu0 %v3675, 127
  %v3692 = vpop.permute.xlu0 %3691
  %3693 = vrot.lane.b32.xlu0 %v3676, 127
  %v3694 = vpop.permute.xlu0 %3693
  %3695 = vrot.lane.b32.xlu0 %v3677, 127
  %v3696 = vpop.permute.xlu0 %3695
  %3697 = vrot.lane.b32.xlu0 %v3678, 127
  %v3698 = vpop.permute.xlu0 %3697
  %3699 = vrot.lane.b32.xlu0 %v3679, 127
  %v3700 = vpop.permute.xlu0 %3699
  %v3701 = vsel %vm124, %v3688, %v3690
  %v3702 = vsel %vm124, %v3690, %v3692
  %v3703 = vsel %vm124, %v3692, %v3694
  %v3704 = vsel %vm124, %v3694, %v3696
  %v3705 = vsel %vm124, %v3696, %v3698
  %v3706 = vsel %vm124, %v3698, %v3700
  %v3714 = vadd.f32 %v3666, %v3701
  %v3715 = vadd.f32 %v3667, %v3702
  %v3716 = vadd.f32 %v3668, %v3703
  %v3717 = vadd.f32 %v3669, %v3704
  %v3718 = vadd.f32 %v3670, %v3705
  %v3719 = vadd.f32 %v3671, %v3706
  %v3720 = vadd.f32 %v3672, %v3700
  %v3721 = vmul.f32 %v147, %v3627
  %v3722 = vmul.f32 %v147, %v3631
  %v3723 = vmul.f32 %v147, %v3635
  %v3724 = vmul.f32 %v147, %v3639
  %v3725 = vmul.f32 %v147, %v3643
  %v3726 = vmul.f32 %v147, %v3647
  %v3727 = vmul.f32 %v147, %v3651
  %3735 = vrot.lane.b32.xlu0 %v3721, 126
  %v3736 = vpop.permute.xlu0 %3735
  %3737 = vrot.lane.b32.xlu0 %v3722, 126
  %v3738 = vpop.permute.xlu0 %3737
  %3739 = vrot.lane.b32.xlu0 %v3723, 126
  %v3740 = vpop.permute.xlu0 %3739
  %3741 = vrot.lane.b32.xlu0 %v3724, 126
  %v3742 = vpop.permute.xlu0 %3741
  %3743 = vrot.lane.b32.xlu0 %v3725, 126
  %v3744 = vpop.permute.xlu0 %3743
  %3745 = vrot.lane.b32.xlu0 %v3726, 126
  %v3746 = vpop.permute.xlu0 %3745
  %3747 = vrot.lane.b32.xlu0 %v3727, 126
  %v3748 = vpop.permute.xlu0 %3747
  %v3749 = vsel %vm177, %v3736, %v3738
  %v3750 = vsel %vm177, %v3738, %v3740
  %v3751 = vsel %vm177, %v3740, %v3742
  %v3752 = vsel %vm177, %v3742, %v3744
  %v3753 = vsel %vm177, %v3744, %v3746
  %v3754 = vsel %vm177, %v3746, %v3748
  %v3762 = vadd.f32 %v3714, %v3749
  %v3763 = vadd.f32 %v3715, %v3750
  %v3764 = vadd.f32 %v3716, %v3751
  %v3765 = vadd.f32 %v3717, %v3752
  %v3766 = vadd.f32 %v3718, %v3753
  %v3767 = vadd.f32 %v3719, %v3754
  %v3768 = vadd.f32 %v3720, %v3748
  %v3769 = vmul.f32 %v200, %v3627
  %v3770 = vmul.f32 %v200, %v3631
  %v3771 = vmul.f32 %v200, %v3635
  %v3772 = vmul.f32 %v200, %v3639
  %v3773 = vmul.f32 %v200, %v3643
  %v3774 = vmul.f32 %v200, %v3647
  %v3775 = vmul.f32 %v200, %v3651
  %3783 = vrot.lane.b32.xlu0 %v3769, 98
  %v3784 = vpop.permute.xlu0 %3783
  %3785 = vrot.lane.b32.xlu0 %v3770, 98
  %v3786 = vpop.permute.xlu0 %3785
  %3787 = vrot.lane.b32.xlu0 %v3771, 98
  %v3788 = vpop.permute.xlu0 %3787
  %3789 = vrot.lane.b32.xlu0 %v3772, 98
  %v3790 = vpop.permute.xlu0 %3789
  %3791 = vrot.lane.b32.xlu0 %v3773, 98
  %v3792 = vpop.permute.xlu0 %3791
  %3793 = vrot.lane.b32.xlu0 %v3774, 98
  %v3794 = vpop.permute.xlu0 %3793
  %3795 = vrot.lane.b32.xlu0 %v3775, 98
  %v3796 = vpop.permute.xlu0 %3795
  %v3797 = vsel %vm230, %v3784, %v3786
  %v3798 = vsel %vm230, %v3786, %v3788
  %v3799 = vsel %vm230, %v3788, %v3790
  %v3800 = vsel %vm230, %v3790, %v3792
  %v3801 = vsel %vm230, %v3792, %v3794
  %v3802 = vsel %vm230, %v3794, %v3796
  %v3810 = vadd.f32 %v3762, %v3797
  %v3811 = vadd.f32 %v3763, %v3798
  %v3812 = vadd.f32 %v3764, %v3799
  %v3813 = vadd.f32 %v3765, %v3800
  %v3814 = vadd.f32 %v3766, %v3801
  %v3815 = vadd.f32 %v3767, %v3802
  %v3816 = vadd.f32 %v3768, %v3796
  %v3817 = vmul.f32 %v253, %v3627
  %v3818 = vmul.f32 %v253, %v3631
  %v3819 = vmul.f32 %v253, %v3635
  %v3820 = vmul.f32 %v253, %v3639
  %v3821 = vmul.f32 %v253, %v3643
  %v3822 = vmul.f32 %v253, %v3647
  %v3823 = vmul.f32 %v253, %v3651
  %3831 = vrot.lane.b32.xlu0 %v3817, 97
  %v3832 = vpop.permute.xlu0 %3831
  %3833 = vrot.lane.b32.xlu0 %v3818, 97
  %v3834 = vpop.permute.xlu0 %3833
  %3835 = vrot.lane.b32.xlu0 %v3819, 97
  %v3836 = vpop.permute.xlu0 %3835
  %3837 = vrot.lane.b32.xlu0 %v3820, 97
  %v3838 = vpop.permute.xlu0 %3837
  %3839 = vrot.lane.b32.xlu0 %v3821, 97
  %v3840 = vpop.permute.xlu0 %3839
  %3841 = vrot.lane.b32.xlu0 %v3822, 97
  %v3842 = vpop.permute.xlu0 %3841
  %3843 = vrot.lane.b32.xlu0 %v3823, 97
  %v3844 = vpop.permute.xlu0 %3843
  %v3845 = vsel %vm283, %v3832, %v3834
  %v3846 = vsel %vm283, %v3834, %v3836
  %v3847 = vsel %vm283, %v3836, %v3838
  %v3848 = vsel %vm283, %v3838, %v3840
  %v3849 = vsel %vm283, %v3840, %v3842
  %v3850 = vsel %vm283, %v3842, %v3844
  %v3858 = vadd.f32 %v3810, %v3845
  %v3859 = vadd.f32 %v3811, %v3846
  %v3860 = vadd.f32 %v3812, %v3847
  %v3861 = vadd.f32 %v3813, %v3848
  %v3862 = vadd.f32 %v3814, %v3849
  %v3863 = vadd.f32 %v3815, %v3850
  %v3864 = vadd.f32 %v3816, %v3844
  %v3865 = vmul.f32 %v306, %v3627
  %v3866 = vmul.f32 %v306, %v3631
  %v3867 = vmul.f32 %v306, %v3635
  %v3868 = vmul.f32 %v306, %v3639
  %v3869 = vmul.f32 %v306, %v3643
  %v3870 = vmul.f32 %v306, %v3647
  %v3871 = vmul.f32 %v306, %v3651
  %3879 = vrot.lane.b32.xlu0 %v3865, 96
  %v3880 = vpop.permute.xlu0 %3879
  %3881 = vrot.lane.b32.xlu0 %v3866, 96
  %v3882 = vpop.permute.xlu0 %3881
  %3883 = vrot.lane.b32.xlu0 %v3867, 96
  %v3884 = vpop.permute.xlu0 %3883
  %3885 = vrot.lane.b32.xlu0 %v3868, 96
  %v3886 = vpop.permute.xlu0 %3885
  %3887 = vrot.lane.b32.xlu0 %v3869, 96
  %v3888 = vpop.permute.xlu0 %3887
  %3889 = vrot.lane.b32.xlu0 %v3870, 96
  %v3890 = vpop.permute.xlu0 %3889
  %3891 = vrot.lane.b32.xlu0 %v3871, 96
  %v3892 = vpop.permute.xlu0 %3891
  %v3893 = vsel %vm336, %v3880, %v3882
  %v3894 = vsel %vm336, %v3882, %v3884
  %v3895 = vsel %vm336, %v3884, %v3886
  %v3896 = vsel %vm336, %v3886, %v3888
  %v3897 = vsel %vm336, %v3888, %v3890
  %v3898 = vsel %vm336, %v3890, %v3892
  %v3906 = vadd.f32 %v3858, %v3893
  %v3907 = vadd.f32 %v3859, %v3894
  %v3908 = vadd.f32 %v3860, %v3895
  %v3909 = vadd.f32 %v3861, %v3896
  %v3910 = vadd.f32 %v3862, %v3897
  %v3911 = vadd.f32 %v3863, %v3898
  %v3912 = vadd.f32 %v3864, %v3892
  %v3913 = vlaneseq
  %v3914 = vshrl.u32 %v3913, 7
  %v3915 = vsub.s32 7, %v3914
  %v3916 = vrot.slane %v3622, %v3915
  %v3918 = vmul.f32 %v359, %v3627
  %v3919 = vmul.f32 %v359, %v3631
  %v3920 = vmul.f32 %v359, %v3635
  %v3921 = vmul.f32 %v359, %v3639
  %v3922 = vmul.f32 %v359, %v3643
  %v3923 = vmul.f32 %v359, %v3647
  %v3924 = vmul.f32 %v359, %v3651
  %v3925 = vmul.f32 %v359, %v3916
  %3934 = vrot.lane.b32.xlu0 %v3918, 68
  %v3935 = vpop.permute.xlu0 %3934
  %3936 = vrot.lane.b32.xlu0 %v3919, 68
  %v3937 = vpop.permute.xlu0 %3936
  %3938 = vrot.lane.b32.xlu0 %v3920, 68
  %v3939 = vpop.permute.xlu0 %3938
  %3940 = vrot.lane.b32.xlu0 %v3921, 68
  %v3941 = vpop.permute.xlu0 %3940
  %3942 = vrot.lane.b32.xlu0 %v3922, 68
  %v3943 = vpop.permute.xlu0 %3942
  %3944 = vrot.lane.b32.xlu0 %v3923, 68
  %v3945 = vpop.permute.xlu0 %3944
  %3946 = vrot.lane.b32.xlu0 %v3924, 68
  %v3947 = vpop.permute.xlu0 %3946
  %3948 = vrot.lane.b32.xlu0 %v3925, 68
  %v3949 = vpop.permute.xlu0 %3948
  %v3950 = vsel %vm398, %v3935, %v3937
  %v3951 = vsel %vm398, %v3937, %v3939
  %v3952 = vsel %vm398, %v3939, %v3941
  %v3953 = vsel %vm398, %v3941, %v3943
  %v3954 = vsel %vm398, %v3943, %v3945
  %v3955 = vsel %vm398, %v3945, %v3947
  %v3956 = vsel %vm398, %v3947, %v3949
  %v3964 = vadd.f32 %v3906, %v3950
  %v3965 = vadd.f32 %v3907, %v3951
  %v3966 = vadd.f32 %v3908, %v3952
  %v3967 = vadd.f32 %v3909, %v3953
  %v3968 = vadd.f32 %v3910, %v3954
  %v3969 = vadd.f32 %v3911, %v3955
  %v3970 = vadd.f32 %v3912, %v3956
  %v3971 = vmul.f32 %v422, %v3627
  %v3972 = vmul.f32 %v422, %v3631
  %v3973 = vmul.f32 %v422, %v3635
  %v3974 = vmul.f32 %v422, %v3639
  %v3975 = vmul.f32 %v422, %v3643
  %v3976 = vmul.f32 %v422, %v3647
  %v3977 = vmul.f32 %v422, %v3651
  %v3978 = vmul.f32 %v422, %v3916
  %3987 = vrot.lane.b32.xlu0 %v3971, 67
  %v3988 = vpop.permute.xlu0 %3987
  %3989 = vrot.lane.b32.xlu0 %v3972, 67
  %v3990 = vpop.permute.xlu0 %3989
  %3991 = vrot.lane.b32.xlu0 %v3973, 67
  %v3992 = vpop.permute.xlu0 %3991
  %3993 = vrot.lane.b32.xlu0 %v3974, 67
  %v3994 = vpop.permute.xlu0 %3993
  %3995 = vrot.lane.b32.xlu0 %v3975, 67
  %v3996 = vpop.permute.xlu0 %3995
  %3997 = vrot.lane.b32.xlu0 %v3976, 67
  %v3998 = vpop.permute.xlu0 %3997
  %3999 = vrot.lane.b32.xlu0 %v3977, 67
  %v4000 = vpop.permute.xlu0 %3999
  %4001 = vrot.lane.b32.xlu0 %v3978, 67
  %v4002 = vpop.permute.xlu0 %4001
  %v4003 = vsel %vm456, %v3988, %v3990
  %v4004 = vsel %vm456, %v3990, %v3992
  %v4005 = vsel %vm456, %v3992, %v3994
  %v4006 = vsel %vm456, %v3994, %v3996
  %v4007 = vsel %vm456, %v3996, %v3998
  %v4008 = vsel %vm456, %v3998, %v4000
  %v4009 = vsel %vm456, %v4000, %v4002
  %v4017 = vadd.f32 %v3964, %v4003
  %v4018 = vadd.f32 %v3965, %v4004
  %v4019 = vadd.f32 %v3966, %v4005
  %v4020 = vadd.f32 %v3967, %v4006
  %v4021 = vadd.f32 %v3968, %v4007
  %v4022 = vadd.f32 %v3969, %v4008
  %v4023 = vadd.f32 %v3970, %v4009
  %v4024 = vmul.f32 %v480, %v3627
  %v4025 = vmul.f32 %v480, %v3631
  %v4026 = vmul.f32 %v480, %v3635
  %v4027 = vmul.f32 %v480, %v3639
  %v4028 = vmul.f32 %v480, %v3643
  %v4029 = vmul.f32 %v480, %v3647
  %v4030 = vmul.f32 %v480, %v3651
  %v4031 = vmul.f32 %v480, %v3916
  %4040 = vrot.lane.b32.xlu0 %v4024, 66
  %v4041 = vpop.permute.xlu0 %4040
  %4042 = vrot.lane.b32.xlu0 %v4025, 66
  %v4043 = vpop.permute.xlu0 %4042
  %4044 = vrot.lane.b32.xlu0 %v4026, 66
  %v4045 = vpop.permute.xlu0 %4044
  %4046 = vrot.lane.b32.xlu0 %v4027, 66
  %v4047 = vpop.permute.xlu0 %4046
  %4048 = vrot.lane.b32.xlu0 %v4028, 66
  %v4049 = vpop.permute.xlu0 %4048
  %4050 = vrot.lane.b32.xlu0 %v4029, 66
  %v4051 = vpop.permute.xlu0 %4050
  %4052 = vrot.lane.b32.xlu0 %v4030, 66
  %v4053 = vpop.permute.xlu0 %4052
  %4054 = vrot.lane.b32.xlu0 %v4031, 66
  %v4055 = vpop.permute.xlu0 %4054
  %v4056 = vsel %vm514, %v4041, %v4043
  %v4057 = vsel %vm514, %v4043, %v4045
  %v4058 = vsel %vm514, %v4045, %v4047
  %v4059 = vsel %vm514, %v4047, %v4049
  %v4060 = vsel %vm514, %v4049, %v4051
  %v4061 = vsel %vm514, %v4051, %v4053
  %v4062 = vsel %vm514, %v4053, %v4055
  %v4070 = vadd.f32 %v4017, %v4056
  %v4071 = vadd.f32 %v4018, %v4057
  %v4072 = vadd.f32 %v4019, %v4058
  %v4073 = vadd.f32 %v4020, %v4059
  %v4074 = vadd.f32 %v4021, %v4060
  %v4075 = vadd.f32 %v4022, %v4061
  %v4076 = vadd.f32 %v4023, %v4062
  %v4077 = vadd.f32 %v4070, %v539
  %v4078 = vadd.f32 %v4071, %v539
  %v4079 = vadd.f32 %v4072, %v539
  %v4080 = vadd.f32 %v4073, %v539
  %v4081 = vadd.f32 %v4074, %v539
  %v4082 = vadd.f32 %v4075, %v539
  %v4083 = vadd.f32 %v4076, %v539
  %vm4084 = vcmp.gt.f32.partialorder %v4077, 0.0
  %vm4085 = vcmp.gt.f32.partialorder %v4078, 0.0
  %vm4086 = vcmp.gt.f32.partialorder %v4079, 0.0
  %vm4087 = vcmp.gt.f32.partialorder %v4080, 0.0
  %vm4088 = vcmp.gt.f32.partialorder %v4081, 0.0
  %vm4089 = vcmp.gt.f32.partialorder %v4082, 0.0
  %vm4090 = vcmp.gt.f32.partialorder %v4083, 0.0
  %v4091 = vmul.f32 %v555, %v4077
  %v4092 = vmul.f32 %v555, %v4078
  %v4093 = vmul.f32 %v555, %v4079
  %v4094 = vmul.f32 %v555, %v4080
  %v4095 = vmul.f32 %v555, %v4081
  %v4096 = vmul.f32 %v555, %v4082
  %v4097 = vmul.f32 %v555, %v4083
  %v4098 = vsel %vm4084, %v4077, %v4091
  %v4099 = vsel %vm4085, %v4078, %v4092
  %v4100 = vsel %vm4086, %v4079, %v4093
  %v4101 = vsel %vm4087, %v4080, %v4094
  %v4102 = vsel %vm4088, %v4081, %v4095
  %v4103 = vsel %vm4089, %v4082, %v4096
  %v4104 = vsel %vm4090, %v4083, %v4097
  %4112 = vrot.lane.b32.xlu0 %v4098, 127
  %v4113 = vpop.permute.xlu0 %4112
  %4114 = vrot.lane.b32.xlu0 %v4099, 127
  %v4115 = vpop.permute.xlu0 %4114
  %4116 = vrot.lane.b32.xlu0 %v4100, 127
  %v4117 = vpop.permute.xlu0 %4116
  %4118 = vrot.lane.b32.xlu0 %v4101, 127
  %v4119 = vpop.permute.xlu0 %4118
  %4120 = vrot.lane.b32.xlu0 %v4102, 127
  %v4121 = vpop.permute.xlu0 %4120
  %4122 = vrot.lane.b32.xlu0 %v4103, 127
  %v4123 = vpop.permute.xlu0 %4122
  %4124 = vrot.lane.b32.xlu0 %v4104, 127
  %v4125 = vpop.permute.xlu0 %4124
  %v4126 = vsel %vm124, %v4113, %v4115
  %v4127 = vsel %vm124, %v4115, %v4117
  %v4128 = vsel %vm124, %v4117, %v4119
  %v4129 = vsel %vm124, %v4119, %v4121
  %v4130 = vsel %vm124, %v4121, %v4123
  %v4131 = vsel %vm124, %v4123, %v4125
  %v4139 = vmax.f32 %v4098, %v4126
  %v4140 = vmax.f32 %v4099, %v4127
  %v4141 = vmax.f32 %v4100, %v4128
  %v4142 = vmax.f32 %v4101, %v4129
  %v4143 = vmax.f32 %v4102, %v4130
  %v4144 = vmax.f32 %v4103, %v4131
  %v4145 = vmax.f32 %v4104, %v4125
  %4153 = vrot.lane.b32.xlu0 %v4139, 98
  %v4154 = vpop.permute.xlu0 %4153
  %4155 = vrot.lane.b32.xlu0 %v4140, 98
  %v4156 = vpop.permute.xlu0 %4155
  %4157 = vrot.lane.b32.xlu0 %v4141, 98
  %v4158 = vpop.permute.xlu0 %4157
  %4159 = vrot.lane.b32.xlu0 %v4142, 98
  %v4160 = vpop.permute.xlu0 %4159
  %4161 = vrot.lane.b32.xlu0 %v4143, 98
  %v4162 = vpop.permute.xlu0 %4161
  %4163 = vrot.lane.b32.xlu0 %v4144, 98
  %v4164 = vpop.permute.xlu0 %4163
  %4165 = vrot.lane.b32.xlu0 %v4145, 98
  %v4166 = vpop.permute.xlu0 %4165
  %v4167 = vsel %vm230, %v4154, %v4156
  %v4168 = vsel %vm230, %v4156, %v4158
  %v4169 = vsel %vm230, %v4158, %v4160
  %v4170 = vsel %vm230, %v4160, %v4162
  %v4171 = vsel %vm230, %v4162, %v4164
  %v4172 = vsel %vm230, %v4164, %v4166
  %v4180 = vmax.f32 %v4139, %v4167
  %v4181 = vmax.f32 %v4140, %v4168
  %v4182 = vmax.f32 %v4141, %v4169
  %v4183 = vmax.f32 %v4142, %v4170
  %v4184 = vmax.f32 %v4143, %v4171
  %v4185 = vmax.f32 %v4144, %v4172
  %v4186 = vmax.f32 %v4145, %v4166
  %4193 = vrot.lane.b32.xlu0 %v4180, 126
  %v4194 = vpop.permute.xlu0 %4193
  %4195 = vrot.lane.b32.xlu0 %v4181, 126
  %v4196 = vpop.permute.xlu0 %4195
  %4197 = vrot.lane.b32.xlu0 %v4182, 126
  %v4198 = vpop.permute.xlu0 %4197
  %4199 = vrot.lane.b32.xlu0 %v4183, 126
  %v4200 = vpop.permute.xlu0 %4199
  %4201 = vrot.lane.b32.xlu0 %v4184, 126
  %v4202 = vpop.permute.xlu0 %4201
  %4203 = vrot.lane.b32.xlu0 %v4185, 126
  %v4204 = vpop.permute.xlu0 %4203
  %v4205 = vsel %vm177, %v4194, %v4196
  %v4206 = vsel %vm177, %v4196, %v4198
  %v4207 = vsel %vm177, %v4198, %v4200
  %v4208 = vsel %vm177, %v4200, %v4202
  %v4209 = vsel %vm177, %v4202, %v4204
  %4216 = vrot.lane.b32.xlu0 %v4180, 124
  %v4217 = vpop.permute.xlu0 %4216
  %4218 = vrot.lane.b32.xlu0 %v4181, 124
  %v4219 = vpop.permute.xlu0 %4218
  %4220 = vrot.lane.b32.xlu0 %v4182, 124
  %v4221 = vpop.permute.xlu0 %4220
  %4222 = vrot.lane.b32.xlu0 %v4183, 124
  %v4223 = vpop.permute.xlu0 %4222
  %4224 = vrot.lane.b32.xlu0 %v4184, 124
  %v4225 = vpop.permute.xlu0 %4224
  %4226 = vrot.lane.b32.xlu0 %v4185, 124
  %v4227 = vpop.permute.xlu0 %4226
  %v4228 = vsel %vm693, %v4217, %v4219
  %v4229 = vsel %vm693, %v4219, %v4221
  %v4230 = vsel %vm693, %v4221, %v4223
  %v4231 = vsel %vm693, %v4223, %v4225
  %v4232 = vsel %vm693, %v4225, %v4227
  %4239 = vrot.lane.b32.xlu0 %v4180, 68
  %v4240 = vpop.permute.xlu0 %4239
  %4241 = vrot.lane.b32.xlu0 %v4181, 68
  %v4242 = vpop.permute.xlu0 %4241
  %4243 = vrot.lane.b32.xlu0 %v4182, 68
  %v4244 = vpop.permute.xlu0 %4243
  %4245 = vrot.lane.b32.xlu0 %v4183, 68
  %v4246 = vpop.permute.xlu0 %4245
  %4247 = vrot.lane.b32.xlu0 %v4184, 68
  %v4248 = vpop.permute.xlu0 %4247
  %4249 = vrot.lane.b32.xlu0 %v4185, 68
  %v4250 = vpop.permute.xlu0 %4249
  %v4251 = vsel %vm398, %v4240, %v4242
  %v4252 = vsel %vm398, %v4242, %v4244
  %v4253 = vsel %vm398, %v4244, %v4246
  %v4254 = vsel %vm398, %v4246, %v4248
  %v4255 = vsel %vm398, %v4248, %v4250
  %4262 = vrot.lane.b32.xlu0 %v4180, 66
  %v4263 = vpop.permute.xlu0 %4262
  %4264 = vrot.lane.b32.xlu0 %v4181, 66
  %v4265 = vpop.permute.xlu0 %4264
  %4266 = vrot.lane.b32.xlu0 %v4182, 66
  %v4267 = vpop.permute.xlu0 %4266
  %4268 = vrot.lane.b32.xlu0 %v4183, 66
  %v4269 = vpop.permute.xlu0 %4268
  %4270 = vrot.lane.b32.xlu0 %v4184, 66
  %v4271 = vpop.permute.xlu0 %4270
  %4272 = vrot.lane.b32.xlu0 %v4185, 66
  %v4273 = vpop.permute.xlu0 %4272
  %v4274 = vsel %vm514, %v4263, %v4265
  %v4275 = vsel %vm514, %v4265, %v4267
  %v4276 = vsel %vm514, %v4267, %v4269
  %v4277 = vsel %vm514, %v4269, %v4271
  %v4278 = vsel %vm514, %v4271, %v4273
  %4285 = vrot.lane.b32.xlu0 %v4180, 64
  %v4286 = vpop.permute.xlu0 %4285
  %4287 = vrot.lane.b32.xlu0 %v4181, 64
  %v4288 = vpop.permute.xlu0 %4287
  %4289 = vrot.lane.b32.xlu0 %v4182, 64
  %v4290 = vpop.permute.xlu0 %4289
  %4291 = vrot.lane.b32.xlu0 %v4183, 64
  %v4292 = vpop.permute.xlu0 %4291
  %4293 = vrot.lane.b32.xlu0 %v4184, 64
  %v4294 = vpop.permute.xlu0 %4293
  %4295 = vrot.lane.b32.xlu0 %v4185, 64
  %v4296 = vpop.permute.xlu0 %4295
  %v4297 = vsel %vm763, %v4286, %v4288
  %v4298 = vsel %vm763, %v4288, %v4290
  %v4299 = vsel %vm763, %v4290, %v4292
  %v4300 = vsel %vm763, %v4292, %v4294
  %v4301 = vsel %vm763, %v4294, %v4296
  %4309 = vrot.lane.b32.xlu0 %v4180, 8
  %v4310 = vpop.permute.xlu0 %4309
  %4311 = vrot.lane.b32.xlu0 %v4181, 8
  %v4312 = vpop.permute.xlu0 %4311
  %4313 = vrot.lane.b32.xlu0 %v4182, 8
  %v4314 = vpop.permute.xlu0 %4313
  %4315 = vrot.lane.b32.xlu0 %v4183, 8
  %v4316 = vpop.permute.xlu0 %4315
  %4317 = vrot.lane.b32.xlu0 %v4184, 8
  %v4318 = vpop.permute.xlu0 %4317
  %4319 = vrot.lane.b32.xlu0 %v4185, 8
  %v4320 = vpop.permute.xlu0 %4319
  %4321 = vrot.lane.b32.xlu0 %v4186, 8
  %v4322 = vpop.permute.xlu0 %4321
  %v4323 = vsel %vm790, %v4310, %v4312
  %v4324 = vsel %vm790, %v4312, %v4314
  %v4325 = vsel %vm790, %v4314, %v4316
  %v4326 = vsel %vm790, %v4316, %v4318
  %v4327 = vsel %vm790, %v4318, %v4320
  %v4328 = vsel %vm790, %v4320, %v4322
  %4335 = vrot.lane.b32.xlu0 %v4180, 6
  %v4336 = vpop.permute.xlu0 %4335
  %4337 = vrot.lane.b32.xlu0 %v4181, 6
  %v4338 = vpop.permute.xlu0 %4337
  %4339 = vrot.lane.b32.xlu0 %v4182, 6
  %v4340 = vpop.permute.xlu0 %4339
  %4341 = vrot.lane.b32.xlu0 %v4183, 6
  %v4342 = vpop.permute.xlu0 %4341
  %4343 = vrot.lane.b32.xlu0 %v4184, 6
  %v4344 = vpop.permute.xlu0 %4343
  %4345 = vrot.lane.b32.xlu0 %v4185, 6
  %v4346 = vpop.permute.xlu0 %4345
  %4347 = vrot.lane.b32.xlu0 %v4186, 6
  %v4348 = vpop.permute.xlu0 %4347
  %v4349 = vsel %vm817, %v4336, %v4338
  %v4350 = vsel %vm817, %v4338, %v4340
  %v4351 = vsel %vm817, %v4340, %v4342
  %v4352 = vsel %vm817, %v4342, %v4344
  %v4353 = vsel %vm817, %v4344, %v4346
  %v4354 = vsel %vm817, %v4346, %v4348
  %4361 = vrot.lane.b32.xlu0 %v4180, 4
  %v4362 = vpop.permute.xlu0 %4361
  %4363 = vrot.lane.b32.xlu0 %v4181, 4
  %v4364 = vpop.permute.xlu0 %4363
  %4365 = vrot.lane.b32.xlu0 %v4182, 4
  %v4366 = vpop.permute.xlu0 %4365
  %4367 = vrot.lane.b32.xlu0 %v4183, 4
  %v4368 = vpop.permute.xlu0 %4367
  %4369 = vrot.lane.b32.xlu0 %v4184, 4
  %v4370 = vpop.permute.xlu0 %4369
  %4371 = vrot.lane.b32.xlu0 %v4185, 4
  %v4372 = vpop.permute.xlu0 %4371
  %4373 = vrot.lane.b32.xlu0 %v4186, 4
  %v4374 = vpop.permute.xlu0 %4373
  %v4375 = vsel %vm844, %v4362, %v4364
  %v4376 = vsel %vm844, %v4364, %v4366
  %v4377 = vsel %vm844, %v4366, %v4368
  %v4378 = vsel %vm844, %v4368, %v4370
  %v4379 = vsel %vm844, %v4370, %v4372
  %v4380 = vsel %vm844, %v4372, %v4374
  %4387 = vmatprep.subr.mxu0 %v4181
  %4388 = vmatpush1.msra.mxu0 %v4180
  %4389 = vmatprep.subr.mxu0 %v4206
  %4390 = vmatpush1.msra.mxu0 %v4205
  %4391 = vmatprep.subr.mxu0 %v4229
  %4392 = vmatpush1.msra.mxu0 %v4228
  %4393 = vmatprep.subr.mxu0 %v4252
  %4394 = vmatpush1.msra.mxu0 %v4251
  %4395 = vmatprep.subr.mxu0 %v4275
  %4396 = vmatpush1.msra.mxu0 %v4274
  %4397 = vmatprep.subr.mxu0 %v4298
  %4398 = vmatpush1.msra.mxu0 %v4297
  %4399 = vmatprep.subr.mxu0 %v4324
  %4400 = vmatpush1.msra.mxu0 %v4323
  %4401 = vmatprep.subr.mxu0 %v4350
  %4402 = vmatpush1.msra.mxu0 %v4349
  %4403 = vmatprep.subr.mxu0 %v4376
  %4404 = vmatpush1.msra.mxu0 %v4375
  %4405 = vmatprep.subr.mxu0 0.0
  %4406 = vmatpush1.msra.mxu0 0.0
  %4407 = vmatprep.subr.mxu0 0.0
  %4408 = vmatpush1.msra.mxu0 0.0
  %4409 = vmatprep.subr.mxu0 0.0
  %4410 = vmatpush1.msra.mxu0 0.0
  %4411 = vmatprep.subr.mxu0 0.0
  %4412 = vmatpush1.msra.mxu0 0.0
  %4413 = vmatprep.subr.mxu0 0.0
  %4414 = vmatpush1.msra.mxu0 0.0
  %4415 = vmatprep.subr.mxu0 0.0
  %4416 = vmatpush1.msra.mxu0 0.0
  %4417 = vmatprep.subr.mxu0 0.0
  %4418 = vmatpush1.msra.mxu0 0.0
  %4419 = vmatprep.subr.mxu0 0.0
  %4420 = vmatpush1.msra.mxu0 0.0
  %4421 = vmatprep.subr.mxu0 0.0
  %4422 = vmatpush1.msra.mxu0 0.0
  %4423 = vmatprep.subr.mxu0 0.0
  %4424 = vmatpush1.msra.mxu0 0.0
  %4425 = vmatprep.subr.mxu0 0.0
  %4426 = vmatpush1.msra.mxu0 0.0
  %4427 = vmatprep.subr.mxu0 0.0
  %4428 = vmatpush1.msra.mxu0 0.0
  %4429 = vmatprep.subr.mxu0 0.0
  %4430 = vmatpush1.msra.mxu0 0.0
  %4431 = vmatprep.subr.mxu0 0.0
  %4432 = vmatpush1.msra.mxu0 0.0
  %4433 = vmatprep.subr.mxu0 0.0
  %4434 = vmatpush1.msra.mxu0 0.0
  %4435 = vmatprep.subr.mxu0 0.0
  %4436 = vmatpush1.msra.mxu0 0.0
  %4437 = vmatprep.subr.mxu0 0.0
  %4438 = vmatpush1.msra.mxu0 0.0
  %4439 = vmatprep.subr.mxu0 0.0
  %4440 = vmatpush1.msra.mxu0 0.0
  %4441 = vmatprep.subr.mxu0 0.0
  %4442 = vmatpush1.msra.mxu0 0.0
  %4443 = vmatprep.subr.mxu0 0.0
  %4444 = vmatpush1.msra.mxu0 0.0
  %4445 = vmatprep.subr.mxu0 0.0
  %4446 = vmatpush1.msra.mxu0 0.0
  %4447 = vmatprep.subr.mxu0 0.0
  %4448 = vmatpush1.msra.mxu0 0.0
  %4449 = vmatprep.subr.mxu0 0.0
  %4450 = vmatpush1.msra.mxu0 0.0
  %4451 = vmatprep.mubr.f32.mxu0 0.0
  %4452 = vmatmul.mubr.f32.gmra.mrb[0].mxu0 %v869
  %v4453 = vpop.f32.mrb[0].mxu0
  %v4454 = vadd.f32 %v860, %v4453
  %v4455 = vpop.f32.mrb[0].mxu0
  %v4456 = vadd.f32 %v860, %v4455
  %4457 = vmatprep.mubr.f32.mxu0 0.0
  %4458 = vmatmul.mubr.f32.gmra.mrb[0].mxu0 %v872
  %v4459 = vpop.f32.mrb[0].mxu0
  %v4460 = vadd.f32 %v865, %v4459
  %v4461 = vpop.f32.mrb[0].mxu0
  %v4462 = vadd.f32 %v865, %v4461
  %4463 = vdwg.mxu0
  %4464 = vmatprep.subr.mxu0 %v4183
  %4465 = vmatpush1.msra.mxu0 %v4182
  %4466 = vmatprep.subr.mxu0 %v4208
  %4467 = vmatpush1.msra.mxu0 %v4207
  %4468 = vmatprep.subr.mxu0 %v4231
  %4469 = vmatpush1.msra.mxu0 %v4230
  %4470 = vmatprep.subr.mxu0 %v4254
  %4471 = vmatpush1.msra.mxu0 %v4253
  %4472 = vmatprep.subr.mxu0 %v4277
  %4473 = vmatpush1.msra.mxu0 %v4276
  %4474 = vmatprep.subr.mxu0 %v4300
  %4475 = vmatpush1.msra.mxu0 %v4299
  %4476 = vmatprep.subr.mxu0 %v4326
  %4477 = vmatpush1.msra.mxu0 %v4325
  %4478 = vmatprep.subr.mxu0 %v4352
  %4479 = vmatpush1.msra.mxu0 %v4351
  %4480 = vmatprep.subr.mxu0 %v4378
  %4481 = vmatpush1.msra.mxu0 %v4377
  %4482 = vmatprep.subr.mxu0 0.0
  %4483 = vmatpush1.msra.mxu0 0.0
  %4484 = vmatprep.subr.mxu0 0.0
  %4485 = vmatpush1.msra.mxu0 0.0
  %4486 = vmatprep.subr.mxu0 0.0
  %4487 = vmatpush1.msra.mxu0 0.0
  %4488 = vmatprep.subr.mxu0 0.0
  %4489 = vmatpush1.msra.mxu0 0.0
  %4490 = vmatprep.subr.mxu0 0.0
  %4491 = vmatpush1.msra.mxu0 0.0
  %4492 = vmatprep.subr.mxu0 0.0
  %4493 = vmatpush1.msra.mxu0 0.0
  %4494 = vmatprep.subr.mxu0 0.0
  %4495 = vmatpush1.msra.mxu0 0.0
  %4496 = vmatprep.subr.mxu0 0.0
  %4497 = vmatpush1.msra.mxu0 0.0
  %4498 = vmatprep.subr.mxu0 0.0
  %4499 = vmatpush1.msra.mxu0 0.0
  %4500 = vmatprep.subr.mxu0 0.0
  %4501 = vmatpush1.msra.mxu0 0.0
  %4502 = vmatprep.subr.mxu0 0.0
  %4503 = vmatpush1.msra.mxu0 0.0
  %4504 = vmatprep.subr.mxu0 0.0
  %4505 = vmatpush1.msra.mxu0 0.0
  %4506 = vmatprep.subr.mxu0 0.0
  %4507 = vmatpush1.msra.mxu0 0.0
  %4508 = vmatprep.subr.mxu0 0.0
  %4509 = vmatpush1.msra.mxu0 0.0
  %4510 = vmatprep.subr.mxu0 0.0
  %4511 = vmatpush1.msra.mxu0 0.0
  %4512 = vmatprep.subr.mxu0 0.0
  %4513 = vmatpush1.msra.mxu0 0.0
  %4514 = vmatprep.subr.mxu0 0.0
  %4515 = vmatpush1.msra.mxu0 0.0
  %4516 = vmatprep.subr.mxu0 0.0
  %4517 = vmatpush1.msra.mxu0 0.0
  %4518 = vmatprep.subr.mxu0 0.0
  %4519 = vmatpush1.msra.mxu0 0.0
  %4520 = vmatprep.subr.mxu0 0.0
  %4521 = vmatpush1.msra.mxu0 0.0
  %4522 = vmatprep.subr.mxu0 0.0
  %4523 = vmatpush1.msra.mxu0 0.0
  %4524 = vmatprep.subr.mxu0 0.0
  %4525 = vmatpush1.msra.mxu0 0.0
  %4526 = vmatprep.subr.mxu0 0.0
  %4527 = vmatpush1.msra.mxu0 0.0
  %4528 = vmatprep.mubr.f32.mxu0 0.0
  %4529 = vmatmul.mubr.f32.gmra.mrb[0].mxu0 %v869
  %v4530 = vpop.f32.mrb[0].mxu0
  %v4531 = vadd.f32 %v860, %v4530
  %v4532 = vpop.f32.mrb[0].mxu0
  %v4533 = vadd.f32 %v860, %v4532
  %4534 = vmatprep.mubr.f32.mxu0 0.0
  %4535 = vmatmul.mubr.f32.gmra.mrb[0].mxu0 %v872
  %v4536 = vpop.f32.mrb[0].mxu0
  %v4537 = vadd.f32 %v865, %v4536
  %v4538 = vpop.f32.mrb[0].mxu0
  %v4539 = vadd.f32 %v865, %v4538
  %4540 = vdwg.mxu0
  %4541 = vmatprep.subr.mxu0 %v4185
  %4542 = vmatpush1.msra.mxu0 %v4184
  %4543 = vmatprep.subr.mxu0 %v4204
  %4544 = vmatpush1.msra.mxu0 %v4209
  %4545 = vmatprep.subr.mxu0 %v4227
  %4546 = vmatpush1.msra.mxu0 %v4232
  %4547 = vmatprep.subr.mxu0 %v4250
  %4548 = vmatpush1.msra.mxu0 %v4255
  %4549 = vmatprep.subr.mxu0 %v4273
  %4550 = vmatpush1.msra.mxu0 %v4278
  %4551 = vmatprep.subr.mxu0 %v4296
  %4552 = vmatpush1.msra.mxu0 %v4301
  %4553 = vmatprep.subr.mxu0 %v4328
  %4554 = vmatpush1.msra.mxu0 %v4327
  %4555 = vmatprep.subr.mxu0 %v4354
  %4556 = vmatpush1.msra.mxu0 %v4353
  %4557 = vmatprep.subr.mxu0 %v4380
  %4558 = vmatpush1.msra.mxu0 %v4379
  %4559 = vmatprep.subr.mxu0 0.0
  %4560 = vmatpush1.msra.mxu0 0.0
  %4561 = vmatprep.subr.mxu0 0.0
  %4562 = vmatpush1.msra.mxu0 0.0
  %4563 = vmatprep.subr.mxu0 0.0
  %4564 = vmatpush1.msra.mxu0 0.0
  %4565 = vmatprep.subr.mxu0 0.0
  %4566 = vmatpush1.msra.mxu0 0.0
  %4567 = vmatprep.subr.mxu0 0.0
  %4568 = vmatpush1.msra.mxu0 0.0
  %4569 = vmatprep.subr.mxu0 0.0
  %4570 = vmatpush1.msra.mxu0 0.0
  %4571 = vmatprep.subr.mxu0 0.0
  %4572 = vmatpush1.msra.mxu0 0.0
  %4573 = vmatprep.subr.mxu0 0.0
  %4574 = vmatpush1.msra.mxu0 0.0
  %4575 = vmatprep.subr.mxu0 0.0
  %4576 = vmatpush1.msra.mxu0 0.0
  %4577 = vmatprep.subr.mxu0 0.0
  %4578 = vmatpush1.msra.mxu0 0.0
  %4579 = vmatprep.subr.mxu0 0.0
  %4580 = vmatpush1.msra.mxu0 0.0
  %4581 = vmatprep.subr.mxu0 0.0
  %4582 = vmatpush1.msra.mxu0 0.0
  %4583 = vmatprep.subr.mxu0 0.0
  %4584 = vmatpush1.msra.mxu0 0.0
  %4585 = vmatprep.subr.mxu0 0.0
  %4586 = vmatpush1.msra.mxu0 0.0
  %4587 = vmatprep.subr.mxu0 0.0
  %4588 = vmatpush1.msra.mxu0 0.0
  %4589 = vmatprep.subr.mxu0 0.0
  %4590 = vmatpush1.msra.mxu0 0.0
  %4591 = vmatprep.subr.mxu0 0.0
  %4592 = vmatpush1.msra.mxu0 0.0
  %4593 = vmatprep.subr.mxu0 0.0
  %4594 = vmatpush1.msra.mxu0 0.0
  %4595 = vmatprep.subr.mxu0 0.0
  %4596 = vmatpush1.msra.mxu0 0.0
  %4597 = vmatprep.subr.mxu0 0.0
  %4598 = vmatpush1.msra.mxu0 0.0
  %4599 = vmatprep.subr.mxu0 0.0
  %4600 = vmatpush1.msra.mxu0 0.0
  %4601 = vmatprep.subr.mxu0 0.0
  %4602 = vmatpush1.msra.mxu0 0.0
  %4603 = vmatprep.subr.mxu0 0.0
  %4604 = vmatpush1.msra.mxu0 0.0
  %4605 = vmatprep.mubr.f32.mxu0 0.0
  %4606 = vmatmul.mubr.f32.gmra.mrb[0].mxu0 %v869
  %v4607 = vpop.f32.mrb[0].mxu0
  %v4608 = vadd.f32 %v860, %v4607
  %v4609 = vpop.f32.mrb[0].mxu0
  %v4610 = vadd.f32 %v860, %v4609
  %4611 = vmatprep.mubr.f32.mxu0 0.0
  %4612 = vmatmul.mubr.f32.gmra.mrb[0].mxu0 %v872
  %v4613 = vpop.f32.mrb[0].mxu0
  %v4614 = vadd.f32 %v865, %v4613
  %v4615 = vpop.f32.mrb[0].mxu0
  %v4616 = vadd.f32 %v865, %v4615
  %4617 = vdwg.mxu0
  %vm4618 = vcmp.gt.f32.partialorder %v4454, 0.0
  %vm4619 = vcmp.gt.f32.partialorder %v4456, 0.0
  %vm4620 = vcmp.gt.f32.partialorder %v4531, 0.0
  %vm4621 = vcmp.gt.f32.partialorder %v4533, 0.0
  %vm4622 = vcmp.gt.f32.partialorder %v4608, 0.0
  %vm4623 = vcmp.gt.f32.partialorder %v4610, 0.0
  %vm4624 = vcmp.gt.f32.partialorder %v4460, 0.0
  %vm4625 = vcmp.gt.f32.partialorder %v4462, 0.0
  %vm4626 = vcmp.gt.f32.partialorder %v4537, 0.0
  %vm4627 = vcmp.gt.f32.partialorder %v4539, 0.0
  %vm4628 = vcmp.gt.f32.partialorder %v4614, 0.0
  %vm4629 = vcmp.gt.f32.partialorder %v4616, 0.0
  %v4630 = vmul.f32 %v555, %v4454
  %v4631 = vmul.f32 %v555, %v4456
  %v4632 = vmul.f32 %v555, %v4531
  %v4633 = vmul.f32 %v555, %v4533
  %v4634 = vmul.f32 %v555, %v4608
  %v4635 = vmul.f32 %v555, %v4610
  %v4636 = vmul.f32 %v555, %v4460
  %v4637 = vmul.f32 %v555, %v4462
  %v4638 = vmul.f32 %v555, %v4537
  %v4639 = vmul.f32 %v555, %v4539
  %v4640 = vmul.f32 %v555, %v4614
  %v4641 = vmul.f32 %v555, %v4616
  %v4642 = vsel %vm4618, %v4454, %v4630
  %v4643 = vsel %vm4619, %v4456, %v4631
  %v4644 = vsel %vm4620, %v4531, %v4632
  %v4645 = vsel %vm4621, %v4533, %v4633
  %v4646 = vsel %vm4622, %v4608, %v4634
  %v4647 = vsel %vm4623, %v4610, %v4635
  %v4648 = vsel %vm4624, %v4460, %v4636
  %v4649 = vsel %vm4625, %v4462, %v4637
  %v4650 = vsel %vm4626, %v4537, %v4638
  %v4651 = vsel %vm4627, %v4539, %v4639
  %v4652 = vsel %vm4628, %v4614, %v4640
  %v4653 = vsel %vm4629, %v4616, %v4641
  %4666 = vrot.lane.b32.xlu0 %v4642, 126
  %v4667 = vpop.permute.xlu0 %4666
  %4668 = vrot.lane.b32.xlu0 %v4643, 126
  %v4669 = vpop.permute.xlu0 %4668
  %4670 = vrot.lane.b32.xlu0 %v4644, 126
  %v4671 = vpop.permute.xlu0 %4670
  %4672 = vrot.lane.b32.xlu0 %v4645, 126
  %v4673 = vpop.permute.xlu0 %4672
  %4674 = vrot.lane.b32.xlu0 %v4646, 126
  %v4675 = vpop.permute.xlu0 %4674
  %4676 = vrot.lane.b32.xlu0 %v4647, 126
  %v4677 = vpop.permute.xlu0 %4676
  %4678 = vrot.lane.b32.xlu0 %v4648, 126
  %v4679 = vpop.permute.xlu0 %4678
  %4680 = vrot.lane.b32.xlu0 %v4649, 126
  %v4681 = vpop.permute.xlu0 %4680
  %4682 = vrot.lane.b32.xlu0 %v4650, 126
  %v4683 = vpop.permute.xlu0 %4682
  %4684 = vrot.lane.b32.xlu0 %v4651, 126
  %v4685 = vpop.permute.xlu0 %4684
  %4686 = vrot.lane.b32.xlu0 %v4652, 126
  %v4687 = vpop.permute.xlu0 %4686
  %4688 = vrot.lane.b32.xlu0 %v4653, 126
  %v4689 = vpop.permute.xlu0 %4688
  %v4690 = vsel %vm177, %v4667, %v4669
  %v4691 = vsel %vm177, %v4669, %v4671
  %v4692 = vsel %vm177, %v4671, %v4673
  %v4693 = vsel %vm177, %v4673, %v4675
  %v4694 = vsel %vm177, %v4675, %v4677
  %v4695 = vsel %vm177, %v4679, %v4681
  %v4696 = vsel %vm177, %v4681, %v4683
  %v4697 = vsel %vm177, %v4683, %v4685
  %v4698 = vsel %vm177, %v4685, %v4687
  %v4699 = vsel %vm177, %v4687, %v4689
  %v4712 = vmax.f32 %v4642, %v4690
  %v4713 = vmax.f32 %v4643, %v4691
  %v4714 = vmax.f32 %v4644, %v4692
  %v4715 = vmax.f32 %v4645, %v4693
  %v4716 = vmax.f32 %v4646, %v4694
  %v4717 = vmax.f32 %v4647, %v4677
  %v4718 = vmax.f32 %v4648, %v4695
  %v4719 = vmax.f32 %v4649, %v4696
  %v4720 = vmax.f32 %v4650, %v4697
  %v4721 = vmax.f32 %v4651, %v4698
  %v4722 = vmax.f32 %v4652, %v4699
  %v4723 = vmax.f32 %v4653, %v4689
  %4736 = vrot.lane.b32.xlu0 %v4712, 68
  %v4737 = vpop.permute.xlu0 %4736
  %4738 = vrot.lane.b32.xlu0 %v4713, 68
  %v4739 = vpop.permute.xlu0 %4738
  %4740 = vrot.lane.b32.xlu0 %v4714, 68
  %v4741 = vpop.permute.xlu0 %4740
  %4742 = vrot.lane.b32.xlu0 %v4715, 68
  %v4743 = vpop.permute.xlu0 %4742
  %4744 = vrot.lane.b32.xlu0 %v4716, 68
  %v4745 = vpop.permute.xlu0 %4744
  %4746 = vrot.lane.b32.xlu0 %v4717, 68
  %v4747 = vpop.permute.xlu0 %4746
  %4748 = vrot.lane.b32.xlu0 %v4718, 68
  %v4749 = vpop.permute.xlu0 %4748
  %4750 = vrot.lane.b32.xlu0 %v4719, 68
  %v4751 = vpop.permute.xlu0 %4750
  %4752 = vrot.lane.b32.xlu0 %v4720, 68
  %v4753 = vpop.permute.xlu0 %4752
  %4754 = vrot.lane.b32.xlu0 %v4721, 68
  %v4755 = vpop.permute.xlu0 %4754
  %4756 = vrot.lane.b32.xlu0 %v4722, 68
  %v4757 = vpop.permute.xlu0 %4756
  %4758 = vrot.lane.b32.xlu0 %v4723, 68
  %v4759 = vpop.permute.xlu0 %4758
  %v4760 = vsel %vm398, %v4737, %v4739
  %v4761 = vsel %vm398, %v4739, %v4741
  %v4762 = vsel %vm398, %v4741, %v4743
  %v4763 = vsel %vm398, %v4743, %v4745
  %v4764 = vsel %vm398, %v4745, %v4747
  %v4765 = vsel %vm398, %v4749, %v4751
  %v4766 = vsel %vm398, %v4751, %v4753
  %v4767 = vsel %vm398, %v4753, %v4755
  %v4768 = vsel %vm398, %v4755, %v4757
  %v4769 = vsel %vm398, %v4757, %v4759
  %v4780 = vmax.f32 %v4712, %v4760
  %v4781 = vmax.f32 %v4713, %v4761
  %v4782 = vmax.f32 %v4714, %v4762
  %v4783 = vmax.f32 %v4715, %v4763
  %v4784 = vmax.f32 %v4716, %v4764
  %v4785 = vmax.f32 %v4718, %v4765
  %v4786 = vmax.f32 %v4719, %v4766
  %v4787 = vmax.f32 %v4720, %v4767
  %v4788 = vmax.f32 %v4721, %v4768
  %v4789 = vmax.f32 %v4722, %v4769
  %s4790 = scalar_lea.vmem %s0, 4
  %v4791 = vld [vmem:[%s4790] ss:$8 sm:$0xf]
  %v4792 = vld [vmem:[%s4790] ss:$8 sm:$0xf0]
  %v4793 = vor.u32 %v4791, %v4792
  %v4795 = vlaneseq
  %v4796 = vshrl.u32 %v4795, 7
  %v4797 = vsub.s32 0, %v4796
  %v4798 = vrot.slane %v4793, %v4797
  %v4799 = vlaneseq
  %v4800 = vshrl.u32 %v4799, 7
  %v4801 = vsub.s32 1, %v4800
  %v4802 = vrot.slane %v4793, %v4801
  %v4803 = vlaneseq
  %v4804 = vshrl.u32 %v4803, 7
  %v4805 = vsub.s32 2, %v4804
  %v4806 = vrot.slane %v4793, %v4805
  %v4807 = vlaneseq
  %v4808 = vshrl.u32 %v4807, 7
  %v4809 = vsub.s32 3, %v4808
  %v4810 = vrot.slane %v4793, %v4809
  %v4811 = vlaneseq
  %v4812 = vshrl.u32 %v4811, 7
  %v4813 = vsub.s32 4, %v4812
  %v4814 = vrot.slane %v4793, %v4813
  %v4815 = vlaneseq
  %v4816 = vshrl.u32 %v4815, 7
  %v4817 = vsub.s32 5, %v4816
  %v4818 = vrot.slane %v4793, %v4817
  %v4819 = vlaneseq
  %v4820 = vshrl.u32 %v4819, 7
  %v4821 = vsub.s32 6, %v4820
  %v4822 = vrot.slane %v4793, %v4821
  %v4830 = vmul.f32 %v40, %v4798
  %v4831 = vmul.f32 %v40, %v4802
  %v4832 = vmul.f32 %v40, %v4806
  %v4833 = vmul.f32 %v40, %v4810
  %v4834 = vmul.f32 %v40, %v4814
  %v4835 = vmul.f32 %v40, %v4818
  %v4836 = vmul.f32 %v40, %v4822
  %v4837 = vadd.f32 %v4830, 0.0
  %v4838 = vadd.f32 %v4831, 0.0
  %v4839 = vadd.f32 %v4832, 0.0
  %v4840 = vadd.f32 %v4833, 0.0
  %v4841 = vadd.f32 %v4834, 0.0
  %v4842 = vadd.f32 %v4835, 0.0
  %v4843 = vadd.f32 %v4836, 0.0
  %v4844 = vmul.f32 %v94, %v4798
  %v4845 = vmul.f32 %v94, %v4802
  %v4846 = vmul.f32 %v94, %v4806
  %v4847 = vmul.f32 %v94, %v4810
  %v4848 = vmul.f32 %v94, %v4814
  %v4849 = vmul.f32 %v94, %v4818
  %v4850 = vmul.f32 %v94, %v4822
  %4858 = vrot.lane.b32.xlu0 %v4844, 127
  %v4859 = vpop.permute.xlu0 %4858
  %4860 = vrot.lane.b32.xlu0 %v4845, 127
  %v4861 = vpop.permute.xlu0 %4860
  %4862 = vrot.lane.b32.xlu0 %v4846, 127
  %v4863 = vpop.permute.xlu0 %4862
  %4864 = vrot.lane.b32.xlu0 %v4847, 127
  %v4865 = vpop.permute.xlu0 %4864
  %4866 = vrot.lane.b32.xlu0 %v4848, 127
  %v4867 = vpop.permute.xlu0 %4866
  %4868 = vrot.lane.b32.xlu0 %v4849, 127
  %v4869 = vpop.permute.xlu0 %4868
  %4870 = vrot.lane.b32.xlu0 %v4850, 127
  %v4871 = vpop.permute.xlu0 %4870
  %v4872 = vsel %vm124, %v4859, %v4861
  %v4873 = vsel %vm124, %v4861, %v4863
  %v4874 = vsel %vm124, %v4863, %v4865
  %v4875 = vsel %vm124, %v4865, %v4867
  %v4876 = vsel %vm124, %v4867, %v4869
  %v4877 = vsel %vm124, %v4869, %v4871
  %v4885 = vadd.f32 %v4837, %v4872
  %v4886 = vadd.f32 %v4838, %v4873
  %v4887 = vadd.f32 %v4839, %v4874
  %v4888 = vadd.f32 %v4840, %v4875
  %v4889 = vadd.f32 %v4841, %v4876
  %v4890 = vadd.f32 %v4842, %v4877
  %v4891 = vadd.f32 %v4843, %v4871
  %v4892 = vmul.f32 %v147, %v4798
  %v4893 = vmul.f32 %v147, %v4802
  %v4894 = vmul.f32 %v147, %v4806
  %v4895 = vmul.f32 %v147, %v4810
  %v4896 = vmul.f32 %v147, %v4814
  %v4897 = vmul.f32 %v147, %v4818
  %v4898 = vmul.f32 %v147, %v4822
  %4906 = vrot.lane.b32.xlu0 %v4892, 126
  %v4907 = vpop.permute.xlu0 %4906
  %4908 = vrot.lane.b32.xlu0 %v4893, 126
  %v4909 = vpop.permute.xlu0 %4908
  %4910 = vrot.lane.b32.xlu0 %v4894, 126
  %v4911 = vpop.permute.xlu0 %4910
  %4912 = vrot.lane.b32.xlu0 %v4895, 126
  %v4913 = vpop.permute.xlu0 %4912
  %4914 = vrot.lane.b32.xlu0 %v4896, 126
  %v4915 = vpop.permute.xlu0 %4914
  %4916 = vrot.lane.b32.xlu0 %v4897, 126
  %v4917 = vpop.permute.xlu0 %4916
  %4918 = vrot.lane.b32.xlu0 %v4898, 126
  %v4919 = vpop.permute.xlu0 %4918
  %v4920 = vsel %vm177, %v4907, %v4909
  %v4921 = vsel %vm177, %v4909, %v4911
  %v4922 = vsel %vm177, %v4911, %v4913
  %v4923 = vsel %vm177, %v4913, %v4915
  %v4924 = vsel %vm177, %v4915, %v4917
  %v4925 = vsel %vm177, %v4917, %v4919
  %v4933 = vadd.f32 %v4885, %v4920
  %v4934 = vadd.f32 %v4886, %v4921
  %v4935 = vadd.f32 %v4887, %v4922
  %v4936 = vadd.f32 %v4888, %v4923
  %v4937 = vadd.f32 %v4889, %v4924
  %v4938 = vadd.f32 %v4890, %v4925
  %v4939 = vadd.f32 %v4891, %v4919
  %v4940 = vmul.f32 %v200, %v4798
  %v4941 = vmul.f32 %v200, %v4802
  %v4942 = vmul.f32 %v200, %v4806
  %v4943 = vmul.f32 %v200, %v4810
  %v4944 = vmul.f32 %v200, %v4814
  %v4945 = vmul.f32 %v200, %v4818
  %v4946 = vmul.f32 %v200, %v4822
  %4954 = vrot.lane.b32.xlu0 %v4940, 98
  %v4955 = vpop.permute.xlu0 %4954
  %4956 = vrot.lane.b32.xlu0 %v4941, 98
  %v4957 = vpop.permute.xlu0 %4956
  %4958 = vrot.lane.b32.xlu0 %v4942, 98
  %v4959 = vpop.permute.xlu0 %4958
  %4960 = vrot.lane.b32.xlu0 %v4943, 98
  %v4961 = vpop.permute.xlu0 %4960
  %4962 = vrot.lane.b32.xlu0 %v4944, 98
  %v4963 = vpop.permute.xlu0 %4962
  %4964 = vrot.lane.b32.xlu0 %v4945, 98
  %v4965 = vpop.permute.xlu0 %4964
  %4966 = vrot.lane.b32.xlu0 %v4946, 98
  %v4967 = vpop.permute.xlu0 %4966
  %v4968 = vsel %vm230, %v4955, %v4957
  %v4969 = vsel %vm230, %v4957, %v4959
  %v4970 = vsel %vm230, %v4959, %v4961
  %v4971 = vsel %vm230, %v4961, %v4963
  %v4972 = vsel %vm230, %v4963, %v4965
  %v4973 = vsel %vm230, %v4965, %v4967
  %v4981 = vadd.f32 %v4933, %v4968
  %v4982 = vadd.f32 %v4934, %v4969
  %v4983 = vadd.f32 %v4935, %v4970
  %v4984 = vadd.f32 %v4936, %v4971
  %v4985 = vadd.f32 %v4937, %v4972
  %v4986 = vadd.f32 %v4938, %v4973
  %v4987 = vadd.f32 %v4939, %v4967
  %v4988 = vmul.f32 %v253, %v4798
  %v4989 = vmul.f32 %v253, %v4802
  %v4990 = vmul.f32 %v253, %v4806
  %v4991 = vmul.f32 %v253, %v4810
  %v4992 = vmul.f32 %v253, %v4814
  %v4993 = vmul.f32 %v253, %v4818
  %v4994 = vmul.f32 %v253, %v4822
  %5002 = vrot.lane.b32.xlu0 %v4988, 97
  %v5003 = vpop.permute.xlu0 %5002
  %5004 = vrot.lane.b32.xlu0 %v4989, 97
  %v5005 = vpop.permute.xlu0 %5004
  %5006 = vrot.lane.b32.xlu0 %v4990, 97
  %v5007 = vpop.permute.xlu0 %5006
  %5008 = vrot.lane.b32.xlu0 %v4991, 97
  %v5009 = vpop.permute.xlu0 %5008
  %5010 = vrot.lane.b32.xlu0 %v4992, 97
  %v5011 = vpop.permute.xlu0 %5010
  %5012 = vrot.lane.b32.xlu0 %v4993, 97
  %v5013 = vpop.permute.xlu0 %5012
  %5014 = vrot.lane.b32.xlu0 %v4994, 97
  %v5015 = vpop.permute.xlu0 %5014
  %v5016 = vsel %vm283, %v5003, %v5005
  %v5017 = vsel %vm283, %v5005, %v5007
  %v5018 = vsel %vm283, %v5007, %v5009
  %v5019 = vsel %vm283, %v5009, %v5011
  %v5020 = vsel %vm283, %v5011, %v5013
  %v5021 = vsel %vm283, %v5013, %v5015
  %v5029 = vadd.f32 %v4981, %v5016
  %v5030 = vadd.f32 %v4982, %v5017
  %v5031 = vadd.f32 %v4983, %v5018
  %v5032 = vadd.f32 %v4984, %v5019
  %v5033 = vadd.f32 %v4985, %v5020
  %v5034 = vadd.f32 %v4986, %v5021
  %v5035 = vadd.f32 %v4987, %v5015
  %v5036 = vmul.f32 %v306, %v4798
  %v5037 = vmul.f32 %v306, %v4802
  %v5038 = vmul.f32 %v306, %v4806
  %v5039 = vmul.f32 %v306, %v4810
  %v5040 = vmul.f32 %v306, %v4814
  %v5041 = vmul.f32 %v306, %v4818
  %v5042 = vmul.f32 %v306, %v4822
  %5050 = vrot.lane.b32.xlu0 %v5036, 96
  %v5051 = vpop.permute.xlu0 %5050
  %5052 = vrot.lane.b32.xlu0 %v5037, 96
  %v5053 = vpop.permute.xlu0 %5052
  %5054 = vrot.lane.b32.xlu0 %v5038, 96
  %v5055 = vpop.permute.xlu0 %5054
  %5056 = vrot.lane.b32.xlu0 %v5039, 96
  %v5057 = vpop.permute.xlu0 %5056
  %5058 = vrot.lane.b32.xlu0 %v5040, 96
  %v5059 = vpop.permute.xlu0 %5058
  %5060 = vrot.lane.b32.xlu0 %v5041, 96
  %v5061 = vpop.permute.xlu0 %5060
  %5062 = vrot.lane.b32.xlu0 %v5042, 96
  %v5063 = vpop.permute.xlu0 %5062
  %v5064 = vsel %vm336, %v5051, %v5053
  %v5065 = vsel %vm336, %v5053, %v5055
  %v5066 = vsel %vm336, %v5055, %v5057
  %v5067 = vsel %vm336, %v5057, %v5059
  %v5068 = vsel %vm336, %v5059, %v5061
  %v5069 = vsel %vm336, %v5061, %v5063
  %v5077 = vadd.f32 %v5029, %v5064
  %v5078 = vadd.f32 %v5030, %v5065
  %v5079 = vadd.f32 %v5031, %v5066
  %v5080 = vadd.f32 %v5032, %v5067
  %v5081 = vadd.f32 %v5033, %v5068
  %v5082 = vadd.f32 %v5034, %v5069
  %v5083 = vadd.f32 %v5035, %v5063
  %v5084 = vlaneseq
  %v5085 = vshrl.u32 %v5084, 7
  %v5086 = vsub.s32 7, %v5085
  %v5087 = vrot.slane %v4793, %v5086
  %v5089 = vmul.f32 %v359, %v4798
  %v5090 = vmul.f32 %v359, %v4802
  %v5091 = vmul.f32 %v359, %v4806
  %v5092 = vmul.f32 %v359, %v4810
  %v5093 = vmul.f32 %v359, %v4814
  %v5094 = vmul.f32 %v359, %v4818
  %v5095 = vmul.f32 %v359, %v4822
  %v5096 = vmul.f32 %v359, %v5087
  %5105 = vrot.lane.b32.xlu0 %v5089, 68
  %v5106 = vpop.permute.xlu0 %5105
  %5107 = vrot.lane.b32.xlu0 %v5090, 68
  %v5108 = vpop.permute.xlu0 %5107
  %5109 = vrot.lane.b32.xlu0 %v5091, 68
  %v5110 = vpop.permute.xlu0 %5109
  %5111 = vrot.lane.b32.xlu0 %v5092, 68
  %v5112 = vpop.permute.xlu0 %5111
  %5113 = vrot.lane.b32.xlu0 %v5093, 68
  %v5114 = vpop.permute.xlu0 %5113
  %5115 = vrot.lane.b32.xlu0 %v5094, 68
  %v5116 = vpop.permute.xlu0 %5115
  %5117 = vrot.lane.b32.xlu0 %v5095, 68
  %v5118 = vpop.permute.xlu0 %5117
  %5119 = vrot.lane.b32.xlu0 %v5096, 68
  %v5120 = vpop.permute.xlu0 %5119
  %v5121 = vsel %vm398, %v5106, %v5108
  %v5122 = vsel %vm398, %v5108, %v5110
  %v5123 = vsel %vm398, %v5110, %v5112
  %v5124 = vsel %vm398, %v5112, %v5114
  %v5125 = vsel %vm398, %v5114, %v5116
  %v5126 = vsel %vm398, %v5116, %v5118
  %v5127 = vsel %vm398, %v5118, %v5120
  %v5135 = vadd.f32 %v5077, %v5121
  %v5136 = vadd.f32 %v5078, %v5122
  %v5137 = vadd.f32 %v5079, %v5123
  %v5138 = vadd.f32 %v5080, %v5124
  %v5139 = vadd.f32 %v5081, %v5125
  %v5140 = vadd.f32 %v5082, %v5126
  %v5141 = vadd.f32 %v5083, %v5127
  %v5142 = vmul.f32 %v422, %v4798
  %v5143 = vmul.f32 %v422, %v4802
  %v5144 = vmul.f32 %v422, %v4806
  %v5145 = vmul.f32 %v422, %v4810
  %v5146 = vmul.f32 %v422, %v4814
  %v5147 = vmul.f32 %v422, %v4818
  %v5148 = vmul.f32 %v422, %v4822
  %v5149 = vmul.f32 %v422, %v5087
  %5158 = vrot.lane.b32.xlu0 %v5142, 67
  %v5159 = vpop.permute.xlu0 %5158
  %5160 = vrot.lane.b32.xlu0 %v5143, 67
  %v5161 = vpop.permute.xlu0 %5160
  %5162 = vrot.lane.b32.xlu0 %v5144, 67
  %v5163 = vpop.permute.xlu0 %5162
  %5164 = vrot.lane.b32.xlu0 %v5145, 67
  %v5165 = vpop.permute.xlu0 %5164
  %5166 = vrot.lane.b32.xlu0 %v5146, 67
  %v5167 = vpop.permute.xlu0 %5166
  %5168 = vrot.lane.b32.xlu0 %v5147, 67
  %v5169 = vpop.permute.xlu0 %5168
  %5170 = vrot.lane.b32.xlu0 %v5148, 67
  %v5171 = vpop.permute.xlu0 %5170
  %5172 = vrot.lane.b32.xlu0 %v5149, 67
  %v5173 = vpop.permute.xlu0 %5172
  %v5174 = vsel %vm456, %v5159, %v5161
  %v5175 = vsel %vm456, %v5161, %v5163
  %v5176 = vsel %vm456, %v5163, %v5165
  %v5177 = vsel %vm456, %v5165, %v5167
  %v5178 = vsel %vm456, %v5167, %v5169
  %v5179 = vsel %vm456, %v5169, %v5171
  %v5180 = vsel %vm456, %v5171, %v5173
  %v5188 = vadd.f32 %v5135, %v5174
  %v5189 = vadd.f32 %v5136, %v5175
  %v5190 = vadd.f32 %v5137, %v5176
  %v5191 = vadd.f32 %v5138, %v5177
  %v5192 = vadd.f32 %v5139, %v5178
  %v5193 = vadd.f32 %v5140, %v5179
  %v5194 = vadd.f32 %v5141, %v5180
  %v5195 = vmul.f32 %v480, %v4798
  %v5196 = vmul.f32 %v480, %v4802
  %v5197 = vmul.f32 %v480, %v4806
  %v5198 = vmul.f32 %v480, %v4810
  %v5199 = vmul.f32 %v480, %v4814
  %v5200 = vmul.f32 %v480, %v4818
  %v5201 = vmul.f32 %v480, %v4822
  %v5202 = vmul.f32 %v480, %v5087
  %5211 = vrot.lane.b32.xlu0 %v5195, 66
  %v5212 = vpop.permute.xlu0 %5211
  %5213 = vrot.lane.b32.xlu0 %v5196, 66
  %v5214 = vpop.permute.xlu0 %5213
  %5215 = vrot.lane.b32.xlu0 %v5197, 66
  %v5216 = vpop.permute.xlu0 %5215
  %5217 = vrot.lane.b32.xlu0 %v5198, 66
  %v5218 = vpop.permute.xlu0 %5217
  %5219 = vrot.lane.b32.xlu0 %v5199, 66
  %v5220 = vpop.permute.xlu0 %5219
  %5221 = vrot.lane.b32.xlu0 %v5200, 66
  %v5222 = vpop.permute.xlu0 %5221
  %5223 = vrot.lane.b32.xlu0 %v5201, 66
  %v5224 = vpop.permute.xlu0 %5223
  %5225 = vrot.lane.b32.xlu0 %v5202, 66
  %v5226 = vpop.permute.xlu0 %5225
  %v5227 = vsel %vm514, %v5212, %v5214
  %v5228 = vsel %vm514, %v5214, %v5216
  %v5229 = vsel %vm514, %v5216, %v5218
  %v5230 = vsel %vm514, %v5218, %v5220
  %v5231 = vsel %vm514, %v5220, %v5222
  %v5232 = vsel %vm514, %v5222, %v5224
  %v5233 = vsel %vm514, %v5224, %v5226
  %v5241 = vadd.f32 %v5188, %v5227
  %v5242 = vadd.f32 %v5189, %v5228
  %v5243 = vadd.f32 %v5190, %v5229
  %v5244 = vadd.f32 %v5191, %v5230
  %v5245 = vadd.f32 %v5192, %v5231
  %v5246 = vadd.f32 %v5193, %v5232
  %v5247 = vadd.f32 %v5194, %v5233
  %v5248 = vadd.f32 %v5241, %v539
  %v5249 = vadd.f32 %v5242, %v539
  %v5250 = vadd.f32 %v5243, %v539
  %v5251 = vadd.f32 %v5244, %v539
  %v5252 = vadd.f32 %v5245, %v539
  %v5253 = vadd.f32 %v5246, %v539
  %v5254 = vadd.f32 %v5247, %v539
  %vm5255 = vcmp.gt.f32.partialorder %v5248, 0.0
  %vm5256 = vcmp.gt.f32.partialorder %v5249, 0.0
  %vm5257 = vcmp.gt.f32.partialorder %v5250, 0.0
  %vm5258 = vcmp.gt.f32.partialorder %v5251, 0.0
  %vm5259 = vcmp.gt.f32.partialorder %v5252, 0.0
  %vm5260 = vcmp.gt.f32.partialorder %v5253, 0.0
  %vm5261 = vcmp.gt.f32.partialorder %v5254, 0.0
  %v5262 = vmul.f32 %v555, %v5248
  %v5263 = vmul.f32 %v555, %v5249
  %v5264 = vmul.f32 %v555, %v5250
  %v5265 = vmul.f32 %v555, %v5251
  %v5266 = vmul.f32 %v555, %v5252
  %v5267 = vmul.f32 %v555, %v5253
  %v5268 = vmul.f32 %v555, %v5254
  %v5269 = vsel %vm5255, %v5248, %v5262
  %v5270 = vsel %vm5256, %v5249, %v5263
  %v5271 = vsel %vm5257, %v5250, %v5264
  %v5272 = vsel %vm5258, %v5251, %v5265
  %v5273 = vsel %vm5259, %v5252, %v5266
  %v5274 = vsel %vm5260, %v5253, %v5267
  %v5275 = vsel %vm5261, %v5254, %v5268
  %5283 = vrot.lane.b32.xlu0 %v5269, 127
  %v5284 = vpop.permute.xlu0 %5283
  %5285 = vrot.lane.b32.xlu0 %v5270, 127
  %v5286 = vpop.permute.xlu0 %5285
  %5287 = vrot.lane.b32.xlu0 %v5271, 127
  %v5288 = vpop.permute.xlu0 %5287
  %5289 = vrot.lane.b32.xlu0 %v5272, 127
  %v5290 = vpop.permute.xlu0 %5289
  %5291 = vrot.lane.b32.xlu0 %v5273, 127
  %v5292 = vpop.permute.xlu0 %5291
  %5293 = vrot.lane.b32.xlu0 %v5274, 127
  %v5294 = vpop.permute.xlu0 %5293
  %5295 = vrot.lane.b32.xlu0 %v5275, 127
  %v5296 = vpop.permute.xlu0 %5295
  %v5297 = vsel %vm124, %v5284, %v5286
  %v5298 = vsel %vm124, %v5286, %v5288
  %v5299 = vsel %vm124, %v5288, %v5290
  %v5300 = vsel %vm124, %v5290, %v5292
  %v5301 = vsel %vm124, %v5292, %v5294
  %v5302 = vsel %vm124, %v5294, %v5296
  %v5310 = vmax.f32 %v5269, %v5297
  %v5311 = vmax.f32 %v5270, %v5298
  %v5312 = vmax.f32 %v5271, %v5299
  %v5313 = vmax.f32 %v5272, %v5300
  %v5314 = vmax.f32 %v5273, %v5301
  %v5315 = vmax.f32 %v5274, %v5302
  %v5316 = vmax.f32 %v5275, %v5296
  %5324 = vrot.lane.b32.xlu0 %v5310, 98
  %v5325 = vpop.permute.xlu0 %5324
  %5326 = vrot.lane.b32.xlu0 %v5311, 98
  %v5327 = vpop.permute.xlu0 %5326
  %5328 = vrot.lane.b32.xlu0 %v5312, 98
  %v5329 = vpop.permute.xlu0 %5328
  %5330 = vrot.lane.b32.xlu0 %v5313, 98
  %v5331 = vpop.permute.xlu0 %5330
  %5332 = vrot.lane.b32.xlu0 %v5314, 98
  %v5333 = vpop.permute.xlu0 %5332
  %5334 = vrot.lane.b32.xlu0 %v5315, 98
  %v5335 = vpop.permute.xlu0 %5334
  %5336 = vrot.lane.b32.xlu0 %v5316, 98
  %v5337 = vpop.permute.xlu0 %5336
  %v5338 = vsel %vm230, %v5325, %v5327
  %v5339 = vsel %vm230, %v5327, %v5329
  %v5340 = vsel %vm230, %v5329, %v5331
  %v5341 = vsel %vm230, %v5331, %v5333
  %v5342 = vsel %vm230, %v5333, %v5335
  %v5343 = vsel %vm230, %v5335, %v5337
  %v5351 = vmax.f32 %v5310, %v5338
  %v5352 = vmax.f32 %v5311, %v5339
  %v5353 = vmax.f32 %v5312, %v5340
  %v5354 = vmax.f32 %v5313, %v5341
  %v5355 = vmax.f32 %v5314, %v5342
  %v5356 = vmax.f32 %v5315, %v5343
  %v5357 = vmax.f32 %v5316, %v5337
  %5364 = vrot.lane.b32.xlu0 %v5351, 126
  %v5365 = vpop.permute.xlu0 %5364
  %5366 = vrot.lane.b32.xlu0 %v5352, 126
  %v5367 = vpop.permute.xlu0 %5366
  %5368 = vrot.lane.b32.xlu0 %v5353, 126
  %v5369 = vpop.permute.xlu0 %5368
  %5370 = vrot.lane.b32.xlu0 %v5354, 126
  %v5371 = vpop.permute.xlu0 %5370
  %5372 = vrot.lane.b32.xlu0 %v5355, 126
  %v5373 = vpop.permute.xlu0 %5372
  %5374 = vrot.lane.b32.xlu0 %v5356, 126
  %v5375 = vpop.permute.xlu0 %5374
  %v5376 = vsel %vm177, %v5365, %v5367
  %v5377 = vsel %vm177, %v5367, %v5369
  %v5378 = vsel %vm177, %v5369, %v5371
  %v5379 = vsel %vm177, %v5371, %v5373
  %v5380 = vsel %vm177, %v5373, %v5375
  %5387 = vrot.lane.b32.xlu0 %v5351, 124
  %v5388 = vpop.permute.xlu0 %5387
  %5389 = vrot.lane.b32.xlu0 %v5352, 124
  %v5390 = vpop.permute.xlu0 %5389
  %5391 = vrot.lane.b32.xlu0 %v5353, 124
  %v5392 = vpop.permute.xlu0 %5391
  %5393 = vrot.lane.b32.xlu0 %v5354, 124
  %v5394 = vpop.permute.xlu0 %5393
  %5395 = vrot.lane.b32.xlu0 %v5355, 124
  %v5396 = vpop.permute.xlu0 %5395
  %5397 = vrot.lane.b32.xlu0 %v5356, 124
  %v5398 = vpop.permute.xlu0 %5397
  %v5399 = vsel %vm693, %v5388, %v5390
  %v5400 = vsel %vm693, %v5390, %v5392
  %v5401 = vsel %vm693, %v5392, %v5394
  %v5402 = vsel %vm693, %v5394, %v5396
  %v5403 = vsel %vm693, %v5396, %v5398
  %5410 = vrot.lane.b32.xlu0 %v5351, 68
  %v5411 = vpop.permute.xlu0 %5410
  %5412 = vrot.lane.b32.xlu0 %v5352, 68
  %v5413 = vpop.permute.xlu0 %5412
  %5414 = vrot.lane.b32.xlu0 %v5353, 68
  %v5415 = vpop.permute.xlu0 %5414
  %5416 = vrot.lane.b32.xlu0 %v5354, 68
  %v5417 = vpop.permute.xlu0 %5416
  %5418 = vrot.lane.b32.xlu0 %v5355, 68
  %v5419 = vpop.permute.xlu0 %5418
  %5420 = vrot.lane.b32.xlu0 %v5356, 68
  %v5421 = vpop.permute.xlu0 %5420
  %v5422 = vsel %vm398, %v5411, %v5413
  %v5423 = vsel %vm398, %v5413, %v5415
  %v5424 = vsel %vm398, %v5415, %v5417
  %v5425 = vsel %vm398, %v5417, %v5419
  %v5426 = vsel %vm398, %v5419, %v5421
  %5433 = vrot.lane.b32.xlu0 %v5351, 66
  %v5434 = vpop.permute.xlu0 %5433
  %5435 = vrot.lane.b32.xlu0 %v5352, 66
  %v5436 = vpop.permute.xlu0 %5435
  %5437 = vrot.lane.b32.xlu0 %v5353, 66
  %v5438 = vpop.permute.xlu0 %5437
  %5439 = vrot.lane.b32.xlu0 %v5354, 66
  %v5440 = vpop.permute.xlu0 %5439
  %5441 = vrot.lane.b32.xlu0 %v5355, 66
  %v5442 = vpop.permute.xlu0 %5441
  %5443 = vrot.lane.b32.xlu0 %v5356, 66
  %v5444 = vpop.permute.xlu0 %5443
  %v5445 = vsel %vm514, %v5434, %v5436
  %v5446 = vsel %vm514, %v5436, %v5438
  %v5447 = vsel %vm514, %v5438, %v5440
  %v5448 = vsel %vm514, %v5440, %v5442
  %v5449 = vsel %vm514, %v5442, %v5444
  %5456 = vrot.lane.b32.xlu0 %v5351, 64
  %v5457 = vpop.permute.xlu0 %5456
  %5458 = vrot.lane.b32.xlu0 %v5352, 64
  %v5459 = vpop.permute.xlu0 %5458
  %5460 = vrot.lane.b32.xlu0 %v5353, 64
  %v5461 = vpop.permute.xlu0 %5460
  %5462 = vrot.lane.b32.xlu0 %v5354, 64
  %v5463 = vpop.permute.xlu0 %5462
  %5464 = vrot.lane.b32.xlu0 %v5355, 64
  %v5465 = vpop.permute.xlu0 %5464
  %5466 = vrot.lane.b32.xlu0 %v5356, 64
  %v5467 = vpop.permute.xlu0 %5466
  %v5468 = vsel %vm763, %v5457, %v5459
  %v5469 = vsel %vm763, %v5459, %v5461
  %v5470 = vsel %vm763, %v5461, %v5463
  %v5471 = vsel %vm763, %v5463, %v5465
  %v5472 = vsel %vm763, %v5465, %v5467
  %5480 = vrot.lane.b32.xlu0 %v5351, 8
  %v5481 = vpop.permute.xlu0 %5480
  %5482 = vrot.lane.b32.xlu0 %v5352, 8
  %v5483 = vpop.permute.xlu0 %5482
  %5484 = vrot.lane.b32.xlu0 %v5353, 8
  %v5485 = vpop.permute.xlu0 %5484
  %5486 = vrot.lane.b32.xlu0 %v5354, 8
  %v5487 = vpop.permute.xlu0 %5486
  %5488 = vrot.lane.b32.xlu0 %v5355, 8
  %v5489 = vpop.permute.xlu0 %5488
  %5490 = vrot.lane.b32.xlu0 %v5356, 8
  %v5491 = vpop.permute.xlu0 %5490
  %5492 = vrot.lane.b32.xlu0 %v5357, 8
  %v5493 = vpop.permute.xlu0 %5492
  %v5494 = vsel %vm790, %v5481, %v5483
  %v5495 = vsel %vm790, %v5483, %v5485
  %v5496 = vsel %vm790, %v5485, %v5487
  %v5497 = vsel %vm790, %v5487, %v5489
  %v5498 = vsel %vm790, %v5489, %v5491
  %v5499 = vsel %vm790, %v5491, %v5493
  %5506 = vrot.lane.b32.xlu0 %v5351, 6
  %v5507 = vpop.permute.xlu0 %5506
  %5508 = vrot.lane.b32.xlu0 %v5352, 6
  %v5509 = vpop.permute.xlu0 %5508
  %5510 = vrot.lane.b32.xlu0 %v5353, 6
  %v5511 = vpop.permute.xlu0 %5510
  %5512 = vrot.lane.b32.xlu0 %v5354, 6
  %v5513 = vpop.permute.xlu0 %5512
  %5514 = vrot.lane.b32.xlu0 %v5355, 6
  %v5515 = vpop.permute.xlu0 %5514
  %5516 = vrot.lane.b32.xlu0 %v5356, 6
  %v5517 = vpop.permute.xlu0 %5516
  %5518 = vrot.lane.b32.xlu0 %v5357, 6
  %v5519 = vpop.permute.xlu0 %5518
  %v5520 = vsel %vm817, %v5507, %v5509
  %v5521 = vsel %vm817, %v5509, %v5511
  %v5522 = vsel %vm817, %v5511, %v5513
  %v5523 = vsel %vm817, %v5513, %v5515
  %v5524 = vsel %vm817, %v5515, %v5517
  %v5525 = vsel %vm817, %v5517, %v5519
  %5532 = vrot.lane.b32.xlu0 %v5351, 4
  %v5533 = vpop.permute.xlu0 %5532
  %5534 = vrot.lane.b32.xlu0 %v5352, 4
  %v5535 = vpop.permute.xlu0 %5534
  %5536 = vrot.lane.b32.xlu0 %v5353, 4
  %v5537 = vpop.permute.xlu0 %5536
  %5538 = vrot.lane.b32.xlu0 %v5354, 4
  %v5539 = vpop.permute.xlu0 %5538
  %5540 = vrot.lane.b32.xlu0 %v5355, 4
  %v5541 = vpop.permute.xlu0 %5540
  %5542 = vrot.lane.b32.xlu0 %v5356, 4
  %v5543 = vpop.permute.xlu0 %5542
  %5544 = vrot.lane.b32.xlu0 %v5357, 4
  %v5545 = vpop.permute.xlu0 %5544
  %v5546 = vsel %vm844, %v5533, %v5535
  %v5547 = vsel %vm844, %v5535, %v5537
  %v5548 = vsel %vm844, %v5537, %v5539
  %v5549 = vsel %vm844, %v5539, %v5541
  %v5550 = vsel %vm844, %v5541, %v5543
  %v5551 = vsel %vm844, %v5543, %v5545
  %5558 = vmatprep.subr.mxu0 %v5352
  %5559 = vmatpush1.msra.mxu0 %v5351
  %5560 = vmatprep.subr.mxu0 %v5377
  %5561 = vmatpush1.msra.mxu0 %v5376
  %5562 = vmatprep.subr.mxu0 %v5400
  %5563 = vmatpush1.msra.mxu0 %v5399
  %5564 = vmatprep.subr.mxu0 %v5423
  %5565 = vmatpush1.msra.mxu0 %v5422
  %5566 = vmatprep.subr.mxu0 %v5446
  %5567 = vmatpush1.msra.mxu0 %v5445
  %5568 = vmatprep.subr.mxu0 %v5469
  %5569 = vmatpush1.msra.mxu0 %v5468
  %5570 = vmatprep.subr.mxu0 %v5495
  %5571 = vmatpush1.msra.mxu0 %v5494
  %5572 = vmatprep.subr.mxu0 %v5521
  %5573 = vmatpush1.msra.mxu0 %v5520
  %5574 = vmatprep.subr.mxu0 %v5547
  %5575 = vmatpush1.msra.mxu0 %v5546
  %5576 = vmatprep.subr.mxu0 0.0
  %5577 = vmatpush1.msra.mxu0 0.0
  %5578 = vmatprep.subr.mxu0 0.0
  %5579 = vmatpush1.msra.mxu0 0.0
  %5580 = vmatprep.subr.mxu0 0.0
  %5581 = vmatpush1.msra.mxu0 0.0
  %5582 = vmatprep.subr.mxu0 0.0
  %5583 = vmatpush1.msra.mxu0 0.0
  %5584 = vmatprep.subr.mxu0 0.0
  %5585 = vmatpush1.msra.mxu0 0.0
  %5586 = vmatprep.subr.mxu0 0.0
  %5587 = vmatpush1.msra.mxu0 0.0
  %5588 = vmatprep.subr.mxu0 0.0
  %5589 = vmatpush1.msra.mxu0 0.0
  %5590 = vmatprep.subr.mxu0 0.0
  %5591 = vmatpush1.msra.mxu0 0.0
  %5592 = vmatprep.subr.mxu0 0.0
  %5593 = vmatpush1.msra.mxu0 0.0
  %5594 = vmatprep.subr.mxu0 0.0
  %5595 = vmatpush1.msra.mxu0 0.0
  %5596 = vmatprep.subr.mxu0 0.0
  %5597 = vmatpush1.msra.mxu0 0.0
  %5598 = vmatprep.subr.mxu0 0.0
  %5599 = vmatpush1.msra.mxu0 0.0
  %5600 = vmatprep.subr.mxu0 0.0
  %5601 = vmatpush1.msra.mxu0 0.0
  %5602 = vmatprep.subr.mxu0 0.0
  %5603 = vmatpush1.msra.mxu0 0.0
  %5604 = vmatprep.subr.mxu0 0.0
  %5605 = vmatpush1.msra.mxu0 0.0
  %5606 = vmatprep.subr.mxu0 0.0
  %5607 = vmatpush1.msra.mxu0 0.0
  %5608 = vmatprep.subr.mxu0 0.0
  %5609 = vmatpush1.msra.mxu0 0.0
  %5610 = vmatprep.subr.mxu0 0.0
  %5611 = vmatpush1.msra.mxu0 0.0
  %5612 = vmatprep.subr.mxu0 0.0
  %5613 = vmatpush1.msra.mxu0 0.0
  %5614 = vmatprep.subr.mxu0 0.0
  %5615 = vmatpush1.msra.mxu0 0.0
  %5616 = vmatprep.subr.mxu0 0.0
  %5617 = vmatpush1.msra.mxu0 0.0
  %5618 = vmatprep.subr.mxu0 0.0
  %5619 = vmatpush1.msra.mxu0 0.0
  %5620 = vmatprep.subr.mxu0 0.0
  %5621 = vmatpush1.msra.mxu0 0.0
  %5622 = vmatprep.mubr.f32.mxu0 0.0
  %5623 = vmatmul.mubr.f32.gmra.mrb[0].mxu0 %v869
  %v5624 = vpop.f32.mrb[0].mxu0
  %v5625 = vadd.f32 %v860, %v5624
  %v5626 = vpop.f32.mrb[0].mxu0
  %v5627 = vadd.f32 %v860, %v5626
  %5628 = vmatprep.mubr.f32.mxu0 0.0
  %5629 = vmatmul.mubr.f32.gmra.mrb[0].mxu0 %v872
  %v5630 = vpop.f32.mrb[0].mxu0
  %v5631 = vadd.f32 %v865, %v5630
  %v5632 = vpop.f32.mrb[0].mxu0
  %v5633 = vadd.f32 %v865, %v5632
  %5634 = vdwg.mxu0
  %5635 = vmatprep.subr.mxu0 %v5354
  %5636 = vmatpush1.msra.mxu0 %v5353
  %5637 = vmatprep.subr.mxu0 %v5379
  %5638 = vmatpush1.msra.mxu0 %v5378
  %5639 = vmatprep.subr.mxu0 %v5402
  %5640 = vmatpush1.msra.mxu0 %v5401
  %5641 = vmatprep.subr.mxu0 %v5425
  %5642 = vmatpush1.msra.mxu0 %v5424
  %5643 = vmatprep.subr.mxu0 %v5448
  %5644 = vmatpush1.msra.mxu0 %v5447
  %5645 = vmatprep.subr.mxu0 %v5471
  %5646 = vmatpush1.msra.mxu0 %v5470
  %5647 = vmatprep.subr.mxu0 %v5497
  %5648 = vmatpush1.msra.mxu0 %v5496
  %5649 = vmatprep.subr.mxu0 %v5523
  %5650 = vmatpush1.msra.mxu0 %v5522
  %5651 = vmatprep.subr.mxu0 %v5549
  %5652 = vmatpush1.msra.mxu0 %v5548
  %5653 = vmatprep.subr.mxu0 0.0
  %5654 = vmatpush1.msra.mxu0 0.0
  %5655 = vmatprep.subr.mxu0 0.0
  %5656 = vmatpush1.msra.mxu0 0.0
  %5657 = vmatprep.subr.mxu0 0.0
  %5658 = vmatpush1.msra.mxu0 0.0
  %5659 = vmatprep.subr.mxu0 0.0
  %5660 = vmatpush1.msra.mxu0 0.0
  %5661 = vmatprep.subr.mxu0 0.0
  %5662 = vmatpush1.msra.mxu0 0.0
  %5663 = vmatprep.subr.mxu0 0.0
  %5664 = vmatpush1.msra.mxu0 0.0
  %5665 = vmatprep.subr.mxu0 0.0
  %5666 = vmatpush1.msra.mxu0 0.0
  %5667 = vmatprep.subr.mxu0 0.0
  %5668 = vmatpush1.msra.mxu0 0.0
  %5669 = vmatprep.subr.mxu0 0.0
  %5670 = vmatpush1.msra.mxu0 0.0
  %5671 = vmatprep.subr.mxu0 0.0
  %5672 = vmatpush1.msra.mxu0 0.0
  %5673 = vmatprep.subr.mxu0 0.0
  %5674 = vmatpush1.msra.mxu0 0.0
  %5675 = vmatprep.subr.mxu0 0.0
  %5676 = vmatpush1.msra.mxu0 0.0
  %5677 = vmatprep.subr.mxu0 0.0
  %5678 = vmatpush1.msra.mxu0 0.0
  %5679 = vmatprep.subr.mxu0 0.0
  %5680 = vmatpush1.msra.mxu0 0.0
  %5681 = vmatprep.subr.mxu0 0.0
  %5682 = vmatpush1.msra.mxu0 0.0
  %5683 = vmatprep.subr.mxu0 0.0
  %5684 = vmatpush1.msra.mxu0 0.0
  %5685 = vmatprep.subr.mxu0 0.0
  %5686 = vmatpush1.msra.mxu0 0.0
  %5687 = vmatprep.subr.mxu0 0.0
  %5688 = vmatpush1.msra.mxu0 0.0
  %5689 = vmatprep.subr.mxu0 0.0
  %5690 = vmatpush1.msra.mxu0 0.0
  %5691 = vmatprep.subr.mxu0 0.0
  %5692 = vmatpush1.msra.mxu0 0.0
  %5693 = vmatprep.subr.mxu0 0.0
  %5694 = vmatpush1.msra.mxu0 0.0
  %5695 = vmatprep.subr.mxu0 0.0
  %5696 = vmatpush1.msra.mxu0 0.0
  %5697 = vmatprep.subr.mxu0 0.0
  %5698 = vmatpush1.msra.mxu0 0.0
  %5699 = vmatprep.mubr.f32.mxu0 0.0
  %5700 = vmatmul.mubr.f32.gmra.mrb[0].mxu0 %v869
  %v5701 = vpop.f32.mrb[0].mxu0
  %v5702 = vadd.f32 %v860, %v5701
  %v5703 = vpop.f32.mrb[0].mxu0
  %v5704 = vadd.f32 %v860, %v5703
  %5705 = vmatprep.mubr.f32.mxu0 0.0
  %5706 = vmatmul.mubr.f32.gmra.mrb[0].mxu0 %v872
  %v5707 = vpop.f32.mrb[0].mxu0
  %v5708 = vadd.f32 %v865, %v5707
  %v5709 = vpop.f32.mrb[0].mxu0
  %v5710 = vadd.f32 %v865, %v5709
  %5711 = vdwg.mxu0
  %5712 = vmatprep.subr.mxu0 %v5356
  %5713 = vmatpush1.msra.mxu0 %v5355
  %5714 = vmatprep.subr.mxu0 %v5375
  %5715 = vmatpush1.msra.mxu0 %v5380
  %5716 = vmatprep.subr.mxu0 %v5398
  %5717 = vmatpush1.msra.mxu0 %v5403
  %5718 = vmatprep.subr.mxu0 %v5421
  %5719 = vmatpush1.msra.mxu0 %v5426
  %5720 = vmatprep.subr.mxu0 %v5444
  %5721 = vmatpush1.msra.mxu0 %v5449
  %5722 = vmatprep.subr.mxu0 %v5467
  %5723 = vmatpush1.msra.mxu0 %v5472
  %5724 = vmatprep.subr.mxu0 %v5499
  %5725 = vmatpush1.msra.mxu0 %v5498
  %5726 = vmatprep.subr.mxu0 %v5525
  %5727 = vmatpush1.msra.mxu0 %v5524
  %5728 = vmatprep.subr.mxu0 %v5551
  %5729 = vmatpush1.msra.mxu0 %v5550
  %5730 = vmatprep.subr.mxu0 0.0
  %5731 = vmatpush1.msra.mxu0 0.0
  %5732 = vmatprep.subr.mxu0 0.0
  %5733 = vmatpush1.msra.mxu0 0.0
  %5734 = vmatprep.subr.mxu0 0.0
  %5735 = vmatpush1.msra.mxu0 0.0
  %5736 = vmatprep.subr.mxu0 0.0
  %5737 = vmatpush1.msra.mxu0 0.0
  %5738 = vmatprep.subr.mxu0 0.0
  %5739 = vmatpush1.msra.mxu0 0.0
  %5740 = vmatprep.subr.mxu0 0.0
  %5741 = vmatpush1.msra.mxu0 0.0
  %5742 = vmatprep.subr.mxu0 0.0
  %5743 = vmatpush1.msra.mxu0 0.0
  %5744 = vmatprep.subr.mxu0 0.0
  %5745 = vmatpush1.msra.mxu0 0.0
  %5746 = vmatprep.subr.mxu0 0.0
  %5747 = vmatpush1.msra.mxu0 0.0
  %5748 = vmatprep.subr.mxu0 0.0
  %5749 = vmatpush1.msra.mxu0 0.0
  %5750 = vmatprep.subr.mxu0 0.0
  %5751 = vmatpush1.msra.mxu0 0.0
  %5752 = vmatprep.subr.mxu0 0.0
  %5753 = vmatpush1.msra.mxu0 0.0
  %5754 = vmatprep.subr.mxu0 0.0
  %5755 = vmatpush1.msra.mxu0 0.0
  %5756 = vmatprep.subr.mxu0 0.0
  %5757 = vmatpush1.msra.mxu0 0.0
  %5758 = vmatprep.subr.mxu0 0.0
  %5759 = vmatpush1.msra.mxu0 0.0
  %5760 = vmatprep.subr.mxu0 0.0
  %5761 = vmatpush1.msra.mxu0 0.0
  %5762 = vmatprep.subr.mxu0 0.0
  %5763 = vmatpush1.msra.mxu0 0.0
  %5764 = vmatprep.subr.mxu0 0.0
  %5765 = vmatpush1.msra.mxu0 0.0
  %5766 = vmatprep.subr.mxu0 0.0
  %5767 = vmatpush1.msra.mxu0 0.0
  %5768 = vmatprep.subr.mxu0 0.0
  %5769 = vmatpush1.msra.mxu0 0.0
  %5770 = vmatprep.subr.mxu0 0.0
  %5771 = vmatpush1.msra.mxu0 0.0
  %5772 = vmatprep.subr.mxu0 0.0
  %5773 = vmatpush1.msra.mxu0 0.0
  %5774 = vmatprep.subr.mxu0 0.0
  %5775 = vmatpush1.msra.mxu0 0.0
  %5776 = vmatprep.mubr.f32.mxu0 0.0
  %5777 = vmatmul.mubr.f32.gmra.mrb[0].mxu0 %v869
  %v5778 = vpop.f32.mrb[0].mxu0
  %v5779 = vadd.f32 %v860, %v5778
  %v5780 = vpop.f32.mrb[0].mxu0
  %v5781 = vadd.f32 %v860, %v5780
  %5782 = vmatprep.mubr.f32.mxu0 0.0
  %5783 = vmatmul.mubr.f32.gmra.mrb[0].mxu0 %v872
  %v5784 = vpop.f32.mrb[0].mxu0
  %v5785 = vadd.f32 %v865, %v5784
  %v5786 = vpop.f32.mrb[0].mxu0
  %v5787 = vadd.f32 %v865, %v5786
  %5788 = vdwg.mxu0
  %vm5789 = vcmp.gt.f32.partialorder %v5625, 0.0
  %vm5790 = vcmp.gt.f32.partialorder %v5627, 0.0
  %vm5791 = vcmp.gt.f32.partialorder %v5702, 0.0
  %vm5792 = vcmp.gt.f32.partialorder %v5704, 0.0
  %vm5793 = vcmp.gt.f32.partialorder %v5779, 0.0
  %vm5794 = vcmp.gt.f32.partialorder %v5781, 0.0
  %vm5795 = vcmp.gt.f32.partialorder %v5631, 0.0
  %vm5796 = vcmp.gt.f32.partialorder %v5633, 0.0
  %vm5797 = vcmp.gt.f32.partialorder %v5708, 0.0
  %vm5798 = vcmp.gt.f32.partialorder %v5710, 0.0
  %vm5799 = vcmp.gt.f32.partialorder %v5785, 0.0
  %vm5800 = vcmp.gt.f32.partialorder %v5787, 0.0
  %v5801 = vmul.f32 %v555, %v5625
  %v5802 = vmul.f32 %v555, %v5627
  %v5803 = vmul.f32 %v555, %v5702
  %v5804 = vmul.f32 %v555, %v5704
  %v5805 = vmul.f32 %v555, %v5779
  %v5806 = vmul.f32 %v555, %v5781
  %v5807 = vmul.f32 %v555, %v5631
  %v5808 = vmul.f32 %v555, %v5633
  %v5809 = vmul.f32 %v555, %v5708
  %v5810 = vmul.f32 %v555, %v5710
  %v5811 = vmul.f32 %v555, %v5785
  %v5812 = vmul.f32 %v555, %v5787
  %v5813 = vsel %vm5789, %v5625, %v5801
  %v5814 = vsel %vm5790, %v5627, %v5802
  %v5815 = vsel %vm5791, %v5702, %v5803
  %v5816 = vsel %vm5792, %v5704, %v5804
  %v5817 = vsel %vm5793, %v5779, %v5805
  %v5818 = vsel %vm5794, %v5781, %v5806
  %v5819 = vsel %vm5795, %v5631, %v5807
  %v5820 = vsel %vm5796, %v5633, %v5808
  %v5821 = vsel %vm5797, %v5708, %v5809
  %v5822 = vsel %vm5798, %v5710, %v5810
  %v5823 = vsel %vm5799, %v5785, %v5811
  %v5824 = vsel %vm5800, %v5787, %v5812
  %5837 = vrot.lane.b32.xlu0 %v5813, 126
  %v5838 = vpop.permute.xlu0 %5837
  %5839 = vrot.lane.b32.xlu0 %v5814, 126
  %v5840 = vpop.permute.xlu0 %5839
  %5841 = vrot.lane.b32.xlu0 %v5815, 126
  %v5842 = vpop.permute.xlu0 %5841
  %5843 = vrot.lane.b32.xlu0 %v5816, 126
  %v5844 = vpop.permute.xlu0 %5843
  %5845 = vrot.lane.b32.xlu0 %v5817, 126
  %v5846 = vpop.permute.xlu0 %5845
  %5847 = vrot.lane.b32.xlu0 %v5818, 126
  %v5848 = vpop.permute.xlu0 %5847
  %5849 = vrot.lane.b32.xlu0 %v5819, 126
  %v5850 = vpop.permute.xlu0 %5849
  %5851 = vrot.lane.b32.xlu0 %v5820, 126
  %v5852 = vpop.permute.xlu0 %5851
  %5853 = vrot.lane.b32.xlu0 %v5821, 126
  %v5854 = vpop.permute.xlu0 %5853
  %5855 = vrot.lane.b32.xlu0 %v5822, 126
  %v5856 = vpop.permute.xlu0 %5855
  %5857 = vrot.lane.b32.xlu0 %v5823, 126
  %v5858 = vpop.permute.xlu0 %5857
  %5859 = vrot.lane.b32.xlu0 %v5824, 126
  %v5860 = vpop.permute.xlu0 %5859
  %v5861 = vsel %vm177, %v5838, %v5840
  %v5862 = vsel %vm177, %v5840, %v5842
  %v5863 = vsel %vm177, %v5842, %v5844
  %v5864 = vsel %vm177, %v5844, %v5846
  %v5865 = vsel %vm177, %v5846, %v5848
  %v5866 = vsel %vm177, %v5850, %v5852
  %v5867 = vsel %vm177, %v5852, %v5854
  %v5868 = vsel %vm177, %v5854, %v5856
  %v5869 = vsel %vm177, %v5856, %v5858
  %v5870 = vsel %vm177, %v5858, %v5860
  %v5883 = vmax.f32 %v5813, %v5861
  %v5884 = vmax.f32 %v5814, %v5862
  %v5885 = vmax.f32 %v5815, %v5863
  %v5886 = vmax.f32 %v5816, %v5864
  %v5887 = vmax.f32 %v5817, %v5865
  %v5888 = vmax.f32 %v5818, %v5848
  %v5889 = vmax.f32 %v5819, %v5866
  %v5890 = vmax.f32 %v5820, %v5867
  %v5891 = vmax.f32 %v5821, %v5868
  %v5892 = vmax.f32 %v5822, %v5869
  %v5893 = vmax.f32 %v5823, %v5870
  %v5894 = vmax.f32 %v5824, %v5860
  %5907 = vrot.lane.b32.xlu0 %v5883, 68
  %v5908 = vpop.permute.xlu0 %5907
  %5909 = vrot.lane.b32.xlu0 %v5884, 68
  %v5910 = vpop.permute.xlu0 %5909
  %5911 = vrot.lane.b32.xlu0 %v5885, 68
  %v5912 = vpop.permute.xlu0 %5911
  %5913 = vrot.lane.b32.xlu0 %v5886, 68
  %v5914 = vpop.permute.xlu0 %5913
  %5915 = vrot.lane.b32.xlu0 %v5887, 68
  %v5916 = vpop.permute.xlu0 %5915
  %5917 = vrot.lane.b32.xlu0 %v5888, 68
  %v5918 = vpop.permute.xlu0 %5917
  %5919 = vrot.lane.b32.xlu0 %v5889, 68
  %v5920 = vpop.permute.xlu0 %5919
  %5921 = vrot.lane.b32.xlu0 %v5890, 68
  %v5922 = vpop.permute.xlu0 %5921
  %5923 = vrot.lane.b32.xlu0 %v5891, 68
  %v5924 = vpop.permute.xlu0 %5923
  %5925 = vrot.lane.b32.xlu0 %v5892, 68
  %v5926 = vpop.permute.xlu0 %5925
  %5927 = vrot.lane.b32.xlu0 %v5893, 68
  %v5928 = vpop.permute.xlu0 %5927
  %5929 = vrot.lane.b32.xlu0 %v5894, 68
  %v5930 = vpop.permute.xlu0 %5929
  %v5931 = vsel %vm398, %v5908, %v5910
  %v5932 = vsel %vm398, %v5910, %v5912
  %v5933 = vsel %vm398, %v5912, %v5914
  %v5934 = vsel %vm398, %v5914, %v5916
  %v5935 = vsel %vm398, %v5916, %v5918
  %v5936 = vsel %vm398, %v5920, %v5922
  %v5937 = vsel %vm398, %v5922, %v5924
  %v5938 = vsel %vm398, %v5924, %v5926
  %v5939 = vsel %vm398, %v5926, %v5928
  %v5940 = vsel %vm398, %v5928, %v5930
  %v5951 = vmax.f32 %v5883, %v5931
  %v5952 = vmax.f32 %v5884, %v5932
  %v5953 = vmax.f32 %v5885, %v5933
  %v5954 = vmax.f32 %v5886, %v5934
  %v5955 = vmax.f32 %v5887, %v5935
  %v5956 = vmax.f32 %v5889, %v5936
  %v5957 = vmax.f32 %v5890, %v5937
  %v5958 = vmax.f32 %v5891, %v5938
  %v5959 = vmax.f32 %v5892, %v5939
  %v5960 = vmax.f32 %v5893, %v5940
  %s5961 = scalar_lea.vmem %s0, 5
  %v5962 = vld [vmem:[%s5961] ss:$8 sm:$0xf]
  %v5963 = vld [vmem:[%s5961] ss:$8 sm:$0xf0]
  %v5964 = vor.u32 %v5962, %v5963
  %v5966 = vlaneseq
  %v5967 = vshrl.u32 %v5966, 7
  %v5968 = vsub.s32 0, %v5967
  %v5969 = vrot.slane %v5964, %v5968
  %v5970 = vlaneseq
  %v5971 = vshrl.u32 %v5970, 7
  %v5972 = vsub.s32 1, %v5971
  %v5973 = vrot.slane %v5964, %v5972
  %v5974 = vlaneseq
  %v5975 = vshrl.u32 %v5974, 7
  %v5976 = vsub.s32 2, %v5975
  %v5977 = vrot.slane %v5964, %v5976
  %v5978 = vlaneseq
  %v5979 = vshrl.u32 %v5978, 7
  %v5980 = vsub.s32 3, %v5979
  %v5981 = vrot.slane %v5964, %v5980
  %v5982 = vlaneseq
  %v5983 = vshrl.u32 %v5982, 7
  %v5984 = vsub.s32 4, %v5983
  %v5985 = vrot.slane %v5964, %v5984
  %v5986 = vlaneseq
  %v5987 = vshrl.u32 %v5986, 7
  %v5988 = vsub.s32 5, %v5987
  %v5989 = vrot.slane %v5964, %v5988
  %v5990 = vlaneseq
  %v5991 = vshrl.u32 %v5990, 7
  %v5992 = vsub.s32 6, %v5991
  %v5993 = vrot.slane %v5964, %v5992
  %v6001 = vmul.f32 %v40, %v5969
  %v6002 = vmul.f32 %v40, %v5973
  %v6003 = vmul.f32 %v40, %v5977
  %v6004 = vmul.f32 %v40, %v5981
  %v6005 = vmul.f32 %v40, %v5985
  %v6006 = vmul.f32 %v40, %v5989
  %v6007 = vmul.f32 %v40, %v5993
  %v6008 = vadd.f32 %v6001, 0.0
  %v6009 = vadd.f32 %v6002, 0.0
  %v6010 = vadd.f32 %v6003, 0.0
  %v6011 = vadd.f32 %v6004, 0.0
  %v6012 = vadd.f32 %v6005, 0.0
  %v6013 = vadd.f32 %v6006, 0.0
  %v6014 = vadd.f32 %v6007, 0.0
  %v6015 = vmul.f32 %v94, %v5969
  %v6016 = vmul.f32 %v94, %v5973
  %v6017 = vmul.f32 %v94, %v5977
  %v6018 = vmul.f32 %v94, %v5981
  %v6019 = vmul.f32 %v94, %v5985
  %v6020 = vmul.f32 %v94, %v5989
  %v6021 = vmul.f32 %v94, %v5993
  %6029 = vrot.lane.b32.xlu0 %v6015, 127
  %v6030 = vpop.permute.xlu0 %6029
  %6031 = vrot.lane.b32.xlu0 %v6016, 127
  %v6032 = vpop.permute.xlu0 %6031
  %6033 = vrot.lane.b32.xlu0 %v6017, 127
  %v6034 = vpop.permute.xlu0 %6033
  %6035 = vrot.lane.b32.xlu0 %v6018, 127
  %v6036 = vpop.permute.xlu0 %6035
  %6037 = vrot.lane.b32.xlu0 %v6019, 127
  %v6038 = vpop.permute.xlu0 %6037
  %6039 = vrot.lane.b32.xlu0 %v6020, 127
  %v6040 = vpop.permute.xlu0 %6039
  %6041 = vrot.lane.b32.xlu0 %v6021, 127
  %v6042 = vpop.permute.xlu0 %6041
  %v6043 = vsel %vm124, %v6030, %v6032
  %v6044 = vsel %vm124, %v6032, %v6034
  %v6045 = vsel %vm124, %v6034, %v6036
  %v6046 = vsel %vm124, %v6036, %v6038
  %v6047 = vsel %vm124, %v6038, %v6040
  %v6048 = vsel %vm124, %v6040, %v6042
  %v6056 = vadd.f32 %v6008, %v6043
  %v6057 = vadd.f32 %v6009, %v6044
  %v6058 = vadd.f32 %v6010, %v6045
  %v6059 = vadd.f32 %v6011, %v6046
  %v6060 = vadd.f32 %v6012, %v6047
  %v6061 = vadd.f32 %v6013, %v6048
  %v6062 = vadd.f32 %v6014, %v6042
  %v6063 = vmul.f32 %v147, %v5969
  %v6064 = vmul.f32 %v147, %v5973
  %v6065 = vmul.f32 %v147, %v5977
  %v6066 = vmul.f32 %v147, %v5981
  %v6067 = vmul.f32 %v147, %v5985
  %v6068 = vmul.f32 %v147, %v5989
  %v6069 = vmul.f32 %v147, %v5993
  %6077 = vrot.lane.b32.xlu0 %v6063, 126
  %v6078 = vpop.permute.xlu0 %6077
  %6079 = vrot.lane.b32.xlu0 %v6064, 126
  %v6080 = vpop.permute.xlu0 %6079
  %6081 = vrot.lane.b32.xlu0 %v6065, 126
  %v6082 = vpop.permute.xlu0 %6081
  %6083 = vrot.lane.b32.xlu0 %v6066, 126
  %v6084 = vpop.permute.xlu0 %6083
  %6085 = vrot.lane.b32.xlu0 %v6067, 126
  %v6086 = vpop.permute.xlu0 %6085
  %6087 = vrot.lane.b32.xlu0 %v6068, 126
  %v6088 = vpop.permute.xlu0 %6087
  %6089 = vrot.lane.b32.xlu0 %v6069, 126
  %v6090 = vpop.permute.xlu0 %6089
  %v6091 = vsel %vm177, %v6078, %v6080
  %v6092 = vsel %vm177, %v6080, %v6082
  %v6093 = vsel %vm177, %v6082, %v6084
  %v6094 = vsel %vm177, %v6084, %v6086
  %v6095 = vsel %vm177, %v6086, %v6088
  %v6096 = vsel %vm177, %v6088, %v6090
  %v6104 = vadd.f32 %v6056, %v6091
  %v6105 = vadd.f32 %v6057, %v6092
  %v6106 = vadd.f32 %v6058, %v6093
  %v6107 = vadd.f32 %v6059, %v6094
  %v6108 = vadd.f32 %v6060, %v6095
  %v6109 = vadd.f32 %v6061, %v6096
  %v6110 = vadd.f32 %v6062, %v6090
  %v6111 = vmul.f32 %v200, %v5969
  %v6112 = vmul.f32 %v200, %v5973
  %v6113 = vmul.f32 %v200, %v5977
  %v6114 = vmul.f32 %v200, %v5981
  %v6115 = vmul.f32 %v200, %v5985
  %v6116 = vmul.f32 %v200, %v5989
  %v6117 = vmul.f32 %v200, %v5993
  %6125 = vrot.lane.b32.xlu0 %v6111, 98
  %v6126 = vpop.permute.xlu0 %6125
  %6127 = vrot.lane.b32.xlu0 %v6112, 98
  %v6128 = vpop.permute.xlu0 %6127
  %6129 = vrot.lane.b32.xlu0 %v6113, 98
  %v6130 = vpop.permute.xlu0 %6129
  %6131 = vrot.lane.b32.xlu0 %v6114, 98
  %v6132 = vpop.permute.xlu0 %6131
  %6133 = vrot.lane.b32.xlu0 %v6115, 98
  %v6134 = vpop.permute.xlu0 %6133
  %6135 = vrot.lane.b32.xlu0 %v6116, 98
  %v6136 = vpop.permute.xlu0 %6135
  %6137 = vrot.lane.b32.xlu0 %v6117, 98
  %v6138 = vpop.permute.xlu0 %6137
  %v6139 = vsel %vm230, %v6126, %v6128
  %v6140 = vsel %vm230, %v6128, %v6130
  %v6141 = vsel %vm230, %v6130, %v6132
  %v6142 = vsel %vm230, %v6132, %v6134
  %v6143 = vsel %vm230, %v6134, %v6136
  %v6144 = vsel %vm230, %v6136, %v6138
  %v6152 = vadd.f32 %v6104, %v6139
  %v6153 = vadd.f32 %v6105, %v6140
  %v6154 = vadd.f32 %v6106, %v6141
  %v6155 = vadd.f32 %v6107, %v6142
  %v6156 = vadd.f32 %v6108, %v6143
  %v6157 = vadd.f32 %v6109, %v6144
  %v6158 = vadd.f32 %v6110, %v6138
  %v6159 = vmul.f32 %v253, %v5969
  %v6160 = vmul.f32 %v253, %v5973
  %v6161 = vmul.f32 %v253, %v5977
  %v6162 = vmul.f32 %v253, %v5981
  %v6163 = vmul.f32 %v253, %v5985
  %v6164 = vmul.f32 %v253, %v5989
  %v6165 = vmul.f32 %v253, %v5993
  %6173 = vrot.lane.b32.xlu0 %v6159, 97
  %v6174 = vpop.permute.xlu0 %6173
  %6175 = vrot.lane.b32.xlu0 %v6160, 97
  %v6176 = vpop.permute.xlu0 %6175
  %6177 = vrot.lane.b32.xlu0 %v6161, 97
  %v6178 = vpop.permute.xlu0 %6177
  %6179 = vrot.lane.b32.xlu0 %v6162, 97
  %v6180 = vpop.permute.xlu0 %6179
  %6181 = vrot.lane.b32.xlu0 %v6163, 97
  %v6182 = vpop.permute.xlu0 %6181
  %6183 = vrot.lane.b32.xlu0 %v6164, 97
  %v6184 = vpop.permute.xlu0 %6183
  %6185 = vrot.lane.b32.xlu0 %v6165, 97
  %v6186 = vpop.permute.xlu0 %6185
  %v6187 = vsel %vm283, %v6174, %v6176
  %v6188 = vsel %vm283, %v6176, %v6178
  %v6189 = vsel %vm283, %v6178, %v6180
  %v6190 = vsel %vm283, %v6180, %v6182
  %v6191 = vsel %vm283, %v6182, %v6184
  %v6192 = vsel %vm283, %v6184, %v6186
  %v6200 = vadd.f32 %v6152, %v6187
  %v6201 = vadd.f32 %v6153, %v6188
  %v6202 = vadd.f32 %v6154, %v6189
  %v6203 = vadd.f32 %v6155, %v6190
  %v6204 = vadd.f32 %v6156, %v6191
  %v6205 = vadd.f32 %v6157, %v6192
  %v6206 = vadd.f32 %v6158, %v6186
  %v6207 = vmul.f32 %v306, %v5969
  %v6208 = vmul.f32 %v306, %v5973
  %v6209 = vmul.f32 %v306, %v5977
  %v6210 = vmul.f32 %v306, %v5981
  %v6211 = vmul.f32 %v306, %v5985
  %v6212 = vmul.f32 %v306, %v5989
  %v6213 = vmul.f32 %v306, %v5993
  %6221 = vrot.lane.b32.xlu0 %v6207, 96
  %v6222 = vpop.permute.xlu0 %6221
  %6223 = vrot.lane.b32.xlu0 %v6208, 96
  %v6224 = vpop.permute.xlu0 %6223
  %6225 = vrot.lane.b32.xlu0 %v6209, 96
  %v6226 = vpop.permute.xlu0 %6225
  %6227 = vrot.lane.b32.xlu0 %v6210, 96
  %v6228 = vpop.permute.xlu0 %6227
  %6229 = vrot.lane.b32.xlu0 %v6211, 96
  %v6230 = vpop.permute.xlu0 %6229
  %6231 = vrot.lane.b32.xlu0 %v6212, 96
  %v6232 = vpop.permute.xlu0 %6231
  %6233 = vrot.lane.b32.xlu0 %v6213, 96
  %v6234 = vpop.permute.xlu0 %6233
  %v6235 = vsel %vm336, %v6222, %v6224
  %v6236 = vsel %vm336, %v6224, %v6226
  %v6237 = vsel %vm336, %v6226, %v6228
  %v6238 = vsel %vm336, %v6228, %v6230
  %v6239 = vsel %vm336, %v6230, %v6232
  %v6240 = vsel %vm336, %v6232, %v6234
  %v6248 = vadd.f32 %v6200, %v6235
  %v6249 = vadd.f32 %v6201, %v6236
  %v6250 = vadd.f32 %v6202, %v6237
  %v6251 = vadd.f32 %v6203, %v6238
  %v6252 = vadd.f32 %v6204, %v6239
  %v6253 = vadd.f32 %v6205, %v6240
  %v6254 = vadd.f32 %v6206, %v6234
  %v6255 = vlaneseq
  %v6256 = vshrl.u32 %v6255, 7
  %v6257 = vsub.s32 7, %v6256
  %v6258 = vrot.slane %v5964, %v6257
  %v6260 = vmul.f32 %v359, %v5969
  %v6261 = vmul.f32 %v359, %v5973
  %v6262 = vmul.f32 %v359, %v5977
  %v6263 = vmul.f32 %v359, %v5981
  %v6264 = vmul.f32 %v359, %v5985
  %v6265 = vmul.f32 %v359, %v5989
  %v6266 = vmul.f32 %v359, %v5993
  %v6267 = vmul.f32 %v359, %v6258
  %6276 = vrot.lane.b32.xlu0 %v6260, 68
  %v6277 = vpop.permute.xlu0 %6276
  %6278 = vrot.lane.b32.xlu0 %v6261, 68
  %v6279 = vpop.permute.xlu0 %6278
  %6280 = vrot.lane.b32.xlu0 %v6262, 68
  %v6281 = vpop.permute.xlu0 %6280
  %6282 = vrot.lane.b32.xlu0 %v6263, 68
  %v6283 = vpop.permute.xlu0 %6282
  %6284 = vrot.lane.b32.xlu0 %v6264, 68
  %v6285 = vpop.permute.xlu0 %6284
  %6286 = vrot.lane.b32.xlu0 %v6265, 68
  %v6287 = vpop.permute.xlu0 %6286
  %6288 = vrot.lane.b32.xlu0 %v6266, 68
  %v6289 = vpop.permute.xlu0 %6288
  %6290 = vrot.lane.b32.xlu0 %v6267, 68
  %v6291 = vpop.permute.xlu0 %6290
  %v6292 = vsel %vm398, %v6277, %v6279
  %v6293 = vsel %vm398, %v6279, %v6281
  %v6294 = vsel %vm398, %v6281, %v6283
  %v6295 = vsel %vm398, %v6283, %v6285
  %v6296 = vsel %vm398, %v6285, %v6287
  %v6297 = vsel %vm398, %v6287, %v6289
  %v6298 = vsel %vm398, %v6289, %v6291
  %v6306 = vadd.f32 %v6248, %v6292
  %v6307 = vadd.f32 %v6249, %v6293
  %v6308 = vadd.f32 %v6250, %v6294
  %v6309 = vadd.f32 %v6251, %v6295
  %v6310 = vadd.f32 %v6252, %v6296
  %v6311 = vadd.f32 %v6253, %v6297
  %v6312 = vadd.f32 %v6254, %v6298
  %v6313 = vmul.f32 %v422, %v5969
  %v6314 = vmul.f32 %v422, %v5973
  %v6315 = vmul.f32 %v422, %v5977
  %v6316 = vmul.f32 %v422, %v5981
  %v6317 = vmul.f32 %v422, %v5985
  %v6318 = vmul.f32 %v422, %v5989
  %v6319 = vmul.f32 %v422, %v5993
  %v6320 = vmul.f32 %v422, %v6258
  %6329 = vrot.lane.b32.xlu0 %v6313, 67
  %v6330 = vpop.permute.xlu0 %6329
  %6331 = vrot.lane.b32.xlu0 %v6314, 67
  %v6332 = vpop.permute.xlu0 %6331
  %6333 = vrot.lane.b32.xlu0 %v6315, 67
  %v6334 = vpop.permute.xlu0 %6333
  %6335 = vrot.lane.b32.xlu0 %v6316, 67
  %v6336 = vpop.permute.xlu0 %6335
  %6337 = vrot.lane.b32.xlu0 %v6317, 67
  %v6338 = vpop.permute.xlu0 %6337
  %6339 = vrot.lane.b32.xlu0 %v6318, 67
  %v6340 = vpop.permute.xlu0 %6339
  %6341 = vrot.lane.b32.xlu0 %v6319, 67
  %v6342 = vpop.permute.xlu0 %6341
  %6343 = vrot.lane.b32.xlu0 %v6320, 67
  %v6344 = vpop.permute.xlu0 %6343
  %v6345 = vsel %vm456, %v6330, %v6332
  %v6346 = vsel %vm456, %v6332, %v6334
  %v6347 = vsel %vm456, %v6334, %v6336
  %v6348 = vsel %vm456, %v6336, %v6338
  %v6349 = vsel %vm456, %v6338, %v6340
  %v6350 = vsel %vm456, %v6340, %v6342
  %v6351 = vsel %vm456, %v6342, %v6344
  %v6359 = vadd.f32 %v6306, %v6345
  %v6360 = vadd.f32 %v6307, %v6346
  %v6361 = vadd.f32 %v6308, %v6347
  %v6362 = vadd.f32 %v6309, %v6348
  %v6363 = vadd.f32 %v6310, %v6349
  %v6364 = vadd.f32 %v6311, %v6350
  %v6365 = vadd.f32 %v6312, %v6351
  %v6366 = vmul.f32 %v480, %v5969
  %v6367 = vmul.f32 %v480, %v5973
  %v6368 = vmul.f32 %v480, %v5977
  %v6369 = vmul.f32 %v480, %v5981
  %v6370 = vmul.f32 %v480, %v5985
  %v6371 = vmul.f32 %v480, %v5989
  %v6372 = vmul.f32 %v480, %v5993
  %v6373 = vmul.f32 %v480, %v6258
  %6382 = vrot.lane.b32.xlu0 %v6366, 66
  %v6383 = vpop.permute.xlu0 %6382
  %6384 = vrot.lane.b32.xlu0 %v6367, 66
  %v6385 = vpop.permute.xlu0 %6384
  %6386 = vrot.lane.b32.xlu0 %v6368, 66
  %v6387 = vpop.permute.xlu0 %6386
  %6388 = vrot.lane.b32.xlu0 %v6369, 66
  %v6389 = vpop.permute.xlu0 %6388
  %6390 = vrot.lane.b32.xlu0 %v6370, 66
  %v6391 = vpop.permute.xlu0 %6390
  %6392 = vrot.lane.b32.xlu0 %v6371, 66
  %v6393 = vpop.permute.xlu0 %6392
  %6394 = vrot.lane.b32.xlu0 %v6372, 66
  %v6395 = vpop.permute.xlu0 %6394
  %6396 = vrot.lane.b32.xlu0 %v6373, 66
  %v6397 = vpop.permute.xlu0 %6396
  %v6398 = vsel %vm514, %v6383, %v6385
  %v6399 = vsel %vm514, %v6385, %v6387
  %v6400 = vsel %vm514, %v6387, %v6389
  %v6401 = vsel %vm514, %v6389, %v6391
  %v6402 = vsel %vm514, %v6391, %v6393
  %v6403 = vsel %vm514, %v6393, %v6395
  %v6404 = vsel %vm514, %v6395, %v6397
  %v6412 = vadd.f32 %v6359, %v6398
  %v6413 = vadd.f32 %v6360, %v6399
  %v6414 = vadd.f32 %v6361, %v6400
  %v6415 = vadd.f32 %v6362, %v6401
  %v6416 = vadd.f32 %v6363, %v6402
  %v6417 = vadd.f32 %v6364, %v6403
  %v6418 = vadd.f32 %v6365, %v6404
  %v6419 = vadd.f32 %v6412, %v539
  %v6420 = vadd.f32 %v6413, %v539
  %v6421 = vadd.f32 %v6414, %v539
  %v6422 = vadd.f32 %v6415, %v539
  %v6423 = vadd.f32 %v6416, %v539
  %v6424 = vadd.f32 %v6417, %v539
  %v6425 = vadd.f32 %v6418, %v539
  %vm6426 = vcmp.gt.f32.partialorder %v6419, 0.0
  %vm6427 = vcmp.gt.f32.partialorder %v6420, 0.0
  %vm6428 = vcmp.gt.f32.partialorder %v6421, 0.0
  %vm6429 = vcmp.gt.f32.partialorder %v6422, 0.0
  %vm6430 = vcmp.gt.f32.partialorder %v6423, 0.0
  %vm6431 = vcmp.gt.f32.partialorder %v6424, 0.0
  %vm6432 = vcmp.gt.f32.partialorder %v6425, 0.0
  %v6433 = vmul.f32 %v555, %v6419
  %v6434 = vmul.f32 %v555, %v6420
  %v6435 = vmul.f32 %v555, %v6421
  %v6436 = vmul.f32 %v555, %v6422
  %v6437 = vmul.f32 %v555, %v6423
  %v6438 = vmul.f32 %v555, %v6424
  %v6439 = vmul.f32 %v555, %v6425
  %v6440 = vsel %vm6426, %v6419, %v6433
  %v6441 = vsel %vm6427, %v6420, %v6434
  %v6442 = vsel %vm6428, %v6421, %v6435
  %v6443 = vsel %vm6429, %v6422, %v6436
  %v6444 = vsel %vm6430, %v6423, %v6437
  %v6445 = vsel %vm6431, %v6424, %v6438
  %v6446 = vsel %vm6432, %v6425, %v6439
  %6454 = vrot.lane.b32.xlu0 %v6440, 127
  %v6455 = vpop.permute.xlu0 %6454
  %6456 = vrot.lane.b32.xlu0 %v6441, 127
  %v6457 = vpop.permute.xlu0 %6456
  %6458 = vrot.lane.b32.xlu0 %v6442, 127
  %v6459 = vpop.permute.xlu0 %6458
  %6460 = vrot.lane.b32.xlu0 %v6443, 127
  %v6461 = vpop.permute.xlu0 %6460
  %6462 = vrot.lane.b32.xlu0 %v6444, 127
  %v6463 = vpop.permute.xlu0 %6462
  %6464 = vrot.lane.b32.xlu0 %v6445, 127
  %v6465 = vpop.permute.xlu0 %6464
  %6466 = vrot.lane.b32.xlu0 %v6446, 127
  %v6467 = vpop.permute.xlu0 %6466
  %v6468 = vsel %vm124, %v6455, %v6457
  %v6469 = vsel %vm124, %v6457, %v6459
  %v6470 = vsel %vm124, %v6459, %v6461
  %v6471 = vsel %vm124, %v6461, %v6463
  %v6472 = vsel %vm124, %v6463, %v6465
  %v6473 = vsel %vm124, %v6465, %v6467
  %v6481 = vmax.f32 %v6440, %v6468
  %v6482 = vmax.f32 %v6441, %v6469
  %v6483 = vmax.f32 %v6442, %v6470
  %v6484 = vmax.f32 %v6443, %v6471
  %v6485 = vmax.f32 %v6444, %v6472
  %v6486 = vmax.f32 %v6445, %v6473
  %v6487 = vmax.f32 %v6446, %v6467
  %6495 = vrot.lane.b32.xlu0 %v6481, 98
  %v6496 = vpop.permute.xlu0 %6495
  %6497 = vrot.lane.b32.xlu0 %v6482, 98
  %v6498 = vpop.permute.xlu0 %6497
  %6499 = vrot.lane.b32.xlu0 %v6483, 98
  %v6500 = vpop.permute.xlu0 %6499
  %6501 = vrot.lane.b32.xlu0 %v6484, 98
  %v6502 = vpop.permute.xlu0 %6501
  %6503 = vrot.lane.b32.xlu0 %v6485, 98
  %v6504 = vpop.permute.xlu0 %6503
  %6505 = vrot.lane.b32.xlu0 %v6486, 98
  %v6506 = vpop.permute.xlu0 %6505
  %6507 = vrot.lane.b32.xlu0 %v6487, 98
  %v6508 = vpop.permute.xlu0 %6507
  %v6509 = vsel %vm230, %v6496, %v6498
  %v6510 = vsel %vm230, %v6498, %v6500
  %v6511 = vsel %vm230, %v6500, %v6502
  %v6512 = vsel %vm230, %v6502, %v6504
  %v6513 = vsel %vm230, %v6504, %v6506
  %v6514 = vsel %vm230, %v6506, %v6508
  %v6522 = vmax.f32 %v6481, %v6509
  %v6523 = vmax.f32 %v6482, %v6510
  %v6524 = vmax.f32 %v6483, %v6511
  %v6525 = vmax.f32 %v6484, %v6512
  %v6526 = vmax.f32 %v6485, %v6513
  %v6527 = vmax.f32 %v6486, %v6514
  %v6528 = vmax.f32 %v6487, %v6508
  %6535 = vrot.lane.b32.xlu0 %v6522, 126
  %v6536 = vpop.permute.xlu0 %6535
  %6537 = vrot.lane.b32.xlu0 %v6523, 126
  %v6538 = vpop.permute.xlu0 %6537
  %6539 = vrot.lane.b32.xlu0 %v6524, 126
  %v6540 = vpop.permute.xlu0 %6539
  %6541 = vrot.lane.b32.xlu0 %v6525, 126
  %v6542 = vpop.permute.xlu0 %6541
  %6543 = vrot.lane.b32.xlu0 %v6526, 126
  %v6544 = vpop.permute.xlu0 %6543
  %6545 = vrot.lane.b32.xlu0 %v6527, 126
  %v6546 = vpop.permute.xlu0 %6545
  %v6547 = vsel %vm177, %v6536, %v6538
  %v6548 = vsel %vm177, %v6538, %v6540
  %v6549 = vsel %vm177, %v6540, %v6542
  %v6550 = vsel %vm177, %v6542, %v6544
  %v6551 = vsel %vm177, %v6544, %v6546
  %6558 = vrot.lane.b32.xlu0 %v6522, 124
  %v6559 = vpop.permute.xlu0 %6558
  %6560 = vrot.lane.b32.xlu0 %v6523, 124
  %v6561 = vpop.permute.xlu0 %6560
  %6562 = vrot.lane.b32.xlu0 %v6524, 124
  %v6563 = vpop.permute.xlu0 %6562
  %6564 = vrot.lane.b32.xlu0 %v6525, 124
  %v6565 = vpop.permute.xlu0 %6564
  %6566 = vrot.lane.b32.xlu0 %v6526, 124
  %v6567 = vpop.permute.xlu0 %6566
  %6568 = vrot.lane.b32.xlu0 %v6527, 124
  %v6569 = vpop.permute.xlu0 %6568
  %v6570 = vsel %vm693, %v6559, %v6561
  %v6571 = vsel %vm693, %v6561, %v6563
  %v6572 = vsel %vm693, %v6563, %v6565
  %v6573 = vsel %vm693, %v6565, %v6567
  %v6574 = vsel %vm693, %v6567, %v6569
  %6581 = vrot.lane.b32.xlu0 %v6522, 68
  %v6582 = vpop.permute.xlu0 %6581
  %6583 = vrot.lane.b32.xlu0 %v6523, 68
  %v6584 = vpop.permute.xlu0 %6583
  %6585 = vrot.lane.b32.xlu0 %v6524, 68
  %v6586 = vpop.permute.xlu0 %6585
  %6587 = vrot.lane.b32.xlu0 %v6525, 68
  %v6588 = vpop.permute.xlu0 %6587
  %6589 = vrot.lane.b32.xlu0 %v6526, 68
  %v6590 = vpop.permute.xlu0 %6589
  %6591 = vrot.lane.b32.xlu0 %v6527, 68
  %v6592 = vpop.permute.xlu0 %6591
  %v6593 = vsel %vm398, %v6582, %v6584
  %v6594 = vsel %vm398, %v6584, %v6586
  %v6595 = vsel %vm398, %v6586, %v6588
  %v6596 = vsel %vm398, %v6588, %v6590
  %v6597 = vsel %vm398, %v6590, %v6592
  %6604 = vrot.lane.b32.xlu0 %v6522, 66
  %v6605 = vpop.permute.xlu0 %6604
  %6606 = vrot.lane.b32.xlu0 %v6523, 66
  %v6607 = vpop.permute.xlu0 %6606
  %6608 = vrot.lane.b32.xlu0 %v6524, 66
  %v6609 = vpop.permute.xlu0 %6608
  %6610 = vrot.lane.b32.xlu0 %v6525, 66
  %v6611 = vpop.permute.xlu0 %6610
  %6612 = vrot.lane.b32.xlu0 %v6526, 66
  %v6613 = vpop.permute.xlu0 %6612
  %6614 = vrot.lane.b32.xlu0 %v6527, 66
  %v6615 = vpop.permute.xlu0 %6614
  %v6616 = vsel %vm514, %v6605, %v6607
  %v6617 = vsel %vm514, %v6607, %v6609
  %v6618 = vsel %vm514, %v6609, %v6611
  %v6619 = vsel %vm514, %v6611, %v6613
  %v6620 = vsel %vm514, %v6613, %v6615
  %6627 = vrot.lane.b32.xlu0 %v6522, 64
  %v6628 = vpop.permute.xlu0 %6627
  %6629 = vrot.lane.b32.xlu0 %v6523, 64
  %v6630 = vpop.permute.xlu0 %6629
  %6631 = vrot.lane.b32.xlu0 %v6524, 64
  %v6632 = vpop.permute.xlu0 %6631
  %6633 = vrot.lane.b32.xlu0 %v6525, 64
  %v6634 = vpop.permute.xlu0 %6633
  %6635 = vrot.lane.b32.xlu0 %v6526, 64
  %v6636 = vpop.permute.xlu0 %6635
  %6637 = vrot.lane.b32.xlu0 %v6527, 64
  %v6638 = vpop.permute.xlu0 %6637
  %v6639 = vsel %vm763, %v6628, %v6630
  %v6640 = vsel %vm763, %v6630, %v6632
  %v6641 = vsel %vm763, %v6632, %v6634
  %v6642 = vsel %vm763, %v6634, %v6636
  %v6643 = vsel %vm763, %v6636, %v6638
  %6651 = vrot.lane.b32.xlu0 %v6522, 8
  %v6652 = vpop.permute.xlu0 %6651
  %6653 = vrot.lane.b32.xlu0 %v6523, 8
  %v6654 = vpop.permute.xlu0 %6653
  %6655 = vrot.lane.b32.xlu0 %v6524, 8
  %v6656 = vpop.permute.xlu0 %6655
  %6657 = vrot.lane.b32.xlu0 %v6525, 8
  %v6658 = vpop.permute.xlu0 %6657
  %6659 = vrot.lane.b32.xlu0 %v6526, 8
  %v6660 = vpop.permute.xlu0 %6659
  %6661 = vrot.lane.b32.xlu0 %v6527, 8
  %v6662 = vpop.permute.xlu0 %6661
  %6663 = vrot.lane.b32.xlu0 %v6528, 8
  %v6664 = vpop.permute.xlu0 %6663
  %v6665 = vsel %vm790, %v6652, %v6654
  %v6666 = vsel %vm790, %v6654, %v6656
  %v6667 = vsel %vm790, %v6656, %v6658
  %v6668 = vsel %vm790, %v6658, %v6660
  %v6669 = vsel %vm790, %v6660, %v6662
  %v6670 = vsel %vm790, %v6662, %v6664
  %6677 = vrot.lane.b32.xlu0 %v6522, 6
  %v6678 = vpop.permute.xlu0 %6677
  %6679 = vrot.lane.b32.xlu0 %v6523, 6
  %v6680 = vpop.permute.xlu0 %6679
  %6681 = vrot.lane.b32.xlu0 %v6524, 6
  %v6682 = vpop.permute.xlu0 %6681
  %6683 = vrot.lane.b32.xlu0 %v6525, 6
  %v6684 = vpop.permute.xlu0 %6683
  %6685 = vrot.lane.b32.xlu0 %v6526, 6
  %v6686 = vpop.permute.xlu0 %6685
  %6687 = vrot.lane.b32.xlu0 %v6527, 6
  %v6688 = vpop.permute.xlu0 %6687
  %6689 = vrot.lane.b32.xlu0 %v6528, 6
  %v6690 = vpop.permute.xlu0 %6689
  %v6691 = vsel %vm817, %v6678, %v6680
  %v6692 = vsel %vm817, %v6680, %v6682
  %v6693 = vsel %vm817, %v6682, %v6684
  %v6694 = vsel %vm817, %v6684, %v6686
  %v6695 = vsel %vm817, %v6686, %v6688
  %v6696 = vsel %vm817, %v6688, %v6690
  %6703 = vrot.lane.b32.xlu0 %v6522, 4
  %v6704 = vpop.permute.xlu0 %6703
  %6705 = vrot.lane.b32.xlu0 %v6523, 4
  %v6706 = vpop.permute.xlu0 %6705
  %6707 = vrot.lane.b32.xlu0 %v6524, 4
  %v6708 = vpop.permute.xlu0 %6707
  %6709 = vrot.lane.b32.xlu0 %v6525, 4
  %v6710 = vpop.permute.xlu0 %6709
  %6711 = vrot.lane.b32.xlu0 %v6526, 4
  %v6712 = vpop.permute.xlu0 %6711
  %6713 = vrot.lane.b32.xlu0 %v6527, 4
  %v6714 = vpop.permute.xlu0 %6713
  %6715 = vrot.lane.b32.xlu0 %v6528, 4
  %v6716 = vpop.permute.xlu0 %6715
  %v6717 = vsel %vm844, %v6704, %v6706
  %v6718 = vsel %vm844, %v6706, %v6708
  %v6719 = vsel %vm844, %v6708, %v6710
  %v6720 = vsel %vm844, %v6710, %v6712
  %v6721 = vsel %vm844, %v6712, %v6714
  %v6722 = vsel %vm844, %v6714, %v6716
  %6729 = vmatprep.subr.mxu0 %v6523
  %6730 = vmatpush1.msra.mxu0 %v6522
  %6731 = vmatprep.subr.mxu0 %v6548
  %6732 = vmatpush1.msra.mxu0 %v6547
  %6733 = vmatprep.subr.mxu0 %v6571
  %6734 = vmatpush1.msra.mxu0 %v6570
  %6735 = vmatprep.subr.mxu0 %v6594
  %6736 = vmatpush1.msra.mxu0 %v6593
  %6737 = vmatprep.subr.mxu0 %v6617
  %6738 = vmatpush1.msra.mxu0 %v6616
  %6739 = vmatprep.subr.mxu0 %v6640
  %6740 = vmatpush1.msra.mxu0 %v6639
  %6741 = vmatprep.subr.mxu0 %v6666
  %6742 = vmatpush1.msra.mxu0 %v6665
  %6743 = vmatprep.subr.mxu0 %v6692
  %6744 = vmatpush1.msra.mxu0 %v6691
  %6745 = vmatprep.subr.mxu0 %v6718
  %6746 = vmatpush1.msra.mxu0 %v6717
  %6747 = vmatprep.subr.mxu0 0.0
  %6748 = vmatpush1.msra.mxu0 0.0
  %6749 = vmatprep.subr.mxu0 0.0
  %6750 = vmatpush1.msra.mxu0 0.0
  %6751 = vmatprep.subr.mxu0 0.0
  %6752 = vmatpush1.msra.mxu0 0.0
  %6753 = vmatprep.subr.mxu0 0.0
  %6754 = vmatpush1.msra.mxu0 0.0
  %6755 = vmatprep.subr.mxu0 0.0
  %6756 = vmatpush1.msra.mxu0 0.0
  %6757 = vmatprep.subr.mxu0 0.0
  %6758 = vmatpush1.msra.mxu0 0.0
  %6759 = vmatprep.subr.mxu0 0.0
  %6760 = vmatpush1.msra.mxu0 0.0
  %6761 = vmatprep.subr.mxu0 0.0
  %6762 = vmatpush1.msra.mxu0 0.0
  %6763 = vmatprep.subr.mxu0 0.0
  %6764 = vmatpush1.msra.mxu0 0.0
  %6765 = vmatprep.subr.mxu0 0.0
  %6766 = vmatpush1.msra.mxu0 0.0
  %6767 = vmatprep.subr.mxu0 0.0
  %6768 = vmatpush1.msra.mxu0 0.0
  %6769 = vmatprep.subr.mxu0 0.0
  %6770 = vmatpush1.msra.mxu0 0.0
  %6771 = vmatprep.subr.mxu0 0.0
  %6772 = vmatpush1.msra.mxu0 0.0
  %6773 = vmatprep.subr.mxu0 0.0
  %6774 = vmatpush1.msra.mxu0 0.0
  %6775 = vmatprep.subr.mxu0 0.0
  %6776 = vmatpush1.msra.mxu0 0.0
  %6777 = vmatprep.subr.mxu0 0.0
  %6778 = vmatpush1.msra.mxu0 0.0
  %6779 = vmatprep.subr.mxu0 0.0
  %6780 = vmatpush1.msra.mxu0 0.0
  %6781 = vmatprep.subr.mxu0 0.0
  %6782 = vmatpush1.msra.mxu0 0.0
  %6783 = vmatprep.subr.mxu0 0.0
  %6784 = vmatpush1.msra.mxu0 0.0
  %6785 = vmatprep.subr.mxu0 0.0
  %6786 = vmatpush1.msra.mxu0 0.0
  %6787 = vmatprep.subr.mxu0 0.0
  %6788 = vmatpush1.msra.mxu0 0.0
  %6789 = vmatprep.subr.mxu0 0.0
  %6790 = vmatpush1.msra.mxu0 0.0
  %6791 = vmatprep.subr.mxu0 0.0
  %6792 = vmatpush1.msra.mxu0 0.0
  %6793 = vmatprep.mubr.f32.mxu0 0.0
  %6794 = vmatmul.mubr.f32.gmra.mrb[0].mxu0 %v869
  %v6795 = vpop.f32.mrb[0].mxu0
  %v6796 = vadd.f32 %v860, %v6795
  %v6797 = vpop.f32.mrb[0].mxu0
  %v6798 = vadd.f32 %v860, %v6797
  %6799 = vmatprep.mubr.f32.mxu0 0.0
  %6800 = vmatmul.mubr.f32.gmra.mrb[0].mxu0 %v872
  %v6801 = vpop.f32.mrb[0].mxu0
  %v6802 = vadd.f32 %v865, %v6801
  %v6803 = vpop.f32.mrb[0].mxu0
  %v6804 = vadd.f32 %v865, %v6803
  %6805 = vdwg.mxu0
  %6806 = vmatprep.subr.mxu0 %v6525
  %6807 = vmatpush1.msra.mxu0 %v6524
  %6808 = vmatprep.subr.mxu0 %v6550
  %6809 = vmatpush1.msra.mxu0 %v6549
  %6810 = vmatprep.subr.mxu0 %v6573
  %6811 = vmatpush1.msra.mxu0 %v6572
  %6812 = vmatprep.subr.mxu0 %v6596
  %6813 = vmatpush1.msra.mxu0 %v6595
  %6814 = vmatprep.subr.mxu0 %v6619
  %6815 = vmatpush1.msra.mxu0 %v6618
  %6816 = vmatprep.subr.mxu0 %v6642
  %6817 = vmatpush1.msra.mxu0 %v6641
  %6818 = vmatprep.subr.mxu0 %v6668
  %6819 = vmatpush1.msra.mxu0 %v6667
  %6820 = vmatprep.subr.mxu0 %v6694
  %6821 = vmatpush1.msra.mxu0 %v6693
  %6822 = vmatprep.subr.mxu0 %v6720
  %6823 = vmatpush1.msra.mxu0 %v6719
  %6824 = vmatprep.subr.mxu0 0.0
  %6825 = vmatpush1.msra.mxu0 0.0
  %6826 = vmatprep.subr.mxu0 0.0
  %6827 = vmatpush1.msra.mxu0 0.0
  %6828 = vmatprep.subr.mxu0 0.0
  %6829 = vmatpush1.msra.mxu0 0.0
  %6830 = vmatprep.subr.mxu0 0.0
  %6831 = vmatpush1.msra.mxu0 0.0
  %6832 = vmatprep.subr.mxu0 0.0
  %6833 = vmatpush1.msra.mxu0 0.0
  %6834 = vmatprep.subr.mxu0 0.0
  %6835 = vmatpush1.msra.mxu0 0.0
  %6836 = vmatprep.subr.mxu0 0.0
  %6837 = vmatpush1.msra.mxu0 0.0
  %6838 = vmatprep.subr.mxu0 0.0
  %6839 = vmatpush1.msra.mxu0 0.0
  %6840 = vmatprep.subr.mxu0 0.0
  %6841 = vmatpush1.msra.mxu0 0.0
  %6842 = vmatprep.subr.mxu0 0.0
  %6843 = vmatpush1.msra.mxu0 0.0
  %6844 = vmatprep.subr.mxu0 0.0
  %6845 = vmatpush1.msra.mxu0 0.0
  %6846 = vmatprep.subr.mxu0 0.0
  %6847 = vmatpush1.msra.mxu0 0.0
  %6848 = vmatprep.subr.mxu0 0.0
  %6849 = vmatpush1.msra.mxu0 0.0
  %6850 = vmatprep.subr.mxu0 0.0
  %6851 = vmatpush1.msra.mxu0 0.0
  %6852 = vmatprep.subr.mxu0 0.0
  %6853 = vmatpush1.msra.mxu0 0.0
  %6854 = vmatprep.subr.mxu0 0.0
  %6855 = vmatpush1.msra.mxu0 0.0
  %6856 = vmatprep.subr.mxu0 0.0
  %6857 = vmatpush1.msra.mxu0 0.0
  %6858 = vmatprep.subr.mxu0 0.0
  %6859 = vmatpush1.msra.mxu0 0.0
  %6860 = vmatprep.subr.mxu0 0.0
  %6861 = vmatpush1.msra.mxu0 0.0
  %6862 = vmatprep.subr.mxu0 0.0
  %6863 = vmatpush1.msra.mxu0 0.0
  %6864 = vmatprep.subr.mxu0 0.0
  %6865 = vmatpush1.msra.mxu0 0.0
  %6866 = vmatprep.subr.mxu0 0.0
  %6867 = vmatpush1.msra.mxu0 0.0
  %6868 = vmatprep.subr.mxu0 0.0
  %6869 = vmatpush1.msra.mxu0 0.0
  %6870 = vmatprep.mubr.f32.mxu0 0.0
  %6871 = vmatmul.mubr.f32.gmra.mrb[0].mxu0 %v869
  %v6872 = vpop.f32.mrb[0].mxu0
  %v6873 = vadd.f32 %v860, %v6872
  %v6874 = vpop.f32.mrb[0].mxu0
  %v6875 = vadd.f32 %v860, %v6874
  %6876 = vmatprep.mubr.f32.mxu0 0.0
  %6877 = vmatmul.mubr.f32.gmra.mrb[0].mxu0 %v872
  %v6878 = vpop.f32.mrb[0].mxu0
  %v6879 = vadd.f32 %v865, %v6878
  %v6880 = vpop.f32.mrb[0].mxu0
  %v6881 = vadd.f32 %v865, %v6880
  %6882 = vdwg.mxu0
  %6883 = vmatprep.subr.mxu0 %v6527
  %6884 = vmatpush1.msra.mxu0 %v6526
  %6885 = vmatprep.subr.mxu0 %v6546
  %6886 = vmatpush1.msra.mxu0 %v6551
  %6887 = vmatprep.subr.mxu0 %v6569
  %6888 = vmatpush1.msra.mxu0 %v6574
  %6889 = vmatprep.subr.mxu0 %v6592
  %6890 = vmatpush1.msra.mxu0 %v6597
  %6891 = vmatprep.subr.mxu0 %v6615
  %6892 = vmatpush1.msra.mxu0 %v6620
  %6893 = vmatprep.subr.mxu0 %v6638
  %6894 = vmatpush1.msra.mxu0 %v6643
  %6895 = vmatprep.subr.mxu0 %v6670
  %6896 = vmatpush1.msra.mxu0 %v6669
  %6897 = vmatprep.subr.mxu0 %v6696
  %6898 = vmatpush1.msra.mxu0 %v6695
  %6899 = vmatprep.subr.mxu0 %v6722
  %6900 = vmatpush1.msra.mxu0 %v6721
  %6901 = vmatprep.subr.mxu0 0.0
  %6902 = vmatpush1.msra.mxu0 0.0
  %6903 = vmatprep.subr.mxu0 0.0
  %6904 = vmatpush1.msra.mxu0 0.0
  %6905 = vmatprep.subr.mxu0 0.0
  %6906 = vmatpush1.msra.mxu0 0.0
  %6907 = vmatprep.subr.mxu0 0.0
  %6908 = vmatpush1.msra.mxu0 0.0
  %6909 = vmatprep.subr.mxu0 0.0
  %6910 = vmatpush1.msra.mxu0 0.0
  %6911 = vmatprep.subr.mxu0 0.0
  %6912 = vmatpush1.msra.mxu0 0.0
  %6913 = vmatprep.subr.mxu0 0.0
  %6914 = vmatpush1.msra.mxu0 0.0
  %6915 = vmatprep.subr.mxu0 0.0
  %6916 = vmatpush1.msra.mxu0 0.0
  %6917 = vmatprep.subr.mxu0 0.0
  %6918 = vmatpush1.msra.mxu0 0.0
  %6919 = vmatprep.subr.mxu0 0.0
  %6920 = vmatpush1.msra.mxu0 0.0
  %6921 = vmatprep.subr.mxu0 0.0
  %6922 = vmatpush1.msra.mxu0 0.0
  %6923 = vmatprep.subr.mxu0 0.0
  %6924 = vmatpush1.msra.mxu0 0.0
  %6925 = vmatprep.subr.mxu0 0.0
  %6926 = vmatpush1.msra.mxu0 0.0
  %6927 = vmatprep.subr.mxu0 0.0
  %6928 = vmatpush1.msra.mxu0 0.0
  %6929 = vmatprep.subr.mxu0 0.0
  %6930 = vmatpush1.msra.mxu0 0.0
  %6931 = vmatprep.subr.mxu0 0.0
  %6932 = vmatpush1.msra.mxu0 0.0
  %6933 = vmatprep.subr.mxu0 0.0
  %6934 = vmatpush1.msra.mxu0 0.0
  %6935 = vmatprep.subr.mxu0 0.0
  %6936 = vmatpush1.msra.mxu0 0.0
  %6937 = vmatprep.subr.mxu0 0.0
  %6938 = vmatpush1.msra.mxu0 0.0
  %6939 = vmatprep.subr.mxu0 0.0
  %6940 = vmatpush1.msra.mxu0 0.0
  %6941 = vmatprep.subr.mxu0 0.0
  %6942 = vmatpush1.msra.mxu0 0.0
  %6943 = vmatprep.subr.mxu0 0.0
  %6944 = vmatpush1.msra.mxu0 0.0
  %6945 = vmatprep.subr.mxu0 0.0
  %6946 = vmatpush1.msra.mxu0 0.0
  %6947 = vmatprep.mubr.f32.mxu0 0.0
  %6948 = vmatmul.mubr.f32.gmra.mrb[0].mxu0 %v869
  %v6949 = vpop.f32.mrb[0].mxu0
  %v6950 = vadd.f32 %v860, %v6949
  %v6951 = vpop.f32.mrb[0].mxu0
  %v6952 = vadd.f32 %v860, %v6951
  %6953 = vmatprep.mubr.f32.mxu0 0.0
  %6954 = vmatmul.mubr.f32.gmra.mrb[0].mxu0 %v872
  %v6955 = vpop.f32.mrb[0].mxu0
  %v6956 = vadd.f32 %v865, %v6955
  %v6957 = vpop.f32.mrb[0].mxu0
  %v6958 = vadd.f32 %v865, %v6957
  %6959 = vdwg.mxu0
  %vm6960 = vcmp.gt.f32.partialorder %v6796, 0.0
  %vm6961 = vcmp.gt.f32.partialorder %v6798, 0.0
  %vm6962 = vcmp.gt.f32.partialorder %v6873, 0.0
  %vm6963 = vcmp.gt.f32.partialorder %v6875, 0.0
  %vm6964 = vcmp.gt.f32.partialorder %v6950, 0.0
  %vm6965 = vcmp.gt.f32.partialorder %v6952, 0.0
  %vm6966 = vcmp.gt.f32.partialorder %v6802, 0.0
  %vm6967 = vcmp.gt.f32.partialorder %v6804, 0.0
  %vm6968 = vcmp.gt.f32.partialorder %v6879, 0.0
  %vm6969 = vcmp.gt.f32.partialorder %v6881, 0.0
  %vm6970 = vcmp.gt.f32.partialorder %v6956, 0.0
  %vm6971 = vcmp.gt.f32.partialorder %v6958, 0.0
  %v6972 = vmul.f32 %v555, %v6796
  %v6973 = vmul.f32 %v555, %v6798
  %v6974 = vmul.f32 %v555, %v6873
  %v6975 = vmul.f32 %v555, %v6875
  %v6976 = vmul.f32 %v555, %v6950
  %v6977 = vmul.f32 %v555, %v6952
  %v6978 = vmul.f32 %v555, %v6802
  %v6979 = vmul.f32 %v555, %v6804
  %v6980 = vmul.f32 %v555, %v6879
  %v6981 = vmul.f32 %v555, %v6881
  %v6982 = vmul.f32 %v555, %v6956
  %v6983 = vmul.f32 %v555, %v6958
  %v6984 = vsel %vm6960, %v6796, %v6972
  %v6985 = vsel %vm6961, %v6798, %v6973
  %v6986 = vsel %vm6962, %v6873, %v6974
  %v6987 = vsel %vm6963, %v6875, %v6975
  %v6988 = vsel %vm6964, %v6950, %v6976
  %v6989 = vsel %vm6965, %v6952, %v6977
  %v6990 = vsel %vm6966, %v6802, %v6978
  %v6991 = vsel %vm6967, %v6804, %v6979
  %v6992 = vsel %vm6968, %v6879, %v6980
  %v6993 = vsel %vm6969, %v6881, %v6981
  %v6994 = vsel %vm6970, %v6956, %v6982
  %v6995 = vsel %vm6971, %v6958, %v6983
  %7008 = vrot.lane.b32.xlu0 %v6984, 126
  %v7009 = vpop.permute.xlu0 %7008
  %7010 = vrot.lane.b32.xlu0 %v6985, 126
  %v7011 = vpop.permute.xlu0 %7010
  %7012 = vrot.lane.b32.xlu0 %v6986, 126
  %v7013 = vpop.permute.xlu0 %7012
  %7014 = vrot.lane.b32.xlu0 %v6987, 126
  %v7015 = vpop.permute.xlu0 %7014
  %7016 = vrot.lane.b32.xlu0 %v6988, 126
  %v7017 = vpop.permute.xlu0 %7016
  %7018 = vrot.lane.b32.xlu0 %v6989, 126
  %v7019 = vpop.permute.xlu0 %7018
  %7020 = vrot.lane.b32.xlu0 %v6990, 126
  %v7021 = vpop.permute.xlu0 %7020
  %7022 = vrot.lane.b32.xlu0 %v6991, 126
  %v7023 = vpop.permute.xlu0 %7022
  %7024 = vrot.lane.b32.xlu0 %v6992, 126
  %v7025 = vpop.permute.xlu0 %7024
  %7026 = vrot.lane.b32.xlu0 %v6993, 126
  %v7027 = vpop.permute.xlu0 %7026
  %7028 = vrot.lane.b32.xlu0 %v6994, 126
  %v7029 = vpop.permute.xlu0 %7028
  %7030 = vrot.lane.b32.xlu0 %v6995, 126
  %v7031 = vpop.permute.xlu0 %7030
  %v7032 = vsel %vm177, %v7009, %v7011
  %v7033 = vsel %vm177, %v7011, %v7013
  %v7034 = vsel %vm177, %v7013, %v7015
  %v7035 = vsel %vm177, %v7015, %v7017
  %v7036 = vsel %vm177, %v7017, %v7019
  %v7037 = vsel %vm177, %v7021, %v7023
  %v7038 = vsel %vm177, %v7023, %v7025
  %v7039 = vsel %vm177, %v7025, %v7027
  %v7040 = vsel %vm177, %v7027, %v7029
  %v7041 = vsel %vm177, %v7029, %v7031
  %v7054 = vmax.f32 %v6984, %v7032
  %v7055 = vmax.f32 %v6985, %v7033
  %v7056 = vmax.f32 %v6986, %v7034
  %v7057 = vmax.f32 %v6987, %v7035
  %v7058 = vmax.f32 %v6988, %v7036
  %v7059 = vmax.f32 %v6989, %v7019
  %v7060 = vmax.f32 %v6990, %v7037
  %v7061 = vmax.f32 %v6991, %v7038
  %v7062 = vmax.f32 %v6992, %v7039
  %v7063 = vmax.f32 %v6993, %v7040
  %v7064 = vmax.f32 %v6994, %v7041
  %v7065 = vmax.f32 %v6995, %v7031
  %7078 = vrot.lane.b32.xlu0 %v7054, 68
  %v7079 = vpop.permute.xlu0 %7078
  %7080 = vrot.lane.b32.xlu0 %v7055, 68
  %v7081 = vpop.permute.xlu0 %7080
  %7082 = vrot.lane.b32.xlu0 %v7056, 68
  %v7083 = vpop.permute.xlu0 %7082
  %7084 = vrot.lane.b32.xlu0 %v7057, 68
  %v7085 = vpop.permute.xlu0 %7084
  %7086 = vrot.lane.b32.xlu0 %v7058, 68
  %v7087 = vpop.permute.xlu0 %7086
  %7088 = vrot.lane.b32.xlu0 %v7059, 68
  %v7089 = vpop.permute.xlu0 %7088
  %7090 = vrot.lane.b32.xlu0 %v7060, 68
  %v7091 = vpop.permute.xlu0 %7090
  %7092 = vrot.lane.b32.xlu0 %v7061, 68
  %v7093 = vpop.permute.xlu0 %7092
  %7094 = vrot.lane.b32.xlu0 %v7062, 68
  %v7095 = vpop.permute.xlu0 %7094
  %7096 = vrot.lane.b32.xlu0 %v7063, 68
  %v7097 = vpop.permute.xlu0 %7096
  %7098 = vrot.lane.b32.xlu0 %v7064, 68
  %v7099 = vpop.permute.xlu0 %7098
  %7100 = vrot.lane.b32.xlu0 %v7065, 68
  %v7101 = vpop.permute.xlu0 %7100
  %v7102 = vsel %vm398, %v7079, %v7081
  %v7103 = vsel %vm398, %v7081, %v7083
  %v7104 = vsel %vm398, %v7083, %v7085
  %v7105 = vsel %vm398, %v7085, %v7087
  %v7106 = vsel %vm398, %v7087, %v7089
  %v7107 = vsel %vm398, %v7091, %v7093
  %v7108 = vsel %vm398, %v7093, %v7095
  %v7109 = vsel %vm398, %v7095, %v7097
  %v7110 = vsel %vm398, %v7097, %v7099
  %v7111 = vsel %vm398, %v7099, %v7101
  %v7122 = vmax.f32 %v7054, %v7102
  %v7123 = vmax.f32 %v7055, %v7103
  %v7124 = vmax.f32 %v7056, %v7104
  %v7125 = vmax.f32 %v7057, %v7105
  %v7126 = vmax.f32 %v7058, %v7106
  %v7127 = vmax.f32 %v7060, %v7107
  %v7128 = vmax.f32 %v7061, %v7108
  %v7129 = vmax.f32 %v7062, %v7109
  %v7130 = vmax.f32 %v7063, %v7110
  %v7131 = vmax.f32 %v7064, %v7111
  %s7132 = scalar_lea.vmem %s0, 6
  %v7133 = vld [vmem:[%s7132] ss:$8 sm:$0xf]
  %v7134 = vld [vmem:[%s7132] ss:$8 sm:$0xf0]
  %v7135 = vor.u32 %v7133, %v7134
  %v7137 = vlaneseq
  %v7138 = vshrl.u32 %v7137, 7
  %v7139 = vsub.s32 0, %v7138
  %v7140 = vrot.slane %v7135, %v7139
  %v7141 = vlaneseq
  %v7142 = vshrl.u32 %v7141, 7
  %v7143 = vsub.s32 1, %v7142
  %v7144 = vrot.slane %v7135, %v7143
  %v7145 = vlaneseq
  %v7146 = vshrl.u32 %v7145, 7
  %v7147 = vsub.s32 2, %v7146
  %v7148 = vrot.slane %v7135, %v7147
  %v7149 = vlaneseq
  %v7150 = vshrl.u32 %v7149, 7
  %v7151 = vsub.s32 3, %v7150
  %v7152 = vrot.slane %v7135, %v7151
  %v7153 = vlaneseq
  %v7154 = vshrl.u32 %v7153, 7
  %v7155 = vsub.s32 4, %v7154
  %v7156 = vrot.slane %v7135, %v7155
  %v7157 = vlaneseq
  %v7158 = vshrl.u32 %v7157, 7
  %v7159 = vsub.s32 5, %v7158
  %v7160 = vrot.slane %v7135, %v7159
  %v7161 = vlaneseq
  %v7162 = vshrl.u32 %v7161, 7
  %v7163 = vsub.s32 6, %v7162
  %v7164 = vrot.slane %v7135, %v7163
  %v7172 = vmul.f32 %v40, %v7140
  %v7173 = vmul.f32 %v40, %v7144
  %v7174 = vmul.f32 %v40, %v7148
  %v7175 = vmul.f32 %v40, %v7152
  %v7176 = vmul.f32 %v40, %v7156
  %v7177 = vmul.f32 %v40, %v7160
  %v7178 = vmul.f32 %v40, %v7164
  %v7179 = vadd.f32 %v7172, 0.0
  %v7180 = vadd.f32 %v7173, 0.0
  %v7181 = vadd.f32 %v7174, 0.0
  %v7182 = vadd.f32 %v7175, 0.0
  %v7183 = vadd.f32 %v7176, 0.0
  %v7184 = vadd.f32 %v7177, 0.0
  %v7185 = vadd.f32 %v7178, 0.0
  %v7186 = vmul.f32 %v94, %v7140
  %v7187 = vmul.f32 %v94, %v7144
  %v7188 = vmul.f32 %v94, %v7148
  %v7189 = vmul.f32 %v94, %v7152
  %v7190 = vmul.f32 %v94, %v7156
  %v7191 = vmul.f32 %v94, %v7160
  %v7192 = vmul.f32 %v94, %v7164
  %7200 = vrot.lane.b32.xlu0 %v7186, 127
  %v7201 = vpop.permute.xlu0 %7200
  %7202 = vrot.lane.b32.xlu0 %v7187, 127
  %v7203 = vpop.permute.xlu0 %7202
  %7204 = vrot.lane.b32.xlu0 %v7188, 127
  %v7205 = vpop.permute.xlu0 %7204
  %7206 = vrot.lane.b32.xlu0 %v7189, 127
  %v7207 = vpop.permute.xlu0 %7206
  %7208 = vrot.lane.b32.xlu0 %v7190, 127
  %v7209 = vpop.permute.xlu0 %7208
  %7210 = vrot.lane.b32.xlu0 %v7191, 127
  %v7211 = vpop.permute.xlu0 %7210
  %7212 = vrot.lane.b32.xlu0 %v7192, 127
  %v7213 = vpop.permute.xlu0 %7212
  %v7214 = vsel %vm124, %v7201, %v7203
  %v7215 = vsel %vm124, %v7203, %v7205
  %v7216 = vsel %vm124, %v7205, %v7207
  %v7217 = vsel %vm124, %v7207, %v7209
  %v7218 = vsel %vm124, %v7209, %v7211
  %v7219 = vsel %vm124, %v7211, %v7213
  %v7227 = vadd.f32 %v7179, %v7214
  %v7228 = vadd.f32 %v7180, %v7215
  %v7229 = vadd.f32 %v7181, %v7216
  %v7230 = vadd.f32 %v7182, %v7217
  %v7231 = vadd.f32 %v7183, %v7218
  %v7232 = vadd.f32 %v7184, %v7219
  %v7233 = vadd.f32 %v7185, %v7213
  %v7234 = vmul.f32 %v147, %v7140
  %v7235 = vmul.f32 %v147, %v7144
  %v7236 = vmul.f32 %v147, %v7148
  %v7237 = vmul.f32 %v147, %v7152
  %v7238 = vmul.f32 %v147, %v7156
  %v7239 = vmul.f32 %v147, %v7160
  %v7240 = vmul.f32 %v147, %v7164
  %7248 = vrot.lane.b32.xlu0 %v7234, 126
  %v7249 = vpop.permute.xlu0 %7248
  %7250 = vrot.lane.b32.xlu0 %v7235, 126
  %v7251 = vpop.permute.xlu0 %7250
  %7252 = vrot.lane.b32.xlu0 %v7236, 126
  %v7253 = vpop.permute.xlu0 %7252
  %7254 = vrot.lane.b32.xlu0 %v7237, 126
  %v7255 = vpop.permute.xlu0 %7254
  %7256 = vrot.lane.b32.xlu0 %v7238, 126
  %v7257 = vpop.permute.xlu0 %7256
  %7258 = vrot.lane.b32.xlu0 %v7239, 126
  %v7259 = vpop.permute.xlu0 %7258
  %7260 = vrot.lane.b32.xlu0 %v7240, 126
  %v7261 = vpop.permute.xlu0 %7260
  %v7262 = vsel %vm177, %v7249, %v7251
  %v7263 = vsel %vm177, %v7251, %v7253
  %v7264 = vsel %vm177, %v7253, %v7255
  %v7265 = vsel %vm177, %v7255, %v7257
  %v7266 = vsel %vm177, %v7257, %v7259
  %v7267 = vsel %vm177, %v7259, %v7261
  %v7275 = vadd.f32 %v7227, %v7262
  %v7276 = vadd.f32 %v7228, %v7263
  %v7277 = vadd.f32 %v7229, %v7264
  %v7278 = vadd.f32 %v7230, %v7265
  %v7279 = vadd.f32 %v7231, %v7266
  %v7280 = vadd.f32 %v7232, %v7267
  %v7281 = vadd.f32 %v7233, %v7261
  %v7282 = vmul.f32 %v200, %v7140
  %v7283 = vmul.f32 %v200, %v7144
  %v7284 = vmul.f32 %v200, %v7148
  %v7285 = vmul.f32 %v200, %v7152
  %v7286 = vmul.f32 %v200, %v7156
  %v7287 = vmul.f32 %v200, %v7160
  %v7288 = vmul.f32 %v200, %v7164
  %7296 = vrot.lane.b32.xlu0 %v7282, 98
  %v7297 = vpop.permute.xlu0 %7296
  %7298 = vrot.lane.b32.xlu0 %v7283, 98
  %v7299 = vpop.permute.xlu0 %7298
  %7300 = vrot.lane.b32.xlu0 %v7284, 98
  %v7301 = vpop.permute.xlu0 %7300
  %7302 = vrot.lane.b32.xlu0 %v7285, 98
  %v7303 = vpop.permute.xlu0 %7302
  %7304 = vrot.lane.b32.xlu0 %v7286, 98
  %v7305 = vpop.permute.xlu0 %7304
  %7306 = vrot.lane.b32.xlu0 %v7287, 98
  %v7307 = vpop.permute.xlu0 %7306
  %7308 = vrot.lane.b32.xlu0 %v7288, 98
  %v7309 = vpop.permute.xlu0 %7308
  %v7310 = vsel %vm230, %v7297, %v7299
  %v7311 = vsel %vm230, %v7299, %v7301
  %v7312 = vsel %vm230, %v7301, %v7303
  %v7313 = vsel %vm230, %v7303, %v7305
  %v7314 = vsel %vm230, %v7305, %v7307
  %v7315 = vsel %vm230, %v7307, %v7309
  %v7323 = vadd.f32 %v7275, %v7310
  %v7324 = vadd.f32 %v7276, %v7311
  %v7325 = vadd.f32 %v7277, %v7312
  %v7326 = vadd.f32 %v7278, %v7313
  %v7327 = vadd.f32 %v7279, %v7314
  %v7328 = vadd.f32 %v7280, %v7315
  %v7329 = vadd.f32 %v7281, %v7309
  %v7330 = vmul.f32 %v253, %v7140
  %v7331 = vmul.f32 %v253, %v7144
  %v7332 = vmul.f32 %v253, %v7148
  %v7333 = vmul.f32 %v253, %v7152
  %v7334 = vmul.f32 %v253, %v7156
  %v7335 = vmul.f32 %v253, %v7160
  %v7336 = vmul.f32 %v253, %v7164
  %7344 = vrot.lane.b32.xlu0 %v7330, 97
  %v7345 = vpop.permute.xlu0 %7344
  %7346 = vrot.lane.b32.xlu0 %v7331, 97
  %v7347 = vpop.permute.xlu0 %7346
  %7348 = vrot.lane.b32.xlu0 %v7332, 97
  %v7349 = vpop.permute.xlu0 %7348
  %7350 = vrot.lane.b32.xlu0 %v7333, 97
  %v7351 = vpop.permute.xlu0 %7350
  %7352 = vrot.lane.b32.xlu0 %v7334, 97
  %v7353 = vpop.permute.xlu0 %7352
  %7354 = vrot.lane.b32.xlu0 %v7335, 97
  %v7355 = vpop.permute.xlu0 %7354
  %7356 = vrot.lane.b32.xlu0 %v7336, 97
  %v7357 = vpop.permute.xlu0 %7356
  %v7358 = vsel %vm283, %v7345, %v7347
  %v7359 = vsel %vm283, %v7347, %v7349
  %v7360 = vsel %vm283, %v7349, %v7351
  %v7361 = vsel %vm283, %v7351, %v7353
  %v7362 = vsel %vm283, %v7353, %v7355
  %v7363 = vsel %vm283, %v7355, %v7357
  %v7371 = vadd.f32 %v7323, %v7358
  %v7372 = vadd.f32 %v7324, %v7359
  %v7373 = vadd.f32 %v7325, %v7360
  %v7374 = vadd.f32 %v7326, %v7361
  %v7375 = vadd.f32 %v7327, %v7362
  %v7376 = vadd.f32 %v7328, %v7363
  %v7377 = vadd.f32 %v7329, %v7357
  %v7378 = vmul.f32 %v306, %v7140
  %v7379 = vmul.f32 %v306, %v7144
  %v7380 = vmul.f32 %v306, %v7148
  %v7381 = vmul.f32 %v306, %v7152
  %v7382 = vmul.f32 %v306, %v7156
  %v7383 = vmul.f32 %v306, %v7160
  %v7384 = vmul.f32 %v306, %v7164
  %7392 = vrot.lane.b32.xlu0 %v7378, 96
  %v7393 = vpop.permute.xlu0 %7392
  %7394 = vrot.lane.b32.xlu0 %v7379, 96
  %v7395 = vpop.permute.xlu0 %7394
  %7396 = vrot.lane.b32.xlu0 %v7380, 96
  %v7397 = vpop.permute.xlu0 %7396
  %7398 = vrot.lane.b32.xlu0 %v7381, 96
  %v7399 = vpop.permute.xlu0 %7398
  %7400 = vrot.lane.b32.xlu0 %v7382, 96
  %v7401 = vpop.permute.xlu0 %7400
  %7402 = vrot.lane.b32.xlu0 %v7383, 96
  %v7403 = vpop.permute.xlu0 %7402
  %7404 = vrot.lane.b32.xlu0 %v7384, 96
  %v7405 = vpop.permute.xlu0 %7404
  %v7406 = vsel %vm336, %v7393, %v7395
  %v7407 = vsel %vm336, %v7395, %v7397
  %v7408 = vsel %vm336, %v7397, %v7399
  %v7409 = vsel %vm336, %v7399, %v7401
  %v7410 = vsel %vm336, %v7401, %v7403
  %v7411 = vsel %vm336, %v7403, %v7405
  %v7419 = vadd.f32 %v7371, %v7406
  %v7420 = vadd.f32 %v7372, %v7407
  %v7421 = vadd.f32 %v7373, %v7408
  %v7422 = vadd.f32 %v7374, %v7409
  %v7423 = vadd.f32 %v7375, %v7410
  %v7424 = vadd.f32 %v7376, %v7411
  %v7425 = vadd.f32 %v7377, %v7405
  %v7426 = vlaneseq
  %v7427 = vshrl.u32 %v7426, 7
  %v7428 = vsub.s32 7, %v7427
  %v7429 = vrot.slane %v7135, %v7428
  %v7431 = vmul.f32 %v359, %v7140
  %v7432 = vmul.f32 %v359, %v7144
  %v7433 = vmul.f32 %v359, %v7148
  %v7434 = vmul.f32 %v359, %v7152
  %v7435 = vmul.f32 %v359, %v7156
  %v7436 = vmul.f32 %v359, %v7160
  %v7437 = vmul.f32 %v359, %v7164
  %v7438 = vmul.f32 %v359, %v7429
  %7447 = vrot.lane.b32.xlu0 %v7431, 68
  %v7448 = vpop.permute.xlu0 %7447
  %7449 = vrot.lane.b32.xlu0 %v7432, 68
  %v7450 = vpop.permute.xlu0 %7449
  %7451 = vrot.lane.b32.xlu0 %v7433, 68
  %v7452 = vpop.permute.xlu0 %7451
  %7453 = vrot.lane.b32.xlu0 %v7434, 68
  %v7454 = vpop.permute.xlu0 %7453
  %7455 = vrot.lane.b32.xlu0 %v7435, 68
  %v7456 = vpop.permute.xlu0 %7455
  %7457 = vrot.lane.b32.xlu0 %v7436, 68
  %v7458 = vpop.permute.xlu0 %7457
  %7459 = vrot.lane.b32.xlu0 %v7437, 68
  %v7460 = vpop.permute.xlu0 %7459
  %7461 = vrot.lane.b32.xlu0 %v7438, 68
  %v7462 = vpop.permute.xlu0 %7461
  %v7463 = vsel %vm398, %v7448, %v7450
  %v7464 = vsel %vm398, %v7450, %v7452
  %v7465 = vsel %vm398, %v7452, %v7454
  %v7466 = vsel %vm398, %v7454, %v7456
  %v7467 = vsel %vm398, %v7456, %v7458
  %v7468 = vsel %vm398, %v7458, %v7460
  %v7469 = vsel %vm398, %v7460, %v7462
  %v7477 = vadd.f32 %v7419, %v7463
  %v7478 = vadd.f32 %v7420, %v7464
  %v7479 = vadd.f32 %v7421, %v7465
  %v7480 = vadd.f32 %v7422, %v7466
  %v7481 = vadd.f32 %v7423, %v7467
  %v7482 = vadd.f32 %v7424, %v7468
  %v7483 = vadd.f32 %v7425, %v7469
  %v7484 = vmul.f32 %v422, %v7140
  %v7485 = vmul.f32 %v422, %v7144
  %v7486 = vmul.f32 %v422, %v7148
  %v7487 = vmul.f32 %v422, %v7152
  %v7488 = vmul.f32 %v422, %v7156
  %v7489 = vmul.f32 %v422, %v7160
  %v7490 = vmul.f32 %v422, %v7164
  %v7491 = vmul.f32 %v422, %v7429
  %7500 = vrot.lane.b32.xlu0 %v7484, 67
  %v7501 = vpop.permute.xlu0 %7500
  %7502 = vrot.lane.b32.xlu0 %v7485, 67
  %v7503 = vpop.permute.xlu0 %7502
  %7504 = vrot.lane.b32.xlu0 %v7486, 67
  %v7505 = vpop.permute.xlu0 %7504
  %7506 = vrot.lane.b32.xlu0 %v7487, 67
  %v7507 = vpop.permute.xlu0 %7506
  %7508 = vrot.lane.b32.xlu0 %v7488, 67
  %v7509 = vpop.permute.xlu0 %7508
  %7510 = vrot.lane.b32.xlu0 %v7489, 67
  %v7511 = vpop.permute.xlu0 %7510
  %7512 = vrot.lane.b32.xlu0 %v7490, 67
  %v7513 = vpop.permute.xlu0 %7512
  %7514 = vrot.lane.b32.xlu0 %v7491, 67
  %v7515 = vpop.permute.xlu0 %7514
  %v7516 = vsel %vm456, %v7501, %v7503
  %v7517 = vsel %vm456, %v7503, %v7505
  %v7518 = vsel %vm456, %v7505, %v7507
  %v7519 = vsel %vm456, %v7507, %v7509
  %v7520 = vsel %vm456, %v7509, %v7511
  %v7521 = vsel %vm456, %v7511, %v7513
  %v7522 = vsel %vm456, %v7513, %v7515
  %v7530 = vadd.f32 %v7477, %v7516
  %v7531 = vadd.f32 %v7478, %v7517
  %v7532 = vadd.f32 %v7479, %v7518
  %v7533 = vadd.f32 %v7480, %v7519
  %v7534 = vadd.f32 %v7481, %v7520
  %v7535 = vadd.f32 %v7482, %v7521
  %v7536 = vadd.f32 %v7483, %v7522
  %v7537 = vmul.f32 %v480, %v7140
  %v7538 = vmul.f32 %v480, %v7144
  %v7539 = vmul.f32 %v480, %v7148
  %v7540 = vmul.f32 %v480, %v7152
  %v7541 = vmul.f32 %v480, %v7156
  %v7542 = vmul.f32 %v480, %v7160
  %v7543 = vmul.f32 %v480, %v7164
  %v7544 = vmul.f32 %v480, %v7429
  %7553 = vrot.lane.b32.xlu0 %v7537, 66
  %v7554 = vpop.permute.xlu0 %7553
  %7555 = vrot.lane.b32.xlu0 %v7538, 66
  %v7556 = vpop.permute.xlu0 %7555
  %7557 = vrot.lane.b32.xlu0 %v7539, 66
  %v7558 = vpop.permute.xlu0 %7557
  %7559 = vrot.lane.b32.xlu0 %v7540, 66
  %v7560 = vpop.permute.xlu0 %7559
  %7561 = vrot.lane.b32.xlu0 %v7541, 66
  %v7562 = vpop.permute.xlu0 %7561
  %7563 = vrot.lane.b32.xlu0 %v7542, 66
  %v7564 = vpop.permute.xlu0 %7563
  %7565 = vrot.lane.b32.xlu0 %v7543, 66
  %v7566 = vpop.permute.xlu0 %7565
  %7567 = vrot.lane.b32.xlu0 %v7544, 66
  %v7568 = vpop.permute.xlu0 %7567
  %v7569 = vsel %vm514, %v7554, %v7556
  %v7570 = vsel %vm514, %v7556, %v7558
  %v7571 = vsel %vm514, %v7558, %v7560
  %v7572 = vsel %vm514, %v7560, %v7562
  %v7573 = vsel %vm514, %v7562, %v7564
  %v7574 = vsel %vm514, %v7564, %v7566
  %v7575 = vsel %vm514, %v7566, %v7568
  %v7583 = vadd.f32 %v7530, %v7569
  %v7584 = vadd.f32 %v7531, %v7570
  %v7585 = vadd.f32 %v7532, %v7571
  %v7586 = vadd.f32 %v7533, %v7572
  %v7587 = vadd.f32 %v7534, %v7573
  %v7588 = vadd.f32 %v7535, %v7574
  %v7589 = vadd.f32 %v7536, %v7575
  %v7590 = vadd.f32 %v7583, %v539
  %v7591 = vadd.f32 %v7584, %v539
  %v7592 = vadd.f32 %v7585, %v539
  %v7593 = vadd.f32 %v7586, %v539
  %v7594 = vadd.f32 %v7587, %v539
  %v7595 = vadd.f32 %v7588, %v539
  %v7596 = vadd.f32 %v7589, %v539
  %vm7597 = vcmp.gt.f32.partialorder %v7590, 0.0
  %vm7598 = vcmp.gt.f32.partialorder %v7591, 0.0
  %vm7599 = vcmp.gt.f32.partialorder %v7592, 0.0
  %vm7600 = vcmp.gt.f32.partialorder %v7593, 0.0
  %vm7601 = vcmp.gt.f32.partialorder %v7594, 0.0
  %vm7602 = vcmp.gt.f32.partialorder %v7595, 0.0
  %vm7603 = vcmp.gt.f32.partialorder %v7596, 0.0
  %v7604 = vmul.f32 %v555, %v7590
  %v7605 = vmul.f32 %v555, %v7591
  %v7606 = vmul.f32 %v555, %v7592
  %v7607 = vmul.f32 %v555, %v7593
  %v7608 = vmul.f32 %v555, %v7594
  %v7609 = vmul.f32 %v555, %v7595
  %v7610 = vmul.f32 %v555, %v7596
  %v7611 = vsel %vm7597, %v7590, %v7604
  %v7612 = vsel %vm7598, %v7591, %v7605
  %v7613 = vsel %vm7599, %v7592, %v7606
  %v7614 = vsel %vm7600, %v7593, %v7607
  %v7615 = vsel %vm7601, %v7594, %v7608
  %v7616 = vsel %vm7602, %v7595, %v7609
  %v7617 = vsel %vm7603, %v7596, %v7610
  %7625 = vrot.lane.b32.xlu0 %v7611, 127
  %v7626 = vpop.permute.xlu0 %7625
  %7627 = vrot.lane.b32.xlu0 %v7612, 127
  %v7628 = vpop.permute.xlu0 %7627
  %7629 = vrot.lane.b32.xlu0 %v7613, 127
  %v7630 = vpop.permute.xlu0 %7629
  %7631 = vrot.lane.b32.xlu0 %v7614, 127
  %v7632 = vpop.permute.xlu0 %7631
  %7633 = vrot.lane.b32.xlu0 %v7615, 127
  %v7634 = vpop.permute.xlu0 %7633
  %7635 = vrot.lane.b32.xlu0 %v7616, 127
  %v7636 = vpop.permute.xlu0 %7635
  %7637 = vrot.lane.b32.xlu0 %v7617, 127
  %v7638 = vpop.permute.xlu0 %7637
  %v7639 = vsel %vm124, %v7626, %v7628
  %v7640 = vsel %vm124, %v7628, %v7630
  %v7641 = vsel %vm124, %v7630, %v7632
  %v7642 = vsel %vm124, %v7632, %v7634
  %v7643 = vsel %vm124, %v7634, %v7636
  %v7644 = vsel %vm124, %v7636, %v7638
  %v7652 = vmax.f32 %v7611, %v7639
  %v7653 = vmax.f32 %v7612, %v7640
  %v7654 = vmax.f32 %v7613, %v7641
  %v7655 = vmax.f32 %v7614, %v7642
  %v7656 = vmax.f32 %v7615, %v7643
  %v7657 = vmax.f32 %v7616, %v7644
  %v7658 = vmax.f32 %v7617, %v7638
  %7666 = vrot.lane.b32.xlu0 %v7652, 98
  %v7667 = vpop.permute.xlu0 %7666
  %7668 = vrot.lane.b32.xlu0 %v7653, 98
  %v7669 = vpop.permute.xlu0 %7668
  %7670 = vrot.lane.b32.xlu0 %v7654, 98
  %v7671 = vpop.permute.xlu0 %7670
  %7672 = vrot.lane.b32.xlu0 %v7655, 98
  %v7673 = vpop.permute.xlu0 %7672
  %7674 = vrot.lane.b32.xlu0 %v7656, 98
  %v7675 = vpop.permute.xlu0 %7674
  %7676 = vrot.lane.b32.xlu0 %v7657, 98
  %v7677 = vpop.permute.xlu0 %7676
  %7678 = vrot.lane.b32.xlu0 %v7658, 98
  %v7679 = vpop.permute.xlu0 %7678
  %v7680 = vsel %vm230, %v7667, %v7669
  %v7681 = vsel %vm230, %v7669, %v7671
  %v7682 = vsel %vm230, %v7671, %v7673
  %v7683 = vsel %vm230, %v7673, %v7675
  %v7684 = vsel %vm230, %v7675, %v7677
  %v7685 = vsel %vm230, %v7677, %v7679
  %v7693 = vmax.f32 %v7652, %v7680
  %v7694 = vmax.f32 %v7653, %v7681
  %v7695 = vmax.f32 %v7654, %v7682
  %v7696 = vmax.f32 %v7655, %v7683
  %v7697 = vmax.f32 %v7656, %v7684
  %v7698 = vmax.f32 %v7657, %v7685
  %v7699 = vmax.f32 %v7658, %v7679
  %7706 = vrot.lane.b32.xlu0 %v7693, 126
  %v7707 = vpop.permute.xlu0 %7706
  %7708 = vrot.lane.b32.xlu0 %v7694, 126
  %v7709 = vpop.permute.xlu0 %7708
  %7710 = vrot.lane.b32.xlu0 %v7695, 126
  %v7711 = vpop.permute.xlu0 %7710
  %7712 = vrot.lane.b32.xlu0 %v7696, 126
  %v7713 = vpop.permute.xlu0 %7712
  %7714 = vrot.lane.b32.xlu0 %v7697, 126
  %v7715 = vpop.permute.xlu0 %7714
  %7716 = vrot.lane.b32.xlu0 %v7698, 126
  %v7717 = vpop.permute.xlu0 %7716
  %v7718 = vsel %vm177, %v7707, %v7709
  %v7719 = vsel %vm177, %v7709, %v7711
  %v7720 = vsel %vm177, %v7711, %v7713
  %v7721 = vsel %vm177, %v7713, %v7715
  %v7722 = vsel %vm177, %v7715, %v7717
  %7729 = vrot.lane.b32.xlu0 %v7693, 124
  %v7730 = vpop.permute.xlu0 %7729
  %7731 = vrot.lane.b32.xlu0 %v7694, 124
  %v7732 = vpop.permute.xlu0 %7731
  %7733 = vrot.lane.b32.xlu0 %v7695, 124
  %v7734 = vpop.permute.xlu0 %7733
  %7735 = vrot.lane.b32.xlu0 %v7696, 124
  %v7736 = vpop.permute.xlu0 %7735
  %7737 = vrot.lane.b32.xlu0 %v7697, 124
  %v7738 = vpop.permute.xlu0 %7737
  %7739 = vrot.lane.b32.xlu0 %v7698, 124
  %v7740 = vpop.permute.xlu0 %7739
  %v7741 = vsel %vm693, %v7730, %v7732
  %v7742 = vsel %vm693, %v7732, %v7734
  %v7743 = vsel %vm693, %v7734, %v7736
  %v7744 = vsel %vm693, %v7736, %v7738
  %v7745 = vsel %vm693, %v7738, %v7740
  %7752 = vrot.lane.b32.xlu0 %v7693, 68
  %v7753 = vpop.permute.xlu0 %7752
  %7754 = vrot.lane.b32.xlu0 %v7694, 68
  %v7755 = vpop.permute.xlu0 %7754
  %7756 = vrot.lane.b32.xlu0 %v7695, 68
  %v7757 = vpop.permute.xlu0 %7756
  %7758 = vrot.lane.b32.xlu0 %v7696, 68
  %v7759 = vpop.permute.xlu0 %7758
  %7760 = vrot.lane.b32.xlu0 %v7697, 68
  %v7761 = vpop.permute.xlu0 %7760
  %7762 = vrot.lane.b32.xlu0 %v7698, 68
  %v7763 = vpop.permute.xlu0 %7762
  %v7764 = vsel %vm398, %v7753, %v7755
  %v7765 = vsel %vm398, %v7755, %v7757
  %v7766 = vsel %vm398, %v7757, %v7759
  %v7767 = vsel %vm398, %v7759, %v7761
  %v7768 = vsel %vm398, %v7761, %v7763
  %7775 = vrot.lane.b32.xlu0 %v7693, 66
  %v7776 = vpop.permute.xlu0 %7775
  %7777 = vrot.lane.b32.xlu0 %v7694, 66
  %v7778 = vpop.permute.xlu0 %7777
  %7779 = vrot.lane.b32.xlu0 %v7695, 66
  %v7780 = vpop.permute.xlu0 %7779
  %7781 = vrot.lane.b32.xlu0 %v7696, 66
  %v7782 = vpop.permute.xlu0 %7781
  %7783 = vrot.lane.b32.xlu0 %v7697, 66
  %v7784 = vpop.permute.xlu0 %7783
  %7785 = vrot.lane.b32.xlu0 %v7698, 66
  %v7786 = vpop.permute.xlu0 %7785
  %v7787 = vsel %vm514, %v7776, %v7778
  %v7788 = vsel %vm514, %v7778, %v7780
  %v7789 = vsel %vm514, %v7780, %v7782
  %v7790 = vsel %vm514, %v7782, %v7784
  %v7791 = vsel %vm514, %v7784, %v7786
  %7798 = vrot.lane.b32.xlu0 %v7693, 64
  %v7799 = vpop.permute.xlu0 %7798
  %7800 = vrot.lane.b32.xlu0 %v7694, 64
  %v7801 = vpop.permute.xlu0 %7800
  %7802 = vrot.lane.b32.xlu0 %v7695, 64
  %v7803 = vpop.permute.xlu0 %7802
  %7804 = vrot.lane.b32.xlu0 %v7696, 64
  %v7805 = vpop.permute.xlu0 %7804
  %7806 = vrot.lane.b32.xlu0 %v7697, 64
  %v7807 = vpop.permute.xlu0 %7806
  %7808 = vrot.lane.b32.xlu0 %v7698, 64
  %v7809 = vpop.permute.xlu0 %7808
  %v7810 = vsel %vm763, %v7799, %v7801
  %v7811 = vsel %vm763, %v7801, %v7803
  %v7812 = vsel %vm763, %v7803, %v7805
  %v7813 = vsel %vm763, %v7805, %v7807
  %v7814 = vsel %vm763, %v7807, %v7809
  %7822 = vrot.lane.b32.xlu0 %v7693, 8
  %v7823 = vpop.permute.xlu0 %7822
  %7824 = vrot.lane.b32.xlu0 %v7694, 8
  %v7825 = vpop.permute.xlu0 %7824
  %7826 = vrot.lane.b32.xlu0 %v7695, 8
  %v7827 = vpop.permute.xlu0 %7826
  %7828 = vrot.lane.b32.xlu0 %v7696, 8
  %v7829 = vpop.permute.xlu0 %7828
  %7830 = vrot.lane.b32.xlu0 %v7697, 8
  %v7831 = vpop.permute.xlu0 %7830
  %7832 = vrot.lane.b32.xlu0 %v7698, 8
  %v7833 = vpop.permute.xlu0 %7832
  %7834 = vrot.lane.b32.xlu0 %v7699, 8
  %v7835 = vpop.permute.xlu0 %7834
  %v7836 = vsel %vm790, %v7823, %v7825
  %v7837 = vsel %vm790, %v7825, %v7827
  %v7838 = vsel %vm790, %v7827, %v7829
  %v7839 = vsel %vm790, %v7829, %v7831
  %v7840 = vsel %vm790, %v7831, %v7833
  %v7841 = vsel %vm790, %v7833, %v7835
  %7848 = vrot.lane.b32.xlu0 %v7693, 6
  %v7849 = vpop.permute.xlu0 %7848
  %7850 = vrot.lane.b32.xlu0 %v7694, 6
  %v7851 = vpop.permute.xlu0 %7850
  %7852 = vrot.lane.b32.xlu0 %v7695, 6
  %v7853 = vpop.permute.xlu0 %7852
  %7854 = vrot.lane.b32.xlu0 %v7696, 6
  %v7855 = vpop.permute.xlu0 %7854
  %7856 = vrot.lane.b32.xlu0 %v7697, 6
  %v7857 = vpop.permute.xlu0 %7856
  %7858 = vrot.lane.b32.xlu0 %v7698, 6
  %v7859 = vpop.permute.xlu0 %7858
  %7860 = vrot.lane.b32.xlu0 %v7699, 6
  %v7861 = vpop.permute.xlu0 %7860
  %v7862 = vsel %vm817, %v7849, %v7851
  %v7863 = vsel %vm817, %v7851, %v7853
  %v7864 = vsel %vm817, %v7853, %v7855
  %v7865 = vsel %vm817, %v7855, %v7857
  %v7866 = vsel %vm817, %v7857, %v7859
  %v7867 = vsel %vm817, %v7859, %v7861
  %7874 = vrot.lane.b32.xlu0 %v7693, 4
  %v7875 = vpop.permute.xlu0 %7874
  %7876 = vrot.lane.b32.xlu0 %v7694, 4
  %v7877 = vpop.permute.xlu0 %7876
  %7878 = vrot.lane.b32.xlu0 %v7695, 4
  %v7879 = vpop.permute.xlu0 %7878
  %7880 = vrot.lane.b32.xlu0 %v7696, 4
  %v7881 = vpop.permute.xlu0 %7880
  %7882 = vrot.lane.b32.xlu0 %v7697, 4
  %v7883 = vpop.permute.xlu0 %7882
  %7884 = vrot.lane.b32.xlu0 %v7698, 4
  %v7885 = vpop.permute.xlu0 %7884
  %7886 = vrot.lane.b32.xlu0 %v7699, 4
  %v7887 = vpop.permute.xlu0 %7886
  %v7888 = vsel %vm844, %v7875, %v7877
  %v7889 = vsel %vm844, %v7877, %v7879
  %v7890 = vsel %vm844, %v7879, %v7881
  %v7891 = vsel %vm844, %v7881, %v7883
  %v7892 = vsel %vm844, %v7883, %v7885
  %v7893 = vsel %vm844, %v7885, %v7887
  %7900 = vmatprep.subr.mxu0 %v7694
  %7901 = vmatpush1.msra.mxu0 %v7693
  %7902 = vmatprep.subr.mxu0 %v7719
  %7903 = vmatpush1.msra.mxu0 %v7718
  %7904 = vmatprep.subr.mxu0 %v7742
  %7905 = vmatpush1.msra.mxu0 %v7741
  %7906 = vmatprep.subr.mxu0 %v7765
  %7907 = vmatpush1.msra.mxu0 %v7764
  %7908 = vmatprep.subr.mxu0 %v7788
  %7909 = vmatpush1.msra.mxu0 %v7787
  %7910 = vmatprep.subr.mxu0 %v7811
  %7911 = vmatpush1.msra.mxu0 %v7810
  %7912 = vmatprep.subr.mxu0 %v7837
  %7913 = vmatpush1.msra.mxu0 %v7836
  %7914 = vmatprep.subr.mxu0 %v7863
  %7915 = vmatpush1.msra.mxu0 %v7862
  %7916 = vmatprep.subr.mxu0 %v7889
  %7917 = vmatpush1.msra.mxu0 %v7888
  %7918 = vmatprep.subr.mxu0 0.0
  %7919 = vmatpush1.msra.mxu0 0.0
  %7920 = vmatprep.subr.mxu0 0.0
  %7921 = vmatpush1.msra.mxu0 0.0
  %7922 = vmatprep.subr.mxu0 0.0
  %7923 = vmatpush1.msra.mxu0 0.0
  %7924 = vmatprep.subr.mxu0 0.0
  %7925 = vmatpush1.msra.mxu0 0.0
  %7926 = vmatprep.subr.mxu0 0.0
  %7927 = vmatpush1.msra.mxu0 0.0
  %7928 = vmatprep.subr.mxu0 0.0
  %7929 = vmatpush1.msra.mxu0 0.0
  %7930 = vmatprep.subr.mxu0 0.0
  %7931 = vmatpush1.msra.mxu0 0.0
  %7932 = vmatprep.subr.mxu0 0.0
  %7933 = vmatpush1.msra.mxu0 0.0
  %7934 = vmatprep.subr.mxu0 0.0
  %7935 = vmatpush1.msra.mxu0 0.0
  %7936 = vmatprep.subr.mxu0 0.0
  %7937 = vmatpush1.msra.mxu0 0.0
  %7938 = vmatprep.subr.mxu0 0.0
  %7939 = vmatpush1.msra.mxu0 0.0
  %7940 = vmatprep.subr.mxu0 0.0
  %7941 = vmatpush1.msra.mxu0 0.0
  %7942 = vmatprep.subr.mxu0 0.0
  %7943 = vmatpush1.msra.mxu0 0.0
  %7944 = vmatprep.subr.mxu0 0.0
  %7945 = vmatpush1.msra.mxu0 0.0
  %7946 = vmatprep.subr.mxu0 0.0
  %7947 = vmatpush1.msra.mxu0 0.0
  %7948 = vmatprep.subr.mxu0 0.0
  %7949 = vmatpush1.msra.mxu0 0.0
  %7950 = vmatprep.subr.mxu0 0.0
  %7951 = vmatpush1.msra.mxu0 0.0
  %7952 = vmatprep.subr.mxu0 0.0
  %7953 = vmatpush1.msra.mxu0 0.0
  %7954 = vmatprep.subr.mxu0 0.0
  %7955 = vmatpush1.msra.mxu0 0.0
  %7956 = vmatprep.subr.mxu0 0.0
  %7957 = vmatpush1.msra.mxu0 0.0
  %7958 = vmatprep.subr.mxu0 0.0
  %7959 = vmatpush1.msra.mxu0 0.0
  %7960 = vmatprep.subr.mxu0 0.0
  %7961 = vmatpush1.msra.mxu0 0.0
  %7962 = vmatprep.subr.mxu0 0.0
  %7963 = vmatpush1.msra.mxu0 0.0
  %7964 = vmatprep.mubr.f32.mxu0 0.0
  %7965 = vmatmul.mubr.f32.gmra.mrb[0].mxu0 %v869
  %v7966 = vpop.f32.mrb[0].mxu0
  %v7967 = vadd.f32 %v860, %v7966
  %v7968 = vpop.f32.mrb[0].mxu0
  %v7969 = vadd.f32 %v860, %v7968
  %7970 = vmatprep.mubr.f32.mxu0 0.0
  %7971 = vmatmul.mubr.f32.gmra.mrb[0].mxu0 %v872
  %v7972 = vpop.f32.mrb[0].mxu0
  %v7973 = vadd.f32 %v865, %v7972
  %v7974 = vpop.f32.mrb[0].mxu0
  %v7975 = vadd.f32 %v865, %v7974
  %7976 = vdwg.mxu0
  %7977 = vmatprep.subr.mxu0 %v7696
  %7978 = vmatpush1.msra.mxu0 %v7695
  %7979 = vmatprep.subr.mxu0 %v7721
  %7980 = vmatpush1.msra.mxu0 %v7720
  %7981 = vmatprep.subr.mxu0 %v7744
  %7982 = vmatpush1.msra.mxu0 %v7743
  %7983 = vmatprep.subr.mxu0 %v7767
  %7984 = vmatpush1.msra.mxu0 %v7766
  %7985 = vmatprep.subr.mxu0 %v7790
  %7986 = vmatpush1.msra.mxu0 %v7789
  %7987 = vmatprep.subr.mxu0 %v7813
  %7988 = vmatpush1.msra.mxu0 %v7812
  %7989 = vmatprep.subr.mxu0 %v7839
  %7990 = vmatpush1.msra.mxu0 %v7838
  %7991 = vmatprep.subr.mxu0 %v7865
  %7992 = vmatpush1.msra.mxu0 %v7864
  %7993 = vmatprep.subr.mxu0 %v7891
  %7994 = vmatpush1.msra.mxu0 %v7890
  %7995 = vmatprep.subr.mxu0 0.0
  %7996 = vmatpush1.msra.mxu0 0.0
  %7997 = vmatprep.subr.mxu0 0.0
  %7998 = vmatpush1.msra.mxu0 0.0
  %7999 = vmatprep.subr.mxu0 0.0
  %8000 = vmatpush1.msra.mxu0 0.0
  %8001 = vmatprep.subr.mxu0 0.0
  %8002 = vmatpush1.msra.mxu0 0.0
  %8003 = vmatprep.subr.mxu0 0.0
  %8004 = vmatpush1.msra.mxu0 0.0
  %8005 = vmatprep.subr.mxu0 0.0
  %8006 = vmatpush1.msra.mxu0 0.0
  %8007 = vmatprep.subr.mxu0 0.0
  %8008 = vmatpush1.msra.mxu0 0.0
  %8009 = vmatprep.subr.mxu0 0.0
  %8010 = vmatpush1.msra.mxu0 0.0
  %8011 = vmatprep.subr.mxu0 0.0
  %8012 = vmatpush1.msra.mxu0 0.0
  %8013 = vmatprep.subr.mxu0 0.0
  %8014 = vmatpush1.msra.mxu0 0.0
  %8015 = vmatprep.subr.mxu0 0.0
  %8016 = vmatpush1.msra.mxu0 0.0
  %8017 = vmatprep.subr.mxu0 0.0
  %8018 = vmatpush1.msra.mxu0 0.0
  %8019 = vmatprep.subr.mxu0 0.0
  %8020 = vmatpush1.msra.mxu0 0.0
  %8021 = vmatprep.subr.mxu0 0.0
  %8022 = vmatpush1.msra.mxu0 0.0
  %8023 = vmatprep.subr.mxu0 0.0
  %8024 = vmatpush1.msra.mxu0 0.0
  %8025 = vmatprep.subr.mxu0 0.0
  %8026 = vmatpush1.msra.mxu0 0.0
  %8027 = vmatprep.subr.mxu0 0.0
  %8028 = vmatpush1.msra.mxu0 0.0
  %8029 = vmatprep.subr.mxu0 0.0
  %8030 = vmatpush1.msra.mxu0 0.0
  %8031 = vmatprep.subr.mxu0 0.0
  %8032 = vmatpush1.msra.mxu0 0.0
  %8033 = vmatprep.subr.mxu0 0.0
  %8034 = vmatpush1.msra.mxu0 0.0
  %8035 = vmatprep.subr.mxu0 0.0
  %8036 = vmatpush1.msra.mxu0 0.0
  %8037 = vmatprep.subr.mxu0 0.0
  %8038 = vmatpush1.msra.mxu0 0.0
  %8039 = vmatprep.subr.mxu0 0.0
  %8040 = vmatpush1.msra.mxu0 0.0
  %8041 = vmatprep.mubr.f32.mxu0 0.0
  %8042 = vmatmul.mubr.f32.gmra.mrb[0].mxu0 %v869
  %v8043 = vpop.f32.mrb[0].mxu0
  %v8044 = vadd.f32 %v860, %v8043
  %v8045 = vpop.f32.mrb[0].mxu0
  %v8046 = vadd.f32 %v860, %v8045
  %8047 = vmatprep.mubr.f32.mxu0 0.0
  %8048 = vmatmul.mubr.f32.gmra.mrb[0].mxu0 %v872
  %v8049 = vpop.f32.mrb[0].mxu0
  %v8050 = vadd.f32 %v865, %v8049
  %v8051 = vpop.f32.mrb[0].mxu0
  %v8052 = vadd.f32 %v865, %v8051
  %8053 = vdwg.mxu0
  %8054 = vmatprep.subr.mxu0 %v7698
  %8055 = vmatpush1.msra.mxu0 %v7697
  %8056 = vmatprep.subr.mxu0 %v7717
  %8057 = vmatpush1.msra.mxu0 %v7722
  %8058 = vmatprep.subr.mxu0 %v7740
  %8059 = vmatpush1.msra.mxu0 %v7745
  %8060 = vmatprep.subr.mxu0 %v7763
  %8061 = vmatpush1.msra.mxu0 %v7768
  %8062 = vmatprep.subr.mxu0 %v7786
  %8063 = vmatpush1.msra.mxu0 %v7791
  %8064 = vmatprep.subr.mxu0 %v7809
  %8065 = vmatpush1.msra.mxu0 %v7814
  %8066 = vmatprep.subr.mxu0 %v7841
  %8067 = vmatpush1.msra.mxu0 %v7840
  %8068 = vmatprep.subr.mxu0 %v7867
  %8069 = vmatpush1.msra.mxu0 %v7866
  %8070 = vmatprep.subr.mxu0 %v7893
  %8071 = vmatpush1.msra.mxu0 %v7892
  %8072 = vmatprep.subr.mxu0 0.0
  %8073 = vmatpush1.msra.mxu0 0.0
  %8074 = vmatprep.subr.mxu0 0.0
  %8075 = vmatpush1.msra.mxu0 0.0
  %8076 = vmatprep.subr.mxu0 0.0
  %8077 = vmatpush1.msra.mxu0 0.0
  %8078 = vmatprep.subr.mxu0 0.0
  %8079 = vmatpush1.msra.mxu0 0.0
  %8080 = vmatprep.subr.mxu0 0.0
  %8081 = vmatpush1.msra.mxu0 0.0
  %8082 = vmatprep.subr.mxu0 0.0
  %8083 = vmatpush1.msra.mxu0 0.0
  %8084 = vmatprep.subr.mxu0 0.0
  %8085 = vmatpush1.msra.mxu0 0.0
  %8086 = vmatprep.subr.mxu0 0.0
  %8087 = vmatpush1.msra.mxu0 0.0
  %8088 = vmatprep.subr.mxu0 0.0
  %8089 = vmatpush1.msra.mxu0 0.0
  %8090 = vmatprep.subr.mxu0 0.0
  %8091 = vmatpush1.msra.mxu0 0.0
  %8092 = vmatprep.subr.mxu0 0.0
  %8093 = vmatpush1.msra.mxu0 0.0
  %8094 = vmatprep.subr.mxu0 0.0
  %8095 = vmatpush1.msra.mxu0 0.0
  %8096 = vmatprep.subr.mxu0 0.0
  %8097 = vmatpush1.msra.mxu0 0.0
  %8098 = vmatprep.subr.mxu0 0.0
  %8099 = vmatpush1.msra.mxu0 0.0
  %8100 = vmatprep.subr.mxu0 0.0
  %8101 = vmatpush1.msra.mxu0 0.0
  %8102 = vmatprep.subr.mxu0 0.0
  %8103 = vmatpush1.msra.mxu0 0.0
  %8104 = vmatprep.subr.mxu0 0.0
  %8105 = vmatpush1.msra.mxu0 0.0
  %8106 = vmatprep.subr.mxu0 0.0
  %8107 = vmatpush1.msra.mxu0 0.0
  %8108 = vmatprep.subr.mxu0 0.0
  %8109 = vmatpush1.msra.mxu0 0.0
  %8110 = vmatprep.subr.mxu0 0.0
  %8111 = vmatpush1.msra.mxu0 0.0
  %8112 = vmatprep.subr.mxu0 0.0
  %8113 = vmatpush1.msra.mxu0 0.0
  %8114 = vmatprep.subr.mxu0 0.0
  %8115 = vmatpush1.msra.mxu0 0.0
  %8116 = vmatprep.subr.mxu0 0.0
  %8117 = vmatpush1.msra.mxu0 0.0
  %8118 = vmatprep.mubr.f32.mxu0 0.0
  %8119 = vmatmul.mubr.f32.gmra.mrb[0].mxu0 %v869
  %v8120 = vpop.f32.mrb[0].mxu0
  %v8121 = vadd.f32 %v860, %v8120
  %v8122 = vpop.f32.mrb[0].mxu0
  %v8123 = vadd.f32 %v860, %v8122
  %8124 = vmatprep.mubr.f32.mxu0 0.0
  %8125 = vmatmul.mubr.f32.gmra.mrb[0].mxu0 %v872
  %v8126 = vpop.f32.mrb[0].mxu0
  %v8127 = vadd.f32 %v865, %v8126
  %v8128 = vpop.f32.mrb[0].mxu0
  %v8129 = vadd.f32 %v865, %v8128
  %8130 = vdwg.mxu0
  %vm8131 = vcmp.gt.f32.partialorder %v7967, 0.0
  %vm8132 = vcmp.gt.f32.partialorder %v7969, 0.0
  %vm8133 = vcmp.gt.f32.partialorder %v8044, 0.0
  %vm8134 = vcmp.gt.f32.partialorder %v8046, 0.0
  %vm8135 = vcmp.gt.f32.partialorder %v8121, 0.0
  %vm8136 = vcmp.gt.f32.partialorder %v8123, 0.0
  %vm8137 = vcmp.gt.f32.partialorder %v7973, 0.0
  %vm8138 = vcmp.gt.f32.partialorder %v7975, 0.0
  %vm8139 = vcmp.gt.f32.partialorder %v8050, 0.0
  %vm8140 = vcmp.gt.f32.partialorder %v8052, 0.0
  %vm8141 = vcmp.gt.f32.partialorder %v8127, 0.0
  %vm8142 = vcmp.gt.f32.partialorder %v8129, 0.0
  %v8143 = vmul.f32 %v555, %v7967
  %v8144 = vmul.f32 %v555, %v7969
  %v8145 = vmul.f32 %v555, %v8044
  %v8146 = vmul.f32 %v555, %v8046
  %v8147 = vmul.f32 %v555, %v8121
  %v8148 = vmul.f32 %v555, %v8123
  %v8149 = vmul.f32 %v555, %v7973
  %v8150 = vmul.f32 %v555, %v7975
  %v8151 = vmul.f32 %v555, %v8050
  %v8152 = vmul.f32 %v555, %v8052
  %v8153 = vmul.f32 %v555, %v8127
  %v8154 = vmul.f32 %v555, %v8129
  %v8155 = vsel %vm8131, %v7967, %v8143
  %v8156 = vsel %vm8132, %v7969, %v8144
  %v8157 = vsel %vm8133, %v8044, %v8145
  %v8158 = vsel %vm8134, %v8046, %v8146
  %v8159 = vsel %vm8135, %v8121, %v8147
  %v8160 = vsel %vm8136, %v8123, %v8148
  %v8161 = vsel %vm8137, %v7973, %v8149
  %v8162 = vsel %vm8138, %v7975, %v8150
  %v8163 = vsel %vm8139, %v8050, %v8151
  %v8164 = vsel %vm8140, %v8052, %v8152
  %v8165 = vsel %vm8141, %v8127, %v8153
  %v8166 = vsel %vm8142, %v8129, %v8154
  %8179 = vrot.lane.b32.xlu0 %v8155, 126
  %v8180 = vpop.permute.xlu0 %8179
  %8181 = vrot.lane.b32.xlu0 %v8156, 126
  %v8182 = vpop.permute.xlu0 %8181
  %8183 = vrot.lane.b32.xlu0 %v8157, 126
  %v8184 = vpop.permute.xlu0 %8183
  %8185 = vrot.lane.b32.xlu0 %v8158, 126
  %v8186 = vpop.permute.xlu0 %8185
  %8187 = vrot.lane.b32.xlu0 %v8159, 126
  %v8188 = vpop.permute.xlu0 %8187
  %8189 = vrot.lane.b32.xlu0 %v8160, 126
  %v8190 = vpop.permute.xlu0 %8189
  %8191 = vrot.lane.b32.xlu0 %v8161, 126
  %v8192 = vpop.permute.xlu0 %8191
  %8193 = vrot.lane.b32.xlu0 %v8162, 126
  %v8194 = vpop.permute.xlu0 %8193
  %8195 = vrot.lane.b32.xlu0 %v8163, 126
  %v8196 = vpop.permute.xlu0 %8195
  %8197 = vrot.lane.b32.xlu0 %v8164, 126
  %v8198 = vpop.permute.xlu0 %8197
  %8199 = vrot.lane.b32.xlu0 %v8165, 126
  %v8200 = vpop.permute.xlu0 %8199
  %8201 = vrot.lane.b32.xlu0 %v8166, 126
  %v8202 = vpop.permute.xlu0 %8201
  %v8203 = vsel %vm177, %v8180, %v8182
  %v8204 = vsel %vm177, %v8182, %v8184
  %v8205 = vsel %vm177, %v8184, %v8186
  %v8206 = vsel %vm177, %v8186, %v8188
  %v8207 = vsel %vm177, %v8188, %v8190
  %v8208 = vsel %vm177, %v8192, %v8194
  %v8209 = vsel %vm177, %v8194, %v8196
  %v8210 = vsel %vm177, %v8196, %v8198
  %v8211 = vsel %vm177, %v8198, %v8200
  %v8212 = vsel %vm177, %v8200, %v8202
  %v8225 = vmax.f32 %v8155, %v8203
  %v8226 = vmax.f32 %v8156, %v8204
  %v8227 = vmax.f32 %v8157, %v8205
  %v8228 = vmax.f32 %v8158, %v8206
  %v8229 = vmax.f32 %v8159, %v8207
  %v8230 = vmax.f32 %v8160, %v8190
  %v8231 = vmax.f32 %v8161, %v8208
  %v8232 = vmax.f32 %v8162, %v8209
  %v8233 = vmax.f32 %v8163, %v8210
  %v8234 = vmax.f32 %v8164, %v8211
  %v8235 = vmax.f32 %v8165, %v8212
  %v8236 = vmax.f32 %v8166, %v8202
  %8249 = vrot.lane.b32.xlu0 %v8225, 68
  %v8250 = vpop.permute.xlu0 %8249
  %8251 = vrot.lane.b32.xlu0 %v8226, 68
  %v8252 = vpop.permute.xlu0 %8251
  %8253 = vrot.lane.b32.xlu0 %v8227, 68
  %v8254 = vpop.permute.xlu0 %8253
  %8255 = vrot.lane.b32.xlu0 %v8228, 68
  %v8256 = vpop.permute.xlu0 %8255
  %8257 = vrot.lane.b32.xlu0 %v8229, 68
  %v8258 = vpop.permute.xlu0 %8257
  %8259 = vrot.lane.b32.xlu0 %v8230, 68
  %v8260 = vpop.permute.xlu0 %8259
  %8261 = vrot.lane.b32.xlu0 %v8231, 68
  %v8262 = vpop.permute.xlu0 %8261
  %8263 = vrot.lane.b32.xlu0 %v8232, 68
  %v8264 = vpop.permute.xlu0 %8263
  %8265 = vrot.lane.b32.xlu0 %v8233, 68
  %v8266 = vpop.permute.xlu0 %8265
  %8267 = vrot.lane.b32.xlu0 %v8234, 68
  %v8268 = vpop.permute.xlu0 %8267
  %8269 = vrot.lane.b32.xlu0 %v8235, 68
  %v8270 = vpop.permute.xlu0 %8269
  %8271 = vrot.lane.b32.xlu0 %v8236, 68
  %v8272 = vpop.permute.xlu0 %8271
  %v8273 = vsel %vm398, %v8250, %v8252
  %v8274 = vsel %vm398, %v8252, %v8254
  %v8275 = vsel %vm398, %v8254, %v8256
  %v8276 = vsel %vm398, %v8256, %v8258
  %v8277 = vsel %vm398, %v8258, %v8260
  %v8278 = vsel %vm398, %v8262, %v8264
  %v8279 = vsel %vm398, %v8264, %v8266
  %v8280 = vsel %vm398, %v8266, %v8268
  %v8281 = vsel %vm398, %v8268, %v8270
  %v8282 = vsel %vm398, %v8270, %v8272
  %v8293 = vmax.f32 %v8225, %v8273
  %v8294 = vmax.f32 %v8226, %v8274
  %v8295 = vmax.f32 %v8227, %v8275
  %v8296 = vmax.f32 %v8228, %v8276
  %v8297 = vmax.f32 %v8229, %v8277
  %v8298 = vmax.f32 %v8231, %v8278
  %v8299 = vmax.f32 %v8232, %v8279
  %v8300 = vmax.f32 %v8233, %v8280
  %v8301 = vmax.f32 %v8234, %v8281
  %v8302 = vmax.f32 %v8235, %v8282
  %s8303 = scalar_lea.vmem %s0, 7
  %v8304 = vld [vmem:[%s8303] ss:$8 sm:$0xf]
  %v8305 = vld [vmem:[%s8303] ss:$8 sm:$0xf0]
  %v8306 = vor.u32 %v8304, %v8305
  %v8308 = vlaneseq
  %v8309 = vshrl.u32 %v8308, 7
  %v8310 = vsub.s32 0, %v8309
  %v8311 = vrot.slane %v8306, %v8310
  %v8312 = vlaneseq
  %v8313 = vshrl.u32 %v8312, 7
  %v8314 = vsub.s32 1, %v8313
  %v8315 = vrot.slane %v8306, %v8314
  %v8316 = vlaneseq
  %v8317 = vshrl.u32 %v8316, 7
  %v8318 = vsub.s32 2, %v8317
  %v8319 = vrot.slane %v8306, %v8318
  %v8320 = vlaneseq
  %v8321 = vshrl.u32 %v8320, 7
  %v8322 = vsub.s32 3, %v8321
  %v8323 = vrot.slane %v8306, %v8322
  %v8324 = vlaneseq
  %v8325 = vshrl.u32 %v8324, 7
  %v8326 = vsub.s32 4, %v8325
  %v8327 = vrot.slane %v8306, %v8326
  %v8328 = vlaneseq
  %v8329 = vshrl.u32 %v8328, 7
  %v8330 = vsub.s32 5, %v8329
  %v8331 = vrot.slane %v8306, %v8330
  %v8332 = vlaneseq
  %v8333 = vshrl.u32 %v8332, 7
  %v8334 = vsub.s32 6, %v8333
  %v8335 = vrot.slane %v8306, %v8334
  %v8343 = vmul.f32 %v40, %v8311
  %v8344 = vmul.f32 %v40, %v8315
  %v8345 = vmul.f32 %v40, %v8319
  %v8346 = vmul.f32 %v40, %v8323
  %v8347 = vmul.f32 %v40, %v8327
  %v8348 = vmul.f32 %v40, %v8331
  %v8349 = vmul.f32 %v40, %v8335
  %v8350 = vadd.f32 %v8343, 0.0
  %v8351 = vadd.f32 %v8344, 0.0
  %v8352 = vadd.f32 %v8345, 0.0
  %v8353 = vadd.f32 %v8346, 0.0
  %v8354 = vadd.f32 %v8347, 0.0
  %v8355 = vadd.f32 %v8348, 0.0
  %v8356 = vadd.f32 %v8349, 0.0
  %v8357 = vmul.f32 %v94, %v8311
  %v8358 = vmul.f32 %v94, %v8315
  %v8359 = vmul.f32 %v94, %v8319
  %v8360 = vmul.f32 %v94, %v8323
  %v8361 = vmul.f32 %v94, %v8327
  %v8362 = vmul.f32 %v94, %v8331
  %v8363 = vmul.f32 %v94, %v8335
  %8371 = vrot.lane.b32.xlu0 %v8357, 127
  %v8372 = vpop.permute.xlu0 %8371
  %8373 = vrot.lane.b32.xlu0 %v8358, 127
  %v8374 = vpop.permute.xlu0 %8373
  %8375 = vrot.lane.b32.xlu0 %v8359, 127
  %v8376 = vpop.permute.xlu0 %8375
  %8377 = vrot.lane.b32.xlu0 %v8360, 127
  %v8378 = vpop.permute.xlu0 %8377
  %8379 = vrot.lane.b32.xlu0 %v8361, 127
  %v8380 = vpop.permute.xlu0 %8379
  %8381 = vrot.lane.b32.xlu0 %v8362, 127
  %v8382 = vpop.permute.xlu0 %8381
  %8383 = vrot.lane.b32.xlu0 %v8363, 127
  %v8384 = vpop.permute.xlu0 %8383
  %v8385 = vsel %vm124, %v8372, %v8374
  %v8386 = vsel %vm124, %v8374, %v8376
  %v8387 = vsel %vm124, %v8376, %v8378
  %v8388 = vsel %vm124, %v8378, %v8380
  %v8389 = vsel %vm124, %v8380, %v8382
  %v8390 = vsel %vm124, %v8382, %v8384
  %v8398 = vadd.f32 %v8350, %v8385
  %v8399 = vadd.f32 %v8351, %v8386
  %v8400 = vadd.f32 %v8352, %v8387
  %v8401 = vadd.f32 %v8353, %v8388
  %v8402 = vadd.f32 %v8354, %v8389
  %v8403 = vadd.f32 %v8355, %v8390
  %v8404 = vadd.f32 %v8356, %v8384
  %v8405 = vmul.f32 %v147, %v8311
  %v8406 = vmul.f32 %v147, %v8315
  %v8407 = vmul.f32 %v147, %v8319
  %v8408 = vmul.f32 %v147, %v8323
  %v8409 = vmul.f32 %v147, %v8327
  %v8410 = vmul.f32 %v147, %v8331
  %v8411 = vmul.f32 %v147, %v8335
  %8419 = vrot.lane.b32.xlu0 %v8405, 126
  %v8420 = vpop.permute.xlu0 %8419
  %8421 = vrot.lane.b32.xlu0 %v8406, 126
  %v8422 = vpop.permute.xlu0 %8421
  %8423 = vrot.lane.b32.xlu0 %v8407, 126
  %v8424 = vpop.permute.xlu0 %8423
  %8425 = vrot.lane.b32.xlu0 %v8408, 126
  %v8426 = vpop.permute.xlu0 %8425
  %8427 = vrot.lane.b32.xlu0 %v8409, 126
  %v8428 = vpop.permute.xlu0 %8427
  %8429 = vrot.lane.b32.xlu0 %v8410, 126
  %v8430 = vpop.permute.xlu0 %8429
  %8431 = vrot.lane.b32.xlu0 %v8411, 126
  %v8432 = vpop.permute.xlu0 %8431
  %v8433 = vsel %vm177, %v8420, %v8422
  %v8434 = vsel %vm177, %v8422, %v8424
  %v8435 = vsel %vm177, %v8424, %v8426
  %v8436 = vsel %vm177, %v8426, %v8428
  %v8437 = vsel %vm177, %v8428, %v8430
  %v8438 = vsel %vm177, %v8430, %v8432
  %v8446 = vadd.f32 %v8398, %v8433
  %v8447 = vadd.f32 %v8399, %v8434
  %v8448 = vadd.f32 %v8400, %v8435
  %v8449 = vadd.f32 %v8401, %v8436
  %v8450 = vadd.f32 %v8402, %v8437
  %v8451 = vadd.f32 %v8403, %v8438
  %v8452 = vadd.f32 %v8404, %v8432
  %v8453 = vmul.f32 %v200, %v8311
  %v8454 = vmul.f32 %v200, %v8315
  %v8455 = vmul.f32 %v200, %v8319
  %v8456 = vmul.f32 %v200, %v8323
  %v8457 = vmul.f32 %v200, %v8327
  %v8458 = vmul.f32 %v200, %v8331
  %v8459 = vmul.f32 %v200, %v8335
  %8467 = vrot.lane.b32.xlu0 %v8453, 98
  %v8468 = vpop.permute.xlu0 %8467
  %8469 = vrot.lane.b32.xlu0 %v8454, 98
  %v8470 = vpop.permute.xlu0 %8469
  %8471 = vrot.lane.b32.xlu0 %v8455, 98
  %v8472 = vpop.permute.xlu0 %8471
  %8473 = vrot.lane.b32.xlu0 %v8456, 98
  %v8474 = vpop.permute.xlu0 %8473
  %8475 = vrot.lane.b32.xlu0 %v8457, 98
  %v8476 = vpop.permute.xlu0 %8475
  %8477 = vrot.lane.b32.xlu0 %v8458, 98
  %v8478 = vpop.permute.xlu0 %8477
  %8479 = vrot.lane.b32.xlu0 %v8459, 98
  %v8480 = vpop.permute.xlu0 %8479
  %v8481 = vsel %vm230, %v8468, %v8470
  %v8482 = vsel %vm230, %v8470, %v8472
  %v8483 = vsel %vm230, %v8472, %v8474
  %v8484 = vsel %vm230, %v8474, %v8476
  %v8485 = vsel %vm230, %v8476, %v8478
  %v8486 = vsel %vm230, %v8478, %v8480
  %v8494 = vadd.f32 %v8446, %v8481
  %v8495 = vadd.f32 %v8447, %v8482
  %v8496 = vadd.f32 %v8448, %v8483
  %v8497 = vadd.f32 %v8449, %v8484
  %v8498 = vadd.f32 %v8450, %v8485
  %v8499 = vadd.f32 %v8451, %v8486
  %v8500 = vadd.f32 %v8452, %v8480
  %v8501 = vmul.f32 %v253, %v8311
  %v8502 = vmul.f32 %v253, %v8315
  %v8503 = vmul.f32 %v253, %v8319
  %v8504 = vmul.f32 %v253, %v8323
  %v8505 = vmul.f32 %v253, %v8327
  %v8506 = vmul.f32 %v253, %v8331
  %v8507 = vmul.f32 %v253, %v8335
  %8515 = vrot.lane.b32.xlu0 %v8501, 97
  %v8516 = vpop.permute.xlu0 %8515
  %8517 = vrot.lane.b32.xlu0 %v8502, 97
  %v8518 = vpop.permute.xlu0 %8517
  %8519 = vrot.lane.b32.xlu0 %v8503, 97
  %v8520 = vpop.permute.xlu0 %8519
  %8521 = vrot.lane.b32.xlu0 %v8504, 97
  %v8522 = vpop.permute.xlu0 %8521
  %8523 = vrot.lane.b32.xlu0 %v8505, 97
  %v8524 = vpop.permute.xlu0 %8523
  %8525 = vrot.lane.b32.xlu0 %v8506, 97
  %v8526 = vpop.permute.xlu0 %8525
  %8527 = vrot.lane.b32.xlu0 %v8507, 97
  %v8528 = vpop.permute.xlu0 %8527
  %v8529 = vsel %vm283, %v8516, %v8518
  %v8530 = vsel %vm283, %v8518, %v8520
  %v8531 = vsel %vm283, %v8520, %v8522
  %v8532 = vsel %vm283, %v8522, %v8524
  %v8533 = vsel %vm283, %v8524, %v8526
  %v8534 = vsel %vm283, %v8526, %v8528
  %v8542 = vadd.f32 %v8494, %v8529
  %v8543 = vadd.f32 %v8495, %v8530
  %v8544 = vadd.f32 %v8496, %v8531
  %v8545 = vadd.f32 %v8497, %v8532
  %v8546 = vadd.f32 %v8498, %v8533
  %v8547 = vadd.f32 %v8499, %v8534
  %v8548 = vadd.f32 %v8500, %v8528
  %v8549 = vmul.f32 %v306, %v8311
  %v8550 = vmul.f32 %v306, %v8315
  %v8551 = vmul.f32 %v306, %v8319
  %v8552 = vmul.f32 %v306, %v8323
  %v8553 = vmul.f32 %v306, %v8327
  %v8554 = vmul.f32 %v306, %v8331
  %v8555 = vmul.f32 %v306, %v8335
  %8563 = vrot.lane.b32.xlu0 %v8549, 96
  %v8564 = vpop.permute.xlu0 %8563
  %8565 = vrot.lane.b32.xlu0 %v8550, 96
  %v8566 = vpop.permute.xlu0 %8565
  %8567 = vrot.lane.b32.xlu0 %v8551, 96
  %v8568 = vpop.permute.xlu0 %8567
  %8569 = vrot.lane.b32.xlu0 %v8552, 96
  %v8570 = vpop.permute.xlu0 %8569
  %8571 = vrot.lane.b32.xlu0 %v8553, 96
  %v8572 = vpop.permute.xlu0 %8571
  %8573 = vrot.lane.b32.xlu0 %v8554, 96
  %v8574 = vpop.permute.xlu0 %8573
  %8575 = vrot.lane.b32.xlu0 %v8555, 96
  %v8576 = vpop.permute.xlu0 %8575
  %v8577 = vsel %vm336, %v8564, %v8566
  %v8578 = vsel %vm336, %v8566, %v8568
  %v8579 = vsel %vm336, %v8568, %v8570
  %v8580 = vsel %vm336, %v8570, %v8572
  %v8581 = vsel %vm336, %v8572, %v8574
  %v8582 = vsel %vm336, %v8574, %v8576
  %v8590 = vadd.f32 %v8542, %v8577
  %v8591 = vadd.f32 %v8543, %v8578
  %v8592 = vadd.f32 %v8544, %v8579
  %v8593 = vadd.f32 %v8545, %v8580
  %v8594 = vadd.f32 %v8546, %v8581
  %v8595 = vadd.f32 %v8547, %v8582
  %v8596 = vadd.f32 %v8548, %v8576
  %v8597 = vlaneseq
  %v8598 = vshrl.u32 %v8597, 7
  %v8599 = vsub.s32 7, %v8598
  %v8600 = vrot.slane %v8306, %v8599
  %v8602 = vmul.f32 %v359, %v8311
  %v8603 = vmul.f32 %v359, %v8315
  %v8604 = vmul.f32 %v359, %v8319
  %v8605 = vmul.f32 %v359, %v8323
  %v8606 = vmul.f32 %v359, %v8327
  %v8607 = vmul.f32 %v359, %v8331
  %v8608 = vmul.f32 %v359, %v8335
  %v8609 = vmul.f32 %v359, %v8600
  %8618 = vrot.lane.b32.xlu0 %v8602, 68
  %v8619 = vpop.permute.xlu0 %8618
  %8620 = vrot.lane.b32.xlu0 %v8603, 68
  %v8621 = vpop.permute.xlu0 %8620
  %8622 = vrot.lane.b32.xlu0 %v8604, 68
  %v8623 = vpop.permute.xlu0 %8622
  %8624 = vrot.lane.b32.xlu0 %v8605, 68
  %v8625 = vpop.permute.xlu0 %8624
  %8626 = vrot.lane.b32.xlu0 %v8606, 68
  %v8627 = vpop.permute.xlu0 %8626
  %8628 = vrot.lane.b32.xlu0 %v8607, 68
  %v8629 = vpop.permute.xlu0 %8628
  %8630 = vrot.lane.b32.xlu0 %v8608, 68
  %v8631 = vpop.permute.xlu0 %8630
  %8632 = vrot.lane.b32.xlu0 %v8609, 68
  %v8633 = vpop.permute.xlu0 %8632
  %v8634 = vsel %vm398, %v8619, %v8621
  %v8635 = vsel %vm398, %v8621, %v8623
  %v8636 = vsel %vm398, %v8623, %v8625
  %v8637 = vsel %vm398, %v8625, %v8627
  %v8638 = vsel %vm398, %v8627, %v8629
  %v8639 = vsel %vm398, %v8629, %v8631
  %v8640 = vsel %vm398, %v8631, %v8633
  %v8648 = vadd.f32 %v8590, %v8634
  %v8649 = vadd.f32 %v8591, %v8635
  %v8650 = vadd.f32 %v8592, %v8636
  %v8651 = vadd.f32 %v8593, %v8637
  %v8652 = vadd.f32 %v8594, %v8638
  %v8653 = vadd.f32 %v8595, %v8639
  %v8654 = vadd.f32 %v8596, %v8640
  %v8655 = vmul.f32 %v422, %v8311
  %v8656 = vmul.f32 %v422, %v8315
  %v8657 = vmul.f32 %v422, %v8319
  %v8658 = vmul.f32 %v422, %v8323
  %v8659 = vmul.f32 %v422, %v8327
  %v8660 = vmul.f32 %v422, %v8331
  %v8661 = vmul.f32 %v422, %v8335
  %v8662 = vmul.f32 %v422, %v8600
  %8671 = vrot.lane.b32.xlu0 %v8655, 67
  %v8672 = vpop.permute.xlu0 %8671
  %8673 = vrot.lane.b32.xlu0 %v8656, 67
  %v8674 = vpop.permute.xlu0 %8673
  %8675 = vrot.lane.b32.xlu0 %v8657, 67
  %v8676 = vpop.permute.xlu0 %8675
  %8677 = vrot.lane.b32.xlu0 %v8658, 67
  %v8678 = vpop.permute.xlu0 %8677
  %8679 = vrot.lane.b32.xlu0 %v8659, 67
  %v8680 = vpop.permute.xlu0 %8679
  %8681 = vrot.lane.b32.xlu0 %v8660, 67
  %v8682 = vpop.permute.xlu0 %8681
  %8683 = vrot.lane.b32.xlu0 %v8661, 67
  %v8684 = vpop.permute.xlu0 %8683
  %8685 = vrot.lane.b32.xlu0 %v8662, 67
  %v8686 = vpop.permute.xlu0 %8685
  %v8687 = vsel %vm456, %v8672, %v8674
  %v8688 = vsel %vm456, %v8674, %v8676
  %v8689 = vsel %vm456, %v8676, %v8678
  %v8690 = vsel %vm456, %v8678, %v8680
  %v8691 = vsel %vm456, %v8680, %v8682
  %v8692 = vsel %vm456, %v8682, %v8684
  %v8693 = vsel %vm456, %v8684, %v8686
  %v8701 = vadd.f32 %v8648, %v8687
  %v8702 = vadd.f32 %v8649, %v8688
  %v8703 = vadd.f32 %v8650, %v8689
  %v8704 = vadd.f32 %v8651, %v8690
  %v8705 = vadd.f32 %v8652, %v8691
  %v8706 = vadd.f32 %v8653, %v8692
  %v8707 = vadd.f32 %v8654, %v8693
  %v8708 = vmul.f32 %v480, %v8311
  %v8709 = vmul.f32 %v480, %v8315
  %v8710 = vmul.f32 %v480, %v8319
  %v8711 = vmul.f32 %v480, %v8323
  %v8712 = vmul.f32 %v480, %v8327
  %v8713 = vmul.f32 %v480, %v8331
  %v8714 = vmul.f32 %v480, %v8335
  %v8715 = vmul.f32 %v480, %v8600
  %8724 = vrot.lane.b32.xlu0 %v8708, 66
  %v8725 = vpop.permute.xlu0 %8724
  %8726 = vrot.lane.b32.xlu0 %v8709, 66
  %v8727 = vpop.permute.xlu0 %8726
  %8728 = vrot.lane.b32.xlu0 %v8710, 66
  %v8729 = vpop.permute.xlu0 %8728
  %8730 = vrot.lane.b32.xlu0 %v8711, 66
  %v8731 = vpop.permute.xlu0 %8730
  %8732 = vrot.lane.b32.xlu0 %v8712, 66
  %v8733 = vpop.permute.xlu0 %8732
  %8734 = vrot.lane.b32.xlu0 %v8713, 66
  %v8735 = vpop.permute.xlu0 %8734
  %8736 = vrot.lane.b32.xlu0 %v8714, 66
  %v8737 = vpop.permute.xlu0 %8736
  %8738 = vrot.lane.b32.xlu0 %v8715, 66
  %v8739 = vpop.permute.xlu0 %8738
  %v8740 = vsel %vm514, %v8725, %v8727
  %v8741 = vsel %vm514, %v8727, %v8729
  %v8742 = vsel %vm514, %v8729, %v8731
  %v8743 = vsel %vm514, %v8731, %v8733
  %v8744 = vsel %vm514, %v8733, %v8735
  %v8745 = vsel %vm514, %v8735, %v8737
  %v8746 = vsel %vm514, %v8737, %v8739
  %v8754 = vadd.f32 %v8701, %v8740
  %v8755 = vadd.f32 %v8702, %v8741
  %v8756 = vadd.f32 %v8703, %v8742
  %v8757 = vadd.f32 %v8704, %v8743
  %v8758 = vadd.f32 %v8705, %v8744
  %v8759 = vadd.f32 %v8706, %v8745
  %v8760 = vadd.f32 %v8707, %v8746
  %v8761 = vadd.f32 %v8754, %v539
  %v8762 = vadd.f32 %v8755, %v539
  %v8763 = vadd.f32 %v8756, %v539
  %v8764 = vadd.f32 %v8757, %v539
  %v8765 = vadd.f32 %v8758, %v539
  %v8766 = vadd.f32 %v8759, %v539
  %v8767 = vadd.f32 %v8760, %v539
  %vm8768 = vcmp.gt.f32.partialorder %v8761, 0.0
  %vm8769 = vcmp.gt.f32.partialorder %v8762, 0.0
  %vm8770 = vcmp.gt.f32.partialorder %v8763, 0.0
  %vm8771 = vcmp.gt.f32.partialorder %v8764, 0.0
  %vm8772 = vcmp.gt.f32.partialorder %v8765, 0.0
  %vm8773 = vcmp.gt.f32.partialorder %v8766, 0.0
  %vm8774 = vcmp.gt.f32.partialorder %v8767, 0.0
  %v8775 = vmul.f32 %v555, %v8761
  %v8776 = vmul.f32 %v555, %v8762
  %v8777 = vmul.f32 %v555, %v8763
  %v8778 = vmul.f32 %v555, %v8764
  %v8779 = vmul.f32 %v555, %v8765
  %v8780 = vmul.f32 %v555, %v8766
  %v8781 = vmul.f32 %v555, %v8767
  %v8782 = vsel %vm8768, %v8761, %v8775
  %v8783 = vsel %vm8769, %v8762, %v8776
  %v8784 = vsel %vm8770, %v8763, %v8777
  %v8785 = vsel %vm8771, %v8764, %v8778
  %v8786 = vsel %vm8772, %v8765, %v8779
  %v8787 = vsel %vm8773, %v8766, %v8780
  %v8788 = vsel %vm8774, %v8767, %v8781
  %8796 = vrot.lane.b32.xlu0 %v8782, 127
  %v8797 = vpop.permute.xlu0 %8796
  %8798 = vrot.lane.b32.xlu0 %v8783, 127
  %v8799 = vpop.permute.xlu0 %8798
  %8800 = vrot.lane.b32.xlu0 %v8784, 127
  %v8801 = vpop.permute.xlu0 %8800
  %8802 = vrot.lane.b32.xlu0 %v8785, 127
  %v8803 = vpop.permute.xlu0 %8802
  %8804 = vrot.lane.b32.xlu0 %v8786, 127
  %v8805 = vpop.permute.xlu0 %8804
  %8806 = vrot.lane.b32.xlu0 %v8787, 127
  %v8807 = vpop.permute.xlu0 %8806
  %8808 = vrot.lane.b32.xlu0 %v8788, 127
  %v8809 = vpop.permute.xlu0 %8808
  %v8810 = vsel %vm124, %v8797, %v8799
  %v8811 = vsel %vm124, %v8799, %v8801
  %v8812 = vsel %vm124, %v8801, %v8803
  %v8813 = vsel %vm124, %v8803, %v8805
  %v8814 = vsel %vm124, %v8805, %v8807
  %v8815 = vsel %vm124, %v8807, %v8809
  %v8823 = vmax.f32 %v8782, %v8810
  %v8824 = vmax.f32 %v8783, %v8811
  %v8825 = vmax.f32 %v8784, %v8812
  %v8826 = vmax.f32 %v8785, %v8813
  %v8827 = vmax.f32 %v8786, %v8814
  %v8828 = vmax.f32 %v8787, %v8815
  %v8829 = vmax.f32 %v8788, %v8809
  %8837 = vrot.lane.b32.xlu0 %v8823, 98
  %v8838 = vpop.permute.xlu0 %8837
  %8839 = vrot.lane.b32.xlu0 %v8824, 98
  %v8840 = vpop.permute.xlu0 %8839
  %8841 = vrot.lane.b32.xlu0 %v8825, 98
  %v8842 = vpop.permute.xlu0 %8841
  %8843 = vrot.lane.b32.xlu0 %v8826, 98
  %v8844 = vpop.permute.xlu0 %8843
  %8845 = vrot.lane.b32.xlu0 %v8827, 98
  %v8846 = vpop.permute.xlu0 %8845
  %8847 = vrot.lane.b32.xlu0 %v8828, 98
  %v8848 = vpop.permute.xlu0 %8847
  %8849 = vrot.lane.b32.xlu0 %v8829, 98
  %v8850 = vpop.permute.xlu0 %8849
  %v8851 = vsel %vm230, %v8838, %v8840
  %v8852 = vsel %vm230, %v8840, %v8842
  %v8853 = vsel %vm230, %v8842, %v8844
  %v8854 = vsel %vm230, %v8844, %v8846
  %v8855 = vsel %vm230, %v8846, %v8848
  %v8856 = vsel %vm230, %v8848, %v8850
  %v8864 = vmax.f32 %v8823, %v8851
  %v8865 = vmax.f32 %v8824, %v8852
  %v8866 = vmax.f32 %v8825, %v8853
  %v8867 = vmax.f32 %v8826, %v8854
  %v8868 = vmax.f32 %v8827, %v8855
  %v8869 = vmax.f32 %v8828, %v8856
  %v8870 = vmax.f32 %v8829, %v8850
  %8877 = vrot.lane.b32.xlu0 %v8864, 126
  %v8878 = vpop.permute.xlu0 %8877
  %8879 = vrot.lane.b32.xlu0 %v8865, 126
  %v8880 = vpop.permute.xlu0 %8879
  %8881 = vrot.lane.b32.xlu0 %v8866, 126
  %v8882 = vpop.permute.xlu0 %8881
  %8883 = vrot.lane.b32.xlu0 %v8867, 126
  %v8884 = vpop.permute.xlu0 %8883
  %8885 = vrot.lane.b32.xlu0 %v8868, 126
  %v8886 = vpop.permute.xlu0 %8885
  %8887 = vrot.lane.b32.xlu0 %v8869, 126
  %v8888 = vpop.permute.xlu0 %8887
  %v8889 = vsel %vm177, %v8878, %v8880
  %v8890 = vsel %vm177, %v8880, %v8882
  %v8891 = vsel %vm177, %v8882, %v8884
  %v8892 = vsel %vm177, %v8884, %v8886
  %v8893 = vsel %vm177, %v8886, %v8888
  %8900 = vrot.lane.b32.xlu0 %v8864, 124
  %v8901 = vpop.permute.xlu0 %8900
  %8902 = vrot.lane.b32.xlu0 %v8865, 124
  %v8903 = vpop.permute.xlu0 %8902
  %8904 = vrot.lane.b32.xlu0 %v8866, 124
  %v8905 = vpop.permute.xlu0 %8904
  %8906 = vrot.lane.b32.xlu0 %v8867, 124
  %v8907 = vpop.permute.xlu0 %8906
  %8908 = vrot.lane.b32.xlu0 %v8868, 124
  %v8909 = vpop.permute.xlu0 %8908
  %8910 = vrot.lane.b32.xlu0 %v8869, 124
  %v8911 = vpop.permute.xlu0 %8910
  %v8912 = vsel %vm693, %v8901, %v8903
  %v8913 = vsel %vm693, %v8903, %v8905
  %v8914 = vsel %vm693, %v8905, %v8907
  %v8915 = vsel %vm693, %v8907, %v8909
  %v8916 = vsel %vm693, %v8909, %v8911
  %8923 = vrot.lane.b32.xlu0 %v8864, 68
  %v8924 = vpop.permute.xlu0 %8923
  %8925 = vrot.lane.b32.xlu0 %v8865, 68
  %v8926 = vpop.permute.xlu0 %8925
  %8927 = vrot.lane.b32.xlu0 %v8866, 68
  %v8928 = vpop.permute.xlu0 %8927
  %8929 = vrot.lane.b32.xlu0 %v8867, 68
  %v8930 = vpop.permute.xlu0 %8929
  %8931 = vrot.lane.b32.xlu0 %v8868, 68
  %v8932 = vpop.permute.xlu0 %8931
  %8933 = vrot.lane.b32.xlu0 %v8869, 68
  %v8934 = vpop.permute.xlu0 %8933
  %v8935 = vsel %vm398, %v8924, %v8926
  %v8936 = vsel %vm398, %v8926, %v8928
  %v8937 = vsel %vm398, %v8928, %v8930
  %v8938 = vsel %vm398, %v8930, %v8932
  %v8939 = vsel %vm398, %v8932, %v8934
  %8946 = vrot.lane.b32.xlu0 %v8864, 66
  %v8947 = vpop.permute.xlu0 %8946
  %8948 = vrot.lane.b32.xlu0 %v8865, 66
  %v8949 = vpop.permute.xlu0 %8948
  %8950 = vrot.lane.b32.xlu0 %v8866, 66
  %v8951 = vpop.permute.xlu0 %8950
  %8952 = vrot.lane.b32.xlu0 %v8867, 66
  %v8953 = vpop.permute.xlu0 %8952
  %8954 = vrot.lane.b32.xlu0 %v8868, 66
  %v8955 = vpop.permute.xlu0 %8954
  %8956 = vrot.lane.b32.xlu0 %v8869, 66
  %v8957 = vpop.permute.xlu0 %8956
  %v8958 = vsel %vm514, %v8947, %v8949
  %v8959 = vsel %vm514, %v8949, %v8951
  %v8960 = vsel %vm514, %v8951, %v8953
  %v8961 = vsel %vm514, %v8953, %v8955
  %v8962 = vsel %vm514, %v8955, %v8957
  %8969 = vrot.lane.b32.xlu0 %v8864, 64
  %v8970 = vpop.permute.xlu0 %8969
  %8971 = vrot.lane.b32.xlu0 %v8865, 64
  %v8972 = vpop.permute.xlu0 %8971
  %8973 = vrot.lane.b32.xlu0 %v8866, 64
  %v8974 = vpop.permute.xlu0 %8973
  %8975 = vrot.lane.b32.xlu0 %v8867, 64
  %v8976 = vpop.permute.xlu0 %8975
  %8977 = vrot.lane.b32.xlu0 %v8868, 64
  %v8978 = vpop.permute.xlu0 %8977
  %8979 = vrot.lane.b32.xlu0 %v8869, 64
  %v8980 = vpop.permute.xlu0 %8979
  %v8981 = vsel %vm763, %v8970, %v8972
  %v8982 = vsel %vm763, %v8972, %v8974
  %v8983 = vsel %vm763, %v8974, %v8976
  %v8984 = vsel %vm763, %v8976, %v8978
  %v8985 = vsel %vm763, %v8978, %v8980
  %8993 = vrot.lane.b32.xlu0 %v8864, 8
  %v8994 = vpop.permute.xlu0 %8993
  %8995 = vrot.lane.b32.xlu0 %v8865, 8
  %v8996 = vpop.permute.xlu0 %8995
  %8997 = vrot.lane.b32.xlu0 %v8866, 8
  %v8998 = vpop.permute.xlu0 %8997
  %8999 = vrot.lane.b32.xlu0 %v8867, 8
  %v9000 = vpop.permute.xlu0 %8999
  %9001 = vrot.lane.b32.xlu0 %v8868, 8
  %v9002 = vpop.permute.xlu0 %9001
  %9003 = vrot.lane.b32.xlu0 %v8869, 8
  %v9004 = vpop.permute.xlu0 %9003
  %9005 = vrot.lane.b32.xlu0 %v8870, 8
  %v9006 = vpop.permute.xlu0 %9005
  %v9007 = vsel %vm790, %v8994, %v8996
  %v9008 = vsel %vm790, %v8996, %v8998
  %v9009 = vsel %vm790, %v8998, %v9000
  %v9010 = vsel %vm790, %v9000, %v9002
  %v9011 = vsel %vm790, %v9002, %v9004
  %v9012 = vsel %vm790, %v9004, %v9006
  %9019 = vrot.lane.b32.xlu0 %v8864, 6
  %v9020 = vpop.permute.xlu0 %9019
  %9021 = vrot.lane.b32.xlu0 %v8865, 6
  %v9022 = vpop.permute.xlu0 %9021
  %9023 = vrot.lane.b32.xlu0 %v8866, 6
  %v9024 = vpop.permute.xlu0 %9023
  %9025 = vrot.lane.b32.xlu0 %v8867, 6
  %v9026 = vpop.permute.xlu0 %9025
  %9027 = vrot.lane.b32.xlu0 %v8868, 6
  %v9028 = vpop.permute.xlu0 %9027
  %9029 = vrot.lane.b32.xlu0 %v8869, 6
  %v9030 = vpop.permute.xlu0 %9029
  %9031 = vrot.lane.b32.xlu0 %v8870, 6
  %v9032 = vpop.permute.xlu0 %9031
  %v9033 = vsel %vm817, %v9020, %v9022
  %v9034 = vsel %vm817, %v9022, %v9024
  %v9035 = vsel %vm817, %v9024, %v9026
  %v9036 = vsel %vm817, %v9026, %v9028
  %v9037 = vsel %vm817, %v9028, %v9030
  %v9038 = vsel %vm817, %v9030, %v9032
  %9045 = vrot.lane.b32.xlu0 %v8864, 4
  %v9046 = vpop.permute.xlu0 %9045
  %9047 = vrot.lane.b32.xlu0 %v8865, 4
  %v9048 = vpop.permute.xlu0 %9047
  %9049 = vrot.lane.b32.xlu0 %v8866, 4
  %v9050 = vpop.permute.xlu0 %9049
  %9051 = vrot.lane.b32.xlu0 %v8867, 4
  %v9052 = vpop.permute.xlu0 %9051
  %9053 = vrot.lane.b32.xlu0 %v8868, 4
  %v9054 = vpop.permute.xlu0 %9053
  %9055 = vrot.lane.b32.xlu0 %v8869, 4
  %v9056 = vpop.permute.xlu0 %9055
  %9057 = vrot.lane.b32.xlu0 %v8870, 4
  %v9058 = vpop.permute.xlu0 %9057
  %v9059 = vsel %vm844, %v9046, %v9048
  %v9060 = vsel %vm844, %v9048, %v9050
  %v9061 = vsel %vm844, %v9050, %v9052
  %v9062 = vsel %vm844, %v9052, %v9054
  %v9063 = vsel %vm844, %v9054, %v9056
  %v9064 = vsel %vm844, %v9056, %v9058
  %9071 = vmatprep.subr.mxu0 %v8865
  %9072 = vmatpush1.msra.mxu0 %v8864
  %9073 = vmatprep.subr.mxu0 %v8890
  %9074 = vmatpush1.msra.mxu0 %v8889
  %9075 = vmatprep.subr.mxu0 %v8913
  %9076 = vmatpush1.msra.mxu0 %v8912
  %9077 = vmatprep.subr.mxu0 %v8936
  %9078 = vmatpush1.msra.mxu0 %v8935
  %9079 = vmatprep.subr.mxu0 %v8959
  %9080 = vmatpush1.msra.mxu0 %v8958
  %9081 = vmatprep.subr.mxu0 %v8982
  %9082 = vmatpush1.msra.mxu0 %v8981
  %9083 = vmatprep.subr.mxu0 %v9008
  %9084 = vmatpush1.msra.mxu0 %v9007
  %9085 = vmatprep.subr.mxu0 %v9034
  %9086 = vmatpush1.msra.mxu0 %v9033
  %9087 = vmatprep.subr.mxu0 %v9060
  %9088 = vmatpush1.msra.mxu0 %v9059
  %9089 = vmatprep.subr.mxu0 0.0
  %9090 = vmatpush1.msra.mxu0 0.0
  %9091 = vmatprep.subr.mxu0 0.0
  %9092 = vmatpush1.msra.mxu0 0.0
  %9093 = vmatprep.subr.mxu0 0.0
  %9094 = vmatpush1.msra.mxu0 0.0
  %9095 = vmatprep.subr.mxu0 0.0
  %9096 = vmatpush1.msra.mxu0 0.0
  %9097 = vmatprep.subr.mxu0 0.0
  %9098 = vmatpush1.msra.mxu0 0.0
  %9099 = vmatprep.subr.mxu0 0.0
  %9100 = vmatpush1.msra.mxu0 0.0
  %9101 = vmatprep.subr.mxu0 0.0
  %9102 = vmatpush1.msra.mxu0 0.0
  %9103 = vmatprep.subr.mxu0 0.0
  %9104 = vmatpush1.msra.mxu0 0.0
  %9105 = vmatprep.subr.mxu0 0.0
  %9106 = vmatpush1.msra.mxu0 0.0
  %9107 = vmatprep.subr.mxu0 0.0
  %9108 = vmatpush1.msra.mxu0 0.0
  %9109 = vmatprep.subr.mxu0 0.0
  %9110 = vmatpush1.msra.mxu0 0.0
  %9111 = vmatprep.subr.mxu0 0.0
  %9112 = vmatpush1.msra.mxu0 0.0
  %9113 = vmatprep.subr.mxu0 0.0
  %9114 = vmatpush1.msra.mxu0 0.0
  %9115 = vmatprep.subr.mxu0 0.0
  %9116 = vmatpush1.msra.mxu0 0.0
  %9117 = vmatprep.subr.mxu0 0.0
  %9118 = vmatpush1.msra.mxu0 0.0
  %9119 = vmatprep.subr.mxu0 0.0
  %9120 = vmatpush1.msra.mxu0 0.0
  %9121 = vmatprep.subr.mxu0 0.0
  %9122 = vmatpush1.msra.mxu0 0.0
  %9123 = vmatprep.subr.mxu0 0.0
  %9124 = vmatpush1.msra.mxu0 0.0
  %9125 = vmatprep.subr.mxu0 0.0
  %9126 = vmatpush1.msra.mxu0 0.0
  %9127 = vmatprep.subr.mxu0 0.0
  %9128 = vmatpush1.msra.mxu0 0.0
  %9129 = vmatprep.subr.mxu0 0.0
  %9130 = vmatpush1.msra.mxu0 0.0
  %9131 = vmatprep.subr.mxu0 0.0
  %9132 = vmatpush1.msra.mxu0 0.0
  %9133 = vmatprep.subr.mxu0 0.0
  %9134 = vmatpush1.msra.mxu0 0.0
  %9135 = vmatprep.mubr.f32.mxu0 0.0
  %9136 = vmatmul.mubr.f32.gmra.mrb[0].mxu0 %v869
  %v9137 = vpop.f32.mrb[0].mxu0
  %v9138 = vadd.f32 %v860, %v9137
  %v9139 = vpop.f32.mrb[0].mxu0
  %v9140 = vadd.f32 %v860, %v9139
  %9141 = vmatprep.mubr.f32.mxu0 0.0
  %9142 = vmatmul.mubr.f32.gmra.mrb[0].mxu0 %v872
  %v9143 = vpop.f32.mrb[0].mxu0
  %v9144 = vadd.f32 %v865, %v9143
  %v9145 = vpop.f32.mrb[0].mxu0
  %v9146 = vadd.f32 %v865, %v9145
  %9147 = vdwg.mxu0
  %9148 = vmatprep.subr.mxu0 %v8867
  %9149 = vmatpush1.msra.mxu0 %v8866
  %9150 = vmatprep.subr.mxu0 %v8892
  %9151 = vmatpush1.msra.mxu0 %v8891
  %9152 = vmatprep.subr.mxu0 %v8915
  %9153 = vmatpush1.msra.mxu0 %v8914
  %9154 = vmatprep.subr.mxu0 %v8938
  %9155 = vmatpush1.msra.mxu0 %v8937
  %9156 = vmatprep.subr.mxu0 %v8961
  %9157 = vmatpush1.msra.mxu0 %v8960
  %9158 = vmatprep.subr.mxu0 %v8984
  %9159 = vmatpush1.msra.mxu0 %v8983
  %9160 = vmatprep.subr.mxu0 %v9010
  %9161 = vmatpush1.msra.mxu0 %v9009
  %9162 = vmatprep.subr.mxu0 %v9036
  %9163 = vmatpush1.msra.mxu0 %v9035
  %9164 = vmatprep.subr.mxu0 %v9062
  %9165 = vmatpush1.msra.mxu0 %v9061
  %9166 = vmatprep.subr.mxu0 0.0
  %9167 = vmatpush1.msra.mxu0 0.0
  %9168 = vmatprep.subr.mxu0 0.0
  %9169 = vmatpush1.msra.mxu0 0.0
  %9170 = vmatprep.subr.mxu0 0.0
  %9171 = vmatpush1.msra.mxu0 0.0
  %9172 = vmatprep.subr.mxu0 0.0
  %9173 = vmatpush1.msra.mxu0 0.0
  %9174 = vmatprep.subr.mxu0 0.0
  %9175 = vmatpush1.msra.mxu0 0.0
  %9176 = vmatprep.subr.mxu0 0.0
  %9177 = vmatpush1.msra.mxu0 0.0
  %9178 = vmatprep.subr.mxu0 0.0
  %9179 = vmatpush1.msra.mxu0 0.0
  %9180 = vmatprep.subr.mxu0 0.0
  %9181 = vmatpush1.msra.mxu0 0.0
  %9182 = vmatprep.subr.mxu0 0.0
  %9183 = vmatpush1.msra.mxu0 0.0
  %9184 = vmatprep.subr.mxu0 0.0
  %9185 = vmatpush1.msra.mxu0 0.0
  %9186 = vmatprep.subr.mxu0 0.0
  %9187 = vmatpush1.msra.mxu0 0.0
  %9188 = vmatprep.subr.mxu0 0.0
  %9189 = vmatpush1.msra.mxu0 0.0
  %9190 = vmatprep.subr.mxu0 0.0
  %9191 = vmatpush1.msra.mxu0 0.0
  %9192 = vmatprep.subr.mxu0 0.0
  %9193 = vmatpush1.msra.mxu0 0.0
  %9194 = vmatprep.subr.mxu0 0.0
  %9195 = vmatpush1.msra.mxu0 0.0
  %9196 = vmatprep.subr.mxu0 0.0
  %9197 = vmatpush1.msra.mxu0 0.0
  %9198 = vmatprep.subr.mxu0 0.0
  %9199 = vmatpush1.msra.mxu0 0.0
  %9200 = vmatprep.subr.mxu0 0.0
  %9201 = vmatpush1.msra.mxu0 0.0
  %9202 = vmatprep.subr.mxu0 0.0
  %9203 = vmatpush1.msra.mxu0 0.0
  %9204 = vmatprep.subr.mxu0 0.0
  %9205 = vmatpush1.msra.mxu0 0.0
  %9206 = vmatprep.subr.mxu0 0.0
  %9207 = vmatpush1.msra.mxu0 0.0
  %9208 = vmatprep.subr.mxu0 0.0
  %9209 = vmatpush1.msra.mxu0 0.0
  %9210 = vmatprep.subr.mxu0 0.0
  %9211 = vmatpush1.msra.mxu0 0.0
  %9212 = vmatprep.mubr.f32.mxu0 0.0
  %9213 = vmatmul.mubr.f32.gmra.mrb[0].mxu0 %v869
  %v9214 = vpop.f32.mrb[0].mxu0
  %v9215 = vadd.f32 %v860, %v9214
  %v9216 = vpop.f32.mrb[0].mxu0
  %v9217 = vadd.f32 %v860, %v9216
  %9218 = vmatprep.mubr.f32.mxu0 0.0
  %9219 = vmatmul.mubr.f32.gmra.mrb[0].mxu0 %v872
  %v9220 = vpop.f32.mrb[0].mxu0
  %v9221 = vadd.f32 %v865, %v9220
  %v9222 = vpop.f32.mrb[0].mxu0
  %v9223 = vadd.f32 %v865, %v9222
  %9224 = vdwg.mxu0
  %9225 = vmatprep.subr.mxu0 %v8869
  %9226 = vmatpush1.msra.mxu0 %v8868
  %9227 = vmatprep.subr.mxu0 %v8888
  %9228 = vmatpush1.msra.mxu0 %v8893
  %9229 = vmatprep.subr.mxu0 %v8911
  %9230 = vmatpush1.msra.mxu0 %v8916
  %9231 = vmatprep.subr.mxu0 %v8934
  %9232 = vmatpush1.msra.mxu0 %v8939
  %9233 = vmatprep.subr.mxu0 %v8957
  %9234 = vmatpush1.msra.mxu0 %v8962
  %9235 = vmatprep.subr.mxu0 %v8980
  %9236 = vmatpush1.msra.mxu0 %v8985
  %9237 = vmatprep.subr.mxu0 %v9012
  %9238 = vmatpush1.msra.mxu0 %v9011
  %9239 = vmatprep.subr.mxu0 %v9038
  %9240 = vmatpush1.msra.mxu0 %v9037
  %9241 = vmatprep.subr.mxu0 %v9064
  %9242 = vmatpush1.msra.mxu0 %v9063
  %9243 = vmatprep.subr.mxu0 0.0
  %9244 = vmatpush1.msra.mxu0 0.0
  %9245 = vmatprep.subr.mxu0 0.0
  %9246 = vmatpush1.msra.mxu0 0.0
  %9247 = vmatprep.subr.mxu0 0.0
  %9248 = vmatpush1.msra.mxu0 0.0
  %9249 = vmatprep.subr.mxu0 0.0
  %9250 = vmatpush1.msra.mxu0 0.0
  %9251 = vmatprep.subr.mxu0 0.0
  %9252 = vmatpush1.msra.mxu0 0.0
  %9253 = vmatprep.subr.mxu0 0.0
  %9254 = vmatpush1.msra.mxu0 0.0
  %9255 = vmatprep.subr.mxu0 0.0
  %9256 = vmatpush1.msra.mxu0 0.0
  %9257 = vmatprep.subr.mxu0 0.0
  %9258 = vmatpush1.msra.mxu0 0.0
  %9259 = vmatprep.subr.mxu0 0.0
  %9260 = vmatpush1.msra.mxu0 0.0
  %9261 = vmatprep.subr.mxu0 0.0
  %9262 = vmatpush1.msra.mxu0 0.0
  %9263 = vmatprep.subr.mxu0 0.0
  %9264 = vmatpush1.msra.mxu0 0.0
  %9265 = vmatprep.subr.mxu0 0.0
  %9266 = vmatpush1.msra.mxu0 0.0
  %9267 = vmatprep.subr.mxu0 0.0
  %9268 = vmatpush1.msra.mxu0 0.0
  %9269 = vmatprep.subr.mxu0 0.0
  %9270 = vmatpush1.msra.mxu0 0.0
  %9271 = vmatprep.subr.mxu0 0.0
  %9272 = vmatpush1.msra.mxu0 0.0
  %9273 = vmatprep.subr.mxu0 0.0
  %9274 = vmatpush1.msra.mxu0 0.0
  %9275 = vmatprep.subr.mxu0 0.0
  %9276 = vmatpush1.msra.mxu0 0.0
  %9277 = vmatprep.subr.mxu0 0.0
  %9278 = vmatpush1.msra.mxu0 0.0
  %9279 = vmatprep.subr.mxu0 0.0
  %9280 = vmatpush1.msra.mxu0 0.0
  %9281 = vmatprep.subr.mxu0 0.0
  %9282 = vmatpush1.msra.mxu0 0.0
  %9283 = vmatprep.subr.mxu0 0.0
  %9284 = vmatpush1.msra.mxu0 0.0
  %9285 = vmatprep.subr.mxu0 0.0
  %9286 = vmatpush1.msra.mxu0 0.0
  %9287 = vmatprep.subr.mxu0 0.0
  %9288 = vmatpush1.msra.mxu0 0.0
  %9289 = vmatprep.mubr.f32.mxu0 0.0
  %9290 = vmatmul.mubr.f32.gmra.mrb[0].mxu0 %v869
  %v9291 = vpop.f32.mrb[0].mxu0
  %v9292 = vadd.f32 %v860, %v9291
  %v9293 = vpop.f32.mrb[0].mxu0
  %v9294 = vadd.f32 %v860, %v9293
  %9295 = vmatprep.mubr.f32.mxu0 0.0
  %9296 = vmatmul.mubr.f32.gmra.mrb[0].mxu0 %v872
  %v9297 = vpop.f32.mrb[0].mxu0
  %v9298 = vadd.f32 %v865, %v9297
  %v9299 = vpop.f32.mrb[0].mxu0
  %v9300 = vadd.f32 %v865, %v9299
  %9301 = vdwg.mxu0
  %vm9302 = vcmp.gt.f32.partialorder %v9138, 0.0
  %vm9303 = vcmp.gt.f32.partialorder %v9140, 0.0
  %vm9304 = vcmp.gt.f32.partialorder %v9215, 0.0
  %vm9305 = vcmp.gt.f32.partialorder %v9217, 0.0
  %vm9306 = vcmp.gt.f32.partialorder %v9292, 0.0
  %vm9307 = vcmp.gt.f32.partialorder %v9294, 0.0
  %vm9308 = vcmp.gt.f32.partialorder %v9144, 0.0
  %vm9309 = vcmp.gt.f32.partialorder %v9146, 0.0
  %vm9310 = vcmp.gt.f32.partialorder %v9221, 0.0
  %vm9311 = vcmp.gt.f32.partialorder %v9223, 0.0
  %vm9312 = vcmp.gt.f32.partialorder %v9298, 0.0
  %vm9313 = vcmp.gt.f32.partialorder %v9300, 0.0
  %v9314 = vmul.f32 %v555, %v9138
  %v9315 = vmul.f32 %v555, %v9140
  %v9316 = vmul.f32 %v555, %v9215
  %v9317 = vmul.f32 %v555, %v9217
  %v9318 = vmul.f32 %v555, %v9292
  %v9319 = vmul.f32 %v555, %v9294
  %v9320 = vmul.f32 %v555, %v9144
  %v9321 = vmul.f32 %v555, %v9146
  %v9322 = vmul.f32 %v555, %v9221
  %v9323 = vmul.f32 %v555, %v9223
  %v9324 = vmul.f32 %v555, %v9298
  %v9325 = vmul.f32 %v555, %v9300
  %v9326 = vsel %vm9302, %v9138, %v9314
  %v9327 = vsel %vm9303, %v9140, %v9315
  %v9328 = vsel %vm9304, %v9215, %v9316
  %v9329 = vsel %vm9305, %v9217, %v9317
  %v9330 = vsel %vm9306, %v9292, %v9318
  %v9331 = vsel %vm9307, %v9294, %v9319
  %v9332 = vsel %vm9308, %v9144, %v9320
  %v9333 = vsel %vm9309, %v9146, %v9321
  %v9334 = vsel %vm9310, %v9221, %v9322
  %v9335 = vsel %vm9311, %v9223, %v9323
  %v9336 = vsel %vm9312, %v9298, %v9324
  %v9337 = vsel %vm9313, %v9300, %v9325
  %9350 = vrot.lane.b32.xlu0 %v9326, 126
  %v9351 = vpop.permute.xlu0 %9350
  %9352 = vrot.lane.b32.xlu0 %v9327, 126
  %v9353 = vpop.permute.xlu0 %9352
  %9354 = vrot.lane.b32.xlu0 %v9328, 126
  %v9355 = vpop.permute.xlu0 %9354
  %9356 = vrot.lane.b32.xlu0 %v9329, 126
  %v9357 = vpop.permute.xlu0 %9356
  %9358 = vrot.lane.b32.xlu0 %v9330, 126
  %v9359 = vpop.permute.xlu0 %9358
  %9360 = vrot.lane.b32.xlu0 %v9331, 126
  %v9361 = vpop.permute.xlu0 %9360
  %9362 = vrot.lane.b32.xlu0 %v9332, 126
  %v9363 = vpop.permute.xlu0 %9362
  %9364 = vrot.lane.b32.xlu0 %v9333, 126
  %v9365 = vpop.permute.xlu0 %9364
  %9366 = vrot.lane.b32.xlu0 %v9334, 126
  %v9367 = vpop.permute.xlu0 %9366
  %9368 = vrot.lane.b32.xlu0 %v9335, 126
  %v9369 = vpop.permute.xlu0 %9368
  %9370 = vrot.lane.b32.xlu0 %v9336, 126
  %v9371 = vpop.permute.xlu0 %9370
  %9372 = vrot.lane.b32.xlu0 %v9337, 126
  %v9373 = vpop.permute.xlu0 %9372
  %v9374 = vsel %vm177, %v9351, %v9353
  %v9375 = vsel %vm177, %v9353, %v9355
  %v9376 = vsel %vm177, %v9355, %v9357
  %v9377 = vsel %vm177, %v9357, %v9359
  %v9378 = vsel %vm177, %v9359, %v9361
  %v9379 = vsel %vm177, %v9363, %v9365
  %v9380 = vsel %vm177, %v9365, %v9367
  %v9381 = vsel %vm177, %v9367, %v9369
  %v9382 = vsel %vm177, %v9369, %v9371
  %v9383 = vsel %vm177, %v9371, %v9373
  %v9396 = vmax.f32 %v9326, %v9374
  %v9397 = vmax.f32 %v9327, %v9375
  %v9398 = vmax.f32 %v9328, %v9376
  %v9399 = vmax.f32 %v9329, %v9377
  %v9400 = vmax.f32 %v9330, %v9378
  %v9401 = vmax.f32 %v9331, %v9361
  %v9402 = vmax.f32 %v9332, %v9379
  %v9403 = vmax.f32 %v9333, %v9380
  %v9404 = vmax.f32 %v9334, %v9381
  %v9405 = vmax.f32 %v9335, %v9382
  %v9406 = vmax.f32 %v9336, %v9383
  %v9407 = vmax.f32 %v9337, %v9373
  %9420 = vrot.lane.b32.xlu0 %v9396, 68
  %v9421 = vpop.permute.xlu0 %9420
  %9422 = vrot.lane.b32.xlu0 %v9397, 68
  %v9423 = vpop.permute.xlu0 %9422
  %9424 = vrot.lane.b32.xlu0 %v9398, 68
  %v9425 = vpop.permute.xlu0 %9424
  %9426 = vrot.lane.b32.xlu0 %v9399, 68
  %v9427 = vpop.permute.xlu0 %9426
  %9428 = vrot.lane.b32.xlu0 %v9400, 68
  %v9429 = vpop.permute.xlu0 %9428
  %9430 = vrot.lane.b32.xlu0 %v9401, 68
  %v9431 = vpop.permute.xlu0 %9430
  %9432 = vrot.lane.b32.xlu0 %v9402, 68
  %v9433 = vpop.permute.xlu0 %9432
  %9434 = vrot.lane.b32.xlu0 %v9403, 68
  %v9435 = vpop.permute.xlu0 %9434
  %9436 = vrot.lane.b32.xlu0 %v9404, 68
  %v9437 = vpop.permute.xlu0 %9436
  %9438 = vrot.lane.b32.xlu0 %v9405, 68
  %v9439 = vpop.permute.xlu0 %9438
  %9440 = vrot.lane.b32.xlu0 %v9406, 68
  %v9441 = vpop.permute.xlu0 %9440
  %9442 = vrot.lane.b32.xlu0 %v9407, 68
  %v9443 = vpop.permute.xlu0 %9442
  %v9444 = vsel %vm398, %v9421, %v9423
  %v9445 = vsel %vm398, %v9423, %v9425
  %v9446 = vsel %vm398, %v9425, %v9427
  %v9447 = vsel %vm398, %v9427, %v9429
  %v9448 = vsel %vm398, %v9429, %v9431
  %v9449 = vsel %vm398, %v9433, %v9435
  %v9450 = vsel %vm398, %v9435, %v9437
  %v9451 = vsel %vm398, %v9437, %v9439
  %v9452 = vsel %vm398, %v9439, %v9441
  %v9453 = vsel %vm398, %v9441, %v9443
  %v9464 = vmax.f32 %v9396, %v9444
  %v9465 = vmax.f32 %v9397, %v9445
  %v9466 = vmax.f32 %v9398, %v9446
  %v9467 = vmax.f32 %v9399, %v9447
  %v9468 = vmax.f32 %v9400, %v9448
  %v9469 = vmax.f32 %v9402, %v9449
  %v9470 = vmax.f32 %v9403, %v9450
  %v9471 = vmax.f32 %v9404, %v9451
  %v9472 = vmax.f32 %v9405, %v9452
  %v9473 = vmax.f32 %v9406, %v9453
  %v9474 = vld [vmem:[%s5] sm:$0xff]
  %v9475 = vld [vmem:[%s5 + $0x8] sm:$0xff]
  %v9476 = vld [vmem:[%s5 + $0x10] sm:$0xff]
  %v9477 = vld [vmem:[%s5 + $0x18] sm:$0xff]
  %v9478 = vld [vmem:[%s5 + $0x20] sm:$0xff]
  %v9479 = vld [vmem:[%s5 + $0x28] sm:$0xff]
  %v9480 = vld [vmem:[%s5 + $0x30] sm:$0xff]
  %v9481 = vld [vmem:[%s5 + $0x38] sm:$0xff]
  %v9482 = vld [vmem:[%s5 + $0x40] sm:$0xff]
  %v9483 = vld [vmem:[%s5 + $0x48] sm:$0xff]
  %v9484 = vld [vmem:[%s5 + $0x50] sm:$0xff]
  %v9485 = vld [vmem:[%s5 + $0x58] sm:$0xff]
  %v9486 = vld [vmem:[%s5 + $0x60] sm:$0xff]
  %v9487 = vld [vmem:[%s5 + $0x68] sm:$0xff]
  %v9488 = vld [vmem:[%s5 + $0x70] sm:$0xff]
  %v9489 = vld [vmem:[%s5 + $0x78] sm:$0xff]
  %v9490 = vld [vmem:[%s5 + $0x80] sm:$0xff]
  %v9491 = vld [vmem:[%s5 + $0x88] sm:$0xff]
  %v9492 = vld [vmem:[%s5 + $0x90] sm:$0xff]
  %v9493 = vld [vmem:[%s5 + $0x98] sm:$0xff]
  %v9494 = vld [vmem:[%s5 + $0xa0] sm:$0xff]
  %v9495 = vld [vmem:[%s5 + $0xa8] sm:$0xff]
  %v9496 = vld [vmem:[%s5 + $0xb0] sm:$0xff]
  %v9497 = vld [vmem:[%s5 + $0xb8] sm:$0xff]
  %v9498 = vld [vmem:[%s5 + $0xc0] sm:$0xff]
  %v9499 = vld [vmem:[%s5 + $0xc8] sm:$0xff]
  %v9500 = vld [vmem:[%s5 + $0xd0] sm:$0xff]
  %v9501 = vld [vmem:[%s5 + $0xd8] sm:$0xff]
  %v9502 = vld [vmem:[%s5 + $0xe0] sm:$0xff]
  %v9503 = vld [vmem:[%s5 + $0xe8] sm:$0xff]
  %v9504 = vld [vmem:[%s5 + $0xf0] sm:$0xff]
  %v9505 = vld [vmem:[%s5 + $0xf8] sm:$0xff]
  %v9506 = vld [vmem:[%s5 + $0x100] sm:$0xff]
  %v9507 = vld [vmem:[%s5 + $0x108] sm:$0xff]
  %v9508 = vld [vmem:[%s5 + $0x110] sm:$0xff]
  %v9509 = vld [vmem:[%s5 + $0x118] sm:$0xff]
  %v9510 = vld [vmem:[%s5 + $0x120] sm:$0xff]
  %v9511 = vld [vmem:[%s5 + $0x128] sm:$0xff]
  %v9512 = vld [vmem:[%s5 + $0x130] sm:$0xff]
  %v9513 = vld [vmem:[%s5 + $0x138] sm:$0xff]
  %v9514 = vld [vmem:[%s5 + $0x140] sm:$0xff]
  %v9515 = vld [vmem:[%s5 + $0x148] sm:$0xff]
  %v9516 = vld [vmem:[%s5 + $0x150] sm:$0xff]
  %v9517 = vld [vmem:[%s5 + $0x158] sm:$0xff]
  %v9518 = vld [vmem:[%s5 + $0x160] sm:$0xff]
  %v9519 = vld [vmem:[%s5 + $0x168] sm:$0xff]
  %v9520 = vld [vmem:[%s5 + $0x170] sm:$0xff]
  %v9521 = vld [vmem:[%s5 + $0x178] sm:$0xff]
  %v9522 = vld [vmem:[%s5 + $0x180] sm:$0xff]
  %v9523 = vld [vmem:[%s5 + $0x188] sm:$0xff]
  %v9524 = vld [vmem:[%s5 + $0x190] sm:$0xff]
  %v9525 = vld [vmem:[%s5 + $0x198] sm:$0xff]
  %v9526 = vld [vmem:[%s5 + $0x1a0] sm:$0xff]
  %v9527 = vld [vmem:[%s5 + $0x1a8] sm:$0xff]
  %v9528 = vld [vmem:[%s5 + $0x1b0] sm:$0xff]
  %v9529 = vld [vmem:[%s5 + $0x1b8] sm:$0xff]
  %v9530 = vld [vmem:[%s5 + $0x1c0] sm:$0xff]
  %v9531 = vld [vmem:[%s5 + $0x1c8] sm:$0xff]
  %v9532 = vld [vmem:[%s5 + $0x1d0] sm:$0xff]
  %v9533 = vld [vmem:[%s5 + $0x1d8] sm:$0xff]
  %v9534 = vld [vmem:[%s5 + $0x1e0] sm:$0xff]
  %v9535 = vld [vmem:[%s5 + $0x1e8] sm:$0xff]
  %v9536 = vld [vmem:[%s5 + $0x1f0] sm:$0xff]
  %v9537 = vld [vmem:[%s5 + $0x1f8] sm:$0xff]
  %v9538 = vld [vmem:[%s5 + $0x200] sm:$0xff]
  %v9539 = vld [vmem:[%s5 + $0x208] sm:$0xff]
  %v9540 = vld [vmem:[%s5 + $0x210] sm:$0xff]
  %v9541 = vld [vmem:[%s5 + $0x218] sm:$0xff]
  %v9542 = vld [vmem:[%s5 + $0x220] sm:$0xff]
  %v9543 = vld [vmem:[%s5 + $0x228] sm:$0xff]
  %v9544 = vld [vmem:[%s5 + $0x230] sm:$0xff]
  %v9545 = vld [vmem:[%s5 + $0x238] sm:$0xff]
  %v9546 = vld [vmem:[%s5 + $0x240] sm:$0xff]
  %v9547 = vld [vmem:[%s5 + $0x248] sm:$0xff]
  %v9548 = vld [vmem:[%s5 + $0x250] sm:$0xff]
  %v9549 = vld [vmem:[%s5 + $0x258] sm:$0xff]
  %v9550 = vld [vmem:[%s5 + $0x260] sm:$0xff]
  %v9551 = vld [vmem:[%s5 + $0x268] sm:$0x1f]
  %vm9552 = vcmask 891904
  %v9554 = vsel %vm9552, %v1271, 0
  %v9557 = vsel %vm9552, %v1276, 0
  %v9560 = vsel %vm9552, %v2442, 0
  %v9563 = vsel %vm9552, %v2447, 0
  %v9566 = vsel %vm9552, %v3613, 0
  %v9569 = vsel %vm9552, %v3618, 0
  %v9572 = vsel %vm9552, %v4784, 0
  %v9575 = vsel %vm9552, %v4789, 0
  %v9578 = vsel %vm9552, %v5955, 0
  %v9581 = vsel %vm9552, %v5960, 0
  %v9584 = vsel %vm9552, %v7126, 0
  %v9587 = vsel %vm9552, %v7131, 0
  %v9590 = vsel %vm9552, %v8297, 0
  %v9593 = vsel %vm9552, %v8302, 0
  %v9596 = vsel %vm9552, %v9468, 0
  %v9599 = vsel %vm9552, %v9473, 0
  %vm9601 = vcmask 1044480
  %v9603 = vsel %vm9601, %v9551, 0
  %9605 = vmatprep.subr.mxu0 0.0
  %9606 = vmatpush1.msra.mxu0 %v9474
  %9607 = vmatprep.subr.mxu0 0.0
  %9608 = vmatpush1.msra.mxu0 %v9475
  %9609 = vmatprep.subr.mxu0 0.0
  %9610 = vmatpush1.msra.mxu0 %v9476
  %9611 = vmatprep.subr.mxu0 0.0
  %9612 = vmatpush1.msra.mxu0 %v9477
  %9613 = vmatprep.subr.mxu0 0.0
  %9614 = vmatpush1.msra.mxu0 %v9478
  %9615 = vmatprep.subr.mxu0 0.0
  %9616 = vmatpush1.msra.mxu0 %v9479
  %9617 = vmatprep.subr.mxu0 0.0
  %9618 = vmatpush1.msra.mxu0 %v9480
  %9619 = vmatprep.subr.mxu0 0.0
  %9620 = vmatpush1.msra.mxu0 %v9481
  %9621 = vmatprep.subr.mxu0 0.0
  %9622 = vmatpush1.msra.mxu0 %v9482
  %9623 = vmatprep.subr.mxu0 0.0
  %9624 = vmatpush1.msra.mxu0 %v9483
  %9625 = vmatprep.subr.mxu0 0.0
  %9626 = vmatpush1.msra.mxu0 %v9484
  %9627 = vmatprep.subr.mxu0 0.0
  %9628 = vmatpush1.msra.mxu0 %v9485
  %9629 = vmatprep.subr.mxu0 0.0
  %9630 = vmatpush1.msra.mxu0 %v9486
  %9631 = vmatprep.subr.mxu0 0.0
  %9632 = vmatpush1.msra.mxu0 %v9487
  %9633 = vmatprep.subr.mxu0 0.0
  %9634 = vmatpush1.msra.mxu0 %v9488
  %9635 = vmatprep.subr.mxu0 0.0
  %9636 = vmatpush1.msra.mxu0 %v9489
  %9637 = vmatprep.subr.mxu0 0.0
  %9638 = vmatpush1.msra.mxu0 %v9490
  %9639 = vmatprep.subr.mxu0 0.0
  %9640 = vmatpush1.msra.mxu0 %v9491
  %9641 = vmatprep.subr.mxu0 0.0
  %9642 = vmatpush1.msra.mxu0 %v9492
  %9643 = vmatprep.subr.mxu0 0.0
  %9644 = vmatpush1.msra.mxu0 %v9493
  %9645 = vmatprep.subr.mxu0 0.0
  %9646 = vmatpush1.msra.mxu0 %v9494
  %9647 = vmatprep.subr.mxu0 0.0
  %9648 = vmatpush1.msra.mxu0 %v9495
  %9649 = vmatprep.subr.mxu0 0.0
  %9650 = vmatpush1.msra.mxu0 %v9496
  %9651 = vmatprep.subr.mxu0 0.0
  %9652 = vmatpush1.msra.mxu0 %v9497
  %9653 = vmatprep.subr.mxu0 0.0
  %9654 = vmatpush1.msra.mxu0 %v9498
  %9655 = vmatprep.subr.mxu0 0.0
  %9656 = vmatpush1.msra.mxu0 %v9499
  %9657 = vmatprep.subr.mxu0 0.0
  %9658 = vmatpush1.msra.mxu0 %v9500
  %9659 = vmatprep.subr.mxu0 0.0
  %9660 = vmatpush1.msra.mxu0 %v9501
  %9661 = vmatprep.subr.mxu0 0.0
  %9662 = vmatpush1.msra.mxu0 %v9502
  %9663 = vmatprep.subr.mxu0 0.0
  %9664 = vmatpush1.msra.mxu0 %v9503
  %9665 = vmatprep.subr.mxu0 0.0
  %9666 = vmatpush1.msra.mxu0 %v9504
  %9667 = vmatprep.subr.mxu0 0.0
  %9668 = vmatpush1.msra.mxu0 %v9505
  %9669 = vmatprep.mubr.f32.mxu0 %v1268
  %9670 = vmatmul.mubr.f32.gmra.mrb[0].mxu0 %v1267
  %v9671 = vpop.f32.mrb[0].mxu0
  %v9672 = vadd.f32 0.0, %v9671
  %v9673 = vpop.f32.mrb[0].mxu0
  %9674 = vmatprep.mubr.f32.mxu0 %v1273
  %9675 = vmatmul.mubr.f32.gmra.mrb[0].mxu0 %v1272
  %v9676 = vpop.f32.mrb[0].mxu0
  %v9677 = vadd.f32 0.0, %v9676
  %v9678 = vpop.f32.mrb[0].mxu0
  %9679 = vmatprep.mubr.f32.mxu0 %v2439
  %9680 = vmatmul.mubr.f32.gmra.mrb[0].mxu0 %v2438
  %v9681 = vpop.f32.mrb[0].mxu0
  %v9682 = vadd.f32 0.0, %v9681
  %v9683 = vpop.f32.mrb[0].mxu0
  %9684 = vmatprep.mubr.f32.mxu0 %v2444
  %9685 = vmatmul.mubr.f32.gmra.mrb[0].mxu0 %v2443
  %v9686 = vpop.f32.mrb[0].mxu0
  %v9687 = vadd.f32 0.0, %v9686
  %v9688 = vpop.f32.mrb[0].mxu0
  %9689 = vmatprep.mubr.f32.mxu0 %v3610
  %9690 = vmatmul.mubr.f32.gmra.mrb[0].mxu0 %v3609
  %v9691 = vpop.f32.mrb[0].mxu0
  %v9692 = vadd.f32 0.0, %v9691
  %v9693 = vpop.f32.mrb[0].mxu0
  %9694 = vmatprep.mubr.f32.mxu0 %v3615
  %9695 = vmatmul.mubr.f32.gmra.mrb[0].mxu0 %v3614
  %v9696 = vpop.f32.mrb[0].mxu0
  %v9697 = vadd.f32 0.0, %v9696
  %v9698 = vpop.f32.mrb[0].mxu0
  %9699 = vmatprep.mubr.f32.mxu0 %v4781
  %9700 = vmatmul.mubr.f32.gmra.mrb[0].mxu0 %v4780
  %v9701 = vpop.f32.mrb[0].mxu0
  %v9702 = vadd.f32 0.0, %v9701
  %v9703 = vpop.f32.mrb[0].mxu0
  %9704 = vmatprep.mubr.f32.mxu0 %v4786
  %9705 = vmatmul.mubr.f32.gmra.mrb[0].mxu0 %v4785
  %v9706 = vpop.f32.mrb[0].mxu0
  %v9707 = vadd.f32 0.0, %v9706
  %v9708 = vpop.f32.mrb[0].mxu0
  %9709 = vmatprep.mubr.f32.mxu0 %v5952
  %9710 = vmatmul.mubr.f32.gmra.mrb[0].mxu0 %v5951
  %v9711 = vpop.f32.mrb[0].mxu0
  %v9712 = vadd.f32 0.0, %v9711
  %v9713 = vpop.f32.mrb[0].mxu0
  %9714 = vmatprep.mubr.f32.mxu0 %v5957
  %9715 = vmatmul.mubr.f32.gmra.mrb[0].mxu0 %v5956
  %v9716 = vpop.f32.mrb[0].mxu0
  %v9717 = vadd.f32 0.0, %v9716
  %v9718 = vpop.f32.mrb[0].mxu0
  %9719 = vmatprep.mubr.f32.mxu0 %v7123
  %9720 = vmatmul.mubr.f32.gmra.mrb[0].mxu0 %v7122
  %v9721 = vpop.f32.mrb[0].mxu0
  %v9722 = vadd.f32 0.0, %v9721
  %v9723 = vpop.f32.mrb[0].mxu0
  %9724 = vmatprep.mubr.f32.mxu0 %v7128
  %9725 = vmatmul.mubr.f32.gmra.mrb[0].mxu0 %v7127
  %v9726 = vpop.f32.mrb[0].mxu0
  %v9727 = vadd.f32 0.0, %v9726
  %v9728 = vpop.f32.mrb[0].mxu0
  %9729 = vmatprep.mubr.f32.mxu0 %v8294
  %9730 = vmatmul.mubr.f32.gmra.mrb[0].mxu0 %v8293
  %v9731 = vpop.f32.mrb[0].mxu0
  %v9732 = vadd.f32 0.0, %v9731
  %v9733 = vpop.f32.mrb[0].mxu0
  %9734 = vmatprep.mubr.f32.mxu0 %v8299
  %9735 = vmatmul.mubr.f32.gmra.mrb[0].mxu0 %v8298
  %v9736 = vpop.f32.mrb[0].mxu0
  %v9737 = vadd.f32 0.0, %v9736
  %v9738 = vpop.f32.mrb[0].mxu0
  %9739 = vmatprep.mubr.f32.mxu0 %v9465
  %9740 = vmatmul.mubr.f32.gmra.mrb[0].mxu0 %v9464
  %v9741 = vpop.f32.mrb[0].mxu0
  %v9742 = vadd.f32 0.0, %v9741
  %v9743 = vpop.f32.mrb[0].mxu0
  %9744 = vmatprep.mubr.f32.mxu0 %v9470
  %9745 = vmatmul.mubr.f32.gmra.mrb[0].mxu0 %v9469
  %v9746 = vpop.f32.mrb[0].mxu0
  %v9747 = vadd.f32 0.0, %v9746
  %v9748 = vpop.f32.mrb[0].mxu0
  %9749 = vdwg.mxu0
  %9750 = vmatprep.subr.mxu0 0.0
  %9751 = vmatpush1.msra.mxu0 %v9506
  %9752 = vmatprep.subr.mxu0 0.0
  %9753 = vmatpush1.msra.mxu0 %v9507
  %9754 = vmatprep.subr.mxu0 0.0
  %9755 = vmatpush1.msra.mxu0 %v9508
  %9756 = vmatprep.subr.mxu0 0.0
  %9757 = vmatpush1.msra.mxu0 %v9509
  %9758 = vmatprep.subr.mxu0 0.0
  %9759 = vmatpush1.msra.mxu0 %v9510
  %9760 = vmatprep.subr.mxu0 0.0
  %9761 = vmatpush1.msra.mxu0 %v9511
  %9762 = vmatprep.subr.mxu0 0.0
  %9763 = vmatpush1.msra.mxu0 %v9512
  %9764 = vmatprep.subr.mxu0 0.0
  %9765 = vmatpush1.msra.mxu0 %v9513
  %9766 = vmatprep.subr.mxu0 0.0
  %9767 = vmatpush1.msra.mxu0 %v9514
  %9768 = vmatprep.subr.mxu0 0.0
  %9769 = vmatpush1.msra.mxu0 %v9515
  %9770 = vmatprep.subr.mxu0 0.0
  %9771 = vmatpush1.msra.mxu0 %v9516
  %9772 = vmatprep.subr.mxu0 0.0
  %9773 = vmatpush1.msra.mxu0 %v9517
  %9774 = vmatprep.subr.mxu0 0.0
  %9775 = vmatpush1.msra.mxu0 %v9518
  %9776 = vmatprep.subr.mxu0 0.0
  %9777 = vmatpush1.msra.mxu0 %v9519
  %9778 = vmatprep.subr.mxu0 0.0
  %9779 = vmatpush1.msra.mxu0 %v9520
  %9780 = vmatprep.subr.mxu0 0.0
  %9781 = vmatpush1.msra.mxu0 %v9521
  %9782 = vmatprep.subr.mxu0 0.0
  %9783 = vmatpush1.msra.mxu0 %v9522
  %9784 = vmatprep.subr.mxu0 0.0
  %9785 = vmatpush1.msra.mxu0 %v9523
  %9786 = vmatprep.subr.mxu0 0.0
  %9787 = vmatpush1.msra.mxu0 %v9524
  %9788 = vmatprep.subr.mxu0 0.0
  %9789 = vmatpush1.msra.mxu0 %v9525
  %9790 = vmatprep.subr.mxu0 0.0
  %9791 = vmatpush1.msra.mxu0 %v9526
  %9792 = vmatprep.subr.mxu0 0.0
  %9793 = vmatpush1.msra.mxu0 %v9527
  %9794 = vmatprep.subr.mxu0 0.0
  %9795 = vmatpush1.msra.mxu0 %v9528
  %9796 = vmatprep.subr.mxu0 0.0
  %9797 = vmatpush1.msra.mxu0 %v9529
  %9798 = vmatprep.subr.mxu0 0.0
  %9799 = vmatpush1.msra.mxu0 %v9530
  %9800 = vmatprep.subr.mxu0 0.0
  %9801 = vmatpush1.msra.mxu0 %v9531
  %9802 = vmatprep.subr.mxu0 0.0
  %9803 = vmatpush1.msra.mxu0 %v9532
  %9804 = vmatprep.subr.mxu0 0.0
  %9805 = vmatpush1.msra.mxu0 %v9533
  %9806 = vmatprep.subr.mxu0 0.0
  %9807 = vmatpush1.msra.mxu0 %v9534
  %9808 = vmatprep.subr.mxu0 0.0
  %9809 = vmatpush1.msra.mxu0 %v9535
  %9810 = vmatprep.subr.mxu0 0.0
  %9811 = vmatpush1.msra.mxu0 %v9536
  %9812 = vmatprep.subr.mxu0 0.0
  %9813 = vmatpush1.msra.mxu0 %v9537
  %9814 = vmatprep.mubr.f32.mxu0 %v1270
  %9815 = vmatmul.mubr.f32.gmra.mrb[0].mxu0 %v1269
  %v9816 = vpop.f32.mrb[0].mxu0
  %v9817 = vadd.f32 %v9672, %v9816
  %v9818 = vpop.f32.mrb[0].mxu0
  %9819 = vmatprep.mubr.f32.mxu0 %v1275
  %9820 = vmatmul.mubr.f32.gmra.mrb[0].mxu0 %v1274
  %v9821 = vpop.f32.mrb[0].mxu0
  %v9822 = vadd.f32 %v9677, %v9821
  %v9823 = vpop.f32.mrb[0].mxu0
  %9824 = vmatprep.mubr.f32.mxu0 %v2441
  %9825 = vmatmul.mubr.f32.gmra.mrb[0].mxu0 %v2440
  %v9826 = vpop.f32.mrb[0].mxu0
  %v9827 = vadd.f32 %v9682, %v9826
  %v9828 = vpop.f32.mrb[0].mxu0
  %9829 = vmatprep.mubr.f32.mxu0 %v2446
  %9830 = vmatmul.mubr.f32.gmra.mrb[0].mxu0 %v2445
  %v9831 = vpop.f32.mrb[0].mxu0
  %v9832 = vadd.f32 %v9687, %v9831
  %v9833 = vpop.f32.mrb[0].mxu0
  %9834 = vmatprep.mubr.f32.mxu0 %v3612
  %9835 = vmatmul.mubr.f32.gmra.mrb[0].mxu0 %v3611
  %v9836 = vpop.f32.mrb[0].mxu0
  %v9837 = vadd.f32 %v9692, %v9836
  %v9838 = vpop.f32.mrb[0].mxu0
  %9839 = vmatprep.mubr.f32.mxu0 %v3617
  %9840 = vmatmul.mubr.f32.gmra.mrb[0].mxu0 %v3616
  %v9841 = vpop.f32.mrb[0].mxu0
  %v9842 = vadd.f32 %v9697, %v9841
  %v9843 = vpop.f32.mrb[0].mxu0
  %9844 = vmatprep.mubr.f32.mxu0 %v4783
  %9845 = vmatmul.mubr.f32.gmra.mrb[0].mxu0 %v4782
  %v9846 = vpop.f32.mrb[0].mxu0
  %v9847 = vadd.f32 %v9702, %v9846
  %v9848 = vpop.f32.mrb[0].mxu0
  %9849 = vmatprep.mubr.f32.mxu0 %v4788
  %9850 = vmatmul.mubr.f32.gmra.mrb[0].mxu0 %v4787
  %v9851 = vpop.f32.mrb[0].mxu0
  %v9852 = vadd.f32 %v9707, %v9851
  %v9853 = vpop.f32.mrb[0].mxu0
  %9854 = vmatprep.mubr.f32.mxu0 %v5954
  %9855 = vmatmul.mubr.f32.gmra.mrb[0].mxu0 %v5953
  %v9856 = vpop.f32.mrb[0].mxu0
  %v9857 = vadd.f32 %v9712, %v9856
  %v9858 = vpop.f32.mrb[0].mxu0
  %9859 = vmatprep.mubr.f32.mxu0 %v5959
  %9860 = vmatmul.mubr.f32.gmra.mrb[0].mxu0 %v5958
  %v9861 = vpop.f32.mrb[0].mxu0
  %v9862 = vadd.f32 %v9717, %v9861
  %v9863 = vpop.f32.mrb[0].mxu0
  %9864 = vmatprep.mubr.f32.mxu0 %v7125
  %9865 = vmatmul.mubr.f32.gmra.mrb[0].mxu0 %v7124
  %v9866 = vpop.f32.mrb[0].mxu0
  %v9867 = vadd.f32 %v9722, %v9866
  %v9868 = vpop.f32.mrb[0].mxu0
  %9869 = vmatprep.mubr.f32.mxu0 %v7130
  %9870 = vmatmul.mubr.f32.gmra.mrb[0].mxu0 %v7129
  %v9871 = vpop.f32.mrb[0].mxu0
  %v9872 = vadd.f32 %v9727, %v9871
  %v9873 = vpop.f32.mrb[0].mxu0
  %9874 = vmatprep.mubr.f32.mxu0 %v8296
  %9875 = vmatmul.mubr.f32.gmra.mrb[0].mxu0 %v8295
  %v9876 = vpop.f32.mrb[0].mxu0
  %v9877 = vadd.f32 %v9732, %v9876
  %v9878 = vpop.f32.mrb[0].mxu0
  %9879 = vmatprep.mubr.f32.mxu0 %v8301
  %9880 = vmatmul.mubr.f32.gmra.mrb[0].mxu0 %v8300
  %v9881 = vpop.f32.mrb[0].mxu0
  %v9882 = vadd.f32 %v9737, %v9881
  %v9883 = vpop.f32.mrb[0].mxu0
  %9884 = vmatprep.mubr.f32.mxu0 %v9467
  %9885 = vmatmul.mubr.f32.gmra.mrb[0].mxu0 %v9466
  %v9886 = vpop.f32.mrb[0].mxu0
  %v9887 = vadd.f32 %v9742, %v9886
  %v9888 = vpop.f32.mrb[0].mxu0
  %9889 = vmatprep.mubr.f32.mxu0 %v9472
  %9890 = vmatmul.mubr.f32.gmra.mrb[0].mxu0 %v9471
  %v9891 = vpop.f32.mrb[0].mxu0
  %v9892 = vadd.f32 %v9747, %v9891
  %v9893 = vpop.f32.mrb[0].mxu0
  %9894 = vdwg.mxu0
  %9895 = vmatprep.subr.mxu0 0.0
  %9896 = vmatpush1.msra.mxu0 %v9538
  %9897 = vmatprep.subr.mxu0 0.0
  %9898 = vmatpush1.msra.mxu0 %v9539
  %9899 = vmatprep.subr.mxu0 0.0
  %9900 = vmatpush1.msra.mxu0 %v9540
  %9901 = vmatprep.subr.mxu0 0.0
  %9902 = vmatpush1.msra.mxu0 %v9541
  %9903 = vmatprep.subr.mxu0 0.0
  %9904 = vmatpush1.msra.mxu0 %v9542
  %9905 = vmatprep.subr.mxu0 0.0
  %9906 = vmatpush1.msra.mxu0 %v9543
  %9907 = vmatprep.subr.mxu0 0.0
  %9908 = vmatpush1.msra.mxu0 %v9544
  %9909 = vmatprep.subr.mxu0 0.0
  %9910 = vmatpush1.msra.mxu0 %v9545
  %9911 = vmatprep.subr.mxu0 0.0
  %9912 = vmatpush1.msra.mxu0 %v9546
  %9913 = vmatprep.subr.mxu0 0.0
  %9914 = vmatpush1.msra.mxu0 %v9547
  %9915 = vmatprep.subr.mxu0 0.0
  %9916 = vmatpush1.msra.mxu0 %v9548
  %9917 = vmatprep.subr.mxu0 0.0
  %9918 = vmatpush1.msra.mxu0 %v9549
  %9919 = vmatprep.subr.mxu0 0.0
  %9920 = vmatpush1.msra.mxu0 %v9550
  %9921 = vmatprep.subr.mxu0 0.0
  %9922 = vmatpush1.msra.mxu0 %v9603
  %9923 = vmatprep.subr.mxu0 0.0
  %9924 = vmatpush1.msra.mxu0 0.0
  %9925 = vmatprep.subr.mxu0 0.0
  %9926 = vmatpush1.msra.mxu0 0.0
  %9927 = vmatprep.subr.mxu0 0.0
  %9928 = vmatpush1.msra.mxu0 0.0
  %9929 = vmatprep.subr.mxu0 0.0
  %9930 = vmatpush1.msra.mxu0 0.0
  %9931 = vmatprep.subr.mxu0 0.0
  %9932 = vmatpush1.msra.mxu0 0.0
  %9933 = vmatprep.subr.mxu0 0.0
  %9934 = vmatpush1.msra.mxu0 0.0
  %9935 = vmatprep.subr.mxu0 0.0
  %9936 = vmatpush1.msra.mxu0 0.0
  %9937 = vmatprep.subr.mxu0 0.0
  %9938 = vmatpush1.msra.mxu0 0.0
  %9939 = vmatprep.subr.mxu0 0.0
  %9940 = vmatpush1.msra.mxu0 0.0
  %9941 = vmatprep.subr.mxu0 0.0
  %9942 = vmatpush1.msra.mxu0 0.0
  %9943 = vmatprep.subr.mxu0 0.0
  %9944 = vmatpush1.msra.mxu0 0.0
  %9945 = vmatprep.subr.mxu0 0.0
  %9946 = vmatpush1.msra.mxu0 0.0
  %9947 = vmatprep.subr.mxu0 0.0
  %9948 = vmatpush1.msra.mxu0 0.0
  %9949 = vmatprep.subr.mxu0 0.0
  %9950 = vmatpush1.msra.mxu0 0.0
  %9951 = vmatprep.subr.mxu0 0.0
  %9952 = vmatpush1.msra.mxu0 0.0
  %9953 = vmatprep.subr.mxu0 0.0
  %9954 = vmatpush1.msra.mxu0 0.0
  %9955 = vmatprep.subr.mxu0 0.0
  %9956 = vmatpush1.msra.mxu0 0.0
  %9957 = vmatprep.subr.mxu0 0.0
  %9958 = vmatpush1.msra.mxu0 0.0
  %9959 = vmatprep.mubr.f32.mxu0 0.0
  %9960 = vmatmul.mubr.f32.gmra.mrb[0].mxu0 %v9554
  %v9961 = vpop.f32.mrb[0].mxu0
  %v9962 = vadd.f32 %v9817, %v9961
  %v9963 = vpop.f32.mrb[0].mxu0
  %9964 = vmatprep.mubr.f32.mxu0 0.0
  %9965 = vmatmul.mubr.f32.gmra.mrb[0].mxu0 %v9557
  %v9966 = vpop.f32.mrb[0].mxu0
  %v9967 = vadd.f32 %v9822, %v9966
  %v9968 = vpop.f32.mrb[0].mxu0
  %9969 = vmatprep.mubr.f32.mxu0 0.0
  %9970 = vmatmul.mubr.f32.gmra.mrb[0].mxu0 %v9560
  %v9971 = vpop.f32.mrb[0].mxu0
  %v9972 = vadd.f32 %v9827, %v9971
  %v9973 = vpop.f32.mrb[0].mxu0
  %9974 = vmatprep.mubr.f32.mxu0 0.0
  %9975 = vmatmul.mubr.f32.gmra.mrb[0].mxu0 %v9563
  %v9976 = vpop.f32.mrb[0].mxu0
  %v9977 = vadd.f32 %v9832, %v9976
  %v9978 = vpop.f32.mrb[0].mxu0
  %9979 = vmatprep.mubr.f32.mxu0 0.0
  %9980 = vmatmul.mubr.f32.gmra.mrb[0].mxu0 %v9566
  %v9981 = vpop.f32.mrb[0].mxu0
  %v9982 = vadd.f32 %v9837, %v9981
  %v9983 = vpop.f32.mrb[0].mxu0
  %9984 = vmatprep.mubr.f32.mxu0 0.0
  %9985 = vmatmul.mubr.f32.gmra.mrb[0].mxu0 %v9569
  %v9986 = vpop.f32.mrb[0].mxu0
  %v9987 = vadd.f32 %v9842, %v9986
  %v9988 = vpop.f32.mrb[0].mxu0
  %9989 = vmatprep.mubr.f32.mxu0 0.0
  %9990 = vmatmul.mubr.f32.gmra.mrb[0].mxu0 %v9572
  %v9991 = vpop.f32.mrb[0].mxu0
  %v9992 = vadd.f32 %v9847, %v9991
  %v9993 = vpop.f32.mrb[0].mxu0
  %9994 = vmatprep.mubr.f32.mxu0 0.0
  %9995 = vmatmul.mubr.f32.gmra.mrb[0].mxu0 %v9575
  %v9996 = vpop.f32.mrb[0].mxu0
  %v9997 = vadd.f32 %v9852, %v9996
  %v9998 = vpop.f32.mrb[0].mxu0
  %9999 = vmatprep.mubr.f32.mxu0 0.0
  %10000 = vmatmul.mubr.f32.gmra.mrb[0].mxu0 %v9578
  %v10001 = vpop.f32.mrb[0].mxu0
  %v10002 = vadd.f32 %v9857, %v10001
  %v10003 = vpop.f32.mrb[0].mxu0
  %10004 = vmatprep.mubr.f32.mxu0 0.0
  %10005 = vmatmul.mubr.f32.gmra.mrb[0].mxu0 %v9581
  %v10006 = vpop.f32.mrb[0].mxu0
  %v10007 = vadd.f32 %v9862, %v10006
  %v10008 = vpop.f32.mrb[0].mxu0
  %10009 = vmatprep.mubr.f32.mxu0 0.0
  %10010 = vmatmul.mubr.f32.gmra.mrb[0].mxu0 %v9584
  %v10011 = vpop.f32.mrb[0].mxu0
  %v10012 = vadd.f32 %v9867, %v10011
  %v10013 = vpop.f32.mrb[0].mxu0
  %10014 = vmatprep.mubr.f32.mxu0 0.0
  %10015 = vmatmul.mubr.f32.gmra.mrb[0].mxu0 %v9587
  %v10016 = vpop.f32.mrb[0].mxu0
  %v10017 = vadd.f32 %v9872, %v10016
  %v10018 = vpop.f32.mrb[0].mxu0
  %10019 = vmatprep.mubr.f32.mxu0 0.0
  %10020 = vmatmul.mubr.f32.gmra.mrb[0].mxu0 %v9590
  %v10021 = vpop.f32.mrb[0].mxu0
  %v10022 = vadd.f32 %v9877, %v10021
  %v10023 = vpop.f32.mrb[0].mxu0
  %10024 = vmatprep.mubr.f32.mxu0 0.0
  %10025 = vmatmul.mubr.f32.gmra.mrb[0].mxu0 %v9593
  %v10026 = vpop.f32.mrb[0].mxu0
  %v10027 = vadd.f32 %v9882, %v10026
  %v10028 = vpop.f32.mrb[0].mxu0
  %10029 = vmatprep.mubr.f32.mxu0 0.0
  %10030 = vmatmul.mubr.f32.gmra.mrb[0].mxu0 %v9596
  %v10031 = vpop.f32.mrb[0].mxu0
  %v10032 = vadd.f32 %v9887, %v10031
  %v10033 = vpop.f32.mrb[0].mxu0
  %10034 = vmatprep.mubr.f32.mxu0 0.0
  %10035 = vmatmul.mubr.f32.gmra.mrb[0].mxu0 %v9599
  %v10036 = vpop.f32.mrb[0].mxu0
  %v10037 = vadd.f32 %v9892, %v10036
  %v10038 = vpop.f32.mrb[0].mxu0
  %10039 = vdwg.mxu0
  %vm10040 = vcmask 293888
  %10041 = vst.msk [vmem:[%s7] sm:$0xff] %vm10040, %v9962
  %10042 = vst.msk [vmem:[%s7 + $0x8] sm:$0xff] %vm10040, %v9967
  %s10043 = scalar_lea.vmem %s7, 16
  %10044 = vst.msk [vmem:[%s10043] sm:$0xff] %vm10040, %v9972
  %10045 = vst.msk [vmem:[%s10043 + $0x8] sm:$0xff] %vm10040, %v9977
  %s10046 = scalar_lea.vmem %s7, 32
  %10047 = vst.msk [vmem:[%s10046] sm:$0xff] %vm10040, %v9982
  %10048 = vst.msk [vmem:[%s10046 + $0x8] sm:$0xff] %vm10040, %v9987
  %s10049 = scalar_lea.vmem %s7, 48
  %10050 = vst.msk [vmem:[%s10049] sm:$0xff] %vm10040, %v9992
  %10051 = vst.msk [vmem:[%s10049 + $0x8] sm:$0xff] %vm10040, %v9997
  %s10052 = scalar_lea.vmem %s7, 64
  %10053 = vst.msk [vmem:[%s10052] sm:$0xff] %vm10040, %v10002
  %10054 = vst.msk [vmem:[%s10052 + $0x8] sm:$0xff] %vm10040, %v10007
  %s10055 = scalar_lea.vmem %s7, 80
  %10056 = vst.msk [vmem:[%s10055] sm:$0xff] %vm10040, %v10012
  %10057 = vst.msk [vmem:[%s10055 + $0x8] sm:$0xff] %vm10040, %v10017
  %s10058 = scalar_lea.vmem %s7, 96
  %10059 = vst.msk [vmem:[%s10058] sm:$0xff] %vm10040, %v10022
  %10060 = vst.msk [vmem:[%s10058 + $0x8] sm:$0xff] %vm10040, %v10027
  %s10061 = scalar_lea.vmem %s7, 112
  %10062 = vst.msk [vmem:[%s10061] sm:$0xff] %vm10040, %v10032
  %10063 = vst.msk [vmem:[%s10061 + $0x8] sm:$0xff] %vm10040, %v10037
  // Predicated region
  $region30: #{network_forward.2} parent=0 // pred_check
    _
  $region31: #{network_forward.2} parent=0 // pred_check_branch
    %10065 = sbr.rel (0) target = $region33
  $region32: #{network_forward.2} parent=0 // pred_region
    _
  $region33: #{network_forward.2} parent=0 // pred_fallthru
    _
  // Predicated region
  $region34: #{network_forward.2} parent=0 // pred_check
    _
  $region35: #{network_forward.2} parent=0 // pred_check_branch
    %10067 = sbr.rel (0) target = $region37
  $region36: #{network_forward.2} parent=0 // pred_region
    _
  $region37: #{network_forward.2} parent=0 // pred_fallthru
    _

</llo_original>
